<compile_context>
chip_gen: v6e
topology: v6e:2x2x1
jax: 0.10.0
libtpu: 0.0.40
codegen_flags: <defaults>
</compile_context>

<pallas_src>
import jax
import jax.numpy as jnp
from jax import lax
from jax.experimental import pallas as pl
from jax.experimental.pallas import tpu as pltpu

EXPANSION = 4
EPS = 1e-5
LANE = 128
SUBLANE = 8


def _round_up(x, m):
    return (x + m - 1) // m * m


def _bottleneck_kernel(xp_ref, id_ref, mask_ref,
                       w1_ref, s1_ref, b1_ref,
                       w2_ref, s2_ref, b2_ref,
                       w3_ref, s3_ref, b3_ref,
                       o_ref):
    # xp_ref  : (NB, H+2, Wp, Cip)  spatially + channel padded input, bf16
    # id_ref  : (NB, H,  Wr, Cep)   identity (channel/width padded), bf16
    # mask_ref: (1,  H+2, Wp, Cp)   conv2 zero-padding mask, f32 (grid-invariant)
    # o_ref   : (NB, H,  Wr, Cep)
    NB, Hp, Wp, Cip = xp_ref.shape
    _, H, Wr, Cep = o_ref.shape
    Cp = w1_ref.shape[1]

    # ---- conv1 (1x1) + BN1 + ReLU: one MXU matmul over all padded pixels ----
    x2d = xp_ref[...].reshape(NB * Hp * Wp, Cip)
    y1 = jnp.dot(x2d, w1_ref[...], preferred_element_type=jnp.float32)
    y1 = jnp.maximum(y1 * s1_ref[...] + b1_ref[...], 0.0)
    # Zero conv2's padding positions (PyTorch zero-pads conv2's *input*).
    # The mask is a grid-invariant input -> a single VPU multiply per step.
    y1 = (y1.reshape(NB, Hp, Wp, Cp) * mask_ref[...]).astype(jnp.bfloat16)

    # ---- conv2 (3x3, stride=1, pad=1) as one im2col matmul (K = 9*Cp) -------
    # Only 3 sublane-shifted (dx) copies; dy slices are along a major axis.
    shifted = [y1[:, :, dx:dx + Wr, :] for dx in range(3)]
    patches = [shifted[dx][:, dy:dy + H, :, :]
               for dy in range(3) for dx in range(3)]           # (ky, kx) order
    im2col = jnp.concatenate(patches, axis=-1).reshape(NB * H * Wr, 9 * Cp)
    y2 = jnp.dot(im2col, w2_ref[...], preferred_element_type=jnp.float32)
    y2 = jnp.maximum(y2 * s2_ref[...] + b2_ref[...], 0.0).astype(jnp.bfloat16)

    # ---- conv3 (1x1) + BN3 ---------------------------------------------------
    y3 = jnp.dot(y2, w3_ref[...], preferred_element_type=jnp.float32)
    y3 = (y3 * s3_ref[...] + b3_ref[...]).reshape(NB, H, Wr, Cep)

    # ---- residual add + ReLU -------------------------------------------------
    o_ref[...] = jnp.maximum(y3 + id_ref[...].astype(jnp.float32),
                             0.0).astype(o_ref.dtype)


def bottleneck2d_pallas(x, w1, s1, b1, w2, s2, b2, w3, s3, b3,
                        *, out_dtype=jnp.float32, min_mxu_rows=256):
    """x: (N, H, W, Cin) NHWC f32.  w1:(Cin,C), w2:(3,3,C,C) HWIO, w3:(C,Ce).
    s*/b*: folded eval-mode BN scale/bias.  Returns (N, H, W, Ce) out_dtype."""
    N, H, W, Cin = x.shape
    C = w1.shape[1]
    Ce = w3.shape[1]
    assert Cin == Ce == EXPANSION * C, "stride=1 / downsample=None config only"

    Cp = _round_up(C, LANE)
    Cip = _round_up(Cin, LANE)
    Cep = _round_up(Ce, LANE)
    Wr = _round_up(W, SUBLANE)          # sublane-aligned compute / store width
    Wp = _round_up(Wr + 2, SUBLANE)     # padded input width (>= Wr + 2)
    Hp = H + 2

    # Batch tile: fold images so each MXU call sees >= min_mxu_rows rows
    # (matters for 7x7 / 14x14 late-ResNet stages on the 256-wide MXU).
    NB = 1
    while NB < N and NB * H * Wr < min_mxu_rows:
        NB += 1
    while N % NB:
        NB -= 1

    bf, f32 = jnp.bfloat16, jnp.float32

    # -------- operand preparation (layout plumbing, outside the kernel) ------
    xp = jnp.pad(x, ((0, 0), (1, 1), (1, Wp - W - 1), (0, Cip - Cin))).astype(bf)
    ident = jnp.pad(x, ((0, 0), (0, 0), (0, Wr - W), (0, Cep - Cin))).astype(bf)

    mask = jnp.zeros((Hp, Wp), f32).at[1:H + 1, 1:W + 1].set(1.0)
    mask = jnp.broadcast_to(mask[None, :, :, None], (1, Hp, Wp, Cp))

    w1p = jnp.pad(w1, ((0, Cip - Cin), (0, Cp - C))).astype(bf)
    w2p = jnp.pad(w2, ((0, 0), (0, 0), (0, Cp - C), (0, Cp - C)))
    w2p = w2p.reshape(9 * Cp, Cp).astype(bf)   # rows (ky, kx, cin) = im2col order
    w3p = jnp.pad(w3, ((0, Cp - C), (0, Cep - Ce))).astype(bf)

    pad_c = lambda v, cp: jnp.pad(v.reshape(1, -1).astype(f32),
                                  ((0, 0), (0, cp - v.size)))
    s1p, b1p = pad_c(s1, Cp), pad_c(b1, Cp)
    s2p, b2p = pad_c(s2, Cp), pad_c(b2, Cp)
    s3p, b3p = pad_c(s3, Cep), pad_c(b3, Cep)

    # -------- explicit VMEM budget + cost estimate ----------------------------
    out_isz = jnp.dtype(out_dtype).itemsize
    blk = 2 * (NB * Hp * Wp * Cip * 2 + NB * H * Wr * Cep * 2
               + NB * H * Wr * Cep * out_isz)
    consts = (Cip * Cp + 9 * Cp * Cp + Cp * Cep) * 2 + Hp * Wp * Cp * 4 \
             + 6 * LANE * 4
    interm = NB * Hp * Wp * Cp * 6 \
             + NB * H * Wr * (9 * Cp * 2 + Cp * 6 + Cep * 4)
    vmem_limit = int(min(max(2 * (blk + consts + interm), 16 << 20), 64 << 20))

    m1, m2 = N * Hp * Wp, N * H * Wr
    flops = 2 * m1 * Cip * Cp + 2 * m2 * 9 * Cp * Cp + 2 * m2 * Cp * Cep
    bytes_accessed = (xp.size + ident.size + w1p.size + w2p.size + w3p.size) * 2 \
                     + mask.size * 4 + N * H * Wr * Cep * out_isz
    cost = pl.CostEstimate(flops=int(flops), transcendentals=0,
                           bytes_accessed=int(bytes_accessed))

    grid = (N // NB,)

    def run(single_buffer_invariants):
        pipe_kwargs = ({"pipeline_mode": pl.Buffered(1)}
                       if single_buffer_invariants else {})

        def invariant(shape):
            # Never re-DMA'd across the grid -> single buffer is pure VMEM savings.
            return pl.BlockSpec(shape, lambda n: (0,) * len(shape), **pipe_kwargs)

        in_specs = [
            pl.BlockSpec((NB, Hp, Wp, Cip), lambda n: (n, 0, 0, 0)),   # xp
            pl.BlockSpec((NB, H, Wr, Cep), lambda n: (n, 0, 0, 0)),    # identity
            invariant((1, Hp, Wp, Cp)),                                # mask
            invariant((Cip, Cp)), invariant((1, Cp)), invariant((1, Cp)),
            invariant((9 * Cp, Cp)), invariant((1, Cp)), invariant((1, Cp)),
            invariant((Cp, Cep)), invariant((1, Cep)), invariant((1, Cep)),
        ]
        out_specs = pl.BlockSpec((NB, H, Wr, Cep), lambda n: (n, 0, 0, 0))

        return pl.pallas_call(
            _bottleneck_kernel,
            out_shape=jax.ShapeDtypeStruct((N, H, Wr, Cep), out_dtype),
            grid_spec=pltpu.PrefetchScalarGridSpec(
                num_scalar_prefetch=0, grid=grid,
                in_specs=in_specs, out_specs=out_specs),
            compiler_params=pltpu.CompilerParams(
                dimension_semantics=("parallel",),       # batch axis -> megacore
                vmem_limit_bytes=vmem_limit),
            cost_estimate=cost,
        )(xp, ident, mask, w1p, s1p, b1p, w2p, s2p, b2p, w3p, s3p, b3p)

    try:
        out = run(True)
    except Exception:   # jax without BlockSpec.pipeline_mode / Buffered(1)
        out = run(False)

    return out[:, :, :W, :Ce]


# ------------------------- pure-JAX reference -------------------------------
def bottleneck2d_ref(x, w1, s1, b1, w2, s2, b2, w3, s3, b3):
    """Mirrors the kernel's bf16-operand / f32-accumulate math."""
    dn = ('NHWC', 'HWIO', 'NHWC')

    def conv(inp, w_hwio, pad):
        return lax.conv_general_dilated(inp, w_hwio, window_strides=(1, 1),
                                        padding=pad, dimension_numbers=dn,
                                        preferred_element_type=jnp.float32)

    Cin, C = w1.shape
    Ce = w3.shape[1]
    bf = jnp.bfloat16
    xb = x.astype(bf)
    identity = xb.astype(jnp.float32)
    y = conv(xb, w1.reshape(1, 1, Cin, C).astype(bf), 'VALID')
    y = jnp.maximum(y * s1.reshape(1, 1, 1, C) + b1.reshape(1, 1, 1, C), 0.0).astype(bf)
    y = conv(y, w2.astype(bf), 'SAME')
    y = jnp.maximum(y * s2.reshape(1, 1, 1, C) + b2.reshape(1, 1, 1, C), 0.0).astype(bf)
    y = conv(y, w3.reshape(1, 1, C, Ce).astype(bf), 'VALID')
    y = y * s3.reshape(1, 1, 1, Ce) + b3.reshape(1, 1, 1, Ce)
    return jnp.maximum(y + identity, 0.0)


def _fold_bn(gamma, beta, mean, var):
    scale = gamma / jnp.sqrt(var + EPS)
    bias = beta - mean * scale
    return scale.reshape(1, -1), bias.reshape(1, -1)


if __name__ == "__main__":
    # Bottleneck2d(in_channels=16, out_channels=4, downsample=None, stride=1)
    N, H, W = 2, 16, 16
    out_channels = 4
    in_channels = out_channels * EXPANSION      # 16
    Ce = out_channels * EXPANSION               # 16

    key = jax.random.PRNGKey(0)
    ks = jax.random.split(key, 16)

    x = jax.random.normal(ks[0], (N, H, W, in_channels), jnp.float32)

    # conv weights in NHWC-friendly layouts
    w1 = jax.random.normal(ks[1], (in_channels, out_channels), jnp.float32) * 0.1
    w2 = jax.random.normal(ks[2], (3, 3, out_channels, out_channels), jnp.float32) * 0.1
    w3 = jax.random.normal(ks[3], (out_channels, Ce), jnp.float32) * 0.1

    # BatchNorm params (eval mode), folded to per-channel scale/bias
    def bn_params(kg, kb, km, kv, c):
        gamma = jax.random.uniform(kg, (c,), jnp.float32, 0.5, 1.5)
        beta = jax.random.normal(kb, (c,), jnp.float32) * 0.1
        mean = jax.random.normal(km, (c,), jnp.float32) * 0.1
        var = jax.random.uniform(kv, (c,), jnp.float32, 0.5, 1.5)
        return _fold_bn(gamma, beta, mean, var)

    s1, b1 = bn_params(ks[4], ks[5], ks[6], ks[7], out_channels)
    s2, b2 = bn_params(ks[8], ks[9], ks[10], ks[11], out_channels)
    s3, b3 = bn_params(ks[12], ks[13], ks[14], ks[15], Ce)

    out = bottleneck2d_pallas(x, w1, s1, b1, w2, s2, b2, w3, s3, b3)
    out = jax.block_until_ready(out)

    ref = bottleneck2d_ref(x, w1, s1, b1, w2, s2, b2, w3, s3, b3)
    assert out.shape == (N, H, W, Ce)
    assert jnp.allclose(out, ref, rtol=2e-2, atol=2e-2), "mismatch vs JAX reference"

    print("KERNEL_OK")
</pallas_src>

<mosaic_0001>
module attributes {stable_mosaic.version = 11 : i64} {
  func.func @_bottleneck_kernel(%arg0: i32, %arg1: memref<1x18x24x128xbf16, #tpu.memory_space<vmem>>, %arg2: memref<1x16x16x128xbf16, #tpu.memory_space<vmem>>, %arg3: memref<1x18x24x128xf32, #tpu.memory_space<vmem>>, %arg4: memref<128x128xbf16, #tpu.memory_space<vmem>>, %arg5: memref<1x128xf32, #tpu.memory_space<vmem>>, %arg6: memref<1x128xf32, #tpu.memory_space<vmem>>, %arg7: memref<1152x128xbf16, #tpu.memory_space<vmem>>, %arg8: memref<1x128xf32, #tpu.memory_space<vmem>>, %arg9: memref<1x128xf32, #tpu.memory_space<vmem>>, %arg10: memref<128x128xbf16, #tpu.memory_space<vmem>>, %arg11: memref<1x128xf32, #tpu.memory_space<vmem>>, %arg12: memref<1x128xf32, #tpu.memory_space<vmem>>, %arg13: memref<1x16x16x128xf32, #tpu.memory_space<vmem>>) attributes {dimension_semantics = [#tpu.dimension_semantics<parallel>], iteration_bounds = array<i64: 2>, scalar_prefetch = 0 : i64, scratch_operands = 0 : i64, tpu.core_type = #tpu.core_type<tc>, window_params = [{transform_indices = @transform_0, window_bounds = array<i64: 1, 18, 24, 128>}, {transform_indices = @transform_1, window_bounds = array<i64: 1, 16, 16, 128>}, {pipeline_mode = #tpu.pipeline_mode<synchronous>, transform_indices = @transform_2, window_bounds = array<i64: 1, 18, 24, 128>}, {pipeline_mode = #tpu.pipeline_mode<synchronous>, transform_indices = @transform_3, window_bounds = array<i64: 128, 128>}, {pipeline_mode = #tpu.pipeline_mode<synchronous>, transform_indices = @transform_4, window_bounds = array<i64: 1, 128>}, {pipeline_mode = #tpu.pipeline_mode<synchronous>, transform_indices = @transform_5, window_bounds = array<i64: 1, 128>}, {pipeline_mode = #tpu.pipeline_mode<synchronous>, transform_indices = @transform_6, window_bounds = array<i64: 1152, 128>}, {pipeline_mode = #tpu.pipeline_mode<synchronous>, transform_indices = @transform_7, window_bounds = array<i64: 1, 128>}, {pipeline_mode = #tpu.pipeline_mode<synchronous>, transform_indices = @transform_8, window_bounds = array<i64: 1, 128>}, {pipeline_mode = #tpu.pipeline_mode<synchronous>, transform_indices = @transform_9, window_bounds = array<i64: 128, 128>}, {pipeline_mode = #tpu.pipeline_mode<synchronous>, transform_indices = @transform_10, window_bounds = array<i64: 1, 128>}, {pipeline_mode = #tpu.pipeline_mode<synchronous>, transform_indices = @transform_11, window_bounds = array<i64: 1, 128>}, {transform_indices = @transform_12, window_bounds = array<i64: 1, 16, 16, 128>}]} {
    %c0 = arith.constant 0 : index
    %c0_0 = arith.constant 0 : index
    %c0_1 = arith.constant 0 : index
    %c0_2 = arith.constant 0 : index
    %0 = vector.load %arg1[%c0, %c0_0, %c0_1, %c0_2] : memref<1x18x24x128xbf16, #tpu.memory_space<vmem>>, vector<1x18x24x128xbf16>
    %1 = vector.shape_cast %0 : vector<1x18x24x128xbf16> to vector<432x128xbf16>
    %c0_3 = arith.constant 0 : index
    %c0_4 = arith.constant 0 : index
    %2 = vector.load %arg4[%c0_3, %c0_4] : memref<128x128xbf16, #tpu.memory_space<vmem>>, vector<128x128xbf16>
    %cst = arith.constant dense<0.000000e+00> : vector<432x128xf32>
    %3 = tpu.matmul %1, %2, %cst {dimension_numbers = #tpu.dot_dimension_numbers<[1], [0], [0], [1], [0, 0, 1, 1], [], []>} : vector<432x128xbf16>, vector<128x128xbf16>, vector<432x128xf32> -> vector<432x128xf32>
    %c0_5 = arith.constant 0 : index
    %c0_6 = arith.constant 0 : index
    %4 = vector.load %arg5[%c0_5, %c0_6] : memref<1x128xf32, #tpu.memory_space<vmem>>, vector<1x128xf32>
    %5 = vector.broadcast %4 : vector<1x128xf32> to vector<432x128xf32>
    %6 = arith.mulf %3, %5 : vector<432x128xf32>
    %c0_7 = arith.constant 0 : index
    %c0_8 = arith.constant 0 : index
    %7 = vector.load %arg6[%c0_7, %c0_8] : memref<1x128xf32, #tpu.memory_space<vmem>>, vector<1x128xf32>
    %8 = vector.broadcast %7 : vector<1x128xf32> to vector<432x128xf32>
    %9 = arith.addf %6, %8 : vector<432x128xf32>
    %cst_9 = arith.constant 0.000000e+00 : f32
    %10 = vector.broadcast %cst_9 : f32 to vector<432x128xf32>
    %11 = arith.maximumf %9, %10 : vector<432x128xf32>
    %12 = vector.shape_cast %11 : vector<432x128xf32> to vector<1x18x24x128xf32>
    %c0_10 = arith.constant 0 : index
    %c0_11 = arith.constant 0 : index
    %c0_12 = arith.constant 0 : index
    %c0_13 = arith.constant 0 : index
    %13 = vector.load %arg3[%c0_10, %c0_11, %c0_12, %c0_13] : memref<1x18x24x128xf32, #tpu.memory_space<vmem>>, vector<1x18x24x128xf32>
    %14 = arith.mulf %12, %13 : vector<1x18x24x128xf32>
    %15 = arith.truncf %14 : vector<1x18x24x128xf32> to vector<1x18x24x128xbf16>
    %16 = vector.extract_strided_slice %15 {offsets = [0, 0, 0, 0], sizes = [1, 18, 16, 128], strides = [1, 1, 1, 1]} : vector<1x18x24x128xbf16> to vector<1x18x16x128xbf16>
    %17 = vector.extract_strided_slice %15 {offsets = [0, 0, 1, 0], sizes = [1, 18, 16, 128], strides = [1, 1, 1, 1]} : vector<1x18x24x128xbf16> to vector<1x18x16x128xbf16>
    %18 = vector.extract_strided_slice %15 {offsets = [0, 0, 2, 0], sizes = [1, 18, 16, 128], strides = [1, 1, 1, 1]} : vector<1x18x24x128xbf16> to vector<1x18x16x128xbf16>
    %19 = vector.extract_strided_slice %16 {offsets = [0, 0, 0, 0], sizes = [1, 16, 16, 128], strides = [1, 1, 1, 1]} : vector<1x18x16x128xbf16> to vector<1x16x16x128xbf16>
    %20 = vector.extract_strided_slice %17 {offsets = [0, 0, 0, 0], sizes = [1, 16, 16, 128], strides = [1, 1, 1, 1]} : vector<1x18x16x128xbf16> to vector<1x16x16x128xbf16>
    %21 = vector.extract_strided_slice %18 {offsets = [0, 0, 0, 0], sizes = [1, 16, 16, 128], strides = [1, 1, 1, 1]} : vector<1x18x16x128xbf16> to vector<1x16x16x128xbf16>
    %22 = vector.extract_strided_slice %16 {offsets = [0, 1, 0, 0], sizes = [1, 16, 16, 128], strides = [1, 1, 1, 1]} : vector<1x18x16x128xbf16> to vector<1x16x16x128xbf16>
    %23 = vector.extract_strided_slice %17 {offsets = [0, 1, 0, 0], sizes = [1, 16, 16, 128], strides = [1, 1, 1, 1]} : vector<1x18x16x128xbf16> to vector<1x16x16x128xbf16>
    %24 = vector.extract_strided_slice %18 {offsets = [0, 1, 0, 0], sizes = [1, 16, 16, 128], strides = [1, 1, 1, 1]} : vector<1x18x16x128xbf16> to vector<1x16x16x128xbf16>
    %25 = vector.extract_strided_slice %16 {offsets = [0, 2, 0, 0], sizes = [1, 16, 16, 128], strides = [1, 1, 1, 1]} : vector<1x18x16x128xbf16> to vector<1x16x16x128xbf16>
    %26 = vector.extract_strided_slice %17 {offsets = [0, 2, 0, 0], sizes = [1, 16, 16, 128], strides = [1, 1, 1, 1]} : vector<1x18x16x128xbf16> to vector<1x16x16x128xbf16>
    %27 = vector.extract_strided_slice %18 {offsets = [0, 2, 0, 0], sizes = [1, 16, 16, 128], strides = [1, 1, 1, 1]} : vector<1x18x16x128xbf16> to vector<1x16x16x128xbf16>
    %28 = tpu.concatenate %19, %20, %21, %22, %23, %24, %25, %26, %27 in 3 : vector<1x16x16x128xbf16>, vector<1x16x16x128xbf16>, vector<1x16x16x128xbf16>, vector<1x16x16x128xbf16>, vector<1x16x16x128xbf16>, vector<1x16x16x128xbf16>, vector<1x16x16x128xbf16>, vector<1x16x16x128xbf16>, vector<1x16x16x128xbf16> -> vector<1x16x16x1152xbf16>
    %29 = vector.shape_cast %28 : vector<1x16x16x1152xbf16> to vector<256x1152xbf16>
    %c0_14 = arith.constant 0 : index
    %c0_15 = arith.constant 0 : index
    %30 = vector.load %arg7[%c0_14, %c0_15] : memref<1152x128xbf16, #tpu.memory_space<vmem>>, vector<1152x128xbf16>
    %cst_16 = arith.constant dense<0.000000e+00> : vector<256x128xf32>
    %31 = tpu.matmul %29, %30, %cst_16 {dimension_numbers = #tpu.dot_dimension_numbers<[1], [0], [0], [1], [0, 0, 1, 1], [], []>} : vector<256x1152xbf16>, vector<1152x128xbf16>, vector<256x128xf32> -> vector<256x128xf32>
    %c0_17 = arith.constant 0 : index
    %c0_18 = arith.constant 0 : index
    %32 = vector.load %arg8[%c0_17, %c0_18] : memref<1x128xf32, #tpu.memory_space<vmem>>, vector<1x128xf32>
    %33 = vector.broadcast %32 : vector<1x128xf32> to vector<256x128xf32>
    %34 = arith.mulf %31, %33 : vector<256x128xf32>
    %c0_19 = arith.constant 0 : index
    %c0_20 = arith.constant 0 : index
    %35 = vector.load %arg9[%c0_19, %c0_20] : memref<1x128xf32, #tpu.memory_space<vmem>>, vector<1x128xf32>
    %36 = vector.broadcast %35 : vector<1x128xf32> to vector<256x128xf32>
    %37 = arith.addf %34, %36 : vector<256x128xf32>
    %cst_21 = arith.constant 0.000000e+00 : f32
    %38 = vector.broadcast %cst_21 : f32 to vector<256x128xf32>
    %39 = arith.maximumf %37, %38 : vector<256x128xf32>
    %40 = arith.truncf %39 : vector<256x128xf32> to vector<256x128xbf16>
    %c0_22 = arith.constant 0 : index
    %c0_23 = arith.constant 0 : index
    %41 = vector.load %arg10[%c0_22, %c0_23] : memref<128x128xbf16, #tpu.memory_space<vmem>>, vector<128x128xbf16>
    %cst_24 = arith.constant dense<0.000000e+00> : vector<256x128xf32>
    %42 = tpu.matmul %40, %41, %cst_24 {dimension_numbers = #tpu.dot_dimension_numbers<[1], [0], [0], [1], [0, 0, 1, 1], [], []>} : vector<256x128xbf16>, vector<128x128xbf16>, vector<256x128xf32> -> vector<256x128xf32>
    %c0_25 = arith.constant 0 : index
    %c0_26 = arith.constant 0 : index
    %43 = vector.load %arg11[%c0_25, %c0_26] : memref<1x128xf32, #tpu.memory_space<vmem>>, vector<1x128xf32>
    %44 = vector.broadcast %43 : vector<1x128xf32> to vector<256x128xf32>
    %45 = arith.mulf %42, %44 : vector<256x128xf32>
    %c0_27 = arith.constant 0 : index
    %c0_28 = arith.constant 0 : index
    %46 = vector.load %arg12[%c0_27, %c0_28] : memref<1x128xf32, #tpu.memory_space<vmem>>, vector<1x128xf32>
    %47 = vector.broadcast %46 : vector<1x128xf32> to vector<256x128xf32>
    %48 = arith.addf %45, %47 : vector<256x128xf32>
    %49 = vector.shape_cast %48 : vector<256x128xf32> to vector<1x16x16x128xf32>
    %c0_29 = arith.constant 0 : index
    %c0_30 = arith.constant 0 : index
    %c0_31 = arith.constant 0 : index
    %c0_32 = arith.constant 0 : index
    %50 = vector.load %arg2[%c0_29, %c0_30, %c0_31, %c0_32] : memref<1x16x16x128xbf16, #tpu.memory_space<vmem>>, vector<1x16x16x128xbf16>
    %51 = arith.extf %50 : vector<1x16x16x128xbf16> to vector<1x16x16x128xf32>
    %52 = arith.addf %49, %51 : vector<1x16x16x128xf32>
    %cst_33 = arith.constant 0.000000e+00 : f32
    %53 = vector.broadcast %cst_33 : f32 to vector<1x16x16x128xf32>
    %54 = arith.maximumf %52, %53 : vector<1x16x16x128xf32>
    %c0_34 = arith.constant 0 : index
    %c0_35 = arith.constant 0 : index
    %c0_36 = arith.constant 0 : index
    %c0_37 = arith.constant 0 : index
    %55 = vector.load %arg13[%c0_34, %c0_35, %c0_36, %c0_37] : memref<1x16x16x128xf32, #tpu.memory_space<vmem>>, vector<1x16x16x128xf32>
    tpu.vector_store %arg13[%c0_34, %c0_35, %c0_36, %c0_37], %54 {strides = array<i32>} : memref<1x16x16x128xf32, #tpu.memory_space<vmem>>, vector<1x16x16x128xf32>,
    return
  }
  func.func @transform_0(%arg0: i32) -> (i32, i32, i32, i32) {
    %c0_i32 = arith.constant 0 : i32
    %c0_i32_0 = arith.constant 0 : i32
    %c0_i32_1 = arith.constant 0 : i32
    %c0_i32_2 = arith.constant 0 : i32
    return %arg0, %c0_i32, %c0_i32_0, %c0_i32_1 : i32, i32, i32, i32
  }
  func.func @transform_1(%arg0: i32) -> (i32, i32, i32, i32) {
    %c0_i32 = arith.constant 0 : i32
    %c0_i32_0 = arith.constant 0 : i32
    %c0_i32_1 = arith.constant 0 : i32
    %c0_i32_2 = arith.constant 0 : i32
    return %arg0, %c0_i32, %c0_i32_0, %c0_i32_1 : i32, i32, i32, i32
  }
  func.func @transform_2(%arg0: i32) -> (i32, i32, i32, i32) {
    %c0_i32 = arith.constant 0 : i32
    %c0_i32_0 = arith.constant 0 : i32
    %c0_i32_1 = arith.constant 0 : i32
    %c0_i32_2 = arith.constant 0 : i32
    %c0_i32_3 = arith.constant 0 : i32
    return %c0_i32, %c0_i32_0, %c0_i32_1, %c0_i32_2 : i32, i32, i32, i32
  }
  func.func @transform_3(%arg0: i32) -> (i32, i32) {
    %c0_i32 = arith.constant 0 : i32
    %c0_i32_0 = arith.constant 0 : i32
    %c0_i32_1 = arith.constant 0 : i32
    return %c0_i32, %c0_i32_0 : i32, i32
  }
  func.func @transform_4(%arg0: i32) -> (i32, i32) {
    %c0_i32 = arith.constant 0 : i32
    %c0_i32_0 = arith.constant 0 : i32
    %c0_i32_1 = arith.constant 0 : i32
    return %c0_i32, %c0_i32_0 : i32, i32
  }
  func.func @transform_5(%arg0: i32) -> (i32, i32) {
    %c0_i32 = arith.constant 0 : i32
    %c0_i32_0 = arith.constant 0 : i32
    %c0_i32_1 = arith.constant 0 : i32
    return %c0_i32, %c0_i32_0 : i32, i32
  }
  func.func @transform_6(%arg0: i32) -> (i32, i32) {
    %c0_i32 = arith.constant 0 : i32
    %c0_i32_0 = arith.constant 0 : i32
    %c0_i32_1 = arith.constant 0 : i32
    return %c0_i32, %c0_i32_0 : i32, i32
  }
  func.func @transform_7(%arg0: i32) -> (i32, i32) {
    %c0_i32 = arith.constant 0 : i32
    %c0_i32_0 = arith.constant 0 : i32
    %c0_i32_1 = arith.constant 0 : i32
    return %c0_i32, %c0_i32_0 : i32, i32
  }
  func.func @transform_8(%arg0: i32) -> (i32, i32) {
    %c0_i32 = arith.constant 0 : i32
    %c0_i32_0 = arith.constant 0 : i32
    %c0_i32_1 = arith.constant 0 : i32
    return %c0_i32, %c0_i32_0 : i32, i32
  }
  func.func @transform_9(%arg0: i32) -> (i32, i32) {
    %c0_i32 = arith.constant 0 : i32
    %c0_i32_0 = arith.constant 0 : i32
    %c0_i32_1 = arith.constant 0 : i32
    return %c0_i32, %c0_i32_0 : i32, i32
  }
  func.func @transform_10(%arg0: i32) -> (i32, i32) {
    %c0_i32 = arith.constant 0 : i32
    %c0_i32_0 = arith.constant 0 : i32
    %c0_i32_1 = arith.constant 0 : i32
    return %c0_i32, %c0_i32_0 : i32, i32
  }
  func.func @transform_11(%arg0: i32) -> (i32, i32) {
    %c0_i32 = arith.constant 0 : i32
    %c0_i32_0 = arith.constant 0 : i32
    %c0_i32_1 = arith.constant 0 : i32
    return %c0_i32, %c0_i32_0 : i32, i32
  }
  func.func @transform_12(%arg0: i32) -> (i32, i32, i32, i32) {
    %c0_i32 = arith.constant 0 : i32
    %c0_i32_0 = arith.constant 0 : i32
    %c0_i32_1 = arith.constant 0 : i32
    %c0_i32_2 = arith.constant 0 : i32
    return %arg0, %c0_i32, %c0_i32_0, %c0_i32_1 : i32, i32, i32, i32
  }
}

module attributes {stable_mosaic.version = 11 : i64} {
  func.func @_bottleneck_kernel(%arg0: i32, %arg1: memref<1x18x24x128xbf16, #tpu.memory_space<vmem>>, %arg2: memref<1x16x16x128xbf16, #tpu.memory_space<vmem>>, %arg3: memref<1x18x24x128xf32, #tpu.memory_space<vmem>>, %arg4: memref<128x128xbf16, #tpu.memory_space<vmem>>, %arg5: memref<1x128xf32, #tpu.memory_space<vmem>>, %arg6: memref<1x128xf32, #tpu.memory_space<vmem>>, %arg7: memref<1152x128xbf16, #tpu.memory_space<vmem>>, %arg8: memref<1x128xf32, #tpu.memory_space<vmem>>, %arg9: memref<1x128xf32, #tpu.memory_space<vmem>>, %arg10: memref<128x128xbf16, #tpu.memory_space<vmem>>, %arg11: memref<1x128xf32, #tpu.memory_space<vmem>>, %arg12: memref<1x128xf32, #tpu.memory_space<vmem>>, %arg13: memref<1x16x16x128xf32, #tpu.memory_space<vmem>>) attributes {dimension_semantics = [#tpu.dimension_semantics<parallel>], iteration_bounds = array<i64: 2>, scalar_prefetch = 0 : i64, scratch_operands = 0 : i64, tpu.core_type = #tpu.core_type<tc>, window_params = [{transform_indices = @transform_0, window_bounds = array<i64: 1, 18, 24, 128>}, {transform_indices = @transform_1, window_bounds = array<i64: 1, 16, 16, 128>}, {pipeline_mode = #tpu.pipeline_mode<synchronous>, transform_indices = @transform_2, window_bounds = array<i64: 1, 18, 24, 128>}, {pipeline_mode = #tpu.pipeline_mode<synchronous>, transform_indices = @transform_3, window_bounds = array<i64: 128, 128>}, {pipeline_mode = #tpu.pipeline_mode<synchronous>, transform_indices = @transform_4, window_bounds = array<i64: 1, 128>}, {pipeline_mode = #tpu.pipeline_mode<synchronous>, transform_indices = @transform_5, window_bounds = array<i64: 1, 128>}, {pipeline_mode = #tpu.pipeline_mode<synchronous>, transform_indices = @transform_6, window_bounds = array<i64: 1152, 128>}, {pipeline_mode = #tpu.pipeline_mode<synchronous>, transform_indices = @transform_7, window_bounds = array<i64: 1, 128>}, {pipeline_mode = #tpu.pipeline_mode<synchronous>, transform_indices = @transform_8, window_bounds = array<i64: 1, 128>}, {pipeline_mode = #tpu.pipeline_mode<synchronous>, transform_indices = @transform_9, window_bounds = array<i64: 128, 128>}, {pipeline_mode = #tpu.pipeline_mode<synchronous>, transform_indices = @transform_10, window_bounds = array<i64: 1, 128>}, {pipeline_mode = #tpu.pipeline_mode<synchronous>, transform_indices = @transform_11, window_bounds = array<i64: 1, 128>}, {transform_indices = @transform_12, window_bounds = array<i64: 1, 16, 16, 128>}]} {
    %c0 = arith.constant 0 : index
    %c0_0 = arith.constant 0 : index
    %c0_1 = arith.constant 0 : index
    %c0_2 = arith.constant 0 : index
    %0 = vector.load %arg1[%c0, %c0_0, %c0_1, %c0_2] : memref<1x18x24x128xbf16, #tpu.memory_space<vmem>>, vector<1x18x24x128xbf16>
    %1 = vector.shape_cast %0 : vector<1x18x24x128xbf16> to vector<432x128xbf16>
    %c0_3 = arith.constant 0 : index
    %c0_4 = arith.constant 0 : index
    %2 = vector.load %arg4[%c0_3, %c0_4] : memref<128x128xbf16, #tpu.memory_space<vmem>>, vector<128x128xbf16>
    %cst = arith.constant dense<0.000000e+00> : vector<432x128xf32>
    %3 = tpu.matmul %1, %2, %cst {dimension_numbers = #tpu.dot_dimension_numbers<[1], [0], [0], [1], [0, 0, 1, 1], [], []>} : vector<432x128xbf16>, vector<128x128xbf16>, vector<432x128xf32> -> vector<432x128xf32>
    %c0_5 = arith.constant 0 : index
    %c0_6 = arith.constant 0 : index
    %4 = vector.load %arg5[%c0_5, %c0_6] : memref<1x128xf32, #tpu.memory_space<vmem>>, vector<1x128xf32>
    %5 = vector.broadcast %4 : vector<1x128xf32> to vector<432x128xf32>
    %6 = arith.mulf %3, %5 : vector<432x128xf32>
    %c0_7 = arith.constant 0 : index
    %c0_8 = arith.constant 0 : index
    %7 = vector.load %arg6[%c0_7, %c0_8] : memref<1x128xf32, #tpu.memory_space<vmem>>, vector<1x128xf32>
    %8 = vector.broadcast %7 : vector<1x128xf32> to vector<432x128xf32>
    %9 = arith.addf %6, %8 : vector<432x128xf32>
    %cst_9 = arith.constant 0.000000e+00 : f32
    %10 = vector.broadcast %cst_9 : f32 to vector<432x128xf32>
    %11 = arith.maximumf %9, %10 : vector<432x128xf32>
    %12 = vector.shape_cast %11 : vector<432x128xf32> to vector<1x18x24x128xf32>
    %c0_10 = arith.constant 0 : index
    %c0_11 = arith.constant 0 : index
    %c0_12 = arith.constant 0 : index
    %c0_13 = arith.constant 0 : index
    %13 = vector.load %arg3[%c0_10, %c0_11, %c0_12, %c0_13] : memref<1x18x24x128xf32, #tpu.memory_space<vmem>>, vector<1x18x24x128xf32>
    %14 = arith.mulf %12, %13 : vector<1x18x24x128xf32>
    %15 = arith.truncf %14 : vector<1x18x24x128xf32> to vector<1x18x24x128xbf16>
    %16 = vector.extract_strided_slice %15 {offsets = [0, 0, 0, 0], sizes = [1, 18, 16, 128], strides = [1, 1, 1, 1]} : vector<1x18x24x128xbf16> to vector<1x18x16x128xbf16>
    %17 = vector.extract_strided_slice %15 {offsets = [0, 0, 1, 0], sizes = [1, 18, 16, 128], strides = [1, 1, 1, 1]} : vector<1x18x24x128xbf16> to vector<1x18x16x128xbf16>
    %18 = vector.extract_strided_slice %15 {offsets = [0, 0, 2, 0], sizes = [1, 18, 16, 128], strides = [1, 1, 1, 1]} : vector<1x18x24x128xbf16> to vector<1x18x16x128xbf16>
    %19 = vector.extract_strided_slice %16 {offsets = [0, 0, 0, 0], sizes = [1, 16, 16, 128], strides = [1, 1, 1, 1]} : vector<1x18x16x128xbf16> to vector<1x16x16x128xbf16>
    %20 = vector.extract_strided_slice %17 {offsets = [0, 0, 0, 0], sizes = [1, 16, 16, 128], strides = [1, 1, 1, 1]} : vector<1x18x16x128xbf16> to vector<1x16x16x128xbf16>
    %21 = vector.extract_strided_slice %18 {offsets = [0, 0, 0, 0], sizes = [1, 16, 16, 128], strides = [1, 1, 1, 1]} : vector<1x18x16x128xbf16> to vector<1x16x16x128xbf16>
    %22 = vector.extract_strided_slice %16 {offsets = [0, 1, 0, 0], sizes = [1, 16, 16, 128], strides = [1, 1, 1, 1]} : vector<1x18x16x128xbf16> to vector<1x16x16x128xbf16>
    %23 = vector.extract_strided_slice %17 {offsets = [0, 1, 0, 0], sizes = [1, 16, 16, 128], strides = [1, 1, 1, 1]} : vector<1x18x16x128xbf16> to vector<1x16x16x128xbf16>
    %24 = vector.extract_strided_slice %18 {offsets = [0, 1, 0, 0], sizes = [1, 16, 16, 128], strides = [1, 1, 1, 1]} : vector<1x18x16x128xbf16> to vector<1x16x16x128xbf16>
    %25 = vector.extract_strided_slice %16 {offsets = [0, 2, 0, 0], sizes = [1, 16, 16, 128], strides = [1, 1, 1, 1]} : vector<1x18x16x128xbf16> to vector<1x16x16x128xbf16>
    %26 = vector.extract_strided_slice %17 {offsets = [0, 2, 0, 0], sizes = [1, 16, 16, 128], strides = [1, 1, 1, 1]} : vector<1x18x16x128xbf16> to vector<1x16x16x128xbf16>
    %27 = vector.extract_strided_slice %18 {offsets = [0, 2, 0, 0], sizes = [1, 16, 16, 128], strides = [1, 1, 1, 1]} : vector<1x18x16x128xbf16> to vector<1x16x16x128xbf16>
    %28 = tpu.concatenate %19, %20, %21, %22, %23, %24, %25, %26, %27 in 3 : vector<1x16x16x128xbf16>, vector<1x16x16x128xbf16>, vector<1x16x16x128xbf16>, vector<1x16x16x128xbf16>, vector<1x16x16x128xbf16>, vector<1x16x16x128xbf16>, vector<1x16x16x128xbf16>, vector<1x16x16x128xbf16>, vector<1x16x16x128xbf16> -> vector<1x16x16x1152xbf16>
    %29 = vector.shape_cast %28 : vector<1x16x16x1152xbf16> to vector<256x1152xbf16>
    %c0_14 = arith.constant 0 : index
    %c0_15 = arith.constant 0 : index
    %30 = vector.load %arg7[%c0_14, %c0_15] : memref<1152x128xbf16, #tpu.memory_space<vmem>>, vector<1152x128xbf16>
    %cst_16 = arith.constant dense<0.000000e+00> : vector<256x128xf32>
    %31 = tpu.matmul %29, %30, %cst_16 {dimension_numbers = #tpu.dot_dimension_numbers<[1], [0], [0], [1], [0, 0, 1, 1], [], []>} : vector<256x1152xbf16>, vector<1152x128xbf16>, vector<256x128xf32> -> vector<256x128xf32>
    %c0_17 = arith.constant 0 : index
    %c0_18 = arith.constant 0 : index
    %32 = vector.load %arg8[%c0_17, %c0_18] : memref<1x128xf32, #tpu.memory_space<vmem>>, vector<1x128xf32>
    %33 = vector.broadcast %32 : vector<1x128xf32> to vector<256x128xf32>
    %34 = arith.mulf %31, %33 : vector<256x128xf32>
    %c0_19 = arith.constant 0 : index
    %c0_20 = arith.constant 0 : index
    %35 = vector.load %arg9[%c0_19, %c0_20] : memref<1x128xf32, #tpu.memory_space<vmem>>, vector<1x128xf32>
    %36 = vector.broadcast %35 : vector<1x128xf32> to vector<256x128xf32>
    %37 = arith.addf %34, %36 : vector<256x128xf32>
    %cst_21 = arith.constant 0.000000e+00 : f32
    %38 = vector.broadcast %cst_21 : f32 to vector<256x128xf32>
    %39 = arith.maximumf %37, %38 : vector<256x128xf32>
    %40 = arith.truncf %39 : vector<256x128xf32> to vector<256x128xbf16>
    %c0_22 = arith.constant 0 : index
    %c0_23 = arith.constant 0 : index
    %41 = vector.load %arg10[%c0_22, %c0_23] : memref<128x128xbf16, #tpu.memory_space<vmem>>, vector<128x128xbf16>
    %cst_24 = arith.constant dense<0.000000e+00> : vector<256x128xf32>
    %42 = tpu.matmul %40, %41, %cst_24 {dimension_numbers = #tpu.dot_dimension_numbers<[1], [0], [0], [1], [0, 0, 1, 1], [], []>} : vector<256x128xbf16>, vector<128x128xbf16>, vector<256x128xf32> -> vector<256x128xf32>
    %c0_25 = arith.constant 0 : index
    %c0_26 = arith.constant 0 : index
    %43 = vector.load %arg11[%c0_25, %c0_26] : memref<1x128xf32, #tpu.memory_space<vmem>>, vector<1x128xf32>
    %44 = vector.broadcast %43 : vector<1x128xf32> to vector<256x128xf32>
    %45 = arith.mulf %42, %44 : vector<256x128xf32>
    %c0_27 = arith.constant 0 : index
    %c0_28 = arith.constant 0 : index
    %46 = vector.load %arg12[%c0_27, %c0_28] : memref<1x128xf32, #tpu.memory_space<vmem>>, vector<1x128xf32>
    %47 = vector.broadcast %46 : vector<1x128xf32> to vector<256x128xf32>
    %48 = arith.addf %45, %47 : vector<256x128xf32>
    %49 = vector.shape_cast %48 : vector<256x128xf32> to vector<1x16x16x128xf32>
    %c0_29 = arith.constant 0 : index
    %c0_30 = arith.constant 0 : index
    %c0_31 = arith.constant 0 : index
    %c0_32 = arith.constant 0 : index
    %50 = vector.load %arg2[%c0_29, %c0_30, %c0_31, %c0_32] : memref<1x16x16x128xbf16, #tpu.memory_space<vmem>>, vector<1x16x16x128xbf16>
    %51 = arith.extf %50 : vector<1x16x16x128xbf16> to vector<1x16x16x128xf32>
    %52 = arith.addf %49, %51 : vector<1x16x16x128xf32>
    %cst_33 = arith.constant 0.000000e+00 : f32
    %53 = vector.broadcast %cst_33 : f32 to vector<1x16x16x128xf32>
    %54 = arith.maximumf %52, %53 : vector<1x16x16x128xf32>
    %c0_34 = arith.constant 0 : index
    %c0_35 = arith.constant 0 : index
    %c0_36 = arith.constant 0 : index
    %c0_37 = arith.constant 0 : index
    %55 = vector.load %arg13[%c0_34, %c0_35, %c0_36, %c0_37] : memref<1x16x16x128xf32, #tpu.memory_space<vmem>>, vector<1x16x16x128xf32>
    tpu.vector_store %arg13[%c0_34, %c0_35, %c0_36, %c0_37], %54 {strides = array<i32>} : memref<1x16x16x128xf32, #tpu.memory_space<vmem>>, vector<1x16x16x128xf32>,
    return
  }
  func.func @transform_0(%arg0: i32) -> (i32, i32, i32, i32) {
    %c0_i32 = arith.constant 0 : i32
    %c0_i32_0 = arith.constant 0 : i32
    %c0_i32_1 = arith.constant 0 : i32
    %c0_i32_2 = arith.constant 0 : i32
    return %arg0, %c0_i32, %c0_i32_0, %c0_i32_1 : i32, i32, i32, i32
  }
  func.func @transform_1(%arg0: i32) -> (i32, i32, i32, i32) {
    %c0_i32 = arith.constant 0 : i32
    %c0_i32_0 = arith.constant 0 : i32
    %c0_i32_1 = arith.constant 0 : i32
    %c0_i32_2 = arith.constant 0 : i32
    return %arg0, %c0_i32, %c0_i32_0, %c0_i32_1 : i32, i32, i32, i32
  }
  func.func @transform_2(%arg0: i32) -> (i32, i32, i32, i32) {
    %c0_i32 = arith.constant 0 : i32
    %c0_i32_0 = arith.constant 0 : i32
    %c0_i32_1 = arith.constant 0 : i32
    %c0_i32_2 = arith.constant 0 : i32
    %c0_i32_3 = arith.constant 0 : i32
    return %c0_i32, %c0_i32_0, %c0_i32_1, %c0_i32_2 : i32, i32, i32, i32
  }
  func.func @transform_3(%arg0: i32) -> (i32, i32) {
    %c0_i32 = arith.constant 0 : i32
    %c0_i32_0 = arith.constant 0 : i32
    %c0_i32_1 = arith.constant 0 : i32
    return %c0_i32, %c0_i32_0 : i32, i32
  }
  func.func @transform_4(%arg0: i32) -> (i32, i32) {
    %c0_i32 = arith.constant 0 : i32
    %c0_i32_0 = arith.constant 0 : i32
    %c0_i32_1 = arith.constant 0 : i32
    return %c0_i32, %c0_i32_0 : i32, i32
  }
  func.func @transform_5(%arg0: i32) -> (i32, i32) {
    %c0_i32 = arith.constant 0 : i32
    %c0_i32_0 = arith.constant 0 : i32
    %c0_i32_1 = arith.constant 0 : i32
    return %c0_i32, %c0_i32_0 : i32, i32
  }
  func.func @transform_6(%arg0: i32) -> (i32, i32) {
    %c0_i32 = arith.constant 0 : i32
    %c0_i32_0 = arith.constant 0 : i32
    %c0_i32_1 = arith.constant 0 : i32
    return %c0_i32, %c0_i32_0 : i32, i32
  }
  func.func @transform_7(%arg0: i32) -> (i32, i32) {
    %c0_i32 = arith.constant 0 : i32
    %c0_i32_0 = arith.constant 0 : i32
    %c0_i32_1 = arith.constant 0 : i32
    return %c0_i32, %c0_i32_0 : i32, i32
  }
  func.func @transform_8(%arg0: i32) -> (i32, i32) {
    %c0_i32 = arith.constant 0 : i32
    %c0_i32_0 = arith.constant 0 : i32
    %c0_i32_1 = arith.constant 0 : i32
    return %c0_i32, %c0_i32_0 : i32, i32
  }
  func.func @transform_9(%arg0: i32) -> (i32, i32) {
    %c0_i32 = arith.constant 0 : i32
    %c0_i32_0 = arith.constant 0 : i32
    %c0_i32_1 = arith.constant 0 : i32
    return %c0_i32, %c0_i32_0 : i32, i32
  }
  func.func @transform_10(%arg0: i32) -> (i32, i32) {
    %c0_i32 = arith.constant 0 : i32
    %c0_i32_0 = arith.constant 0 : i32
    %c0_i32_1 = arith.constant 0 : i32
    return %c0_i32, %c0_i32_0 : i32, i32
  }
  func.func @transform_11(%arg0: i32) -> (i32, i32) {
    %c0_i32 = arith.constant 0 : i32
    %c0_i32_0 = arith.constant 0 : i32
    %c0_i32_1 = arith.constant 0 : i32
    return %c0_i32, %c0_i32_0 : i32, i32
  }
  func.func @transform_12(%arg0: i32) -> (i32, i32, i32, i32) {
    %c0_i32 = arith.constant 0 : i32
    %c0_i32_0 = arith.constant 0 : i32
    %c0_i32_1 = arith.constant 0 : i32
    %c0_i32_2 = arith.constant 0 : i32
    return %arg0, %c0_i32, %c0_i32_0, %c0_i32_1 : i32, i32, i32, i32
  }
}

</mosaic_0001>

<llo_original>
// kernel: tpu_custom_call.1
$region0: #{tpu_custom_call.1}
  #allocation0 [shape = 'u32[]', space=smem, size = 0x4, offset = 0x4, fixed_abs, tag = 'smem constant byte address 0x4 - core index']
  #allocation1 [shape = 'u32[144,128]{1,0:T(1,128)}', space=vmem, size = 0x12000, scoped, tag = 'internal scratch']
  %s0 = inlined_call_operand.hbm [shape: bf16[2,18,24,128], index: 0, kind: input, shape index: {}]
  %s1 = inlined_call_operand.hbm [shape: bf16[2,16,16,128], index: 1, kind: input, shape index: {}]
  %s2 = inlined_call_operand.hbm [shape: f32[1,18,24,128], index: 2, kind: input, shape index: {}]
  %s3 = inlined_call_operand.hbm [shape: bf16[128,128], index: 3, kind: input, shape index: {}]
  %s4 = inlined_call_operand.vmem [shape: f32[1,128], index: 4, kind: input, shape index: {}]
  %s5 = inlined_call_operand.vmem [shape: f32[1,128], index: 5, kind: input, shape index: {}]
  %s6 = inlined_call_operand.hbm [shape: bf16[1152,128], index: 6, kind: input, shape index: {}]
  %s7 = inlined_call_operand.vmem [shape: f32[1,128], index: 7, kind: input, shape index: {}]
  %s8 = inlined_call_operand.vmem [shape: f32[1,128], index: 8, kind: input, shape index: {}]
  %s9 = inlined_call_operand.hbm [shape: bf16[128,128], index: 9, kind: input, shape index: {}]
  %s10 = inlined_call_operand.vmem [shape: f32[1,128], index: 10, kind: input, shape index: {}]
  %s11 = inlined_call_operand.vmem [shape: f32[1,128], index: 11, kind: input, shape index: {}]
  %s12 = inlined_call_operand.hbm [shape: f32[2,16,16,128], index: 12, kind: output, shape index: {}]
  %s13 = sld [smem:[#allocation0]]
  $region105: #{tpu_custom_call.1} parent=0
    _
  %s15 = ssub.s32 1, %s13
  %s16 = scalar_select 0, %s15, %s13
  $region1: #{tpu_custom_call.1} parent=0
    #allocation2 [shape = 'u8[221184]{0}', space=vmem, size = 0x36000, scoped, tag = 'input window, operand 0']
    #allocation3 [shape = 's32[2]{0}', space=sflag, size = 0x8, scoped, tag = 'scoped memory for tpu_custom_call.1']
    #allocation4 [shape = 's32[2]{0}', space=sflag, size = 0x8, scoped, tag = 'scoped memory for tpu_custom_call.1']
    #allocation5 [shape = 'u8[131072]{0}', space=vmem, size = 0x20000, scoped, tag = 'input window, operand 1']
    #allocation6 [shape = 's32[2]{0}', space=sflag, size = 0x8, scoped, tag = 'scoped memory for tpu_custom_call.1']
    #allocation7 [shape = 'u8[221184]{0}', space=vmem, size = 0x36000, scoped, tag = 'input window, operand 2, single buffered']
    #allocation8 [shape = 'u8[32768]{0}', space=vmem, size = 0x8000, scoped, tag = 'input window, operand 3, single buffered']
    #allocation9 [shape = 's32[1]{0}', space=sflag, size = 0x4, scoped, tag = 'scoped memory for tpu_custom_call.1']
    #allocation10 [shape = 'u8[294912]{0}', space=vmem, size = 0x48000, scoped, tag = 'input window, operand 6, single buffered']
    #allocation11 [shape = 'u8[32768]{0}', space=vmem, size = 0x8000, scoped, tag = 'input window, operand 9, single buffered']
    #allocation12 [shape = 's32[1]{0}', space=sflag, size = 0x4, scoped, tag = 'scoped memory for tpu_custom_call.1']
    #allocation13 [shape = 'u8[262144]{0}', space=vmem, size = 0x40000, scoped, tag = 'output window, operand 0']
    %17 = vsyncpa [#allocation3], 0
    %s18 = scalar_lea.sflag [#allocation3], 1
    %19 = vsyncpa %s18, 0
    %20 = vsyncpa [#allocation6], 0
    %s21 = scalar_lea.sflag [#allocation6], 1
    %22 = vsyncpa %s21, 0
    %23 = vsyncpa [#allocation9], 0
    %24 = vsyncpa [#allocation12], 0
    %25 = vsyncpa [#allocation4], 0
    %s26 = scalar_lea.sflag [#allocation4], 1
    %27 = vsyncpa %s26, 0
    loop: start=0, step=1, limit=4
    $region2: #{tpu_custom_call.1} parent=1 // loop_pre_header
      _
    $region3: #{tpu_custom_call.1} parent=1 // loop_header
      %s29 = sphi 0, %s33
      %p30 = scmp.ge.s32.totalorder %s29, 4
      %s39 = sphi 0, %s41
      %s42 = sphi 0, %s39
      %s43 = sphi 0, %s42
      %s59 = sphi 0, %s43
      %s65 = sphi 0, %s67
      %s68 = sphi 0, %s65
      %s69 = sphi 0, %s68
      %s85 = sphi 0, %s69
      %s89 = sphi 0, %s89
      %s91 = sphi 0, %s89
      %s92 = sphi 0, %s91
      %s106 = sphi 0, %s92
      %s110 = sphi 0, %s110
      %s112 = sphi 0, %s110
      %s113 = sphi 0, %s112
      %s127 = sphi 0, %s113
      %s131 = sphi 0, %s131
      %s133 = sphi 0, %s131
      %s134 = sphi 0, %s133
      %s148 = sphi 0, %s134
      %s152 = sphi 0, %s152
      %s154 = sphi 0, %s152
      %s155 = sphi 0, %s154
      %s169 = sphi 0, %s155
      %s173 = sphi 0, %s173
      %s175 = sphi 0, %s173
      %s176 = sphi 0, %s175
      %s190 = sphi 0, %s176
      %s194 = sphi 0, %s194
      %s196 = sphi 0, %s194
      %s197 = sphi 0, %s196
      %s211 = sphi 0, %s197
      %s215 = sphi 0, %s215
      %s217 = sphi 0, %s215
      %s218 = sphi 0, %s217
      %s232 = sphi 0, %s218
      %s236 = sphi 0, %s236
      %s238 = sphi 0, %s236
      %s239 = sphi 0, %s238
      %s253 = sphi 0, %s239
      %s257 = sphi 0, %s257
      %s259 = sphi 0, %s257
      %s260 = sphi 0, %s259
      %s274 = sphi 0, %s260
      %s278 = sphi 0, %s278
      %s280 = sphi 0, %s278
      %s281 = sphi 0, %s280
      %s295 = sphi 0, %s281
      %s301 = sphi 0, %s303
      %s304 = sphi 0, %s301
      %s305 = sphi 0, %s304
      %s321 = sphi 0, %s305
    $region4: #{tpu_custom_call.1} parent=1 // loop_header_branch
      %32 = sbr.rel (%p30) target = $region8
    $region5: #{tpu_custom_call.1} parent=1 // loop_body
      %s34 = ssub.s32 %s29, 1
      %s35 = ssub.s32 %s29, 2
      %s36 = sadd.s32 %s29, 1
      %s37 = ssub.s32 %s29, %s36
      %p38 = scmp.eq.s32.totalorder %s37, 0
      %s40 = sadd.s32 %s39, 1
      %s41 = scalar_select %p38, %s39, %s40
      %p44 = pneg %p38
      %p45 = scmp.eq.s32.totalorder %s29, 1
      %p46 = por %p44, %p45
      %p47 = scmp.ne.s32.totalorder %s39, %s42
      %p48 = scmp.eq.s32.totalorder %s29, 0
      %p49 = por %p47, %p48
      %p50 = scmp.ne.s32.totalorder %s39, %s42
      %p51 = scmp.eq.s32.totalorder %s34, 1
      %p52 = por %p50, %p51
      %p53 = scmp.ne.s32.totalorder %s42, %s43
      %p54 = scmp.eq.s32.totalorder %s34, 0
      %p55 = por %p53, %p54
      %p56 = scmp.ne.s32.totalorder %s42, %s43
      %p57 = scmp.eq.s32.totalorder %s35, 1
      %p58 = por %p56, %p57
      %p60 = scmp.ne.s32.totalorder %s43, %s59
      %p61 = scmp.eq.s32.totalorder %s35, 0
      %p62 = por %p60, %p61
      %s63 = ssub.s32 %s29, %s36
      %p64 = scmp.eq.s32.totalorder %s63, 0
      %s66 = sadd.s32 %s65, 1
      %s67 = scalar_select %p64, %s65, %s66
      %p70 = pneg %p64
      %p71 = scmp.eq.s32.totalorder %s29, 1
      %p72 = por %p70, %p71
      %p73 = scmp.ne.s32.totalorder %s65, %s68
      %p74 = scmp.eq.s32.totalorder %s29, 0
      %p75 = por %p73, %p74
      %p76 = scmp.ne.s32.totalorder %s65, %s68
      %p77 = scmp.eq.s32.totalorder %s34, 1
      %p78 = por %p76, %p77
      %p79 = scmp.ne.s32.totalorder %s68, %s69
      %p80 = scmp.eq.s32.totalorder %s34, 0
      %p81 = por %p79, %p80
      %p82 = scmp.ne.s32.totalorder %s68, %s69
      %p83 = scmp.eq.s32.totalorder %s35, 1
      %p84 = por %p82, %p83
      %p86 = scmp.ne.s32.totalorder %s69, %s85
      %p87 = scmp.eq.s32.totalorder %s35, 0
      %p88 = por %p86, %p87
      %s90 = sadd.s32 %s89, 1
      %p93 = scmp.eq.s32.totalorder %s29, 1
      %p94 = scmp.ne.s32.totalorder %s89, %s91
      %p95 = scmp.eq.s32.totalorder %s29, 0
      %p96 = por %p94, %p95
      %p97 = scmp.ne.s32.totalorder %s89, %s91
      %p98 = scmp.eq.s32.totalorder %s34, 1
      %p99 = por %p97, %p98
      %p100 = scmp.ne.s32.totalorder %s91, %s92
      %p101 = scmp.eq.s32.totalorder %s34, 0
      %p102 = por %p100, %p101
      %p103 = scmp.ne.s32.totalorder %s91, %s92
      %p104 = scmp.eq.s32.totalorder %s35, 1
      %p105 = por %p103, %p104
      %p107 = scmp.ne.s32.totalorder %s92, %s106
      %p108 = scmp.eq.s32.totalorder %s35, 0
      %p109 = por %p107, %p108
      %s111 = sadd.s32 %s110, 1
      %p114 = scmp.eq.s32.totalorder %s29, 1
      %p115 = scmp.ne.s32.totalorder %s110, %s112
      %p116 = scmp.eq.s32.totalorder %s29, 0
      %p117 = por %p115, %p116
      %p118 = scmp.ne.s32.totalorder %s110, %s112
      %p119 = scmp.eq.s32.totalorder %s34, 1
      %p120 = por %p118, %p119
      %p121 = scmp.ne.s32.totalorder %s112, %s113
      %p122 = scmp.eq.s32.totalorder %s34, 0
      %p123 = por %p121, %p122
      %p124 = scmp.ne.s32.totalorder %s112, %s113
      %p125 = scmp.eq.s32.totalorder %s35, 1
      %p126 = por %p124, %p125
      %p128 = scmp.ne.s32.totalorder %s113, %s127
      %p129 = scmp.eq.s32.totalorder %s35, 0
      %p130 = por %p128, %p129
      %s132 = sadd.s32 %s131, 1
      %p135 = scmp.eq.s32.totalorder %s29, 1
      %p136 = scmp.ne.s32.totalorder %s131, %s133
      %p137 = scmp.eq.s32.totalorder %s29, 0
      %p138 = por %p136, %p137
      %p139 = scmp.ne.s32.totalorder %s131, %s133
      %p140 = scmp.eq.s32.totalorder %s34, 1
      %p141 = por %p139, %p140
      %p142 = scmp.ne.s32.totalorder %s133, %s134
      %p143 = scmp.eq.s32.totalorder %s34, 0
      %p144 = por %p142, %p143
      %p145 = scmp.ne.s32.totalorder %s133, %s134
      %p146 = scmp.eq.s32.totalorder %s35, 1
      %p147 = por %p145, %p146
      %p149 = scmp.ne.s32.totalorder %s134, %s148
      %p150 = scmp.eq.s32.totalorder %s35, 0
      %p151 = por %p149, %p150
      %s153 = sadd.s32 %s152, 1
      %p156 = scmp.eq.s32.totalorder %s29, 1
      %p157 = scmp.ne.s32.totalorder %s152, %s154
      %p158 = scmp.eq.s32.totalorder %s29, 0
      %p159 = por %p157, %p158
      %p160 = scmp.ne.s32.totalorder %s152, %s154
      %p161 = scmp.eq.s32.totalorder %s34, 1
      %p162 = por %p160, %p161
      %p163 = scmp.ne.s32.totalorder %s154, %s155
      %p164 = scmp.eq.s32.totalorder %s34, 0
      %p165 = por %p163, %p164
      %p166 = scmp.ne.s32.totalorder %s154, %s155
      %p167 = scmp.eq.s32.totalorder %s35, 1
      %p168 = por %p166, %p167
      %p170 = scmp.ne.s32.totalorder %s155, %s169
      %p171 = scmp.eq.s32.totalorder %s35, 0
      %p172 = por %p170, %p171
      %s174 = sadd.s32 %s173, 1
      %p177 = scmp.eq.s32.totalorder %s29, 1
      %p178 = scmp.ne.s32.totalorder %s173, %s175
      %p179 = scmp.eq.s32.totalorder %s29, 0
      %p180 = por %p178, %p179
      %p181 = scmp.ne.s32.totalorder %s173, %s175
      %p182 = scmp.eq.s32.totalorder %s34, 1
      %p183 = por %p181, %p182
      %p184 = scmp.ne.s32.totalorder %s175, %s176
      %p185 = scmp.eq.s32.totalorder %s34, 0
      %p186 = por %p184, %p185
      %p187 = scmp.ne.s32.totalorder %s175, %s176
      %p188 = scmp.eq.s32.totalorder %s35, 1
      %p189 = por %p187, %p188
      %p191 = scmp.ne.s32.totalorder %s176, %s190
      %p192 = scmp.eq.s32.totalorder %s35, 0
      %p193 = por %p191, %p192
      %s195 = sadd.s32 %s194, 1
      %p198 = scmp.eq.s32.totalorder %s29, 1
      %p199 = scmp.ne.s32.totalorder %s194, %s196
      %p200 = scmp.eq.s32.totalorder %s29, 0
      %p201 = por %p199, %p200
      %p202 = scmp.ne.s32.totalorder %s194, %s196
      %p203 = scmp.eq.s32.totalorder %s34, 1
      %p204 = por %p202, %p203
      %p205 = scmp.ne.s32.totalorder %s196, %s197
      %p206 = scmp.eq.s32.totalorder %s34, 0
      %p207 = por %p205, %p206
      %p208 = scmp.ne.s32.totalorder %s196, %s197
      %p209 = scmp.eq.s32.totalorder %s35, 1
      %p210 = por %p208, %p209
      %p212 = scmp.ne.s32.totalorder %s197, %s211
      %p213 = scmp.eq.s32.totalorder %s35, 0
      %p214 = por %p212, %p213
      %s216 = sadd.s32 %s215, 1
      %p219 = scmp.eq.s32.totalorder %s29, 1
      %p220 = scmp.ne.s32.totalorder %s215, %s217
      %p221 = scmp.eq.s32.totalorder %s29, 0
      %p222 = por %p220, %p221
      %p223 = scmp.ne.s32.totalorder %s215, %s217
      %p224 = scmp.eq.s32.totalorder %s34, 1
      %p225 = por %p223, %p224
      %p226 = scmp.ne.s32.totalorder %s217, %s218
      %p227 = scmp.eq.s32.totalorder %s34, 0
      %p228 = por %p226, %p227
      %p229 = scmp.ne.s32.totalorder %s217, %s218
      %p230 = scmp.eq.s32.totalorder %s35, 1
      %p231 = por %p229, %p230
      %p233 = scmp.ne.s32.totalorder %s218, %s232
      %p234 = scmp.eq.s32.totalorder %s35, 0
      %p235 = por %p233, %p234
      %s237 = sadd.s32 %s236, 1
      %p240 = scmp.eq.s32.totalorder %s29, 1
      %p241 = scmp.ne.s32.totalorder %s236, %s238
      %p242 = scmp.eq.s32.totalorder %s29, 0
      %p243 = por %p241, %p242
      %p244 = scmp.ne.s32.totalorder %s236, %s238
      %p245 = scmp.eq.s32.totalorder %s34, 1
      %p246 = por %p244, %p245
      %p247 = scmp.ne.s32.totalorder %s238, %s239
      %p248 = scmp.eq.s32.totalorder %s34, 0
      %p249 = por %p247, %p248
      %p250 = scmp.ne.s32.totalorder %s238, %s239
      %p251 = scmp.eq.s32.totalorder %s35, 1
      %p252 = por %p250, %p251
      %p254 = scmp.ne.s32.totalorder %s239, %s253
      %p255 = scmp.eq.s32.totalorder %s35, 0
      %p256 = por %p254, %p255
      %s258 = sadd.s32 %s257, 1
      %p261 = scmp.eq.s32.totalorder %s29, 1
      %p262 = scmp.ne.s32.totalorder %s257, %s259
      %p263 = scmp.eq.s32.totalorder %s29, 0
      %p264 = por %p262, %p263
      %p265 = scmp.ne.s32.totalorder %s257, %s259
      %p266 = scmp.eq.s32.totalorder %s34, 1
      %p267 = por %p265, %p266
      %p268 = scmp.ne.s32.totalorder %s259, %s260
      %p269 = scmp.eq.s32.totalorder %s34, 0
      %p270 = por %p268, %p269
      %p271 = scmp.ne.s32.totalorder %s259, %s260
      %p272 = scmp.eq.s32.totalorder %s35, 1
      %p273 = por %p271, %p272
      %p275 = scmp.ne.s32.totalorder %s260, %s274
      %p276 = scmp.eq.s32.totalorder %s35, 0
      %p277 = por %p275, %p276
      %s279 = sadd.s32 %s278, 1
      %p282 = scmp.eq.s32.totalorder %s29, 1
      %p283 = scmp.ne.s32.totalorder %s278, %s280
      %p284 = scmp.eq.s32.totalorder %s29, 0
      %p285 = por %p283, %p284
      %p286 = scmp.ne.s32.totalorder %s278, %s280
      %p287 = scmp.eq.s32.totalorder %s34, 1
      %p288 = por %p286, %p287
      %p289 = scmp.ne.s32.totalorder %s280, %s281
      %p290 = scmp.eq.s32.totalorder %s34, 0
      %p291 = por %p289, %p290
      %p292 = scmp.ne.s32.totalorder %s280, %s281
      %p293 = scmp.eq.s32.totalorder %s35, 1
      %p294 = por %p292, %p293
      %p296 = scmp.ne.s32.totalorder %s281, %s295
      %p297 = scmp.eq.s32.totalorder %s35, 0
      %p298 = por %p296, %p297
      %s299 = ssub.s32 %s29, %s36
      %p300 = scmp.eq.s32.totalorder %s299, 0
      %s302 = sadd.s32 %s301, 1
      %s303 = scalar_select %p300, %s301, %s302
      %p306 = pneg %p300
      %p307 = scmp.eq.s32.totalorder %s29, 1
      %p308 = por %p306, %p307
      %p309 = scmp.ne.s32.totalorder %s301, %s304
      %p310 = scmp.eq.s32.totalorder %s29, 0
      %p311 = por %p309, %p310
      %p312 = scmp.ne.s32.totalorder %s301, %s304
      %p313 = scmp.eq.s32.totalorder %s34, 1
      %p314 = por %p312, %p313
      %p315 = scmp.ne.s32.totalorder %s304, %s305
      %p316 = scmp.eq.s32.totalorder %s34, 0
      %p317 = por %p315, %p316
      %p318 = scmp.ne.s32.totalorder %s304, %s305
      %p319 = scmp.eq.s32.totalorder %s35, 1
      %p320 = por %p318, %p319
      %p322 = scmp.ne.s32.totalorder %s305, %s321
      %p323 = scmp.eq.s32.totalorder %s35, 0
      %p324 = por %p322, %p323
      %p325 = scmp.le.s32.totalorder 1, %s29
      %p326 = scmp.lt.s32.totalorder %s29, 3
      %p327 = pnand %p325, %p326
      %p328 = pneg %p327
      // Predicated region
      $region9: #{tpu_custom_call.1} parent=5 // pred_check
        _
      $region10: #{tpu_custom_call.1} parent=5 // pred_check_branch
        %330 = sbr.rel (%p327) target = $region12
      $region11: #{tpu_custom_call.1} parent=5 // pred_region
        %s331 = ssub.s32 %s29, 1
        // Predicated region
        $region13: #{tpu_custom_call.1} parent=11 // pred_check
          %p332 = pneg %p102
        $region14: #{tpu_custom_call.1} parent=11 // pred_check_branch
          %334 = sbr.rel (%p332) target = $region16
        $region15: #{tpu_custom_call.1} parent=11 // pred_region
          %s336 = ssub.s32 6912, 6912
          %337 = vsyncadd [#allocation6], %s336
          %s338 = sshll.u32 [#allocation7], 4
          %s339 = int_to_ptr.vmem [resolvable:$true] %s338
          %344 = dma.hbm_to_vmem [thread:$0]  %s2, 6912, %s339, [#allocation6], 128, 128, 8
        $region16: #{tpu_custom_call.1} parent=11 // pred_fallthru
          _
        // Predicated region
        $region17: #{tpu_custom_call.1} parent=11 // pred_check
          %p345 = pneg %p123
        $region18: #{tpu_custom_call.1} parent=11 // pred_check_branch
          %347 = sbr.rel (%p345) target = $region20
        $region19: #{tpu_custom_call.1} parent=11 // pred_region
          %s349 = ssub.s32 1024, 1024
          %350 = vsyncadd [#allocation9], %s349
          %s351 = sshll.u32 [#allocation8], 4
          %s352 = int_to_ptr.vmem [resolvable:$true] %s351
          %357 = dma.hbm_to_vmem [thread:$0]  %s3, 1024, %s352, [#allocation9], 64, 64, 4
        $region20: #{tpu_custom_call.1} parent=11 // pred_fallthru
          _
        // Predicated region
        $region21: #{tpu_custom_call.1} parent=11 // pred_check
          %p358 = pneg %p144
        $region22: #{tpu_custom_call.1} parent=11 // pred_check_branch
          %360 = sbr.rel (%p358) target = $region24
        $region23: #{tpu_custom_call.1} parent=11 // pred_region
          _
        $region24: #{tpu_custom_call.1} parent=11 // pred_fallthru
          _
        // Predicated region
        $region25: #{tpu_custom_call.1} parent=11 // pred_check
          %p361 = pneg %p165
        $region26: #{tpu_custom_call.1} parent=11 // pred_check_branch
          %363 = sbr.rel (%p361) target = $region28
        $region27: #{tpu_custom_call.1} parent=11 // pred_region
          _
        $region28: #{tpu_custom_call.1} parent=11 // pred_fallthru
          _
        // Predicated region
        $region29: #{tpu_custom_call.1} parent=11 // pred_check
          %p364 = pneg %p186
        $region30: #{tpu_custom_call.1} parent=11 // pred_check_branch
          %366 = sbr.rel (%p364) target = $region32
        $region31: #{tpu_custom_call.1} parent=11 // pred_region
          %s368 = ssub.s32 9216, 9216
          %369 = vsyncadd [#allocation9], %s368
          %s370 = sshll.u32 [#allocation10], 4
          %s371 = int_to_ptr.vmem [resolvable:$true] %s370
          %376 = dma.hbm_to_vmem [thread:$0]  %s6, 9216, %s371, [#allocation9], 64, 64, 4
        $region32: #{tpu_custom_call.1} parent=11 // pred_fallthru
          _
        // Predicated region
        $region33: #{tpu_custom_call.1} parent=11 // pred_check
          %p377 = pneg %p207
        $region34: #{tpu_custom_call.1} parent=11 // pred_check_branch
          %379 = sbr.rel (%p377) target = $region36
        $region35: #{tpu_custom_call.1} parent=11 // pred_region
          _
        $region36: #{tpu_custom_call.1} parent=11 // pred_fallthru
          _
        // Predicated region
        $region37: #{tpu_custom_call.1} parent=11 // pred_check
          %p380 = pneg %p228
        $region38: #{tpu_custom_call.1} parent=11 // pred_check_branch
          %382 = sbr.rel (%p380) target = $region40
        $region39: #{tpu_custom_call.1} parent=11 // pred_region
          _
        $region40: #{tpu_custom_call.1} parent=11 // pred_fallthru
          _
        // Predicated region
        $region41: #{tpu_custom_call.1} parent=11 // pred_check
          %p383 = pneg %p249
        $region42: #{tpu_custom_call.1} parent=11 // pred_check_branch
          %385 = sbr.rel (%p383) target = $region44
        $region43: #{tpu_custom_call.1} parent=11 // pred_region
          %s387 = ssub.s32 1024, 1024
          %388 = vsyncadd [#allocation12], %s387
          %s389 = sshll.u32 [#allocation11], 4
          %s390 = int_to_ptr.vmem [resolvable:$true] %s389
          %395 = dma.hbm_to_vmem [thread:$0]  %s9, 1024, %s390, [#allocation12], 64, 64, 4
        $region44: #{tpu_custom_call.1} parent=11 // pred_fallthru
          _
        // Predicated region
        $region45: #{tpu_custom_call.1} parent=11 // pred_check
          %p396 = pneg %p270
        $region46: #{tpu_custom_call.1} parent=11 // pred_check_branch
          %398 = sbr.rel (%p396) target = $region48
        $region47: #{tpu_custom_call.1} parent=11 // pred_region
          _
        $region48: #{tpu_custom_call.1} parent=11 // pred_fallthru
          _
        // Predicated region
        $region49: #{tpu_custom_call.1} parent=11 // pred_check
          %p399 = pneg %p291
        $region50: #{tpu_custom_call.1} parent=11 // pred_check_branch
          %401 = sbr.rel (%p399) target = $region52
        $region51: #{tpu_custom_call.1} parent=11 // pred_region
          _
        $region52: #{tpu_custom_call.1} parent=11 // pred_fallthru
          _
      $region12: #{tpu_custom_call.1} parent=5 // pred_fallthru
        _
      %p402 = scmp.lt.s32.totalorder %s29, 2
      // Predicated region
      $region53: #{tpu_custom_call.1} parent=5 // pred_check
        %p403 = pneg %p402
      $region54: #{tpu_custom_call.1} parent=5 // pred_check_branch
        %405 = sbr.rel (%p403) target = $region56
      $region55: #{tpu_custom_call.1} parent=5 // pred_region
        // Predicated region
        $region57: #{tpu_custom_call.1} parent=55 // pred_check
          %p406 = pneg %p49
        $region58: #{tpu_custom_call.1} parent=55 // pred_check_branch
          %408 = sbr.rel (%p406) target = $region60
        $region59: #{tpu_custom_call.1} parent=55 // pred_region
          %s409 = sand.u32 %s39, 1
          %s410 = scalar_lea.sflag [#allocation3], %s409
          %s411 = sand.u32 %s39, 1
          %s412 = smul.addr %s411, 216
          %s413 = scalar_lea.vmem [#allocation2], %s412
          %s415 = ssub.s32 3456, 3456
          %416 = vsyncadd %s410, %s415
          %s417 = smul.addr %s29, 54
          %s418 = smul.addr %s417, 64
          %s419 = scalar_lea.hbm %s0, %s418
          %s420 = sshll.u32 %s413, 4
          %s421 = int_to_ptr.vmem [resolvable:$true] %s420
          %426 = dma.hbm_to_vmem [thread:$0]  %s419, 3456, %s421, %s410, 64, 64, 4
        $region60: #{tpu_custom_call.1} parent=55 // pred_fallthru
          _
        // Predicated region
        $region61: #{tpu_custom_call.1} parent=55 // pred_check
          %p427 = pneg %p75
        $region62: #{tpu_custom_call.1} parent=55 // pred_check_branch
          %429 = sbr.rel (%p427) target = $region64
        $region63: #{tpu_custom_call.1} parent=55 // pred_region
          %s430 = sand.u32 %s29, 1
          %s431 = scalar_lea.sflag [#allocation6], %s430
          %s432 = sand.u32 %s65, 1
          %s433 = smul.addr %s432, 128
          %s434 = scalar_lea.vmem [#allocation5], %s433
          %s436 = ssub.s32 2048, 2048
          %437 = vsyncadd %s431, %s436
          %s438 = smul.addr %s29, 32
          %s439 = smul.addr %s438, 64
          %s440 = scalar_lea.hbm %s1, %s439
          %s441 = sshll.u32 %s434, 4
          %s442 = int_to_ptr.vmem [resolvable:$true] %s441
          %447 = dma.hbm_to_vmem [thread:$0]  %s440, 2048, %s442, %s431, 64, 64, 4
        $region64: #{tpu_custom_call.1} parent=55 // pred_fallthru
          _
      $region56: #{tpu_custom_call.1} parent=5 // pred_fallthru
        _
      %p448 = scmp.le.s32.totalorder 1, %s29
      %p449 = scmp.lt.s32.totalorder %s29, 3
      %p450 = pnand %p448, %p449
      %p451 = pneg %p450
      // Predicated region
      $region65: #{tpu_custom_call.1} parent=5 // pred_check
        _
      $region66: #{tpu_custom_call.1} parent=5 // pred_check_branch
        %453 = sbr.rel (%p450) target = $region68
      $region67: #{tpu_custom_call.1} parent=5 // pred_region
        %s454 = ssub.s32 %s29, 1
        %s455 = sand.u32 %s42, 1
        %s456 = scalar_lea.sflag [#allocation3], %s455
        %s457 = sand.u32 %s42, 1
        %s458 = smul.addr %s457, 216
        %s459 = scalar_lea.vmem [#allocation2], %s458
        // Predicated region
        $region69: #{tpu_custom_call.1} parent=67 // pred_check
          %p460 = pneg %p55
        $region70: #{tpu_custom_call.1} parent=67 // pred_check_branch
          %462 = sbr.rel (%p460) target = $region72
        $region71: #{tpu_custom_call.1} parent=67 // pred_region
          %463 = dma.done %s456, 3456
        $region72: #{tpu_custom_call.1} parent=67 // pred_fallthru
          _
        %s464 = sand.u32 %s34, 1
        %s465 = scalar_lea.sflag [#allocation6], %s464
        %s466 = sand.u32 %s68, 1
        %s467 = smul.addr %s466, 128
        %s468 = scalar_lea.vmem [#allocation5], %s467
        // Predicated region
        $region73: #{tpu_custom_call.1} parent=67 // pred_check
          %p469 = pneg %p81
        $region74: #{tpu_custom_call.1} parent=67 // pred_check_branch
          %471 = sbr.rel (%p469) target = $region76
        $region75: #{tpu_custom_call.1} parent=67 // pred_region
          %472 = dma.done %s465, 2048
        $region76: #{tpu_custom_call.1} parent=67 // pred_fallthru
          _
        // Predicated region
        $region77: #{tpu_custom_call.1} parent=67 // pred_check
          %p473 = pneg %p102
        $region78: #{tpu_custom_call.1} parent=67 // pred_check_branch
          %475 = sbr.rel (%p473) target = $region80
        $region79: #{tpu_custom_call.1} parent=67 // pred_region
          %476 = dma.done [#allocation6], 6912
        $region80: #{tpu_custom_call.1} parent=67 // pred_fallthru
          _
        // Predicated region
        $region81: #{tpu_custom_call.1} parent=67 // pred_check
          %p477 = pneg %p123
        $region82: #{tpu_custom_call.1} parent=67 // pred_check_branch
          %479 = sbr.rel (%p477) target = $region84
        $region83: #{tpu_custom_call.1} parent=67 // pred_region
          %480 = dma.done [#allocation9], 1024
        $region84: #{tpu_custom_call.1} parent=67 // pred_fallthru
          _
        // Predicated region
        $region85: #{tpu_custom_call.1} parent=67 // pred_check
          %p481 = pneg %p186
        $region86: #{tpu_custom_call.1} parent=67 // pred_check_branch
          %483 = sbr.rel (%p481) target = $region88
        $region87: #{tpu_custom_call.1} parent=67 // pred_region
          %484 = dma.done [#allocation9], 9216
        $region88: #{tpu_custom_call.1} parent=67 // pred_fallthru
          _
        // Predicated region
        $region89: #{tpu_custom_call.1} parent=67 // pred_check
          %p485 = pneg %p249
        $region90: #{tpu_custom_call.1} parent=67 // pred_check_branch
          %487 = sbr.rel (%p485) target = $region92
        $region91: #{tpu_custom_call.1} parent=67 // pred_region
          %488 = dma.done [#allocation12], 1024
        $region92: #{tpu_custom_call.1} parent=67 // pred_fallthru
          _
        %s489 = sand.u32 %s42, 1
        %s490 = scalar_lea.sflag [#allocation3], %s489
        %s491 = sand.u32 %s42, 1
        %s492 = smul.addr %s491, 216
        %s493 = scalar_lea.vmem [#allocation2], %s492
        %p494 = pneg %p55
        %p495 = pneg %p52
        %s496 = sand.u32 %s34, 1
        %s497 = scalar_lea.sflag [#allocation6], %s496
        %s498 = sand.u32 %s68, 1
        %s499 = smul.addr %s498, 128
        %s500 = scalar_lea.vmem [#allocation5], %s499
        %p501 = pneg %p81
        %p502 = pneg %p78
        %p503 = pneg %p102
        %p504 = pneg %p99
        %p505 = pneg %p123
        %p506 = pneg %p120
        %p507 = pneg %p144
        %p508 = pneg %p141
        %p509 = pneg %p165
        %p510 = pneg %p162
        %p511 = pneg %p186
        %p512 = pneg %p183
        %p513 = pneg %p207
        %p514 = pneg %p204
        %p515 = pneg %p228
        %p516 = pneg %p225
        %p517 = pneg %p249
        %p518 = pneg %p246
        %p519 = pneg %p270
        %p520 = pneg %p267
        %p521 = pneg %p291
        %p522 = pneg %p288
        %p523 = pneg %p317
        %p524 = pneg %p314
        %s525 = sand.u32 %s304, 1
        %s526 = scalar_lea.sflag [#allocation4], %s525
        %s527 = sand.u32 %s304, 1
        %s528 = smul.addr %s527, 256
        %s529 = scalar_lea.vmem [#allocation13], %s528
        %v531 = vld [vmem:[%s459] sm:$0xf]
        %v532 = vld [vmem:[%s459 + $0x4] sm:$0xf]
        %v533 = vld [vmem:[%s459 + $0x8] sm:$0xf]
        %v534 = vld [vmem:[%s459 + $0xc] sm:$0xf]
        %v535 = vld [vmem:[%s459 + $0x10] sm:$0xf]
        %v536 = vld [vmem:[%s459 + $0x14] sm:$0xf]
        %v537 = vld [vmem:[%s459 + $0x18] sm:$0xf]
        %v538 = vld [vmem:[%s459 + $0x1c] sm:$0xf]
        %v539 = vld [vmem:[%s459 + $0x20] sm:$0xf]
        %v540 = vld [vmem:[%s459 + $0x24] sm:$0xf]
        %v541 = vld [vmem:[%s459 + $0x28] sm:$0xf]
        %v542 = vld [vmem:[%s459 + $0x2c] sm:$0xf]
        %v543 = vld [vmem:[%s459 + $0x30] sm:$0xf]
        %v544 = vld [vmem:[%s459 + $0x34] sm:$0xf]
        %v545 = vld [vmem:[%s459 + $0x38] sm:$0xf]
        %v546 = vld [vmem:[%s459 + $0x3c] sm:$0xf]
        %v547 = vld [vmem:[%s459 + $0x40] sm:$0xf]
        %v548 = vld [vmem:[%s459 + $0x44] sm:$0xf]
        %v549 = vld [vmem:[%s459 + $0x48] sm:$0xf]
        %v550 = vld [vmem:[%s459 + $0x4c] sm:$0xf]
        %v551 = vld [vmem:[%s459 + $0x50] sm:$0xf]
        %v552 = vld [vmem:[%s459 + $0x54] sm:$0xf]
        %v553 = vld [vmem:[%s459 + $0x58] sm:$0xf]
        %v554 = vld [vmem:[%s459 + $0x5c] sm:$0xf]
        %v555 = vld [vmem:[%s459 + $0x60] sm:$0xf]
        %v556 = vld [vmem:[%s459 + $0x64] sm:$0xf]
        %v557 = vld [vmem:[%s459 + $0x68] sm:$0xf]
        %v558 = vld [vmem:[%s459 + $0x6c] sm:$0xf]
        %v559 = vld [vmem:[%s459 + $0x70] sm:$0xf]
        %v560 = vld [vmem:[%s459 + $0x74] sm:$0xf]
        %v561 = vld [vmem:[%s459 + $0x78] sm:$0xf]
        %v562 = vld [vmem:[%s459 + $0x7c] sm:$0xf]
        %v563 = vld [vmem:[%s459 + $0x80] sm:$0xf]
        %v564 = vld [vmem:[%s459 + $0x84] sm:$0xf]
        %v565 = vld [vmem:[%s459 + $0x88] sm:$0xf]
        %v566 = vld [vmem:[%s459 + $0x8c] sm:$0xf]
        %v567 = vld [vmem:[%s459 + $0x90] sm:$0xf]
        %v568 = vld [vmem:[%s459 + $0x94] sm:$0xf]
        %v569 = vld [vmem:[%s459 + $0x98] sm:$0xf]
        %v570 = vld [vmem:[%s459 + $0x9c] sm:$0xf]
        %v571 = vld [vmem:[%s459 + $0xa0] sm:$0xf]
        %v572 = vld [vmem:[%s459 + $0xa4] sm:$0xf]
        %v573 = vld [vmem:[%s459 + $0xa8] sm:$0xf]
        %v574 = vld [vmem:[%s459 + $0xac] sm:$0xf]
        %v575 = vld [vmem:[%s459 + $0xb0] sm:$0xf]
        %v576 = vld [vmem:[%s459 + $0xb4] sm:$0xf]
        %v577 = vld [vmem:[%s459 + $0xb8] sm:$0xf]
        %v578 = vld [vmem:[%s459 + $0xbc] sm:$0xf]
        %v579 = vld [vmem:[%s459 + $0xc0] sm:$0xf]
        %v580 = vld [vmem:[%s459 + $0xc4] sm:$0xf]
        %v581 = vld [vmem:[%s459 + $0xc8] sm:$0xf]
        %v582 = vld [vmem:[%s459 + $0xcc] sm:$0xf]
        %v583 = vld [vmem:[%s459 + $0xd0] sm:$0xf]
        %v584 = vld [vmem:[%s459 + $0xd4] sm:$0xf]
        %v585 = vld [vmem:[#allocation8] sm:$0xf]
        %v586 = vld [vmem:[#allocation8 + $0x4] sm:$0xf]
        %v587 = vld [vmem:[#allocation8 + $0x8] sm:$0xf]
        %v588 = vld [vmem:[#allocation8 + $0xc] sm:$0xf]
        %v589 = vld [vmem:[#allocation8 + $0x10] sm:$0xf]
        %v590 = vld [vmem:[#allocation8 + $0x14] sm:$0xf]
        %v591 = vld [vmem:[#allocation8 + $0x18] sm:$0xf]
        %v592 = vld [vmem:[#allocation8 + $0x1c] sm:$0xf]
        %v593 = vld [vmem:[#allocation8 + $0x20] sm:$0xf]
        %v594 = vld [vmem:[#allocation8 + $0x24] sm:$0xf]
        %v595 = vld [vmem:[#allocation8 + $0x28] sm:$0xf]
        %v596 = vld [vmem:[#allocation8 + $0x2c] sm:$0xf]
        %v597 = vld [vmem:[#allocation8 + $0x30] sm:$0xf]
        %v598 = vld [vmem:[#allocation8 + $0x34] sm:$0xf]
        %v599 = vld [vmem:[#allocation8 + $0x38] sm:$0xf]
        %v600 = vld [vmem:[#allocation8 + $0x3c] sm:$0xf]
        %v655 = vunpack.c.l.b16 %v531
        %v656 = vunpack.c.l.b16 %v532
        %v657 = vunpack.c.l.b16 %v533
        %v658 = vunpack.c.l.b16 %v534
        %v659 = vunpack.c.l.b16 %v535
        %v660 = vunpack.c.l.b16 %v536
        %v661 = vunpack.c.l.b16 %v537
        %v662 = vunpack.c.l.b16 %v538
        %v663 = vunpack.c.l.b16 %v539
        %v664 = vunpack.c.l.b16 %v540
        %v665 = vunpack.c.l.b16 %v541
        %v666 = vunpack.c.l.b16 %v542
        %v667 = vunpack.c.l.b16 %v543
        %v668 = vunpack.c.l.b16 %v544
        %v669 = vunpack.c.l.b16 %v545
        %v670 = vunpack.c.l.b16 %v546
        %v671 = vunpack.c.l.b16 %v547
        %v672 = vunpack.c.l.b16 %v548
        %v673 = vunpack.c.l.b16 %v549
        %v674 = vunpack.c.l.b16 %v550
        %v675 = vunpack.c.l.b16 %v551
        %v676 = vunpack.c.l.b16 %v552
        %v677 = vunpack.c.l.b16 %v553
        %v678 = vunpack.c.l.b16 %v554
        %v679 = vunpack.c.l.b16 %v555
        %v680 = vunpack.c.l.b16 %v556
        %v681 = vunpack.c.l.b16 %v557
        %v682 = vunpack.c.l.b16 %v558
        %v683 = vunpack.c.l.b16 %v559
        %v684 = vunpack.c.l.b16 %v560
        %v685 = vunpack.c.l.b16 %v561
        %v686 = vunpack.c.l.b16 %v562
        %v687 = vunpack.c.l.b16 %v563
        %v688 = vunpack.c.l.b16 %v564
        %v689 = vunpack.c.l.b16 %v565
        %v690 = vunpack.c.l.b16 %v566
        %v691 = vunpack.c.l.b16 %v567
        %v692 = vunpack.c.l.b16 %v568
        %v693 = vunpack.c.l.b16 %v569
        %v694 = vunpack.c.l.b16 %v570
        %v695 = vunpack.c.l.b16 %v571
        %v696 = vunpack.c.l.b16 %v572
        %v697 = vunpack.c.l.b16 %v573
        %v698 = vunpack.c.l.b16 %v574
        %v699 = vunpack.c.l.b16 %v575
        %v700 = vunpack.c.l.b16 %v576
        %v701 = vunpack.c.l.b16 %v577
        %v702 = vunpack.c.l.b16 %v578
        %v703 = vunpack.c.l.b16 %v579
        %v704 = vunpack.c.l.b16 %v580
        %v705 = vunpack.c.l.b16 %v581
        %v706 = vunpack.c.l.b16 %v582
        %v707 = vunpack.c.l.b16 %v583
        %v708 = vunpack.c.l.b16 %v584
        %v709 = vpack.c.b16 %v656, %v655
        %v710 = vpack.c.b16 %v658, %v657
        %v711 = vpack.c.b16 %v660, %v659
        %v712 = vpack.c.b16 %v662, %v661
        %v713 = vpack.c.b16 %v664, %v663
        %v714 = vpack.c.b16 %v666, %v665
        %v715 = vpack.c.b16 %v668, %v667
        %v716 = vpack.c.b16 %v670, %v669
        %v717 = vpack.c.b16 %v672, %v671
        %v718 = vpack.c.b16 %v674, %v673
        %v719 = vpack.c.b16 %v676, %v675
        %v720 = vpack.c.b16 %v678, %v677
        %v721 = vpack.c.b16 %v680, %v679
        %v722 = vpack.c.b16 %v682, %v681
        %v723 = vpack.c.b16 %v684, %v683
        %v724 = vpack.c.b16 %v686, %v685
        %v725 = vpack.c.b16 %v688, %v687
        %v726 = vpack.c.b16 %v690, %v689
        %v727 = vpack.c.b16 %v692, %v691
        %v728 = vpack.c.b16 %v694, %v693
        %v729 = vpack.c.b16 %v696, %v695
        %v730 = vpack.c.b16 %v698, %v697
        %v731 = vpack.c.b16 %v700, %v699
        %v732 = vpack.c.b16 %v702, %v701
        %v733 = vpack.c.b16 %v704, %v703
        %v734 = vpack.c.b16 %v706, %v705
        %v735 = vpack.c.b16 %v708, %v707
        %v779 = vunpack.c.l.b16 %v585
        %v780 = vunpack.c.l.b16 %v586
        %v781 = vunpack.c.l.b16 %v587
        %v782 = vunpack.c.l.b16 %v588
        %v783 = vunpack.c.l.b16 %v589
        %v784 = vunpack.c.l.b16 %v590
        %v785 = vunpack.c.l.b16 %v591
        %v786 = vunpack.c.l.b16 %v592
        %v787 = vunpack.c.l.b16 %v593
        %v788 = vunpack.c.l.b16 %v594
        %v789 = vunpack.c.l.b16 %v595
        %v790 = vunpack.c.l.b16 %v596
        %v791 = vunpack.c.l.b16 %v597
        %v792 = vunpack.c.l.b16 %v598
        %v793 = vunpack.c.l.b16 %v599
        %v794 = vunpack.c.l.b16 %v600
        %v795 = vpack.c.b16 %v780, %v779
        %v796 = vpack.c.b16 %v782, %v781
        %v797 = vpack.c.b16 %v784, %v783
        %v798 = vpack.c.b16 %v786, %v785
        %v799 = vpack.c.b16 %v788, %v787
        %v800 = vpack.c.b16 %v790, %v789
        %v801 = vpack.c.b16 %v792, %v791
        %v802 = vpack.c.b16 %v794, %v793
        %811 = vmatprep.subr.bf16.mxu0 0
        %812 = vmatpush1.bf16.msra.mxu0 %v802
        %813 = vmatprep.subr.bf16.mxu0 0
        %814 = vmatpush1.bf16.msra.mxu0 %v801
        %815 = vmatprep.subr.bf16.mxu0 0
        %816 = vmatpush1.bf16.msra.mxu0 %v800
        %817 = vmatprep.subr.bf16.mxu0 0
        %818 = vmatpush1.bf16.msra.mxu0 %v799
        %819 = vmatprep.subr.bf16.mxu0 0
        %820 = vmatpush1.bf16.msra.mxu0 %v798
        %821 = vmatprep.subr.bf16.mxu0 0
        %822 = vmatpush1.bf16.msra.mxu0 %v797
        %823 = vmatprep.subr.bf16.mxu0 0
        %824 = vmatpush1.bf16.msra.mxu0 %v796
        %825 = vmatprep.subr.bf16.mxu0 0
        %826 = vmatpush1.bf16.msra.mxu0 %v795
        %827 = vmatprep.subr.bf16.mxu0 0
        %828 = vmatpush2.bf16.msra.mxu0 0
        %829 = vmatprep.subr.bf16.mxu0 0
        %830 = vmatpush2.bf16.msra.mxu0 0
        %831 = vmatprep.subr.bf16.mxu0 0
        %832 = vmatpush2.bf16.msra.mxu0 0
        %833 = vmatprep.subr.bf16.mxu0 0
        %834 = vmatpush2.bf16.msra.mxu0 0
        %835 = vmatprep.subr.bf16.mxu0 0
        %836 = vmatpush2.bf16.msra.mxu0 0
        %837 = vmatprep.subr.bf16.mxu0 0
        %838 = vmatpush2.bf16.msra.mxu0 0
        %839 = vmatprep.subr.bf16.mxu0 0
        %840 = vmatpush2.bf16.msra.mxu0 0
        %841 = vmatprep.subr.bf16.mxu0 0
        %842 = vmatpush2.bf16.msra.mxu0 0
        %843 = vmatprep.mubr.bf16.mxu0 0
        %844 = vmatmul.mubr.bf16.gmra.mxu0 %v709
        %v845 = vpop.f32.mrf.mxu0
        %v846 = vadd.f32 0.0, %v845
        %v847 = vpop.f32.mrf.mxu0
        %v848 = vpop.f32.mrf.mxu0
        %v849 = vadd.f32 0.0, %v848
        %v850 = vpop.f32.mrf.mxu0
        %851 = vmatprep.mubr.bf16.mxu0 0
        %852 = vmatmul.mubr.bf16.gmra.mxu0 %v710
        %v853 = vpop.f32.mrf.mxu0
        %v854 = vadd.f32 0.0, %v853
        %v855 = vpop.f32.mrf.mxu0
        %v856 = vpop.f32.mrf.mxu0
        %v857 = vadd.f32 0.0, %v856
        %v858 = vpop.f32.mrf.mxu0
        %859 = vmatprep.mubr.bf16.mxu0 0
        %860 = vmatmul.mubr.bf16.gmra.mxu0 %v711
        %v861 = vpop.f32.mrf.mxu0
        %v862 = vadd.f32 0.0, %v861
        %v863 = vpop.f32.mrf.mxu0
        %v864 = vpop.f32.mrf.mxu0
        %v865 = vadd.f32 0.0, %v864
        %v866 = vpop.f32.mrf.mxu0
        %867 = vmatprep.mubr.bf16.mxu0 0
        %868 = vmatmul.mubr.bf16.gmra.mxu0 %v712
        %v869 = vpop.f32.mrf.mxu0
        %v870 = vadd.f32 0.0, %v869
        %v871 = vpop.f32.mrf.mxu0
        %v872 = vpop.f32.mrf.mxu0
        %v873 = vadd.f32 0.0, %v872
        %v874 = vpop.f32.mrf.mxu0
        %875 = vmatprep.mubr.bf16.mxu0 0
        %876 = vmatmul.mubr.bf16.gmra.mxu0 %v713
        %v877 = vpop.f32.mrf.mxu0
        %v878 = vadd.f32 0.0, %v877
        %v879 = vpop.f32.mrf.mxu0
        %v880 = vpop.f32.mrf.mxu0
        %v881 = vadd.f32 0.0, %v880
        %v882 = vpop.f32.mrf.mxu0
        %883 = vmatprep.mubr.bf16.mxu0 0
        %884 = vmatmul.mubr.bf16.gmra.mxu0 %v714
        %v885 = vpop.f32.mrf.mxu0
        %v886 = vadd.f32 0.0, %v885
        %v887 = vpop.f32.mrf.mxu0
        %v888 = vpop.f32.mrf.mxu0
        %v889 = vadd.f32 0.0, %v888
        %v890 = vpop.f32.mrf.mxu0
        %891 = vmatprep.mubr.bf16.mxu0 0
        %892 = vmatmul.mubr.bf16.gmra.mxu0 %v715
        %v893 = vpop.f32.mrf.mxu0
        %v894 = vadd.f32 0.0, %v893
        %v895 = vpop.f32.mrf.mxu0
        %v896 = vpop.f32.mrf.mxu0
        %v897 = vadd.f32 0.0, %v896
        %v898 = vpop.f32.mrf.mxu0
        %899 = vmatprep.mubr.bf16.mxu0 0
        %900 = vmatmul.mubr.bf16.gmra.mxu0 %v716
        %v901 = vpop.f32.mrf.mxu0
        %v902 = vadd.f32 0.0, %v901
        %v903 = vpop.f32.mrf.mxu0
        %v904 = vpop.f32.mrf.mxu0
        %v905 = vadd.f32 0.0, %v904
        %v906 = vpop.f32.mrf.mxu0
        %907 = vmatprep.mubr.bf16.mxu0 0
        %908 = vmatmul.mubr.bf16.gmra.mxu0 %v717
        %v909 = vpop.f32.mrf.mxu0
        %v910 = vadd.f32 0.0, %v909
        %v911 = vpop.f32.mrf.mxu0
        %v912 = vpop.f32.mrf.mxu0
        %v913 = vadd.f32 0.0, %v912
        %v914 = vpop.f32.mrf.mxu0
        %915 = vmatprep.mubr.bf16.mxu0 0
        %916 = vmatmul.mubr.bf16.gmra.mxu0 %v718
        %v917 = vpop.f32.mrf.mxu0
        %v918 = vadd.f32 0.0, %v917
        %v919 = vpop.f32.mrf.mxu0
        %v920 = vpop.f32.mrf.mxu0
        %v921 = vadd.f32 0.0, %v920
        %v922 = vpop.f32.mrf.mxu0
        %923 = vmatprep.mubr.bf16.mxu0 0
        %924 = vmatmul.mubr.bf16.gmra.mxu0 %v719
        %v925 = vpop.f32.mrf.mxu0
        %v926 = vadd.f32 0.0, %v925
        %v927 = vpop.f32.mrf.mxu0
        %v928 = vpop.f32.mrf.mxu0
        %v929 = vadd.f32 0.0, %v928
        %v930 = vpop.f32.mrf.mxu0
        %931 = vmatprep.mubr.bf16.mxu0 0
        %932 = vmatmul.mubr.bf16.gmra.mxu0 %v720
        %v933 = vpop.f32.mrf.mxu0
        %v934 = vadd.f32 0.0, %v933
        %v935 = vpop.f32.mrf.mxu0
        %v936 = vpop.f32.mrf.mxu0
        %v937 = vadd.f32 0.0, %v936
        %v938 = vpop.f32.mrf.mxu0
        %939 = vmatprep.mubr.bf16.mxu0 0
        %940 = vmatmul.mubr.bf16.gmra.mxu0 %v721
        %v941 = vpop.f32.mrf.mxu0
        %v942 = vadd.f32 0.0, %v941
        %v943 = vpop.f32.mrf.mxu0
        %v944 = vpop.f32.mrf.mxu0
        %v945 = vadd.f32 0.0, %v944
        %v946 = vpop.f32.mrf.mxu0
        %947 = vmatprep.mubr.bf16.mxu0 0
        %948 = vmatmul.mubr.bf16.gmra.mxu0 %v722
        %v949 = vpop.f32.mrf.mxu0
        %v950 = vadd.f32 0.0, %v949
        %v951 = vpop.f32.mrf.mxu0
        %v952 = vpop.f32.mrf.mxu0
        %v953 = vadd.f32 0.0, %v952
        %v954 = vpop.f32.mrf.mxu0
        %955 = vmatprep.mubr.bf16.mxu0 0
        %956 = vmatmul.mubr.bf16.gmra.mxu0 %v723
        %v957 = vpop.f32.mrf.mxu0
        %v958 = vadd.f32 0.0, %v957
        %v959 = vpop.f32.mrf.mxu0
        %v960 = vpop.f32.mrf.mxu0
        %v961 = vadd.f32 0.0, %v960
        %v962 = vpop.f32.mrf.mxu0
        %963 = vmatprep.mubr.bf16.mxu0 0
        %964 = vmatmul.mubr.bf16.gmra.mxu0 %v724
        %v965 = vpop.f32.mrf.mxu0
        %v966 = vadd.f32 0.0, %v965
        %v967 = vpop.f32.mrf.mxu0
        %v968 = vpop.f32.mrf.mxu0
        %v969 = vadd.f32 0.0, %v968
        %v970 = vpop.f32.mrf.mxu0
        %971 = vmatprep.mubr.bf16.mxu0 0
        %972 = vmatmul.mubr.bf16.gmra.mxu0 %v725
        %v973 = vpop.f32.mrf.mxu0
        %v974 = vadd.f32 0.0, %v973
        %v975 = vpop.f32.mrf.mxu0
        %v976 = vpop.f32.mrf.mxu0
        %v977 = vadd.f32 0.0, %v976
        %v978 = vpop.f32.mrf.mxu0
        %979 = vmatprep.mubr.bf16.mxu0 0
        %980 = vmatmul.mubr.bf16.gmra.mxu0 %v726
        %v981 = vpop.f32.mrf.mxu0
        %v982 = vadd.f32 0.0, %v981
        %v983 = vpop.f32.mrf.mxu0
        %v984 = vpop.f32.mrf.mxu0
        %v985 = vadd.f32 0.0, %v984
        %v986 = vpop.f32.mrf.mxu0
        %987 = vmatprep.mubr.bf16.mxu0 0
        %988 = vmatmul.mubr.bf16.gmra.mxu0 %v727
        %v989 = vpop.f32.mrf.mxu0
        %v990 = vadd.f32 0.0, %v989
        %v991 = vpop.f32.mrf.mxu0
        %v992 = vpop.f32.mrf.mxu0
        %v993 = vadd.f32 0.0, %v992
        %v994 = vpop.f32.mrf.mxu0
        %995 = vmatprep.mubr.bf16.mxu0 0
        %996 = vmatmul.mubr.bf16.gmra.mxu0 %v728
        %v997 = vpop.f32.mrf.mxu0
        %v998 = vadd.f32 0.0, %v997
        %v999 = vpop.f32.mrf.mxu0
        %v1000 = vpop.f32.mrf.mxu0
        %v1001 = vadd.f32 0.0, %v1000
        %v1002 = vpop.f32.mrf.mxu0
        %1003 = vmatprep.mubr.bf16.mxu0 0
        %1004 = vmatmul.mubr.bf16.gmra.mxu0 %v729
        %v1005 = vpop.f32.mrf.mxu0
        %v1006 = vadd.f32 0.0, %v1005
        %v1007 = vpop.f32.mrf.mxu0
        %v1008 = vpop.f32.mrf.mxu0
        %v1009 = vadd.f32 0.0, %v1008
        %v1010 = vpop.f32.mrf.mxu0
        %1011 = vmatprep.mubr.bf16.mxu0 0
        %1012 = vmatmul.mubr.bf16.gmra.mxu0 %v730
        %v1013 = vpop.f32.mrf.mxu0
        %v1014 = vadd.f32 0.0, %v1013
        %v1015 = vpop.f32.mrf.mxu0
        %v1016 = vpop.f32.mrf.mxu0
        %v1017 = vadd.f32 0.0, %v1016
        %v1018 = vpop.f32.mrf.mxu0
        %1019 = vmatprep.mubr.bf16.mxu0 0
        %1020 = vmatmul.mubr.bf16.gmra.mxu0 %v731
        %v1021 = vpop.f32.mrf.mxu0
        %v1022 = vadd.f32 0.0, %v1021
        %v1023 = vpop.f32.mrf.mxu0
        %v1024 = vpop.f32.mrf.mxu0
        %v1025 = vadd.f32 0.0, %v1024
        %v1026 = vpop.f32.mrf.mxu0
        %1027 = vmatprep.mubr.bf16.mxu0 0
        %1028 = vmatmul.mubr.bf16.gmra.mxu0 %v732
        %v1029 = vpop.f32.mrf.mxu0
        %v1030 = vadd.f32 0.0, %v1029
        %v1031 = vpop.f32.mrf.mxu0
        %v1032 = vpop.f32.mrf.mxu0
        %v1033 = vadd.f32 0.0, %v1032
        %v1034 = vpop.f32.mrf.mxu0
        %1035 = vmatprep.mubr.bf16.mxu0 0
        %1036 = vmatmul.mubr.bf16.gmra.mxu0 %v733
        %v1037 = vpop.f32.mrf.mxu0
        %v1038 = vadd.f32 0.0, %v1037
        %v1039 = vpop.f32.mrf.mxu0
        %v1040 = vpop.f32.mrf.mxu0
        %v1041 = vadd.f32 0.0, %v1040
        %v1042 = vpop.f32.mrf.mxu0
        %1043 = vmatprep.mubr.bf16.mxu0 0
        %1044 = vmatmul.mubr.bf16.gmra.mxu0 %v734
        %v1045 = vpop.f32.mrf.mxu0
        %v1046 = vadd.f32 0.0, %v1045
        %v1047 = vpop.f32.mrf.mxu0
        %v1048 = vpop.f32.mrf.mxu0
        %v1049 = vadd.f32 0.0, %v1048
        %v1050 = vpop.f32.mrf.mxu0
        %1051 = vmatprep.mubr.bf16.mxu0 0
        %1052 = vmatmul.mubr.bf16.gmra.mxu0 %v735
        %v1053 = vpop.f32.mrf.mxu0
        %v1054 = vadd.f32 0.0, %v1053
        %v1055 = vpop.f32.mrf.mxu0
        %v1056 = vpop.f32.mrf.mxu0
        %v1057 = vadd.f32 0.0, %v1056
        %v1058 = vpop.f32.mrf.mxu0
        %1059 = vdwg.mxu0
        %v1060 = vld [vmem:[%s4] sm:$0x1]
        %v1062 = vlaneseq
        %v1063 = vshrl.u32 %v1062, 7
        %v1064 = vsub.s32 0, %v1063
        %v1065 = vrot.slane %v1060, %v1064
        %v1067 = vmul.f32 %v846, %v1065
        %v1068 = vmul.f32 %v849, %v1065
        %v1069 = vmul.f32 %v854, %v1065
        %v1070 = vmul.f32 %v857, %v1065
        %v1071 = vmul.f32 %v862, %v1065
        %v1072 = vmul.f32 %v865, %v1065
        %v1073 = vmul.f32 %v870, %v1065
        %v1074 = vmul.f32 %v873, %v1065
        %v1075 = vmul.f32 %v878, %v1065
        %v1076 = vmul.f32 %v881, %v1065
        %v1077 = vmul.f32 %v886, %v1065
        %v1078 = vmul.f32 %v889, %v1065
        %v1079 = vmul.f32 %v894, %v1065
        %v1080 = vmul.f32 %v897, %v1065
        %v1081 = vmul.f32 %v902, %v1065
        %v1082 = vmul.f32 %v905, %v1065
        %v1083 = vmul.f32 %v910, %v1065
        %v1084 = vmul.f32 %v913, %v1065
        %v1085 = vmul.f32 %v918, %v1065
        %v1086 = vmul.f32 %v921, %v1065
        %v1087 = vmul.f32 %v926, %v1065
        %v1088 = vmul.f32 %v929, %v1065
        %v1089 = vmul.f32 %v934, %v1065
        %v1090 = vmul.f32 %v937, %v1065
        %v1091 = vmul.f32 %v942, %v1065
        %v1092 = vmul.f32 %v945, %v1065
        %v1093 = vmul.f32 %v950, %v1065
        %v1094 = vmul.f32 %v953, %v1065
        %v1095 = vmul.f32 %v958, %v1065
        %v1096 = vmul.f32 %v961, %v1065
        %v1097 = vmul.f32 %v966, %v1065
        %v1098 = vmul.f32 %v969, %v1065
        %v1099 = vmul.f32 %v974, %v1065
        %v1100 = vmul.f32 %v977, %v1065
        %v1101 = vmul.f32 %v982, %v1065
        %v1102 = vmul.f32 %v985, %v1065
        %v1103 = vmul.f32 %v990, %v1065
        %v1104 = vmul.f32 %v993, %v1065
        %v1105 = vmul.f32 %v998, %v1065
        %v1106 = vmul.f32 %v1001, %v1065
        %v1107 = vmul.f32 %v1006, %v1065
        %v1108 = vmul.f32 %v1009, %v1065
        %v1109 = vmul.f32 %v1014, %v1065
        %v1110 = vmul.f32 %v1017, %v1065
        %v1111 = vmul.f32 %v1022, %v1065
        %v1112 = vmul.f32 %v1025, %v1065
        %v1113 = vmul.f32 %v1030, %v1065
        %v1114 = vmul.f32 %v1033, %v1065
        %v1115 = vmul.f32 %v1038, %v1065
        %v1116 = vmul.f32 %v1041, %v1065
        %v1117 = vmul.f32 %v1046, %v1065
        %v1118 = vmul.f32 %v1049, %v1065
        %v1119 = vmul.f32 %v1054, %v1065
        %v1120 = vmul.f32 %v1057, %v1065
        %v1121 = vld [vmem:[%s5] sm:$0x1]
        %v1123 = vlaneseq
        %v1124 = vshrl.u32 %v1123, 7
        %v1125 = vsub.s32 0, %v1124
        %v1126 = vrot.slane %v1121, %v1125
        %v1128 = vadd.f32 %v1067, %v1126
        %v1129 = vadd.f32 %v1068, %v1126
        %v1130 = vadd.f32 %v1069, %v1126
        %v1131 = vadd.f32 %v1070, %v1126
        %v1132 = vadd.f32 %v1071, %v1126
        %v1133 = vadd.f32 %v1072, %v1126
        %v1134 = vadd.f32 %v1073, %v1126
        %v1135 = vadd.f32 %v1074, %v1126
        %v1136 = vadd.f32 %v1075, %v1126
        %v1137 = vadd.f32 %v1076, %v1126
        %v1138 = vadd.f32 %v1077, %v1126
        %v1139 = vadd.f32 %v1078, %v1126
        %v1140 = vadd.f32 %v1079, %v1126
        %v1141 = vadd.f32 %v1080, %v1126
        %v1142 = vadd.f32 %v1081, %v1126
        %v1143 = vadd.f32 %v1082, %v1126
        %v1144 = vadd.f32 %v1083, %v1126
        %v1145 = vadd.f32 %v1084, %v1126
        %v1146 = vadd.f32 %v1085, %v1126
        %v1147 = vadd.f32 %v1086, %v1126
        %v1148 = vadd.f32 %v1087, %v1126
        %v1149 = vadd.f32 %v1088, %v1126
        %v1150 = vadd.f32 %v1089, %v1126
        %v1151 = vadd.f32 %v1090, %v1126
        %v1152 = vadd.f32 %v1091, %v1126
        %v1153 = vadd.f32 %v1092, %v1126
        %v1154 = vadd.f32 %v1093, %v1126
        %v1155 = vadd.f32 %v1094, %v1126
        %v1156 = vadd.f32 %v1095, %v1126
        %v1157 = vadd.f32 %v1096, %v1126
        %v1158 = vadd.f32 %v1097, %v1126
        %v1159 = vadd.f32 %v1098, %v1126
        %v1160 = vadd.f32 %v1099, %v1126
        %v1161 = vadd.f32 %v1100, %v1126
        %v1162 = vadd.f32 %v1101, %v1126
        %v1163 = vadd.f32 %v1102, %v1126
        %v1164 = vadd.f32 %v1103, %v1126
        %v1165 = vadd.f32 %v1104, %v1126
        %v1166 = vadd.f32 %v1105, %v1126
        %v1167 = vadd.f32 %v1106, %v1126
        %v1168 = vadd.f32 %v1107, %v1126
        %v1169 = vadd.f32 %v1108, %v1126
        %v1170 = vadd.f32 %v1109, %v1126
        %v1171 = vadd.f32 %v1110, %v1126
        %v1172 = vadd.f32 %v1111, %v1126
        %v1173 = vadd.f32 %v1112, %v1126
        %v1174 = vadd.f32 %v1113, %v1126
        %v1175 = vadd.f32 %v1114, %v1126
        %v1176 = vadd.f32 %v1115, %v1126
        %v1177 = vadd.f32 %v1116, %v1126
        %v1178 = vadd.f32 %v1117, %v1126
        %v1179 = vadd.f32 %v1118, %v1126
        %v1180 = vadd.f32 %v1119, %v1126
        %v1181 = vadd.f32 %v1120, %v1126
        %v1182 = vmax.f32 %v1128, 0.0
        %v1183 = vmax.f32 %v1129, 0.0
        %v1184 = vmax.f32 %v1130, 0.0
        %v1185 = vmax.f32 %v1131, 0.0
        %v1186 = vmax.f32 %v1132, 0.0
        %v1187 = vmax.f32 %v1133, 0.0
        %v1188 = vmax.f32 %v1134, 0.0
        %v1189 = vmax.f32 %v1135, 0.0
        %v1190 = vmax.f32 %v1136, 0.0
        %v1191 = vmax.f32 %v1137, 0.0
        %v1192 = vmax.f32 %v1138, 0.0
        %v1193 = vmax.f32 %v1139, 0.0
        %v1194 = vmax.f32 %v1140, 0.0
        %v1195 = vmax.f32 %v1141, 0.0
        %v1196 = vmax.f32 %v1142, 0.0
        %v1197 = vmax.f32 %v1143, 0.0
        %v1198 = vmax.f32 %v1144, 0.0
        %v1199 = vmax.f32 %v1145, 0.0
        %v1200 = vmax.f32 %v1146, 0.0
        %v1201 = vmax.f32 %v1147, 0.0
        %v1202 = vmax.f32 %v1148, 0.0
        %v1203 = vmax.f32 %v1149, 0.0
        %v1204 = vmax.f32 %v1150, 0.0
        %v1205 = vmax.f32 %v1151, 0.0
        %v1206 = vmax.f32 %v1152, 0.0
        %v1207 = vmax.f32 %v1153, 0.0
        %v1208 = vmax.f32 %v1154, 0.0
        %v1209 = vmax.f32 %v1155, 0.0
        %v1210 = vmax.f32 %v1156, 0.0
        %v1211 = vmax.f32 %v1157, 0.0
        %v1212 = vmax.f32 %v1158, 0.0
        %v1213 = vmax.f32 %v1159, 0.0
        %v1214 = vmax.f32 %v1160, 0.0
        %v1215 = vmax.f32 %v1161, 0.0
        %v1216 = vmax.f32 %v1162, 0.0
        %v1217 = vmax.f32 %v1163, 0.0
        %v1218 = vmax.f32 %v1164, 0.0
        %v1219 = vmax.f32 %v1165, 0.0
        %v1220 = vmax.f32 %v1166, 0.0
        %v1221 = vmax.f32 %v1167, 0.0
        %v1222 = vmax.f32 %v1168, 0.0
        %v1223 = vmax.f32 %v1169, 0.0
        %v1224 = vmax.f32 %v1170, 0.0
        %v1225 = vmax.f32 %v1171, 0.0
        %v1226 = vmax.f32 %v1172, 0.0
        %v1227 = vmax.f32 %v1173, 0.0
        %v1228 = vmax.f32 %v1174, 0.0
        %v1229 = vmax.f32 %v1175, 0.0
        %v1230 = vmax.f32 %v1176, 0.0
        %v1231 = vmax.f32 %v1177, 0.0
        %v1232 = vmax.f32 %v1178, 0.0
        %v1233 = vmax.f32 %v1179, 0.0
        %v1234 = vmax.f32 %v1180, 0.0
        %v1235 = vmax.f32 %v1181, 0.0
        %v1236 = vld [vmem:[#allocation7] sm:$0xff]
        %v1237 = vld [vmem:[#allocation7 + $0x8] sm:$0xff]
        %v1238 = vld [vmem:[#allocation7 + $0x10] sm:$0xff]
        %v1239 = vld [vmem:[#allocation7 + $0x18] sm:$0xff]
        %v1240 = vld [vmem:[#allocation7 + $0x20] sm:$0xff]
        %v1241 = vld [vmem:[#allocation7 + $0x28] sm:$0xff]
        %v1242 = vld [vmem:[#allocation7 + $0x30] sm:$0xff]
        %v1243 = vld [vmem:[#allocation7 + $0x38] sm:$0xff]
        %v1244 = vld [vmem:[#allocation7 + $0x40] sm:$0xff]
        %v1245 = vld [vmem:[#allocation7 + $0x48] sm:$0xff]
        %v1246 = vld [vmem:[#allocation7 + $0x50] sm:$0xff]
        %v1247 = vld [vmem:[#allocation7 + $0x58] sm:$0xff]
        %v1248 = vld [vmem:[#allocation7 + $0x60] sm:$0xff]
        %v1249 = vld [vmem:[#allocation7 + $0x68] sm:$0xff]
        %v1250 = vld [vmem:[#allocation7 + $0x70] sm:$0xff]
        %v1251 = vld [vmem:[#allocation7 + $0x78] sm:$0xff]
        %v1252 = vld [vmem:[#allocation7 + $0x80] sm:$0xff]
        %v1253 = vld [vmem:[#allocation7 + $0x88] sm:$0xff]
        %v1254 = vld [vmem:[#allocation7 + $0x90] sm:$0xff]
        %v1255 = vld [vmem:[#allocation7 + $0x98] sm:$0xff]
        %v1256 = vld [vmem:[#allocation7 + $0xa0] sm:$0xff]
        %v1257 = vld [vmem:[#allocation7 + $0xa8] sm:$0xff]
        %v1258 = vld [vmem:[#allocation7 + $0xb0] sm:$0xff]
        %v1259 = vld [vmem:[#allocation7 + $0xb8] sm:$0xff]
        %v1260 = vld [vmem:[#allocation7 + $0xc0] sm:$0xff]
        %v1261 = vld [vmem:[#allocation7 + $0xc8] sm:$0xff]
        %v1262 = vld [vmem:[#allocation7 + $0xd0] sm:$0xff]
        %v1263 = vld [vmem:[#allocation7 + $0xd8] sm:$0xff]
        %v1264 = vld [vmem:[#allocation7 + $0xe0] sm:$0xff]
        %v1265 = vld [vmem:[#allocation7 + $0xe8] sm:$0xff]
        %v1266 = vld [vmem:[#allocation7 + $0xf0] sm:$0xff]
        %v1267 = vld [vmem:[#allocation7 + $0xf8] sm:$0xff]
        %v1268 = vld [vmem:[#allocation7 + $0x100] sm:$0xff]
        %v1269 = vld [vmem:[#allocation7 + $0x108] sm:$0xff]
        %v1270 = vld [vmem:[#allocation7 + $0x110] sm:$0xff]
        %v1271 = vld [vmem:[#allocation7 + $0x118] sm:$0xff]
        %v1272 = vld [vmem:[#allocation7 + $0x120] sm:$0xff]
        %v1273 = vld [vmem:[#allocation7 + $0x128] sm:$0xff]
        %v1274 = vld [vmem:[#allocation7 + $0x130] sm:$0xff]
        %v1275 = vld [vmem:[#allocation7 + $0x138] sm:$0xff]
        %v1276 = vld [vmem:[#allocation7 + $0x140] sm:$0xff]
        %v1277 = vld [vmem:[#allocation7 + $0x148] sm:$0xff]
        %v1278 = vld [vmem:[#allocation7 + $0x150] sm:$0xff]
        %v1279 = vld [vmem:[#allocation7 + $0x158] sm:$0xff]
        %v1280 = vld [vmem:[#allocation7 + $0x160] sm:$0xff]
        %v1281 = vld [vmem:[#allocation7 + $0x168] sm:$0xff]
        %v1282 = vld [vmem:[#allocation7 + $0x170] sm:$0xff]
        %v1283 = vld [vmem:[#allocation7 + $0x178] sm:$0xff]
        %v1284 = vld [vmem:[#allocation7 + $0x180] sm:$0xff]
        %v1285 = vld [vmem:[#allocation7 + $0x188] sm:$0xff]
        %v1286 = vld [vmem:[#allocation7 + $0x190] sm:$0xff]
        %v1287 = vld [vmem:[#allocation7 + $0x198] sm:$0xff]
        %v1288 = vld [vmem:[#allocation7 + $0x1a0] sm:$0xff]
        %v1289 = vld [vmem:[#allocation7 + $0x1a8] sm:$0xff]
        %v1290 = vmul.f32 %v1182, %v1236
        %v1291 = vmul.f32 %v1183, %v1237
        %v1292 = vmul.f32 %v1184, %v1238
        %v1293 = vmul.f32 %v1185, %v1239
        %v1294 = vmul.f32 %v1186, %v1240
        %v1295 = vmul.f32 %v1187, %v1241
        %v1296 = vmul.f32 %v1188, %v1242
        %v1297 = vmul.f32 %v1189, %v1243
        %v1298 = vmul.f32 %v1190, %v1244
        %v1299 = vmul.f32 %v1191, %v1245
        %v1300 = vmul.f32 %v1192, %v1246
        %v1301 = vmul.f32 %v1193, %v1247
        %v1302 = vmul.f32 %v1194, %v1248
        %v1303 = vmul.f32 %v1195, %v1249
        %v1304 = vmul.f32 %v1196, %v1250
        %v1305 = vmul.f32 %v1197, %v1251
        %v1306 = vmul.f32 %v1198, %v1252
        %v1307 = vmul.f32 %v1199, %v1253
        %v1308 = vmul.f32 %v1200, %v1254
        %v1309 = vmul.f32 %v1201, %v1255
        %v1310 = vmul.f32 %v1202, %v1256
        %v1311 = vmul.f32 %v1203, %v1257
        %v1312 = vmul.f32 %v1204, %v1258
        %v1313 = vmul.f32 %v1205, %v1259
        %v1314 = vmul.f32 %v1206, %v1260
        %v1315 = vmul.f32 %v1207, %v1261
        %v1316 = vmul.f32 %v1208, %v1262
        %v1317 = vmul.f32 %v1209, %v1263
        %v1318 = vmul.f32 %v1210, %v1264
        %v1319 = vmul.f32 %v1211, %v1265
        %v1320 = vmul.f32 %v1212, %v1266
        %v1321 = vmul.f32 %v1213, %v1267
        %v1322 = vmul.f32 %v1214, %v1268
        %v1323 = vmul.f32 %v1215, %v1269
        %v1324 = vmul.f32 %v1216, %v1270
        %v1325 = vmul.f32 %v1217, %v1271
        %v1326 = vmul.f32 %v1218, %v1272
        %v1327 = vmul.f32 %v1219, %v1273
        %v1328 = vmul.f32 %v1220, %v1274
        %v1329 = vmul.f32 %v1221, %v1275
        %v1330 = vmul.f32 %v1222, %v1276
        %v1331 = vmul.f32 %v1223, %v1277
        %v1332 = vmul.f32 %v1224, %v1278
        %v1333 = vmul.f32 %v1225, %v1279
        %v1334 = vmul.f32 %v1226, %v1280
        %v1335 = vmul.f32 %v1227, %v1281
        %v1336 = vmul.f32 %v1228, %v1282
        %v1337 = vmul.f32 %v1229, %v1283
        %v1338 = vmul.f32 %v1230, %v1284
        %v1339 = vmul.f32 %v1231, %v1285
        %v1340 = vmul.f32 %v1232, %v1286
        %v1341 = vmul.f32 %v1233, %v1287
        %v1342 = vmul.f32 %v1234, %v1288
        %v1343 = vmul.f32 %v1235, %v1289
        %v1344 = vpack.c.bf16 %v1291, %v1290
        %v1345 = vpack.c.bf16 %v1292, %v1292
        %v1346 = vpack.c.bf16 %v1294, %v1293
        %v1347 = vpack.c.bf16 %v1295, %v1295
        %v1348 = vpack.c.bf16 %v1297, %v1296
        %v1349 = vpack.c.bf16 %v1298, %v1298
        %v1350 = vpack.c.bf16 %v1300, %v1299
        %v1351 = vpack.c.bf16 %v1301, %v1301
        %v1352 = vpack.c.bf16 %v1303, %v1302
        %v1353 = vpack.c.bf16 %v1304, %v1304
        %v1354 = vpack.c.bf16 %v1306, %v1305
        %v1355 = vpack.c.bf16 %v1307, %v1307
        %v1356 = vpack.c.bf16 %v1309, %v1308
        %v1357 = vpack.c.bf16 %v1310, %v1310
        %v1358 = vpack.c.bf16 %v1312, %v1311
        %v1359 = vpack.c.bf16 %v1313, %v1313
        %v1360 = vpack.c.bf16 %v1315, %v1314
        %v1361 = vpack.c.bf16 %v1316, %v1316
        %v1362 = vpack.c.bf16 %v1318, %v1317
        %v1363 = vpack.c.bf16 %v1319, %v1319
        %v1364 = vpack.c.bf16 %v1321, %v1320
        %v1365 = vpack.c.bf16 %v1322, %v1322
        %v1366 = vpack.c.bf16 %v1324, %v1323
        %v1367 = vpack.c.bf16 %v1325, %v1325
        %v1368 = vpack.c.bf16 %v1327, %v1326
        %v1369 = vpack.c.bf16 %v1328, %v1328
        %v1370 = vpack.c.bf16 %v1330, %v1329
        %v1371 = vpack.c.bf16 %v1331, %v1331
        %v1372 = vpack.c.bf16 %v1333, %v1332
        %v1373 = vpack.c.bf16 %v1334, %v1334
        %v1374 = vpack.c.bf16 %v1336, %v1335
        %v1375 = vpack.c.bf16 %v1337, %v1337
        %v1376 = vpack.c.bf16 %v1339, %v1338
        %v1377 = vpack.c.bf16 %v1340, %v1340
        %v1378 = vpack.c.bf16 %v1342, %v1341
        %v1379 = vpack.c.bf16 %v1343, %v1343
        %vm1380 = vsmask.f32 7424
        %v1382 = vshrl.u32 %v1344, 16
        %v1384 = vshll.u32 %v1344, 16
        %v1386 = vrot.slane %v1384, 1
        %v1387 = vor.u32 %v1382, %v1386
        %v1389 = vshll.u32 %v1345, 16
        %v1391 = vrot.slane %v1389, 1
        %v1392 = vsel %vm1380, %v1387, %v1391
        %v1394 = vshrl.u32 %v1346, 16
        %v1396 = vshll.u32 %v1346, 16
        %v1398 = vrot.slane %v1396, 1
        %v1399 = vor.u32 %v1394, %v1398
        %v1401 = vshll.u32 %v1347, 16
        %v1403 = vrot.slane %v1401, 1
        %v1404 = vsel %vm1380, %v1399, %v1403
        %v1406 = vshrl.u32 %v1348, 16
        %v1408 = vshll.u32 %v1348, 16
        %v1410 = vrot.slane %v1408, 1
        %v1411 = vor.u32 %v1406, %v1410
        %v1413 = vshll.u32 %v1349, 16
        %v1415 = vrot.slane %v1413, 1
        %v1416 = vsel %vm1380, %v1411, %v1415
        %v1418 = vshrl.u32 %v1350, 16
        %v1420 = vshll.u32 %v1350, 16
        %v1422 = vrot.slane %v1420, 1
        %v1423 = vor.u32 %v1418, %v1422
        %v1425 = vshll.u32 %v1351, 16
        %v1427 = vrot.slane %v1425, 1
        %v1428 = vsel %vm1380, %v1423, %v1427
        %v1430 = vshrl.u32 %v1352, 16
        %v1432 = vshll.u32 %v1352, 16
        %v1434 = vrot.slane %v1432, 1
        %v1435 = vor.u32 %v1430, %v1434
        %v1437 = vshll.u32 %v1353, 16
        %v1439 = vrot.slane %v1437, 1
        %v1440 = vsel %vm1380, %v1435, %v1439
        %v1442 = vshrl.u32 %v1354, 16
        %v1444 = vshll.u32 %v1354, 16
        %v1446 = vrot.slane %v1444, 1
        %v1447 = vor.u32 %v1442, %v1446
        %v1449 = vshll.u32 %v1355, 16
        %v1451 = vrot.slane %v1449, 1
        %v1452 = vsel %vm1380, %v1447, %v1451
        %v1454 = vshrl.u32 %v1356, 16
        %v1456 = vshll.u32 %v1356, 16
        %v1458 = vrot.slane %v1456, 1
        %v1459 = vor.u32 %v1454, %v1458
        %v1461 = vshll.u32 %v1357, 16
        %v1463 = vrot.slane %v1461, 1
        %v1464 = vsel %vm1380, %v1459, %v1463
        %v1466 = vshrl.u32 %v1358, 16
        %v1468 = vshll.u32 %v1358, 16
        %v1470 = vrot.slane %v1468, 1
        %v1471 = vor.u32 %v1466, %v1470
        %v1473 = vshll.u32 %v1359, 16
        %v1475 = vrot.slane %v1473, 1
        %v1476 = vsel %vm1380, %v1471, %v1475
        %v1478 = vshrl.u32 %v1360, 16
        %v1480 = vshll.u32 %v1360, 16
        %v1482 = vrot.slane %v1480, 1
        %v1483 = vor.u32 %v1478, %v1482
        %v1485 = vshll.u32 %v1361, 16
        %v1487 = vrot.slane %v1485, 1
        %v1488 = vsel %vm1380, %v1483, %v1487
        %v1490 = vshrl.u32 %v1362, 16
        %v1492 = vshll.u32 %v1362, 16
        %v1494 = vrot.slane %v1492, 1
        %v1495 = vor.u32 %v1490, %v1494
        %v1497 = vshll.u32 %v1363, 16
        %v1499 = vrot.slane %v1497, 1
        %v1500 = vsel %vm1380, %v1495, %v1499
        %v1502 = vshrl.u32 %v1364, 16
        %v1504 = vshll.u32 %v1364, 16
        %v1506 = vrot.slane %v1504, 1
        %v1507 = vor.u32 %v1502, %v1506
        %v1509 = vshll.u32 %v1365, 16
        %v1511 = vrot.slane %v1509, 1
        %v1512 = vsel %vm1380, %v1507, %v1511
        %v1514 = vshrl.u32 %v1366, 16
        %v1516 = vshll.u32 %v1366, 16
        %v1518 = vrot.slane %v1516, 1
        %v1519 = vor.u32 %v1514, %v1518
        %v1521 = vshll.u32 %v1367, 16
        %v1523 = vrot.slane %v1521, 1
        %v1524 = vsel %vm1380, %v1519, %v1523
        %v1526 = vshrl.u32 %v1368, 16
        %v1528 = vshll.u32 %v1368, 16
        %v1530 = vrot.slane %v1528, 1
        %v1531 = vor.u32 %v1526, %v1530
        %v1533 = vshll.u32 %v1369, 16
        %v1535 = vrot.slane %v1533, 1
        %v1536 = vsel %vm1380, %v1531, %v1535
        %v1538 = vshrl.u32 %v1370, 16
        %v1540 = vshll.u32 %v1370, 16
        %v1542 = vrot.slane %v1540, 1
        %v1543 = vor.u32 %v1538, %v1542
        %v1545 = vshll.u32 %v1371, 16
        %v1547 = vrot.slane %v1545, 1
        %v1548 = vsel %vm1380, %v1543, %v1547
        %v1550 = vshrl.u32 %v1372, 16
        %v1552 = vshll.u32 %v1372, 16
        %v1554 = vrot.slane %v1552, 1
        %v1555 = vor.u32 %v1550, %v1554
        %v1557 = vshll.u32 %v1373, 16
        %v1559 = vrot.slane %v1557, 1
        %v1560 = vsel %vm1380, %v1555, %v1559
        %v1562 = vshrl.u32 %v1374, 16
        %v1564 = vshll.u32 %v1374, 16
        %v1566 = vrot.slane %v1564, 1
        %v1567 = vor.u32 %v1562, %v1566
        %v1569 = vshll.u32 %v1375, 16
        %v1571 = vrot.slane %v1569, 1
        %v1572 = vsel %vm1380, %v1567, %v1571
        %vm1621 = vcmask 1046528
        %v1622 = vrot.slane %v1344, 1
        %v1623 = vrot.slane %v1345, 1
        %v1624 = vsel %vm1621, %v1622, %v1623
        %v1625 = vrot.slane %v1346, 1
        %v1626 = vrot.slane %v1347, 1
        %v1627 = vsel %vm1621, %v1625, %v1626
        %v1628 = vrot.slane %v1348, 1
        %v1629 = vrot.slane %v1349, 1
        %v1630 = vsel %vm1621, %v1628, %v1629
        %v1631 = vrot.slane %v1350, 1
        %v1632 = vrot.slane %v1351, 1
        %v1633 = vsel %vm1621, %v1631, %v1632
        %v1634 = vrot.slane %v1352, 1
        %v1635 = vrot.slane %v1353, 1
        %v1636 = vsel %vm1621, %v1634, %v1635
        %v1637 = vrot.slane %v1354, 1
        %v1638 = vrot.slane %v1355, 1
        %v1639 = vsel %vm1621, %v1637, %v1638
        %v1640 = vrot.slane %v1356, 1
        %v1641 = vrot.slane %v1357, 1
        %v1642 = vsel %vm1621, %v1640, %v1641
        %v1643 = vrot.slane %v1358, 1
        %v1644 = vrot.slane %v1359, 1
        %v1645 = vsel %vm1621, %v1643, %v1644
        %v1646 = vrot.slane %v1360, 1
        %v1647 = vrot.slane %v1361, 1
        %v1648 = vsel %vm1621, %v1646, %v1647
        %v1649 = vrot.slane %v1362, 1
        %v1650 = vrot.slane %v1363, 1
        %v1651 = vsel %vm1621, %v1649, %v1650
        %v1652 = vrot.slane %v1364, 1
        %v1653 = vrot.slane %v1365, 1
        %v1654 = vsel %vm1621, %v1652, %v1653
        %v1655 = vrot.slane %v1366, 1
        %v1656 = vrot.slane %v1367, 1
        %v1657 = vsel %vm1621, %v1655, %v1656
        %v1658 = vrot.slane %v1368, 1
        %v1659 = vrot.slane %v1369, 1
        %v1660 = vsel %vm1621, %v1658, %v1659
        %v1661 = vrot.slane %v1370, 1
        %v1662 = vrot.slane %v1371, 1
        %v1663 = vsel %vm1621, %v1661, %v1662
        %v1664 = vrot.slane %v1372, 1
        %v1665 = vrot.slane %v1373, 1
        %v1666 = vsel %vm1621, %v1664, %v1665
        %v1667 = vrot.slane %v1374, 1
        %v1668 = vrot.slane %v1375, 1
        %v1669 = vsel %vm1621, %v1667, %v1668
        %v1687 = vshrl.u32 %v1376, 16
        %v1689 = vshll.u32 %v1376, 16
        %v1691 = vrot.slane %v1689, 1
        %v1692 = vor.u32 %v1687, %v1691
        %v1694 = vshll.u32 %v1377, 16
        %v1696 = vrot.slane %v1694, 1
        %v1697 = vsel %vm1380, %v1692, %v1696
        %v1701 = vrot.slane %v1376, 1
        %v1702 = vrot.slane %v1377, 1
        %v1703 = vsel %vm1621, %v1701, %v1702
        %v1706 = vshrl.u32 %v1378, 16
        %v1708 = vshll.u32 %v1378, 16
        %v1710 = vrot.slane %v1708, 1
        %v1711 = vor.u32 %v1706, %v1710
        %v1713 = vshll.u32 %v1379, 16
        %v1715 = vrot.slane %v1713, 1
        %v1716 = vsel %vm1380, %v1711, %v1715
        %v1720 = vrot.slane %v1378, 1
        %v1721 = vrot.slane %v1379, 1
        %v1722 = vsel %vm1621, %v1720, %v1721
        %v1724 = vld [vmem:[#allocation10] sm:$0xf]
        %v1725 = vld [vmem:[#allocation10 + $0x4] sm:$0xf]
        %v1726 = vld [vmem:[#allocation10 + $0x8] sm:$0xf]
        %v1727 = vld [vmem:[#allocation10 + $0xc] sm:$0xf]
        %v1728 = vld [vmem:[#allocation10 + $0x10] sm:$0xf]
        %v1729 = vld [vmem:[#allocation10 + $0x14] sm:$0xf]
        %v1730 = vld [vmem:[#allocation10 + $0x18] sm:$0xf]
        %v1731 = vld [vmem:[#allocation10 + $0x1c] sm:$0xf]
        %v1732 = vld [vmem:[#allocation10 + $0x20] sm:$0xf]
        %v1733 = vld [vmem:[#allocation10 + $0x24] sm:$0xf]
        %v1734 = vld [vmem:[#allocation10 + $0x28] sm:$0xf]
        %v1735 = vld [vmem:[#allocation10 + $0x2c] sm:$0xf]
        %v1736 = vld [vmem:[#allocation10 + $0x30] sm:$0xf]
        %v1737 = vld [vmem:[#allocation10 + $0x34] sm:$0xf]
        %v1738 = vld [vmem:[#allocation10 + $0x38] sm:$0xf]
        %v1739 = vld [vmem:[#allocation10 + $0x3c] sm:$0xf]
        %v1740 = vld [vmem:[#allocation10 + $0x40] sm:$0xf]
        %v1741 = vld [vmem:[#allocation10 + $0x44] sm:$0xf]
        %v1742 = vld [vmem:[#allocation10 + $0x48] sm:$0xf]
        %v1743 = vld [vmem:[#allocation10 + $0x4c] sm:$0xf]
        %v1744 = vld [vmem:[#allocation10 + $0x50] sm:$0xf]
        %v1745 = vld [vmem:[#allocation10 + $0x54] sm:$0xf]
        %v1746 = vld [vmem:[#allocation10 + $0x58] sm:$0xf]
        %v1747 = vld [vmem:[#allocation10 + $0x5c] sm:$0xf]
        %v1748 = vld [vmem:[#allocation10 + $0x60] sm:$0xf]
        %v1749 = vld [vmem:[#allocation10 + $0x64] sm:$0xf]
        %v1750 = vld [vmem:[#allocation10 + $0x68] sm:$0xf]
        %v1751 = vld [vmem:[#allocation10 + $0x6c] sm:$0xf]
        %v1752 = vld [vmem:[#allocation10 + $0x70] sm:$0xf]
        %v1753 = vld [vmem:[#allocation10 + $0x74] sm:$0xf]
        %v1754 = vld [vmem:[#allocation10 + $0x78] sm:$0xf]
        %v1755 = vld [vmem:[#allocation10 + $0x7c] sm:$0xf]
        %v1756 = vld [vmem:[#allocation10 + $0x80] sm:$0xf]
        %v1757 = vld [vmem:[#allocation10 + $0x84] sm:$0xf]
        %v1758 = vld [vmem:[#allocation10 + $0x88] sm:$0xf]
        %v1759 = vld [vmem:[#allocation10 + $0x8c] sm:$0xf]
        %v1760 = vld [vmem:[#allocation10 + $0x90] sm:$0xf]
        %v1761 = vld [vmem:[#allocation10 + $0x94] sm:$0xf]
        %v1762 = vld [vmem:[#allocation10 + $0x98] sm:$0xf]
        %v1763 = vld [vmem:[#allocation10 + $0x9c] sm:$0xf]
        %v1764 = vld [vmem:[#allocation10 + $0xa0] sm:$0xf]
        %v1765 = vld [vmem:[#allocation10 + $0xa4] sm:$0xf]
        %v1766 = vld [vmem:[#allocation10 + $0xa8] sm:$0xf]
        %v1767 = vld [vmem:[#allocation10 + $0xac] sm:$0xf]
        %v1768 = vld [vmem:[#allocation10 + $0xb0] sm:$0xf]
        %v1769 = vld [vmem:[#allocation10 + $0xb4] sm:$0xf]
        %v1770 = vld [vmem:[#allocation10 + $0xb8] sm:$0xf]
        %v1771 = vld [vmem:[#allocation10 + $0xbc] sm:$0xf]
        %v1772 = vld [vmem:[#allocation10 + $0xc0] sm:$0xf]
        %v1773 = vld [vmem:[#allocation10 + $0xc4] sm:$0xf]
        %v1774 = vld [vmem:[#allocation10 + $0xc8] sm:$0xf]
        %v1775 = vld [vmem:[#allocation10 + $0xcc] sm:$0xf]
        %v1776 = vld [vmem:[#allocation10 + $0xd0] sm:$0xf]
        %v1777 = vld [vmem:[#allocation10 + $0xd4] sm:$0xf]
        %v1778 = vld [vmem:[#allocation10 + $0xd8] sm:$0xf]
        %v1779 = vld [vmem:[#allocation10 + $0xdc] sm:$0xf]
        %v1780 = vld [vmem:[#allocation10 + $0xe0] sm:$0xf]
        %v1781 = vld [vmem:[#allocation10 + $0xe4] sm:$0xf]
        %v1782 = vld [vmem:[#allocation10 + $0xe8] sm:$0xf]
        %v1783 = vld [vmem:[#allocation10 + $0xec] sm:$0xf]
        %v1784 = vld [vmem:[#allocation10 + $0xf0] sm:$0xf]
        %v1785 = vld [vmem:[#allocation10 + $0xf4] sm:$0xf]
        %v1786 = vld [vmem:[#allocation10 + $0xf8] sm:$0xf]
        %v1787 = vld [vmem:[#allocation10 + $0xfc] sm:$0xf]
        %v1788 = vld [vmem:[#allocation10 + $0x100] sm:$0xf]
        %v1789 = vld [vmem:[#allocation10 + $0x104] sm:$0xf]
        %v1790 = vld [vmem:[#allocation10 + $0x108] sm:$0xf]
        %v1791 = vld [vmem:[#allocation10 + $0x10c] sm:$0xf]
        %v1792 = vld [vmem:[#allocation10 + $0x110] sm:$0xf]
        %v1793 = vld [vmem:[#allocation10 + $0x114] sm:$0xf]
        %v1794 = vld [vmem:[#allocation10 + $0x118] sm:$0xf]
        %v1795 = vld [vmem:[#allocation10 + $0x11c] sm:$0xf]
        %v1796 = vld [vmem:[#allocation10 + $0x120] sm:$0xf]
        %v1797 = vld [vmem:[#allocation10 + $0x124] sm:$0xf]
        %v1798 = vld [vmem:[#allocation10 + $0x128] sm:$0xf]
        %v1799 = vld [vmem:[#allocation10 + $0x12c] sm:$0xf]
        %v1800 = vld [vmem:[#allocation10 + $0x130] sm:$0xf]
        %v1801 = vld [vmem:[#allocation10 + $0x134] sm:$0xf]
        %v1802 = vld [vmem:[#allocation10 + $0x138] sm:$0xf]
        %v1803 = vld [vmem:[#allocation10 + $0x13c] sm:$0xf]
        %v1804 = vld [vmem:[#allocation10 + $0x140] sm:$0xf]
        %v1805 = vld [vmem:[#allocation10 + $0x144] sm:$0xf]
        %v1806 = vld [vmem:[#allocation10 + $0x148] sm:$0xf]
        %v1807 = vld [vmem:[#allocation10 + $0x14c] sm:$0xf]
        %v1808 = vld [vmem:[#allocation10 + $0x150] sm:$0xf]
        %v1809 = vld [vmem:[#allocation10 + $0x154] sm:$0xf]
        %v1810 = vld [vmem:[#allocation10 + $0x158] sm:$0xf]
        %v1811 = vld [vmem:[#allocation10 + $0x15c] sm:$0xf]
        %v1812 = vld [vmem:[#allocation10 + $0x160] sm:$0xf]
        %v1813 = vld [vmem:[#allocation10 + $0x164] sm:$0xf]
        %v1814 = vld [vmem:[#allocation10 + $0x168] sm:$0xf]
        %v1815 = vld [vmem:[#allocation10 + $0x16c] sm:$0xf]
        %v1816 = vld [vmem:[#allocation10 + $0x170] sm:$0xf]
        %v1817 = vld [vmem:[#allocation10 + $0x174] sm:$0xf]
        %v1818 = vld [vmem:[#allocation10 + $0x178] sm:$0xf]
        %v1819 = vld [vmem:[#allocation10 + $0x17c] sm:$0xf]
        %v1820 = vld [vmem:[#allocation10 + $0x180] sm:$0xf]
        %v1821 = vld [vmem:[#allocation10 + $0x184] sm:$0xf]
        %v1822 = vld [vmem:[#allocation10 + $0x188] sm:$0xf]
        %v1823 = vld [vmem:[#allocation10 + $0x18c] sm:$0xf]
        %v1824 = vld [vmem:[#allocation10 + $0x190] sm:$0xf]
        %v1825 = vld [vmem:[#allocation10 + $0x194] sm:$0xf]
        %v1826 = vld [vmem:[#allocation10 + $0x198] sm:$0xf]
        %v1827 = vld [vmem:[#allocation10 + $0x19c] sm:$0xf]
        %v1828 = vld [vmem:[#allocation10 + $0x1a0] sm:$0xf]
        %v1829 = vld [vmem:[#allocation10 + $0x1a4] sm:$0xf]
        %v1830 = vld [vmem:[#allocation10 + $0x1a8] sm:$0xf]
        %v1831 = vld [vmem:[#allocation10 + $0x1ac] sm:$0xf]
        %v1832 = vld [vmem:[#allocation10 + $0x1b0] sm:$0xf]
        %v1833 = vld [vmem:[#allocation10 + $0x1b4] sm:$0xf]
        %v1834 = vld [vmem:[#allocation10 + $0x1b8] sm:$0xf]
        %v1835 = vld [vmem:[#allocation10 + $0x1bc] sm:$0xf]
        %v1836 = vld [vmem:[#allocation10 + $0x1c0] sm:$0xf]
        %v1837 = vld [vmem:[#allocation10 + $0x1c4] sm:$0xf]
        %v1838 = vld [vmem:[#allocation10 + $0x1c8] sm:$0xf]
        %v1839 = vld [vmem:[#allocation10 + $0x1cc] sm:$0xf]
        %v1840 = vld [vmem:[#allocation10 + $0x1d0] sm:$0xf]
        %v1841 = vld [vmem:[#allocation10 + $0x1d4] sm:$0xf]
        %v1842 = vld [vmem:[#allocation10 + $0x1d8] sm:$0xf]
        %v1843 = vld [vmem:[#allocation10 + $0x1dc] sm:$0xf]
        %v1844 = vld [vmem:[#allocation10 + $0x1e0] sm:$0xf]
        %v1845 = vld [vmem:[#allocation10 + $0x1e4] sm:$0xf]
        %v1846 = vld [vmem:[#allocation10 + $0x1e8] sm:$0xf]
        %v1847 = vld [vmem:[#allocation10 + $0x1ec] sm:$0xf]
        %v1848 = vld [vmem:[#allocation10 + $0x1f0] sm:$0xf]
        %v1849 = vld [vmem:[#allocation10 + $0x1f4] sm:$0xf]
        %v1850 = vld [vmem:[#allocation10 + $0x1f8] sm:$0xf]
        %v1851 = vld [vmem:[#allocation10 + $0x1fc] sm:$0xf]
        %v1852 = vld [vmem:[#allocation10 + $0x200] sm:$0xf]
        %v1853 = vld [vmem:[#allocation10 + $0x204] sm:$0xf]
        %v1854 = vld [vmem:[#allocation10 + $0x208] sm:$0xf]
        %v1855 = vld [vmem:[#allocation10 + $0x20c] sm:$0xf]
        %v1856 = vld [vmem:[#allocation10 + $0x210] sm:$0xf]
        %v1857 = vld [vmem:[#allocation10 + $0x214] sm:$0xf]
        %v1858 = vld [vmem:[#allocation10 + $0x218] sm:$0xf]
        %v1859 = vld [vmem:[#allocation10 + $0x21c] sm:$0xf]
        %v1860 = vld [vmem:[#allocation10 + $0x220] sm:$0xf]
        %v1861 = vld [vmem:[#allocation10 + $0x224] sm:$0xf]
        %v1862 = vld [vmem:[#allocation10 + $0x228] sm:$0xf]
        %v1863 = vld [vmem:[#allocation10 + $0x22c] sm:$0xf]
        %v1864 = vld [vmem:[#allocation10 + $0x230] sm:$0xf]
        %v1865 = vld [vmem:[#allocation10 + $0x234] sm:$0xf]
        %v1866 = vld [vmem:[#allocation10 + $0x238] sm:$0xf]
        %v1867 = vld [vmem:[#allocation10 + $0x23c] sm:$0xf]
        %v2012 = vunpack.c.l.b16 %v1724
        %v2013 = vunpack.c.l.b16 %v1725
        %v2014 = vunpack.c.l.b16 %v1726
        %v2015 = vunpack.c.l.b16 %v1727
        %v2016 = vunpack.c.l.b16 %v1728
        %v2017 = vunpack.c.l.b16 %v1729
        %v2018 = vunpack.c.l.b16 %v1730
        %v2019 = vunpack.c.l.b16 %v1731
        %v2020 = vunpack.c.l.b16 %v1732
        %v2021 = vunpack.c.l.b16 %v1733
        %v2022 = vunpack.c.l.b16 %v1734
        %v2023 = vunpack.c.l.b16 %v1735
        %v2024 = vunpack.c.l.b16 %v1736
        %v2025 = vunpack.c.l.b16 %v1737
        %v2026 = vunpack.c.l.b16 %v1738
        %v2027 = vunpack.c.l.b16 %v1739
        %v2028 = vunpack.c.l.b16 %v1740
        %v2029 = vunpack.c.l.b16 %v1741
        %v2030 = vunpack.c.l.b16 %v1742
        %v2031 = vunpack.c.l.b16 %v1743
        %v2032 = vunpack.c.l.b16 %v1744
        %v2033 = vunpack.c.l.b16 %v1745
        %v2034 = vunpack.c.l.b16 %v1746
        %v2035 = vunpack.c.l.b16 %v1747
        %v2036 = vunpack.c.l.b16 %v1748
        %v2037 = vunpack.c.l.b16 %v1749
        %v2038 = vunpack.c.l.b16 %v1750
        %v2039 = vunpack.c.l.b16 %v1751
        %v2040 = vunpack.c.l.b16 %v1752
        %v2041 = vunpack.c.l.b16 %v1753
        %v2042 = vunpack.c.l.b16 %v1754
        %v2043 = vunpack.c.l.b16 %v1755
        %v2044 = vunpack.c.l.b16 %v1756
        %v2045 = vunpack.c.l.b16 %v1757
        %v2046 = vunpack.c.l.b16 %v1758
        %v2047 = vunpack.c.l.b16 %v1759
        %v2048 = vunpack.c.l.b16 %v1760
        %v2049 = vunpack.c.l.b16 %v1761
        %v2050 = vunpack.c.l.b16 %v1762
        %v2051 = vunpack.c.l.b16 %v1763
        %v2052 = vunpack.c.l.b16 %v1764
        %v2053 = vunpack.c.l.b16 %v1765
        %v2054 = vunpack.c.l.b16 %v1766
        %v2055 = vunpack.c.l.b16 %v1767
        %v2056 = vunpack.c.l.b16 %v1768
        %v2057 = vunpack.c.l.b16 %v1769
        %v2058 = vunpack.c.l.b16 %v1770
        %v2059 = vunpack.c.l.b16 %v1771
        %v2060 = vunpack.c.l.b16 %v1772
        %v2061 = vunpack.c.l.b16 %v1773
        %v2062 = vunpack.c.l.b16 %v1774
        %v2063 = vunpack.c.l.b16 %v1775
        %v2064 = vunpack.c.l.b16 %v1776
        %v2065 = vunpack.c.l.b16 %v1777
        %v2066 = vunpack.c.l.b16 %v1778
        %v2067 = vunpack.c.l.b16 %v1779
        %v2068 = vunpack.c.l.b16 %v1780
        %v2069 = vunpack.c.l.b16 %v1781
        %v2070 = vunpack.c.l.b16 %v1782
        %v2071 = vunpack.c.l.b16 %v1783
        %v2072 = vunpack.c.l.b16 %v1784
        %v2073 = vunpack.c.l.b16 %v1785
        %v2074 = vunpack.c.l.b16 %v1786
        %v2075 = vunpack.c.l.b16 %v1787
        %v2076 = vunpack.c.l.b16 %v1788
        %v2077 = vunpack.c.l.b16 %v1789
        %v2078 = vunpack.c.l.b16 %v1790
        %v2079 = vunpack.c.l.b16 %v1791
        %v2080 = vunpack.c.l.b16 %v1792
        %v2081 = vunpack.c.l.b16 %v1793
        %v2082 = vunpack.c.l.b16 %v1794
        %v2083 = vunpack.c.l.b16 %v1795
        %v2084 = vunpack.c.l.b16 %v1796
        %v2085 = vunpack.c.l.b16 %v1797
        %v2086 = vunpack.c.l.b16 %v1798
        %v2087 = vunpack.c.l.b16 %v1799
        %v2088 = vunpack.c.l.b16 %v1800
        %v2089 = vunpack.c.l.b16 %v1801
        %v2090 = vunpack.c.l.b16 %v1802
        %v2091 = vunpack.c.l.b16 %v1803
        %v2092 = vunpack.c.l.b16 %v1804
        %v2093 = vunpack.c.l.b16 %v1805
        %v2094 = vunpack.c.l.b16 %v1806
        %v2095 = vunpack.c.l.b16 %v1807
        %v2096 = vunpack.c.l.b16 %v1808
        %v2097 = vunpack.c.l.b16 %v1809
        %v2098 = vunpack.c.l.b16 %v1810
        %v2099 = vunpack.c.l.b16 %v1811
        %v2100 = vunpack.c.l.b16 %v1812
        %v2101 = vunpack.c.l.b16 %v1813
        %v2102 = vunpack.c.l.b16 %v1814
        %v2103 = vunpack.c.l.b16 %v1815
        %v2104 = vunpack.c.l.b16 %v1816
        %v2105 = vunpack.c.l.b16 %v1817
        %v2106 = vunpack.c.l.b16 %v1818
        %v2107 = vunpack.c.l.b16 %v1819
        %v2108 = vunpack.c.l.b16 %v1820
        %v2109 = vunpack.c.l.b16 %v1821
        %v2110 = vunpack.c.l.b16 %v1822
        %v2111 = vunpack.c.l.b16 %v1823
        %v2112 = vunpack.c.l.b16 %v1824
        %v2113 = vunpack.c.l.b16 %v1825
        %v2114 = vunpack.c.l.b16 %v1826
        %v2115 = vunpack.c.l.b16 %v1827
        %v2116 = vunpack.c.l.b16 %v1828
        %v2117 = vunpack.c.l.b16 %v1829
        %v2118 = vunpack.c.l.b16 %v1830
        %v2119 = vunpack.c.l.b16 %v1831
        %v2120 = vunpack.c.l.b16 %v1832
        %v2121 = vunpack.c.l.b16 %v1833
        %v2122 = vunpack.c.l.b16 %v1834
        %v2123 = vunpack.c.l.b16 %v1835
        %v2124 = vunpack.c.l.b16 %v1836
        %v2125 = vunpack.c.l.b16 %v1837
        %v2126 = vunpack.c.l.b16 %v1838
        %v2127 = vunpack.c.l.b16 %v1839
        %v2128 = vunpack.c.l.b16 %v1840
        %v2129 = vunpack.c.l.b16 %v1841
        %v2130 = vunpack.c.l.b16 %v1842
        %v2131 = vunpack.c.l.b16 %v1843
        %v2132 = vunpack.c.l.b16 %v1844
        %v2133 = vunpack.c.l.b16 %v1845
        %v2134 = vunpack.c.l.b16 %v1846
        %v2135 = vunpack.c.l.b16 %v1847
        %v2136 = vunpack.c.l.b16 %v1848
        %v2137 = vunpack.c.l.b16 %v1849
        %v2138 = vunpack.c.l.b16 %v1850
        %v2139 = vunpack.c.l.b16 %v1851
        %v2140 = vunpack.c.l.b16 %v1852
        %v2141 = vunpack.c.l.b16 %v1853
        %v2142 = vunpack.c.l.b16 %v1854
        %v2143 = vunpack.c.l.b16 %v1855
        %v2144 = vunpack.c.l.b16 %v1856
        %v2145 = vunpack.c.l.b16 %v1857
        %v2146 = vunpack.c.l.b16 %v1858
        %v2147 = vunpack.c.l.b16 %v1859
        %v2148 = vunpack.c.l.b16 %v1860
        %v2149 = vunpack.c.l.b16 %v1861
        %v2150 = vunpack.c.l.b16 %v1862
        %v2151 = vunpack.c.l.b16 %v1863
        %v2152 = vunpack.c.l.b16 %v1864
        %v2153 = vunpack.c.l.b16 %v1865
        %v2154 = vunpack.c.l.b16 %v1866
        %v2155 = vunpack.c.l.b16 %v1867
        %v2156 = vpack.c.b16 %v2013, %v2012
        %v2157 = vpack.c.b16 %v2015, %v2014
        %v2158 = vpack.c.b16 %v2017, %v2016
        %v2159 = vpack.c.b16 %v2019, %v2018
        %v2160 = vpack.c.b16 %v2021, %v2020
        %v2161 = vpack.c.b16 %v2023, %v2022
        %v2162 = vpack.c.b16 %v2025, %v2024
        %v2163 = vpack.c.b16 %v2027, %v2026
        %v2164 = vpack.c.b16 %v2029, %v2028
        %v2165 = vpack.c.b16 %v2031, %v2030
        %v2166 = vpack.c.b16 %v2033, %v2032
        %v2167 = vpack.c.b16 %v2035, %v2034
        %v2168 = vpack.c.b16 %v2037, %v2036
        %v2169 = vpack.c.b16 %v2039, %v2038
        %v2170 = vpack.c.b16 %v2041, %v2040
        %v2171 = vpack.c.b16 %v2043, %v2042
        %v2172 = vpack.c.b16 %v2045, %v2044
        %v2173 = vpack.c.b16 %v2047, %v2046
        %v2174 = vpack.c.b16 %v2049, %v2048
        %v2175 = vpack.c.b16 %v2051, %v2050
        %v2176 = vpack.c.b16 %v2053, %v2052
        %v2177 = vpack.c.b16 %v2055, %v2054
        %v2178 = vpack.c.b16 %v2057, %v2056
        %v2179 = vpack.c.b16 %v2059, %v2058
        %v2180 = vpack.c.b16 %v2061, %v2060
        %v2181 = vpack.c.b16 %v2063, %v2062
        %v2182 = vpack.c.b16 %v2065, %v2064
        %v2183 = vpack.c.b16 %v2067, %v2066
        %v2184 = vpack.c.b16 %v2069, %v2068
        %v2185 = vpack.c.b16 %v2071, %v2070
        %v2186 = vpack.c.b16 %v2073, %v2072
        %v2187 = vpack.c.b16 %v2075, %v2074
        %v2188 = vpack.c.b16 %v2077, %v2076
        %v2189 = vpack.c.b16 %v2079, %v2078
        %v2190 = vpack.c.b16 %v2081, %v2080
        %v2191 = vpack.c.b16 %v2083, %v2082
        %v2192 = vpack.c.b16 %v2085, %v2084
        %v2193 = vpack.c.b16 %v2087, %v2086
        %v2194 = vpack.c.b16 %v2089, %v2088
        %v2195 = vpack.c.b16 %v2091, %v2090
        %v2196 = vpack.c.b16 %v2093, %v2092
        %v2197 = vpack.c.b16 %v2095, %v2094
        %v2198 = vpack.c.b16 %v2097, %v2096
        %v2199 = vpack.c.b16 %v2099, %v2098
        %v2200 = vpack.c.b16 %v2101, %v2100
        %v2201 = vpack.c.b16 %v2103, %v2102
        %v2202 = vpack.c.b16 %v2105, %v2104
        %v2203 = vpack.c.b16 %v2107, %v2106
        %v2204 = vpack.c.b16 %v2109, %v2108
        %v2205 = vpack.c.b16 %v2111, %v2110
        %v2206 = vpack.c.b16 %v2113, %v2112
        %v2207 = vpack.c.b16 %v2115, %v2114
        %v2208 = vpack.c.b16 %v2117, %v2116
        %v2209 = vpack.c.b16 %v2119, %v2118
        %v2210 = vpack.c.b16 %v2121, %v2120
        %v2211 = vpack.c.b16 %v2123, %v2122
        %v2212 = vpack.c.b16 %v2125, %v2124
        %v2213 = vpack.c.b16 %v2127, %v2126
        %v2214 = vpack.c.b16 %v2129, %v2128
        %v2215 = vpack.c.b16 %v2131, %v2130
        %v2216 = vpack.c.b16 %v2133, %v2132
        %v2217 = vpack.c.b16 %v2135, %v2134
        %v2218 = vpack.c.b16 %v2137, %v2136
        %v2219 = vpack.c.b16 %v2139, %v2138
        %v2220 = vpack.c.b16 %v2141, %v2140
        %v2221 = vpack.c.b16 %v2143, %v2142
        %v2222 = vpack.c.b16 %v2145, %v2144
        %v2223 = vpack.c.b16 %v2147, %v2146
        %v2224 = vpack.c.b16 %v2149, %v2148
        %v2225 = vpack.c.b16 %v2151, %v2150
        %v2226 = vpack.c.b16 %v2153, %v2152
        %v2227 = vpack.c.b16 %v2155, %v2154
        %2300 = vmatprep.subr.bf16.mxu0 0
        %2301 = vmatpush1.bf16.msra.mxu0 %v2163
        %2302 = vmatprep.subr.bf16.mxu0 0
        %2303 = vmatpush1.bf16.msra.mxu0 %v2162
        %2304 = vmatprep.subr.bf16.mxu0 0
        %2305 = vmatpush1.bf16.msra.mxu0 %v2161
        %2306 = vmatprep.subr.bf16.mxu0 0
        %2307 = vmatpush1.bf16.msra.mxu0 %v2160
        %2308 = vmatprep.subr.bf16.mxu0 0
        %2309 = vmatpush1.bf16.msra.mxu0 %v2159
        %2310 = vmatprep.subr.bf16.mxu0 0
        %2311 = vmatpush1.bf16.msra.mxu0 %v2158
        %2312 = vmatprep.subr.bf16.mxu0 0
        %2313 = vmatpush1.bf16.msra.mxu0 %v2157
        %2314 = vmatprep.subr.bf16.mxu0 0
        %2315 = vmatpush1.bf16.msra.mxu0 %v2156
        %2316 = vmatprep.subr.bf16.mxu0 0
        %2317 = vmatpush2.bf16.msra.mxu0 %v2171
        %2318 = vmatprep.subr.bf16.mxu0 0
        %2319 = vmatpush2.bf16.msra.mxu0 %v2170
        %2320 = vmatprep.subr.bf16.mxu0 0
        %2321 = vmatpush2.bf16.msra.mxu0 %v2169
        %2322 = vmatprep.subr.bf16.mxu0 0
        %2323 = vmatpush2.bf16.msra.mxu0 %v2168
        %2324 = vmatprep.subr.bf16.mxu0 0
        %2325 = vmatpush2.bf16.msra.mxu0 %v2167
        %2326 = vmatprep.subr.bf16.mxu0 0
        %2327 = vmatpush2.bf16.msra.mxu0 %v2166
        %2328 = vmatprep.subr.bf16.mxu0 0
        %2329 = vmatpush2.bf16.msra.mxu0 %v2165
        %2330 = vmatprep.subr.bf16.mxu0 0
        %2331 = vmatpush2.bf16.msra.mxu0 %v2164
        %2332 = vmatprep.mubr.bf16.mxu0 %v1392
        %2333 = vmatmul.mubr.bf16.gmra.mxu0 %v1344
        %v2334 = vpop.f32.mrf.mxu0
        %v2335 = vadd.f32 0.0, %v2334
        %v2336 = vpop.f32.mrf.mxu0
        %v2337 = vpop.f32.mrf.mxu0
        %v2338 = vadd.f32 0.0, %v2337
        %v2339 = vpop.f32.mrf.mxu0
        %2340 = vmatprep.mubr.bf16.mxu0 %v1404
        %2341 = vmatmul.mubr.bf16.gmra.mxu0 %v1346
        %v2342 = vpop.f32.mrf.mxu0
        %v2343 = vadd.f32 0.0, %v2342
        %v2344 = vpop.f32.mrf.mxu0
        %v2345 = vpop.f32.mrf.mxu0
        %v2346 = vadd.f32 0.0, %v2345
        %v2347 = vpop.f32.mrf.mxu0
        %2348 = vmatprep.mubr.bf16.mxu0 %v1416
        %2349 = vmatmul.mubr.bf16.gmra.mxu0 %v1348
        %v2350 = vpop.f32.mrf.mxu0
        %v2351 = vadd.f32 0.0, %v2350
        %v2352 = vpop.f32.mrf.mxu0
        %v2353 = vpop.f32.mrf.mxu0
        %v2354 = vadd.f32 0.0, %v2353
        %v2355 = vpop.f32.mrf.mxu0
        %2356 = vmatprep.mubr.bf16.mxu0 %v1428
        %2357 = vmatmul.mubr.bf16.gmra.mxu0 %v1350
        %v2358 = vpop.f32.mrf.mxu0
        %v2359 = vadd.f32 0.0, %v2358
        %v2360 = vpop.f32.mrf.mxu0
        %v2361 = vpop.f32.mrf.mxu0
        %v2362 = vadd.f32 0.0, %v2361
        %v2363 = vpop.f32.mrf.mxu0
        %2364 = vmatprep.mubr.bf16.mxu0 %v1440
        %2365 = vmatmul.mubr.bf16.gmra.mxu0 %v1352
        %v2366 = vpop.f32.mrf.mxu0
        %v2367 = vadd.f32 0.0, %v2366
        %v2368 = vpop.f32.mrf.mxu0
        %v2369 = vpop.f32.mrf.mxu0
        %v2370 = vadd.f32 0.0, %v2369
        %v2371 = vpop.f32.mrf.mxu0
        %2372 = vmatprep.mubr.bf16.mxu0 %v1452
        %2373 = vmatmul.mubr.bf16.gmra.mxu0 %v1354
        %v2374 = vpop.f32.mrf.mxu0
        %v2375 = vadd.f32 0.0, %v2374
        %v2376 = vpop.f32.mrf.mxu0
        %v2377 = vpop.f32.mrf.mxu0
        %v2378 = vadd.f32 0.0, %v2377
        %v2379 = vpop.f32.mrf.mxu0
        %2380 = vmatprep.mubr.bf16.mxu0 %v1464
        %2381 = vmatmul.mubr.bf16.gmra.mxu0 %v1356
        %v2382 = vpop.f32.mrf.mxu0
        %v2383 = vadd.f32 0.0, %v2382
        %v2384 = vpop.f32.mrf.mxu0
        %v2385 = vpop.f32.mrf.mxu0
        %v2386 = vadd.f32 0.0, %v2385
        %v2387 = vpop.f32.mrf.mxu0
        %2388 = vmatprep.mubr.bf16.mxu0 %v1476
        %2389 = vmatmul.mubr.bf16.gmra.mxu0 %v1358
        %v2390 = vpop.f32.mrf.mxu0
        %v2391 = vadd.f32 0.0, %v2390
        %v2392 = vpop.f32.mrf.mxu0
        %v2393 = vpop.f32.mrf.mxu0
        %v2394 = vadd.f32 0.0, %v2393
        %v2395 = vpop.f32.mrf.mxu0
        %2396 = vmatprep.mubr.bf16.mxu0 %v1488
        %2397 = vmatmul.mubr.bf16.gmra.mxu0 %v1360
        %v2398 = vpop.f32.mrf.mxu0
        %v2399 = vadd.f32 0.0, %v2398
        %v2400 = vpop.f32.mrf.mxu0
        %v2401 = vpop.f32.mrf.mxu0
        %v2402 = vadd.f32 0.0, %v2401
        %v2403 = vpop.f32.mrf.mxu0
        %2404 = vmatprep.mubr.bf16.mxu0 %v1500
        %2405 = vmatmul.mubr.bf16.gmra.mxu0 %v1362
        %v2406 = vpop.f32.mrf.mxu0
        %v2407 = vadd.f32 0.0, %v2406
        %v2408 = vpop.f32.mrf.mxu0
        %v2409 = vpop.f32.mrf.mxu0
        %v2410 = vadd.f32 0.0, %v2409
        %v2411 = vpop.f32.mrf.mxu0
        %2412 = vmatprep.mubr.bf16.mxu0 %v1512
        %2413 = vmatmul.mubr.bf16.gmra.mxu0 %v1364
        %v2414 = vpop.f32.mrf.mxu0
        %v2415 = vadd.f32 0.0, %v2414
        %v2416 = vpop.f32.mrf.mxu0
        %v2417 = vpop.f32.mrf.mxu0
        %v2418 = vadd.f32 0.0, %v2417
        %v2419 = vpop.f32.mrf.mxu0
        %2420 = vmatprep.mubr.bf16.mxu0 %v1524
        %2421 = vmatmul.mubr.bf16.gmra.mxu0 %v1366
        %v2422 = vpop.f32.mrf.mxu0
        %v2423 = vadd.f32 0.0, %v2422
        %v2424 = vpop.f32.mrf.mxu0
        %v2425 = vpop.f32.mrf.mxu0
        %v2426 = vadd.f32 0.0, %v2425
        %v2427 = vpop.f32.mrf.mxu0
        %2428 = vmatprep.mubr.bf16.mxu0 %v1536
        %2429 = vmatmul.mubr.bf16.gmra.mxu0 %v1368
        %v2430 = vpop.f32.mrf.mxu0
        %v2431 = vadd.f32 0.0, %v2430
        %v2432 = vpop.f32.mrf.mxu0
        %v2433 = vpop.f32.mrf.mxu0
        %v2434 = vadd.f32 0.0, %v2433
        %v2435 = vpop.f32.mrf.mxu0
        %2436 = vmatprep.mubr.bf16.mxu0 %v1548
        %2437 = vmatmul.mubr.bf16.gmra.mxu0 %v1370
        %v2438 = vpop.f32.mrf.mxu0
        %v2439 = vadd.f32 0.0, %v2438
        %v2440 = vpop.f32.mrf.mxu0
        %v2441 = vpop.f32.mrf.mxu0
        %v2442 = vadd.f32 0.0, %v2441
        %v2443 = vpop.f32.mrf.mxu0
        %2444 = vmatprep.mubr.bf16.mxu0 %v1560
        %2445 = vmatmul.mubr.bf16.gmra.mxu0 %v1372
        %v2446 = vpop.f32.mrf.mxu0
        %v2447 = vadd.f32 0.0, %v2446
        %v2448 = vpop.f32.mrf.mxu0
        %v2449 = vpop.f32.mrf.mxu0
        %v2450 = vadd.f32 0.0, %v2449
        %v2451 = vpop.f32.mrf.mxu0
        %2452 = vmatprep.mubr.bf16.mxu0 %v1572
        %2453 = vmatmul.mubr.bf16.gmra.mxu0 %v1374
        %v2454 = vpop.f32.mrf.mxu0
        %v2455 = vadd.f32 0.0, %v2454
        %v2456 = vpop.f32.mrf.mxu0
        %v2457 = vpop.f32.mrf.mxu0
        %v2458 = vadd.f32 0.0, %v2457
        %v2459 = vpop.f32.mrf.mxu0
        %2460 = vdwg.mxu0
        %2461 = vmatprep.subr.bf16.mxu0 0
        %2462 = vmatpush1.bf16.msra.mxu0 %v2179
        %2463 = vmatprep.subr.bf16.mxu0 0
        %2464 = vmatpush1.bf16.msra.mxu0 %v2178
        %2465 = vmatprep.subr.bf16.mxu0 0
        %2466 = vmatpush1.bf16.msra.mxu0 %v2177
        %2467 = vmatprep.subr.bf16.mxu0 0
        %2468 = vmatpush1.bf16.msra.mxu0 %v2176
        %2469 = vmatprep.subr.bf16.mxu0 0
        %2470 = vmatpush1.bf16.msra.mxu0 %v2175
        %2471 = vmatprep.subr.bf16.mxu0 0
        %2472 = vmatpush1.bf16.msra.mxu0 %v2174
        %2473 = vmatprep.subr.bf16.mxu0 0
        %2474 = vmatpush1.bf16.msra.mxu0 %v2173
        %2475 = vmatprep.subr.bf16.mxu0 0
        %2476 = vmatpush1.bf16.msra.mxu0 %v2172
        %2477 = vmatprep.subr.bf16.mxu0 0
        %2478 = vmatpush2.bf16.msra.mxu0 %v2187
        %2479 = vmatprep.subr.bf16.mxu0 0
        %2480 = vmatpush2.bf16.msra.mxu0 %v2186
        %2481 = vmatprep.subr.bf16.mxu0 0
        %2482 = vmatpush2.bf16.msra.mxu0 %v2185
        %2483 = vmatprep.subr.bf16.mxu0 0
        %2484 = vmatpush2.bf16.msra.mxu0 %v2184
        %2485 = vmatprep.subr.bf16.mxu0 0
        %2486 = vmatpush2.bf16.msra.mxu0 %v2183
        %2487 = vmatprep.subr.bf16.mxu0 0
        %2488 = vmatpush2.bf16.msra.mxu0 %v2182
        %2489 = vmatprep.subr.bf16.mxu0 0
        %2490 = vmatpush2.bf16.msra.mxu0 %v2181
        %2491 = vmatprep.subr.bf16.mxu0 0
        %2492 = vmatpush2.bf16.msra.mxu0 %v2180
        %2493 = vmatprep.mubr.bf16.mxu0 %v1346
        %2494 = vmatmul.mubr.bf16.gmra.mxu0 %v1624
        %v2495 = vpop.f32.mrf.mxu0
        %v2496 = vadd.f32 %v2335, %v2495
        %v2497 = vpop.f32.mrf.mxu0
        %v2498 = vpop.f32.mrf.mxu0
        %v2499 = vadd.f32 %v2338, %v2498
        %v2500 = vpop.f32.mrf.mxu0
        %2501 = vmatprep.mubr.bf16.mxu0 %v1348
        %2502 = vmatmul.mubr.bf16.gmra.mxu0 %v1627
        %v2503 = vpop.f32.mrf.mxu0
        %v2504 = vadd.f32 %v2343, %v2503
        %v2505 = vpop.f32.mrf.mxu0
        %v2506 = vpop.f32.mrf.mxu0
        %v2507 = vadd.f32 %v2346, %v2506
        %v2508 = vpop.f32.mrf.mxu0
        %2509 = vmatprep.mubr.bf16.mxu0 %v1350
        %2510 = vmatmul.mubr.bf16.gmra.mxu0 %v1630
        %v2511 = vpop.f32.mrf.mxu0
        %v2512 = vadd.f32 %v2351, %v2511
        %v2513 = vpop.f32.mrf.mxu0
        %v2514 = vpop.f32.mrf.mxu0
        %v2515 = vadd.f32 %v2354, %v2514
        %v2516 = vpop.f32.mrf.mxu0
        %2517 = vmatprep.mubr.bf16.mxu0 %v1352
        %2518 = vmatmul.mubr.bf16.gmra.mxu0 %v1633
        %v2519 = vpop.f32.mrf.mxu0
        %v2520 = vadd.f32 %v2359, %v2519
        %v2521 = vpop.f32.mrf.mxu0
        %v2522 = vpop.f32.mrf.mxu0
        %v2523 = vadd.f32 %v2362, %v2522
        %v2524 = vpop.f32.mrf.mxu0
        %2525 = vmatprep.mubr.bf16.mxu0 %v1354
        %2526 = vmatmul.mubr.bf16.gmra.mxu0 %v1636
        %v2527 = vpop.f32.mrf.mxu0
        %v2528 = vadd.f32 %v2367, %v2527
        %v2529 = vpop.f32.mrf.mxu0
        %v2530 = vpop.f32.mrf.mxu0
        %v2531 = vadd.f32 %v2370, %v2530
        %v2532 = vpop.f32.mrf.mxu0
        %2533 = vmatprep.mubr.bf16.mxu0 %v1356
        %2534 = vmatmul.mubr.bf16.gmra.mxu0 %v1639
        %v2535 = vpop.f32.mrf.mxu0
        %v2536 = vadd.f32 %v2375, %v2535
        %v2537 = vpop.f32.mrf.mxu0
        %v2538 = vpop.f32.mrf.mxu0
        %v2539 = vadd.f32 %v2378, %v2538
        %v2540 = vpop.f32.mrf.mxu0
        %2541 = vmatprep.mubr.bf16.mxu0 %v1358
        %2542 = vmatmul.mubr.bf16.gmra.mxu0 %v1642
        %v2543 = vpop.f32.mrf.mxu0
        %v2544 = vadd.f32 %v2383, %v2543
        %v2545 = vpop.f32.mrf.mxu0
        %v2546 = vpop.f32.mrf.mxu0
        %v2547 = vadd.f32 %v2386, %v2546
        %v2548 = vpop.f32.mrf.mxu0
        %2549 = vmatprep.mubr.bf16.mxu0 %v1360
        %2550 = vmatmul.mubr.bf16.gmra.mxu0 %v1645
        %v2551 = vpop.f32.mrf.mxu0
        %v2552 = vadd.f32 %v2391, %v2551
        %v2553 = vpop.f32.mrf.mxu0
        %v2554 = vpop.f32.mrf.mxu0
        %v2555 = vadd.f32 %v2394, %v2554
        %v2556 = vpop.f32.mrf.mxu0
        %2557 = vmatprep.mubr.bf16.mxu0 %v1362
        %2558 = vmatmul.mubr.bf16.gmra.mxu0 %v1648
        %v2559 = vpop.f32.mrf.mxu0
        %v2560 = vadd.f32 %v2399, %v2559
        %v2561 = vpop.f32.mrf.mxu0
        %v2562 = vpop.f32.mrf.mxu0
        %v2563 = vadd.f32 %v2402, %v2562
        %v2564 = vpop.f32.mrf.mxu0
        %2565 = vmatprep.mubr.bf16.mxu0 %v1364
        %2566 = vmatmul.mubr.bf16.gmra.mxu0 %v1651
        %v2567 = vpop.f32.mrf.mxu0
        %v2568 = vadd.f32 %v2407, %v2567
        %v2569 = vpop.f32.mrf.mxu0
        %v2570 = vpop.f32.mrf.mxu0
        %v2571 = vadd.f32 %v2410, %v2570
        %v2572 = vpop.f32.mrf.mxu0
        %2573 = vmatprep.mubr.bf16.mxu0 %v1366
        %2574 = vmatmul.mubr.bf16.gmra.mxu0 %v1654
        %v2575 = vpop.f32.mrf.mxu0
        %v2576 = vadd.f32 %v2415, %v2575
        %v2577 = vpop.f32.mrf.mxu0
        %v2578 = vpop.f32.mrf.mxu0
        %v2579 = vadd.f32 %v2418, %v2578
        %v2580 = vpop.f32.mrf.mxu0
        %2581 = vmatprep.mubr.bf16.mxu0 %v1368
        %2582 = vmatmul.mubr.bf16.gmra.mxu0 %v1657
        %v2583 = vpop.f32.mrf.mxu0
        %v2584 = vadd.f32 %v2423, %v2583
        %v2585 = vpop.f32.mrf.mxu0
        %v2586 = vpop.f32.mrf.mxu0
        %v2587 = vadd.f32 %v2426, %v2586
        %v2588 = vpop.f32.mrf.mxu0
        %2589 = vmatprep.mubr.bf16.mxu0 %v1370
        %2590 = vmatmul.mubr.bf16.gmra.mxu0 %v1660
        %v2591 = vpop.f32.mrf.mxu0
        %v2592 = vadd.f32 %v2431, %v2591
        %v2593 = vpop.f32.mrf.mxu0
        %v2594 = vpop.f32.mrf.mxu0
        %v2595 = vadd.f32 %v2434, %v2594
        %v2596 = vpop.f32.mrf.mxu0
        %2597 = vmatprep.mubr.bf16.mxu0 %v1372
        %2598 = vmatmul.mubr.bf16.gmra.mxu0 %v1663
        %v2599 = vpop.f32.mrf.mxu0
        %v2600 = vadd.f32 %v2439, %v2599
        %v2601 = vpop.f32.mrf.mxu0
        %v2602 = vpop.f32.mrf.mxu0
        %v2603 = vadd.f32 %v2442, %v2602
        %v2604 = vpop.f32.mrf.mxu0
        %2605 = vmatprep.mubr.bf16.mxu0 %v1374
        %2606 = vmatmul.mubr.bf16.gmra.mxu0 %v1666
        %v2607 = vpop.f32.mrf.mxu0
        %v2608 = vadd.f32 %v2447, %v2607
        %v2609 = vpop.f32.mrf.mxu0
        %v2610 = vpop.f32.mrf.mxu0
        %v2611 = vadd.f32 %v2450, %v2610
        %v2612 = vpop.f32.mrf.mxu0
        %2613 = vmatprep.mubr.bf16.mxu0 %v1376
        %2614 = vmatmul.mubr.bf16.gmra.mxu0 %v1669
        %v2615 = vpop.f32.mrf.mxu0
        %v2616 = vadd.f32 %v2455, %v2615
        %v2617 = vpop.f32.mrf.mxu0
        %v2618 = vpop.f32.mrf.mxu0
        %v2619 = vadd.f32 %v2458, %v2618
        %v2620 = vpop.f32.mrf.mxu0
        %2621 = vdwg.mxu0
        %2622 = vmatprep.subr.bf16.mxu0 0
        %2623 = vmatpush1.bf16.msra.mxu0 %v2195
        %2624 = vmatprep.subr.bf16.mxu0 0
        %2625 = vmatpush1.bf16.msra.mxu0 %v2194
        %2626 = vmatprep.subr.bf16.mxu0 0
        %2627 = vmatpush1.bf16.msra.mxu0 %v2193
        %2628 = vmatprep.subr.bf16.mxu0 0
        %2629 = vmatpush1.bf16.msra.mxu0 %v2192
        %2630 = vmatprep.subr.bf16.mxu0 0
        %2631 = vmatpush1.bf16.msra.mxu0 %v2191
        %2632 = vmatprep.subr.bf16.mxu0 0
        %2633 = vmatpush1.bf16.msra.mxu0 %v2190
        %2634 = vmatprep.subr.bf16.mxu0 0
        %2635 = vmatpush1.bf16.msra.mxu0 %v2189
        %2636 = vmatprep.subr.bf16.mxu0 0
        %2637 = vmatpush1.bf16.msra.mxu0 %v2188
        %2638 = vmatprep.subr.bf16.mxu0 0
        %2639 = vmatpush2.bf16.msra.mxu0 %v2203
        %2640 = vmatprep.subr.bf16.mxu0 0
        %2641 = vmatpush2.bf16.msra.mxu0 %v2202
        %2642 = vmatprep.subr.bf16.mxu0 0
        %2643 = vmatpush2.bf16.msra.mxu0 %v2201
        %2644 = vmatprep.subr.bf16.mxu0 0
        %2645 = vmatpush2.bf16.msra.mxu0 %v2200
        %2646 = vmatprep.subr.bf16.mxu0 0
        %2647 = vmatpush2.bf16.msra.mxu0 %v2199
        %2648 = vmatprep.subr.bf16.mxu0 0
        %2649 = vmatpush2.bf16.msra.mxu0 %v2198
        %2650 = vmatprep.subr.bf16.mxu0 0
        %2651 = vmatpush2.bf16.msra.mxu0 %v2197
        %2652 = vmatprep.subr.bf16.mxu0 0
        %2653 = vmatpush2.bf16.msra.mxu0 %v2196
        %2654 = vmatprep.mubr.bf16.mxu0 %v1627
        %2655 = vmatmul.mubr.bf16.gmra.mxu0 %v1404
        %v2656 = vpop.f32.mrf.mxu0
        %v2657 = vadd.f32 %v2496, %v2656
        %v2658 = vpop.f32.mrf.mxu0
        %v2659 = vpop.f32.mrf.mxu0
        %v2660 = vadd.f32 %v2499, %v2659
        %v2661 = vpop.f32.mrf.mxu0
        %2662 = vmatprep.mubr.bf16.mxu0 %v1630
        %2663 = vmatmul.mubr.bf16.gmra.mxu0 %v1416
        %v2664 = vpop.f32.mrf.mxu0
        %v2665 = vadd.f32 %v2504, %v2664
        %v2666 = vpop.f32.mrf.mxu0
        %v2667 = vpop.f32.mrf.mxu0
        %v2668 = vadd.f32 %v2507, %v2667
        %v2669 = vpop.f32.mrf.mxu0
        %2670 = vmatprep.mubr.bf16.mxu0 %v1633
        %2671 = vmatmul.mubr.bf16.gmra.mxu0 %v1428
        %v2672 = vpop.f32.mrf.mxu0
        %v2673 = vadd.f32 %v2512, %v2672
        %v2674 = vpop.f32.mrf.mxu0
        %v2675 = vpop.f32.mrf.mxu0
        %v2676 = vadd.f32 %v2515, %v2675
        %v2677 = vpop.f32.mrf.mxu0
        %2678 = vmatprep.mubr.bf16.mxu0 %v1636
        %2679 = vmatmul.mubr.bf16.gmra.mxu0 %v1440
        %v2680 = vpop.f32.mrf.mxu0
        %v2681 = vadd.f32 %v2520, %v2680
        %v2682 = vpop.f32.mrf.mxu0
        %v2683 = vpop.f32.mrf.mxu0
        %v2684 = vadd.f32 %v2523, %v2683
        %v2685 = vpop.f32.mrf.mxu0
        %2686 = vmatprep.mubr.bf16.mxu0 %v1639
        %2687 = vmatmul.mubr.bf16.gmra.mxu0 %v1452
        %v2688 = vpop.f32.mrf.mxu0
        %v2689 = vadd.f32 %v2528, %v2688
        %v2690 = vpop.f32.mrf.mxu0
        %v2691 = vpop.f32.mrf.mxu0
        %v2692 = vadd.f32 %v2531, %v2691
        %v2693 = vpop.f32.mrf.mxu0
        %2694 = vmatprep.mubr.bf16.mxu0 %v1642
        %2695 = vmatmul.mubr.bf16.gmra.mxu0 %v1464
        %v2696 = vpop.f32.mrf.mxu0
        %v2697 = vadd.f32 %v2536, %v2696
        %v2698 = vpop.f32.mrf.mxu0
        %v2699 = vpop.f32.mrf.mxu0
        %v2700 = vadd.f32 %v2539, %v2699
        %v2701 = vpop.f32.mrf.mxu0
        %2702 = vmatprep.mubr.bf16.mxu0 %v1645
        %2703 = vmatmul.mubr.bf16.gmra.mxu0 %v1476
        %v2704 = vpop.f32.mrf.mxu0
        %v2705 = vadd.f32 %v2544, %v2704
        %v2706 = vpop.f32.mrf.mxu0
        %v2707 = vpop.f32.mrf.mxu0
        %v2708 = vadd.f32 %v2547, %v2707
        %v2709 = vpop.f32.mrf.mxu0
        %2710 = vmatprep.mubr.bf16.mxu0 %v1648
        %2711 = vmatmul.mubr.bf16.gmra.mxu0 %v1488
        %v2712 = vpop.f32.mrf.mxu0
        %v2713 = vadd.f32 %v2552, %v2712
        %v2714 = vpop.f32.mrf.mxu0
        %v2715 = vpop.f32.mrf.mxu0
        %v2716 = vadd.f32 %v2555, %v2715
        %v2717 = vpop.f32.mrf.mxu0
        %2718 = vmatprep.mubr.bf16.mxu0 %v1651
        %2719 = vmatmul.mubr.bf16.gmra.mxu0 %v1500
        %v2720 = vpop.f32.mrf.mxu0
        %v2721 = vadd.f32 %v2560, %v2720
        %v2722 = vpop.f32.mrf.mxu0
        %v2723 = vpop.f32.mrf.mxu0
        %v2724 = vadd.f32 %v2563, %v2723
        %v2725 = vpop.f32.mrf.mxu0
        %2726 = vmatprep.mubr.bf16.mxu0 %v1654
        %2727 = vmatmul.mubr.bf16.gmra.mxu0 %v1512
        %v2728 = vpop.f32.mrf.mxu0
        %v2729 = vadd.f32 %v2568, %v2728
        %v2730 = vpop.f32.mrf.mxu0
        %v2731 = vpop.f32.mrf.mxu0
        %v2732 = vadd.f32 %v2571, %v2731
        %v2733 = vpop.f32.mrf.mxu0
        %2734 = vmatprep.mubr.bf16.mxu0 %v1657
        %2735 = vmatmul.mubr.bf16.gmra.mxu0 %v1524
        %v2736 = vpop.f32.mrf.mxu0
        %v2737 = vadd.f32 %v2576, %v2736
        %v2738 = vpop.f32.mrf.mxu0
        %v2739 = vpop.f32.mrf.mxu0
        %v2740 = vadd.f32 %v2579, %v2739
        %v2741 = vpop.f32.mrf.mxu0
        %2742 = vmatprep.mubr.bf16.mxu0 %v1660
        %2743 = vmatmul.mubr.bf16.gmra.mxu0 %v1536
        %v2744 = vpop.f32.mrf.mxu0
        %v2745 = vadd.f32 %v2584, %v2744
        %v2746 = vpop.f32.mrf.mxu0
        %v2747 = vpop.f32.mrf.mxu0
        %v2748 = vadd.f32 %v2587, %v2747
        %v2749 = vpop.f32.mrf.mxu0
        %2750 = vmatprep.mubr.bf16.mxu0 %v1663
        %2751 = vmatmul.mubr.bf16.gmra.mxu0 %v1548
        %v2752 = vpop.f32.mrf.mxu0
        %v2753 = vadd.f32 %v2592, %v2752
        %v2754 = vpop.f32.mrf.mxu0
        %v2755 = vpop.f32.mrf.mxu0
        %v2756 = vadd.f32 %v2595, %v2755
        %v2757 = vpop.f32.mrf.mxu0
        %2758 = vmatprep.mubr.bf16.mxu0 %v1666
        %2759 = vmatmul.mubr.bf16.gmra.mxu0 %v1560
        %v2760 = vpop.f32.mrf.mxu0
        %v2761 = vadd.f32 %v2600, %v2760
        %v2762 = vpop.f32.mrf.mxu0
        %v2763 = vpop.f32.mrf.mxu0
        %v2764 = vadd.f32 %v2603, %v2763
        %v2765 = vpop.f32.mrf.mxu0
        %2766 = vmatprep.mubr.bf16.mxu0 %v1669
        %2767 = vmatmul.mubr.bf16.gmra.mxu0 %v1572
        %v2768 = vpop.f32.mrf.mxu0
        %v2769 = vadd.f32 %v2608, %v2768
        %v2770 = vpop.f32.mrf.mxu0
        %v2771 = vpop.f32.mrf.mxu0
        %v2772 = vadd.f32 %v2611, %v2771
        %v2773 = vpop.f32.mrf.mxu0
        %2774 = vmatprep.mubr.bf16.mxu0 %v1703
        %2775 = vmatmul.mubr.bf16.gmra.mxu0 %v1697
        %v2776 = vpop.f32.mrf.mxu0
        %v2777 = vadd.f32 %v2616, %v2776
        %v2778 = vpop.f32.mrf.mxu0
        %v2779 = vpop.f32.mrf.mxu0
        %v2780 = vadd.f32 %v2619, %v2779
        %v2781 = vpop.f32.mrf.mxu0
        %2782 = vdwg.mxu0
        %2783 = vmatprep.subr.bf16.mxu0 0
        %2784 = vmatpush1.bf16.msra.mxu0 %v2211
        %2785 = vmatprep.subr.bf16.mxu0 0
        %2786 = vmatpush1.bf16.msra.mxu0 %v2210
        %2787 = vmatprep.subr.bf16.mxu0 0
        %2788 = vmatpush1.bf16.msra.mxu0 %v2209
        %2789 = vmatprep.subr.bf16.mxu0 0
        %2790 = vmatpush1.bf16.msra.mxu0 %v2208
        %2791 = vmatprep.subr.bf16.mxu0 0
        %2792 = vmatpush1.bf16.msra.mxu0 %v2207
        %2793 = vmatprep.subr.bf16.mxu0 0
        %2794 = vmatpush1.bf16.msra.mxu0 %v2206
        %2795 = vmatprep.subr.bf16.mxu0 0
        %2796 = vmatpush1.bf16.msra.mxu0 %v2205
        %2797 = vmatprep.subr.bf16.mxu0 0
        %2798 = vmatpush1.bf16.msra.mxu0 %v2204
        %2799 = vmatprep.subr.bf16.mxu0 0
        %2800 = vmatpush2.bf16.msra.mxu0 %v2219
        %2801 = vmatprep.subr.bf16.mxu0 0
        %2802 = vmatpush2.bf16.msra.mxu0 %v2218
        %2803 = vmatprep.subr.bf16.mxu0 0
        %2804 = vmatpush2.bf16.msra.mxu0 %v2217
        %2805 = vmatprep.subr.bf16.mxu0 0
        %2806 = vmatpush2.bf16.msra.mxu0 %v2216
        %2807 = vmatprep.subr.bf16.mxu0 0
        %2808 = vmatpush2.bf16.msra.mxu0 %v2215
        %2809 = vmatprep.subr.bf16.mxu0 0
        %2810 = vmatpush2.bf16.msra.mxu0 %v2214
        %2811 = vmatprep.subr.bf16.mxu0 0
        %2812 = vmatpush2.bf16.msra.mxu0 %v2213
        %2813 = vmatprep.subr.bf16.mxu0 0
        %2814 = vmatpush2.bf16.msra.mxu0 %v2212
        %2815 = vmatprep.mubr.bf16.mxu0 %v1416
        %2816 = vmatmul.mubr.bf16.gmra.mxu0 %v1348
        %v2817 = vpop.f32.mrf.mxu0
        %v2818 = vadd.f32 %v2657, %v2817
        %v2819 = vpop.f32.mrf.mxu0
        %v2820 = vpop.f32.mrf.mxu0
        %v2821 = vadd.f32 %v2660, %v2820
        %v2822 = vpop.f32.mrf.mxu0
        %2823 = vmatprep.mubr.bf16.mxu0 %v1428
        %2824 = vmatmul.mubr.bf16.gmra.mxu0 %v1350
        %v2825 = vpop.f32.mrf.mxu0
        %v2826 = vadd.f32 %v2665, %v2825
        %v2827 = vpop.f32.mrf.mxu0
        %v2828 = vpop.f32.mrf.mxu0
        %v2829 = vadd.f32 %v2668, %v2828
        %v2830 = vpop.f32.mrf.mxu0
        %2831 = vmatprep.mubr.bf16.mxu0 %v1440
        %2832 = vmatmul.mubr.bf16.gmra.mxu0 %v1352
        %v2833 = vpop.f32.mrf.mxu0
        %v2834 = vadd.f32 %v2673, %v2833
        %v2835 = vpop.f32.mrf.mxu0
        %v2836 = vpop.f32.mrf.mxu0
        %v2837 = vadd.f32 %v2676, %v2836
        %v2838 = vpop.f32.mrf.mxu0
        %2839 = vmatprep.mubr.bf16.mxu0 %v1452
        %2840 = vmatmul.mubr.bf16.gmra.mxu0 %v1354
        %v2841 = vpop.f32.mrf.mxu0
        %v2842 = vadd.f32 %v2681, %v2841
        %v2843 = vpop.f32.mrf.mxu0
        %v2844 = vpop.f32.mrf.mxu0
        %v2845 = vadd.f32 %v2684, %v2844
        %v2846 = vpop.f32.mrf.mxu0
        %2847 = vmatprep.mubr.bf16.mxu0 %v1464
        %2848 = vmatmul.mubr.bf16.gmra.mxu0 %v1356
        %v2849 = vpop.f32.mrf.mxu0
        %v2850 = vadd.f32 %v2689, %v2849
        %v2851 = vpop.f32.mrf.mxu0
        %v2852 = vpop.f32.mrf.mxu0
        %v2853 = vadd.f32 %v2692, %v2852
        %v2854 = vpop.f32.mrf.mxu0
        %2855 = vmatprep.mubr.bf16.mxu0 %v1476
        %2856 = vmatmul.mubr.bf16.gmra.mxu0 %v1358
        %v2857 = vpop.f32.mrf.mxu0
        %v2858 = vadd.f32 %v2697, %v2857
        %v2859 = vpop.f32.mrf.mxu0
        %v2860 = vpop.f32.mrf.mxu0
        %v2861 = vadd.f32 %v2700, %v2860
        %v2862 = vpop.f32.mrf.mxu0
        %2863 = vmatprep.mubr.bf16.mxu0 %v1488
        %2864 = vmatmul.mubr.bf16.gmra.mxu0 %v1360
        %v2865 = vpop.f32.mrf.mxu0
        %v2866 = vadd.f32 %v2705, %v2865
        %v2867 = vpop.f32.mrf.mxu0
        %v2868 = vpop.f32.mrf.mxu0
        %v2869 = vadd.f32 %v2708, %v2868
        %v2870 = vpop.f32.mrf.mxu0
        %2871 = vmatprep.mubr.bf16.mxu0 %v1500
        %2872 = vmatmul.mubr.bf16.gmra.mxu0 %v1362
        %v2873 = vpop.f32.mrf.mxu0
        %v2874 = vadd.f32 %v2713, %v2873
        %v2875 = vpop.f32.mrf.mxu0
        %v2876 = vpop.f32.mrf.mxu0
        %v2877 = vadd.f32 %v2716, %v2876
        %v2878 = vpop.f32.mrf.mxu0
        %2879 = vmatprep.mubr.bf16.mxu0 %v1512
        %2880 = vmatmul.mubr.bf16.gmra.mxu0 %v1364
        %v2881 = vpop.f32.mrf.mxu0
        %v2882 = vadd.f32 %v2721, %v2881
        %v2883 = vpop.f32.mrf.mxu0
        %v2884 = vpop.f32.mrf.mxu0
        %v2885 = vadd.f32 %v2724, %v2884
        %v2886 = vpop.f32.mrf.mxu0
        %2887 = vmatprep.mubr.bf16.mxu0 %v1524
        %2888 = vmatmul.mubr.bf16.gmra.mxu0 %v1366
        %v2889 = vpop.f32.mrf.mxu0
        %v2890 = vadd.f32 %v2729, %v2889
        %v2891 = vpop.f32.mrf.mxu0
        %v2892 = vpop.f32.mrf.mxu0
        %v2893 = vadd.f32 %v2732, %v2892
        %v2894 = vpop.f32.mrf.mxu0
        %2895 = vmatprep.mubr.bf16.mxu0 %v1536
        %2896 = vmatmul.mubr.bf16.gmra.mxu0 %v1368
        %v2897 = vpop.f32.mrf.mxu0
        %v2898 = vadd.f32 %v2737, %v2897
        %v2899 = vpop.f32.mrf.mxu0
        %v2900 = vpop.f32.mrf.mxu0
        %v2901 = vadd.f32 %v2740, %v2900
        %v2902 = vpop.f32.mrf.mxu0
        %2903 = vmatprep.mubr.bf16.mxu0 %v1548
        %2904 = vmatmul.mubr.bf16.gmra.mxu0 %v1370
        %v2905 = vpop.f32.mrf.mxu0
        %v2906 = vadd.f32 %v2745, %v2905
        %v2907 = vpop.f32.mrf.mxu0
        %v2908 = vpop.f32.mrf.mxu0
        %v2909 = vadd.f32 %v2748, %v2908
        %v2910 = vpop.f32.mrf.mxu0
        %2911 = vmatprep.mubr.bf16.mxu0 %v1560
        %2912 = vmatmul.mubr.bf16.gmra.mxu0 %v1372
        %v2913 = vpop.f32.mrf.mxu0
        %v2914 = vadd.f32 %v2753, %v2913
        %v2915 = vpop.f32.mrf.mxu0
        %v2916 = vpop.f32.mrf.mxu0
        %v2917 = vadd.f32 %v2756, %v2916
        %v2918 = vpop.f32.mrf.mxu0
        %2919 = vmatprep.mubr.bf16.mxu0 %v1572
        %2920 = vmatmul.mubr.bf16.gmra.mxu0 %v1374
        %v2921 = vpop.f32.mrf.mxu0
        %v2922 = vadd.f32 %v2761, %v2921
        %v2923 = vpop.f32.mrf.mxu0
        %v2924 = vpop.f32.mrf.mxu0
        %v2925 = vadd.f32 %v2764, %v2924
        %v2926 = vpop.f32.mrf.mxu0
        %2927 = vmatprep.mubr.bf16.mxu0 %v1697
        %2928 = vmatmul.mubr.bf16.gmra.mxu0 %v1376
        %v2929 = vpop.f32.mrf.mxu0
        %v2930 = vadd.f32 %v2769, %v2929
        %v2931 = vpop.f32.mrf.mxu0
        %v2932 = vpop.f32.mrf.mxu0
        %v2933 = vadd.f32 %v2772, %v2932
        %v2934 = vpop.f32.mrf.mxu0
        %2935 = vmatprep.mubr.bf16.mxu0 %v1716
        %2936 = vmatmul.mubr.bf16.gmra.mxu0 %v1378
        %v2937 = vpop.f32.mrf.mxu0
        %v2938 = vadd.f32 %v2777, %v2937
        %v2939 = vpop.f32.mrf.mxu0
        %v2940 = vpop.f32.mrf.mxu0
        %v2941 = vadd.f32 %v2780, %v2940
        %v2942 = vpop.f32.mrf.mxu0
        %2943 = vdwg.mxu0
        %2944 = vmatprep.subr.bf16.mxu0 0
        %2945 = vmatpush1.bf16.msra.mxu0 %v2227
        %2946 = vmatprep.subr.bf16.mxu0 0
        %2947 = vmatpush1.bf16.msra.mxu0 %v2226
        %2948 = vmatprep.subr.bf16.mxu0 0
        %2949 = vmatpush1.bf16.msra.mxu0 %v2225
        %2950 = vmatprep.subr.bf16.mxu0 0
        %2951 = vmatpush1.bf16.msra.mxu0 %v2224
        %2952 = vmatprep.subr.bf16.mxu0 0
        %2953 = vmatpush1.bf16.msra.mxu0 %v2223
        %2954 = vmatprep.subr.bf16.mxu0 0
        %2955 = vmatpush1.bf16.msra.mxu0 %v2222
        %2956 = vmatprep.subr.bf16.mxu0 0
        %2957 = vmatpush1.bf16.msra.mxu0 %v2221
        %2958 = vmatprep.subr.bf16.mxu0 0
        %2959 = vmatpush1.bf16.msra.mxu0 %v2220
        %2960 = vmatprep.subr.bf16.mxu0 0
        %2961 = vmatpush2.bf16.msra.mxu0 0
        %2962 = vmatprep.subr.bf16.mxu0 0
        %2963 = vmatpush2.bf16.msra.mxu0 0
        %2964 = vmatprep.subr.bf16.mxu0 0
        %2965 = vmatpush2.bf16.msra.mxu0 0
        %2966 = vmatprep.subr.bf16.mxu0 0
        %2967 = vmatpush2.bf16.msra.mxu0 0
        %2968 = vmatprep.subr.bf16.mxu0 0
        %2969 = vmatpush2.bf16.msra.mxu0 0
        %2970 = vmatprep.subr.bf16.mxu0 0
        %2971 = vmatpush2.bf16.msra.mxu0 0
        %2972 = vmatprep.subr.bf16.mxu0 0
        %2973 = vmatpush2.bf16.msra.mxu0 0
        %2974 = vmatprep.subr.bf16.mxu0 0
        %2975 = vmatpush2.bf16.msra.mxu0 0
        %2976 = vmatprep.mubr.bf16.mxu0 0
        %2977 = vmatmul.mubr.bf16.gmra.mxu0 %v1630
        %v2978 = vpop.f32.mrf.mxu0
        %v2979 = vadd.f32 %v2818, %v2978
        %v2980 = vpop.f32.mrf.mxu0
        %v2981 = vpop.f32.mrf.mxu0
        %v2982 = vadd.f32 %v2821, %v2981
        %v2983 = vpop.f32.mrf.mxu0
        %2984 = vmatprep.mubr.bf16.mxu0 0
        %2985 = vmatmul.mubr.bf16.gmra.mxu0 %v1633
        %v2986 = vpop.f32.mrf.mxu0
        %v2987 = vadd.f32 %v2826, %v2986
        %v2988 = vpop.f32.mrf.mxu0
        %v2989 = vpop.f32.mrf.mxu0
        %v2990 = vadd.f32 %v2829, %v2989
        %v2991 = vpop.f32.mrf.mxu0
        %2992 = vmatprep.mubr.bf16.mxu0 0
        %2993 = vmatmul.mubr.bf16.gmra.mxu0 %v1636
        %v2994 = vpop.f32.mrf.mxu0
        %v2995 = vadd.f32 %v2834, %v2994
        %v2996 = vpop.f32.mrf.mxu0
        %v2997 = vpop.f32.mrf.mxu0
        %v2998 = vadd.f32 %v2837, %v2997
        %v2999 = vpop.f32.mrf.mxu0
        %3000 = vmatprep.mubr.bf16.mxu0 0
        %3001 = vmatmul.mubr.bf16.gmra.mxu0 %v1639
        %v3002 = vpop.f32.mrf.mxu0
        %v3003 = vadd.f32 %v2842, %v3002
        %v3004 = vpop.f32.mrf.mxu0
        %v3005 = vpop.f32.mrf.mxu0
        %v3006 = vadd.f32 %v2845, %v3005
        %v3007 = vpop.f32.mrf.mxu0
        %3008 = vmatprep.mubr.bf16.mxu0 0
        %3009 = vmatmul.mubr.bf16.gmra.mxu0 %v1642
        %v3010 = vpop.f32.mrf.mxu0
        %v3011 = vadd.f32 %v2850, %v3010
        %v3012 = vpop.f32.mrf.mxu0
        %v3013 = vpop.f32.mrf.mxu0
        %v3014 = vadd.f32 %v2853, %v3013
        %v3015 = vpop.f32.mrf.mxu0
        %3016 = vmatprep.mubr.bf16.mxu0 0
        %3017 = vmatmul.mubr.bf16.gmra.mxu0 %v1645
        %v3018 = vpop.f32.mrf.mxu0
        %v3019 = vadd.f32 %v2858, %v3018
        %v3020 = vpop.f32.mrf.mxu0
        %v3021 = vpop.f32.mrf.mxu0
        %v3022 = vadd.f32 %v2861, %v3021
        %v3023 = vpop.f32.mrf.mxu0
        %3024 = vmatprep.mubr.bf16.mxu0 0
        %3025 = vmatmul.mubr.bf16.gmra.mxu0 %v1648
        %v3026 = vpop.f32.mrf.mxu0
        %v3027 = vadd.f32 %v2866, %v3026
        %v3028 = vpop.f32.mrf.mxu0
        %v3029 = vpop.f32.mrf.mxu0
        %v3030 = vadd.f32 %v2869, %v3029
        %v3031 = vpop.f32.mrf.mxu0
        %3032 = vmatprep.mubr.bf16.mxu0 0
        %3033 = vmatmul.mubr.bf16.gmra.mxu0 %v1651
        %v3034 = vpop.f32.mrf.mxu0
        %v3035 = vadd.f32 %v2874, %v3034
        %v3036 = vpop.f32.mrf.mxu0
        %v3037 = vpop.f32.mrf.mxu0
        %v3038 = vadd.f32 %v2877, %v3037
        %v3039 = vpop.f32.mrf.mxu0
        %3040 = vmatprep.mubr.bf16.mxu0 0
        %3041 = vmatmul.mubr.bf16.gmra.mxu0 %v1654
        %v3042 = vpop.f32.mrf.mxu0
        %v3043 = vadd.f32 %v2882, %v3042
        %v3044 = vpop.f32.mrf.mxu0
        %v3045 = vpop.f32.mrf.mxu0
        %v3046 = vadd.f32 %v2885, %v3045
        %v3047 = vpop.f32.mrf.mxu0
        %3048 = vmatprep.mubr.bf16.mxu0 0
        %3049 = vmatmul.mubr.bf16.gmra.mxu0 %v1657
        %v3050 = vpop.f32.mrf.mxu0
        %v3051 = vadd.f32 %v2890, %v3050
        %v3052 = vpop.f32.mrf.mxu0
        %v3053 = vpop.f32.mrf.mxu0
        %v3054 = vadd.f32 %v2893, %v3053
        %v3055 = vpop.f32.mrf.mxu0
        %3056 = vmatprep.mubr.bf16.mxu0 0
        %3057 = vmatmul.mubr.bf16.gmra.mxu0 %v1660
        %v3058 = vpop.f32.mrf.mxu0
        %v3059 = vadd.f32 %v2898, %v3058
        %v3060 = vpop.f32.mrf.mxu0
        %v3061 = vpop.f32.mrf.mxu0
        %v3062 = vadd.f32 %v2901, %v3061
        %v3063 = vpop.f32.mrf.mxu0
        %3064 = vmatprep.mubr.bf16.mxu0 0
        %3065 = vmatmul.mubr.bf16.gmra.mxu0 %v1663
        %v3066 = vpop.f32.mrf.mxu0
        %v3067 = vadd.f32 %v2906, %v3066
        %v3068 = vpop.f32.mrf.mxu0
        %v3069 = vpop.f32.mrf.mxu0
        %v3070 = vadd.f32 %v2909, %v3069
        %v3071 = vpop.f32.mrf.mxu0
        %3072 = vmatprep.mubr.bf16.mxu0 0
        %3073 = vmatmul.mubr.bf16.gmra.mxu0 %v1666
        %v3074 = vpop.f32.mrf.mxu0
        %v3075 = vadd.f32 %v2914, %v3074
        %v3076 = vpop.f32.mrf.mxu0
        %v3077 = vpop.f32.mrf.mxu0
        %v3078 = vadd.f32 %v2917, %v3077
        %v3079 = vpop.f32.mrf.mxu0
        %3080 = vmatprep.mubr.bf16.mxu0 0
        %3081 = vmatmul.mubr.bf16.gmra.mxu0 %v1669
        %v3082 = vpop.f32.mrf.mxu0
        %v3083 = vadd.f32 %v2922, %v3082
        %v3084 = vpop.f32.mrf.mxu0
        %v3085 = vpop.f32.mrf.mxu0
        %v3086 = vadd.f32 %v2925, %v3085
        %v3087 = vpop.f32.mrf.mxu0
        %3088 = vmatprep.mubr.bf16.mxu0 0
        %3089 = vmatmul.mubr.bf16.gmra.mxu0 %v1703
        %v3090 = vpop.f32.mrf.mxu0
        %v3091 = vadd.f32 %v2930, %v3090
        %v3092 = vpop.f32.mrf.mxu0
        %v3093 = vpop.f32.mrf.mxu0
        %v3094 = vadd.f32 %v2933, %v3093
        %v3095 = vpop.f32.mrf.mxu0
        %3096 = vmatprep.mubr.bf16.mxu0 0
        %3097 = vmatmul.mubr.bf16.gmra.mxu0 %v1722
        %v3098 = vpop.f32.mrf.mxu0
        %v3099 = vadd.f32 %v2938, %v3098
        %v3100 = vpop.f32.mrf.mxu0
        %v3101 = vpop.f32.mrf.mxu0
        %v3102 = vadd.f32 %v2941, %v3101
        %v3103 = vpop.f32.mrf.mxu0
        %3104 = vdwg.mxu0
        %v3105 = vld [vmem:[%s7] sm:$0x1]
        %v3107 = vlaneseq
        %v3108 = vshrl.u32 %v3107, 7
        %v3109 = vsub.s32 0, %v3108
        %v3110 = vrot.slane %v3105, %v3109
        %v3112 = vmul.f32 %v2979, %v3110
        %v3113 = vmul.f32 %v2982, %v3110
        %v3114 = vmul.f32 %v2987, %v3110
        %v3115 = vmul.f32 %v2990, %v3110
        %v3116 = vmul.f32 %v2995, %v3110
        %v3117 = vmul.f32 %v2998, %v3110
        %v3118 = vmul.f32 %v3003, %v3110
        %v3119 = vmul.f32 %v3006, %v3110
        %v3120 = vmul.f32 %v3011, %v3110
        %v3121 = vmul.f32 %v3014, %v3110
        %v3122 = vmul.f32 %v3019, %v3110
        %v3123 = vmul.f32 %v3022, %v3110
        %v3124 = vmul.f32 %v3027, %v3110
        %v3125 = vmul.f32 %v3030, %v3110
        %v3126 = vmul.f32 %v3035, %v3110
        %v3127 = vmul.f32 %v3038, %v3110
        %v3128 = vmul.f32 %v3043, %v3110
        %v3129 = vmul.f32 %v3046, %v3110
        %v3130 = vmul.f32 %v3051, %v3110
        %v3131 = vmul.f32 %v3054, %v3110
        %v3132 = vmul.f32 %v3059, %v3110
        %v3133 = vmul.f32 %v3062, %v3110
        %v3134 = vmul.f32 %v3067, %v3110
        %v3135 = vmul.f32 %v3070, %v3110
        %v3136 = vmul.f32 %v3075, %v3110
        %v3137 = vmul.f32 %v3078, %v3110
        %v3138 = vmul.f32 %v3083, %v3110
        %v3139 = vmul.f32 %v3086, %v3110
        %v3140 = vmul.f32 %v3091, %v3110
        %v3141 = vmul.f32 %v3094, %v3110
        %v3142 = vmul.f32 %v3099, %v3110
        %v3143 = vmul.f32 %v3102, %v3110
        %v3144 = vld [vmem:[%s8] sm:$0x1]
        %v3146 = vlaneseq
        %v3147 = vshrl.u32 %v3146, 7
        %v3148 = vsub.s32 0, %v3147
        %v3149 = vrot.slane %v3144, %v3148
        %v3151 = vadd.f32 %v3112, %v3149
        %v3152 = vadd.f32 %v3113, %v3149
        %v3153 = vadd.f32 %v3114, %v3149
        %v3154 = vadd.f32 %v3115, %v3149
        %v3155 = vadd.f32 %v3116, %v3149
        %v3156 = vadd.f32 %v3117, %v3149
        %v3157 = vadd.f32 %v3118, %v3149
        %v3158 = vadd.f32 %v3119, %v3149
        %v3159 = vadd.f32 %v3120, %v3149
        %v3160 = vadd.f32 %v3121, %v3149
        %v3161 = vadd.f32 %v3122, %v3149
        %v3162 = vadd.f32 %v3123, %v3149
        %v3163 = vadd.f32 %v3124, %v3149
        %v3164 = vadd.f32 %v3125, %v3149
        %v3165 = vadd.f32 %v3126, %v3149
        %v3166 = vadd.f32 %v3127, %v3149
        %v3167 = vadd.f32 %v3128, %v3149
        %v3168 = vadd.f32 %v3129, %v3149
        %v3169 = vadd.f32 %v3130, %v3149
        %v3170 = vadd.f32 %v3131, %v3149
        %v3171 = vadd.f32 %v3132, %v3149
        %v3172 = vadd.f32 %v3133, %v3149
        %v3173 = vadd.f32 %v3134, %v3149
        %v3174 = vadd.f32 %v3135, %v3149
        %v3175 = vadd.f32 %v3136, %v3149
        %v3176 = vadd.f32 %v3137, %v3149
        %v3177 = vadd.f32 %v3138, %v3149
        %v3178 = vadd.f32 %v3139, %v3149
        %v3179 = vadd.f32 %v3140, %v3149
        %v3180 = vadd.f32 %v3141, %v3149
        %v3181 = vadd.f32 %v3142, %v3149
        %v3182 = vadd.f32 %v3143, %v3149
        %v3183 = vmax.f32 %v3151, 0.0
        %v3184 = vmax.f32 %v3152, 0.0
        %v3185 = vmax.f32 %v3153, 0.0
        %v3186 = vmax.f32 %v3154, 0.0
        %v3187 = vmax.f32 %v3155, 0.0
        %v3188 = vmax.f32 %v3156, 0.0
        %v3189 = vmax.f32 %v3157, 0.0
        %v3190 = vmax.f32 %v3158, 0.0
        %v3191 = vmax.f32 %v3159, 0.0
        %v3192 = vmax.f32 %v3160, 0.0
        %v3193 = vmax.f32 %v3161, 0.0
        %v3194 = vmax.f32 %v3162, 0.0
        %v3195 = vmax.f32 %v3163, 0.0
        %v3196 = vmax.f32 %v3164, 0.0
        %v3197 = vmax.f32 %v3165, 0.0
        %v3198 = vmax.f32 %v3166, 0.0
        %v3199 = vmax.f32 %v3167, 0.0
        %v3200 = vmax.f32 %v3168, 0.0
        %v3201 = vmax.f32 %v3169, 0.0
        %v3202 = vmax.f32 %v3170, 0.0
        %v3203 = vmax.f32 %v3171, 0.0
        %v3204 = vmax.f32 %v3172, 0.0
        %v3205 = vmax.f32 %v3173, 0.0
        %v3206 = vmax.f32 %v3174, 0.0
        %v3207 = vmax.f32 %v3175, 0.0
        %v3208 = vmax.f32 %v3176, 0.0
        %v3209 = vmax.f32 %v3177, 0.0
        %v3210 = vmax.f32 %v3178, 0.0
        %v3211 = vmax.f32 %v3179, 0.0
        %v3212 = vmax.f32 %v3180, 0.0
        %v3213 = vmax.f32 %v3181, 0.0
        %v3214 = vmax.f32 %v3182, 0.0
        %v3215 = vpack.c.bf16 %v3184, %v3183
        %v3216 = vpack.c.bf16 %v3186, %v3185
        %v3217 = vpack.c.bf16 %v3188, %v3187
        %v3218 = vpack.c.bf16 %v3190, %v3189
        %v3219 = vpack.c.bf16 %v3192, %v3191
        %v3220 = vpack.c.bf16 %v3194, %v3193
        %v3221 = vpack.c.bf16 %v3196, %v3195
        %v3222 = vpack.c.bf16 %v3198, %v3197
        %v3223 = vpack.c.bf16 %v3200, %v3199
        %v3224 = vpack.c.bf16 %v3202, %v3201
        %v3225 = vpack.c.bf16 %v3204, %v3203
        %v3226 = vpack.c.bf16 %v3206, %v3205
        %v3227 = vpack.c.bf16 %v3208, %v3207
        %v3228 = vpack.c.bf16 %v3210, %v3209
        %v3229 = vpack.c.bf16 %v3212, %v3211
        %v3230 = vpack.c.bf16 %v3214, %v3213
        %v3231 = vld [vmem:[#allocation11] sm:$0xf]
        %v3232 = vld [vmem:[#allocation11 + $0x4] sm:$0xf]
        %v3233 = vld [vmem:[#allocation11 + $0x8] sm:$0xf]
        %v3234 = vld [vmem:[#allocation11 + $0xc] sm:$0xf]
        %v3235 = vld [vmem:[#allocation11 + $0x10] sm:$0xf]
        %v3236 = vld [vmem:[#allocation11 + $0x14] sm:$0xf]
        %v3237 = vld [vmem:[#allocation11 + $0x18] sm:$0xf]
        %v3238 = vld [vmem:[#allocation11 + $0x1c] sm:$0xf]
        %v3239 = vld [vmem:[#allocation11 + $0x20] sm:$0xf]
        %v3240 = vld [vmem:[#allocation11 + $0x24] sm:$0xf]
        %v3241 = vld [vmem:[#allocation11 + $0x28] sm:$0xf]
        %v3242 = vld [vmem:[#allocation11 + $0x2c] sm:$0xf]
        %v3243 = vld [vmem:[#allocation11 + $0x30] sm:$0xf]
        %v3244 = vld [vmem:[#allocation11 + $0x34] sm:$0xf]
        %v3245 = vld [vmem:[#allocation11 + $0x38] sm:$0xf]
        %v3246 = vld [vmem:[#allocation11 + $0x3c] sm:$0xf]
        %v3263 = vunpack.c.l.b16 %v3231
        %v3264 = vunpack.c.l.b16 %v3232
        %v3265 = vunpack.c.l.b16 %v3233
        %v3266 = vunpack.c.l.b16 %v3234
        %v3267 = vunpack.c.l.b16 %v3235
        %v3268 = vunpack.c.l.b16 %v3236
        %v3269 = vunpack.c.l.b16 %v3237
        %v3270 = vunpack.c.l.b16 %v3238
        %v3271 = vunpack.c.l.b16 %v3239
        %v3272 = vunpack.c.l.b16 %v3240
        %v3273 = vunpack.c.l.b16 %v3241
        %v3274 = vunpack.c.l.b16 %v3242
        %v3275 = vunpack.c.l.b16 %v3243
        %v3276 = vunpack.c.l.b16 %v3244
        %v3277 = vunpack.c.l.b16 %v3245
        %v3278 = vunpack.c.l.b16 %v3246
        %v3279 = vpack.c.b16 %v3264, %v3263
        %v3280 = vpack.c.b16 %v3266, %v3265
        %v3281 = vpack.c.b16 %v3268, %v3267
        %v3282 = vpack.c.b16 %v3270, %v3269
        %v3283 = vpack.c.b16 %v3272, %v3271
        %v3284 = vpack.c.b16 %v3274, %v3273
        %v3285 = vpack.c.b16 %v3276, %v3275
        %v3286 = vpack.c.b16 %v3278, %v3277
        %3295 = vmatprep.subr.bf16.mxu0 0
        %3296 = vmatpush1.bf16.msra.mxu0 %v3286
        %3297 = vmatprep.subr.bf16.mxu0 0
        %3298 = vmatpush1.bf16.msra.mxu0 %v3285
        %3299 = vmatprep.subr.bf16.mxu0 0
        %3300 = vmatpush1.bf16.msra.mxu0 %v3284
        %3301 = vmatprep.subr.bf16.mxu0 0
        %3302 = vmatpush1.bf16.msra.mxu0 %v3283
        %3303 = vmatprep.subr.bf16.mxu0 0
        %3304 = vmatpush1.bf16.msra.mxu0 %v3282
        %3305 = vmatprep.subr.bf16.mxu0 0
        %3306 = vmatpush1.bf16.msra.mxu0 %v3281
        %3307 = vmatprep.subr.bf16.mxu0 0
        %3308 = vmatpush1.bf16.msra.mxu0 %v3280
        %3309 = vmatprep.subr.bf16.mxu0 0
        %3310 = vmatpush1.bf16.msra.mxu0 %v3279
        %3311 = vmatprep.subr.bf16.mxu0 0
        %3312 = vmatpush2.bf16.msra.mxu0 0
        %3313 = vmatprep.subr.bf16.mxu0 0
        %3314 = vmatpush2.bf16.msra.mxu0 0
        %3315 = vmatprep.subr.bf16.mxu0 0
        %3316 = vmatpush2.bf16.msra.mxu0 0
        %3317 = vmatprep.subr.bf16.mxu0 0
        %3318 = vmatpush2.bf16.msra.mxu0 0
        %3319 = vmatprep.subr.bf16.mxu0 0
        %3320 = vmatpush2.bf16.msra.mxu0 0
        %3321 = vmatprep.subr.bf16.mxu0 0
        %3322 = vmatpush2.bf16.msra.mxu0 0
        %3323 = vmatprep.subr.bf16.mxu0 0
        %3324 = vmatpush2.bf16.msra.mxu0 0
        %3325 = vmatprep.subr.bf16.mxu0 0
        %3326 = vmatpush2.bf16.msra.mxu0 0
        %3327 = vmatprep.mubr.bf16.mxu0 0
        %3328 = vmatmul.mubr.bf16.gmra.mxu0 %v3215
        %v3329 = vpop.f32.mrf.mxu0
        %v3330 = vadd.f32 0.0, %v3329
        %v3331 = vpop.f32.mrf.mxu0
        %v3332 = vpop.f32.mrf.mxu0
        %v3333 = vadd.f32 0.0, %v3332
        %v3334 = vpop.f32.mrf.mxu0
        %3335 = vmatprep.mubr.bf16.mxu0 0
        %3336 = vmatmul.mubr.bf16.gmra.mxu0 %v3216
        %v3337 = vpop.f32.mrf.mxu0
        %v3338 = vadd.f32 0.0, %v3337
        %v3339 = vpop.f32.mrf.mxu0
        %v3340 = vpop.f32.mrf.mxu0
        %v3341 = vadd.f32 0.0, %v3340
        %v3342 = vpop.f32.mrf.mxu0
        %3343 = vmatprep.mubr.bf16.mxu0 0
        %3344 = vmatmul.mubr.bf16.gmra.mxu0 %v3217
        %v3345 = vpop.f32.mrf.mxu0
        %v3346 = vadd.f32 0.0, %v3345
        %v3347 = vpop.f32.mrf.mxu0
        %v3348 = vpop.f32.mrf.mxu0
        %v3349 = vadd.f32 0.0, %v3348
        %v3350 = vpop.f32.mrf.mxu0
        %3351 = vmatprep.mubr.bf16.mxu0 0
        %3352 = vmatmul.mubr.bf16.gmra.mxu0 %v3218
        %v3353 = vpop.f32.mrf.mxu0
        %v3354 = vadd.f32 0.0, %v3353
        %v3355 = vpop.f32.mrf.mxu0
        %v3356 = vpop.f32.mrf.mxu0
        %v3357 = vadd.f32 0.0, %v3356
        %v3358 = vpop.f32.mrf.mxu0
        %3359 = vmatprep.mubr.bf16.mxu0 0
        %3360 = vmatmul.mubr.bf16.gmra.mxu0 %v3219
        %v3361 = vpop.f32.mrf.mxu0
        %v3362 = vadd.f32 0.0, %v3361
        %v3363 = vpop.f32.mrf.mxu0
        %v3364 = vpop.f32.mrf.mxu0
        %v3365 = vadd.f32 0.0, %v3364
        %v3366 = vpop.f32.mrf.mxu0
        %3367 = vmatprep.mubr.bf16.mxu0 0
        %3368 = vmatmul.mubr.bf16.gmra.mxu0 %v3220
        %v3369 = vpop.f32.mrf.mxu0
        %v3370 = vadd.f32 0.0, %v3369
        %v3371 = vpop.f32.mrf.mxu0
        %v3372 = vpop.f32.mrf.mxu0
        %v3373 = vadd.f32 0.0, %v3372
        %v3374 = vpop.f32.mrf.mxu0
        %3375 = vmatprep.mubr.bf16.mxu0 0
        %3376 = vmatmul.mubr.bf16.gmra.mxu0 %v3221
        %v3377 = vpop.f32.mrf.mxu0
        %v3378 = vadd.f32 0.0, %v3377
        %v3379 = vpop.f32.mrf.mxu0
        %v3380 = vpop.f32.mrf.mxu0
        %v3381 = vadd.f32 0.0, %v3380
        %v3382 = vpop.f32.mrf.mxu0
        %3383 = vmatprep.mubr.bf16.mxu0 0
        %3384 = vmatmul.mubr.bf16.gmra.mxu0 %v3222
        %v3385 = vpop.f32.mrf.mxu0
        %v3386 = vadd.f32 0.0, %v3385
        %v3387 = vpop.f32.mrf.mxu0
        %v3388 = vpop.f32.mrf.mxu0
        %v3389 = vadd.f32 0.0, %v3388
        %v3390 = vpop.f32.mrf.mxu0
        %3391 = vmatprep.mubr.bf16.mxu0 0
        %3392 = vmatmul.mubr.bf16.gmra.mxu0 %v3223
        %v3393 = vpop.f32.mrf.mxu0
        %v3394 = vadd.f32 0.0, %v3393
        %v3395 = vpop.f32.mrf.mxu0
        %v3396 = vpop.f32.mrf.mxu0
        %v3397 = vadd.f32 0.0, %v3396
        %v3398 = vpop.f32.mrf.mxu0
        %3399 = vmatprep.mubr.bf16.mxu0 0
        %3400 = vmatmul.mubr.bf16.gmra.mxu0 %v3224
        %v3401 = vpop.f32.mrf.mxu0
        %v3402 = vadd.f32 0.0, %v3401
        %v3403 = vpop.f32.mrf.mxu0
        %v3404 = vpop.f32.mrf.mxu0
        %v3405 = vadd.f32 0.0, %v3404
        %v3406 = vpop.f32.mrf.mxu0
        %3407 = vmatprep.mubr.bf16.mxu0 0
        %3408 = vmatmul.mubr.bf16.gmra.mxu0 %v3225
        %v3409 = vpop.f32.mrf.mxu0
        %v3410 = vadd.f32 0.0, %v3409
        %v3411 = vpop.f32.mrf.mxu0
        %v3412 = vpop.f32.mrf.mxu0
        %v3413 = vadd.f32 0.0, %v3412
        %v3414 = vpop.f32.mrf.mxu0
        %3415 = vmatprep.mubr.bf16.mxu0 0
        %3416 = vmatmul.mubr.bf16.gmra.mxu0 %v3226
        %v3417 = vpop.f32.mrf.mxu0
        %v3418 = vadd.f32 0.0, %v3417
        %v3419 = vpop.f32.mrf.mxu0
        %v3420 = vpop.f32.mrf.mxu0
        %v3421 = vadd.f32 0.0, %v3420
        %v3422 = vpop.f32.mrf.mxu0
        %3423 = vmatprep.mubr.bf16.mxu0 0
        %3424 = vmatmul.mubr.bf16.gmra.mxu0 %v3227
        %v3425 = vpop.f32.mrf.mxu0
        %v3426 = vadd.f32 0.0, %v3425
        %v3427 = vpop.f32.mrf.mxu0
        %v3428 = vpop.f32.mrf.mxu0
        %v3429 = vadd.f32 0.0, %v3428
        %v3430 = vpop.f32.mrf.mxu0
        %3431 = vmatprep.mubr.bf16.mxu0 0
        %3432 = vmatmul.mubr.bf16.gmra.mxu0 %v3228
        %v3433 = vpop.f32.mrf.mxu0
        %v3434 = vadd.f32 0.0, %v3433
        %v3435 = vpop.f32.mrf.mxu0
        %v3436 = vpop.f32.mrf.mxu0
        %v3437 = vadd.f32 0.0, %v3436
        %v3438 = vpop.f32.mrf.mxu0
        %3439 = vmatprep.mubr.bf16.mxu0 0
        %3440 = vmatmul.mubr.bf16.gmra.mxu0 %v3229
        %v3441 = vpop.f32.mrf.mxu0
        %v3442 = vadd.f32 0.0, %v3441
        %v3443 = vpop.f32.mrf.mxu0
        %v3444 = vpop.f32.mrf.mxu0
        %v3445 = vadd.f32 0.0, %v3444
        %v3446 = vpop.f32.mrf.mxu0
        %3447 = vmatprep.mubr.bf16.mxu0 0
        %3448 = vmatmul.mubr.bf16.gmra.mxu0 %v3230
        %v3449 = vpop.f32.mrf.mxu0
        %v3450 = vadd.f32 0.0, %v3449
        %v3451 = vpop.f32.mrf.mxu0
        %v3452 = vpop.f32.mrf.mxu0
        %v3453 = vadd.f32 0.0, %v3452
        %v3454 = vpop.f32.mrf.mxu0
        %3455 = vdwg.mxu0
        %v3456 = vld [vmem:[%s10] sm:$0x1]
        %v3458 = vlaneseq
        %v3459 = vshrl.u32 %v3458, 7
        %v3460 = vsub.s32 0, %v3459
        %v3461 = vrot.slane %v3456, %v3460
        %v3463 = vmul.f32 %v3330, %v3461
        %v3464 = vmul.f32 %v3333, %v3461
        %v3465 = vmul.f32 %v3338, %v3461
        %v3466 = vmul.f32 %v3341, %v3461
        %v3467 = vmul.f32 %v3346, %v3461
        %v3468 = vmul.f32 %v3349, %v3461
        %v3469 = vmul.f32 %v3354, %v3461
        %v3470 = vmul.f32 %v3357, %v3461
        %v3471 = vmul.f32 %v3362, %v3461
        %v3472 = vmul.f32 %v3365, %v3461
        %v3473 = vmul.f32 %v3370, %v3461
        %v3474 = vmul.f32 %v3373, %v3461
        %v3475 = vmul.f32 %v3378, %v3461
        %v3476 = vmul.f32 %v3381, %v3461
        %v3477 = vmul.f32 %v3386, %v3461
        %v3478 = vmul.f32 %v3389, %v3461
        %v3479 = vmul.f32 %v3394, %v3461
        %v3480 = vmul.f32 %v3397, %v3461
        %v3481 = vmul.f32 %v3402, %v3461
        %v3482 = vmul.f32 %v3405, %v3461
        %v3483 = vmul.f32 %v3410, %v3461
        %v3484 = vmul.f32 %v3413, %v3461
        %v3485 = vmul.f32 %v3418, %v3461
        %v3486 = vmul.f32 %v3421, %v3461
        %v3487 = vmul.f32 %v3426, %v3461
        %v3488 = vmul.f32 %v3429, %v3461
        %v3489 = vmul.f32 %v3434, %v3461
        %v3490 = vmul.f32 %v3437, %v3461
        %v3491 = vmul.f32 %v3442, %v3461
        %v3492 = vmul.f32 %v3445, %v3461
        %v3493 = vmul.f32 %v3450, %v3461
        %v3494 = vmul.f32 %v3453, %v3461
        %v3495 = vld [vmem:[%s11] sm:$0x1]
        %v3497 = vlaneseq
        %v3498 = vshrl.u32 %v3497, 7
        %v3499 = vsub.s32 0, %v3498
        %v3500 = vrot.slane %v3495, %v3499
        %v3502 = vadd.f32 %v3463, %v3500
        %v3503 = vadd.f32 %v3464, %v3500
        %v3504 = vadd.f32 %v3465, %v3500
        %v3505 = vadd.f32 %v3466, %v3500
        %v3506 = vadd.f32 %v3467, %v3500
        %v3507 = vadd.f32 %v3468, %v3500
        %v3508 = vadd.f32 %v3469, %v3500
        %v3509 = vadd.f32 %v3470, %v3500
        %v3510 = vadd.f32 %v3471, %v3500
        %v3511 = vadd.f32 %v3472, %v3500
        %v3512 = vadd.f32 %v3473, %v3500
        %v3513 = vadd.f32 %v3474, %v3500
        %v3514 = vadd.f32 %v3475, %v3500
        %v3515 = vadd.f32 %v3476, %v3500
        %v3516 = vadd.f32 %v3477, %v3500
        %v3517 = vadd.f32 %v3478, %v3500
        %v3518 = vadd.f32 %v3479, %v3500
        %v3519 = vadd.f32 %v3480, %v3500
        %v3520 = vadd.f32 %v3481, %v3500
        %v3521 = vadd.f32 %v3482, %v3500
        %v3522 = vadd.f32 %v3483, %v3500
        %v3523 = vadd.f32 %v3484, %v3500
        %v3524 = vadd.f32 %v3485, %v3500
        %v3525 = vadd.f32 %v3486, %v3500
        %v3526 = vadd.f32 %v3487, %v3500
        %v3527 = vadd.f32 %v3488, %v3500
        %v3528 = vadd.f32 %v3489, %v3500
        %v3529 = vadd.f32 %v3490, %v3500
        %v3530 = vadd.f32 %v3491, %v3500
        %v3531 = vadd.f32 %v3492, %v3500
        %v3532 = vadd.f32 %v3493, %v3500
        %v3533 = vadd.f32 %v3494, %v3500
        %v3534 = vld [vmem:[%s468] sm:$0xf]
        %v3535 = vld [vmem:[%s468 + $0x4] sm:$0xf]
        %v3536 = vld [vmem:[%s468 + $0x8] sm:$0xf]
        %v3537 = vld [vmem:[%s468 + $0xc] sm:$0xf]
        %v3538 = vld [vmem:[%s468 + $0x10] sm:$0xf]
        %v3539 = vld [vmem:[%s468 + $0x14] sm:$0xf]
        %v3540 = vld [vmem:[%s468 + $0x18] sm:$0xf]
        %v3541 = vld [vmem:[%s468 + $0x1c] sm:$0xf]
        %v3542 = vld [vmem:[%s468 + $0x20] sm:$0xf]
        %v3543 = vld [vmem:[%s468 + $0x24] sm:$0xf]
        %v3544 = vld [vmem:[%s468 + $0x28] sm:$0xf]
        %v3545 = vld [vmem:[%s468 + $0x2c] sm:$0xf]
        %v3546 = vld [vmem:[%s468 + $0x30] sm:$0xf]
        %v3547 = vld [vmem:[%s468 + $0x34] sm:$0xf]
        %v3548 = vld [vmem:[%s468 + $0x38] sm:$0xf]
        %v3549 = vld [vmem:[%s468 + $0x3c] sm:$0xf]
        %v3550 = vld [vmem:[%s468 + $0x40] sm:$0xf]
        %v3551 = vld [vmem:[%s468 + $0x44] sm:$0xf]
        %v3552 = vld [vmem:[%s468 + $0x48] sm:$0xf]
        %v3553 = vld [vmem:[%s468 + $0x4c] sm:$0xf]
        %v3554 = vld [vmem:[%s468 + $0x50] sm:$0xf]
        %v3555 = vld [vmem:[%s468 + $0x54] sm:$0xf]
        %v3556 = vld [vmem:[%s468 + $0x58] sm:$0xf]
        %v3557 = vld [vmem:[%s468 + $0x5c] sm:$0xf]
        %v3558 = vld [vmem:[%s468 + $0x60] sm:$0xf]
        %v3559 = vld [vmem:[%s468 + $0x64] sm:$0xf]
        %v3560 = vld [vmem:[%s468 + $0x68] sm:$0xf]
        %v3561 = vld [vmem:[%s468 + $0x6c] sm:$0xf]
        %v3562 = vld [vmem:[%s468 + $0x70] sm:$0xf]
        %v3563 = vld [vmem:[%s468 + $0x74] sm:$0xf]
        %v3564 = vld [vmem:[%s468 + $0x78] sm:$0xf]
        %v3565 = vld [vmem:[%s468 + $0x7c] sm:$0xf]
        %v3566 = vunpack.c.l.bf16 %v3534
        %v3567 = vunpack.c.l.bf16 %v3535
        %v3568 = vunpack.c.l.bf16 %v3536
        %v3569 = vunpack.c.l.bf16 %v3537
        %v3570 = vunpack.c.l.bf16 %v3538
        %v3571 = vunpack.c.l.bf16 %v3539
        %v3572 = vunpack.c.l.bf16 %v3540
        %v3573 = vunpack.c.l.bf16 %v3541
        %v3574 = vunpack.c.l.bf16 %v3542
        %v3575 = vunpack.c.l.bf16 %v3543
        %v3576 = vunpack.c.l.bf16 %v3544
        %v3577 = vunpack.c.l.bf16 %v3545
        %v3578 = vunpack.c.l.bf16 %v3546
        %v3579 = vunpack.c.l.bf16 %v3547
        %v3580 = vunpack.c.l.bf16 %v3548
        %v3581 = vunpack.c.l.bf16 %v3549
        %v3582 = vunpack.c.l.bf16 %v3550
        %v3583 = vunpack.c.l.bf16 %v3551
        %v3584 = vunpack.c.l.bf16 %v3552
        %v3585 = vunpack.c.l.bf16 %v3553
        %v3586 = vunpack.c.l.bf16 %v3554
        %v3587 = vunpack.c.l.bf16 %v3555
        %v3588 = vunpack.c.l.bf16 %v3556
        %v3589 = vunpack.c.l.bf16 %v3557
        %v3590 = vunpack.c.l.bf16 %v3558
        %v3591 = vunpack.c.l.bf16 %v3559
        %v3592 = vunpack.c.l.bf16 %v3560
        %v3593 = vunpack.c.l.bf16 %v3561
        %v3594 = vunpack.c.l.bf16 %v3562
        %v3595 = vunpack.c.l.bf16 %v3563
        %v3596 = vunpack.c.l.bf16 %v3564
        %v3597 = vunpack.c.l.bf16 %v3565
        %v3598 = vadd.f32 %v3502, %v3566
        %v3599 = vadd.f32 %v3503, %v3567
        %v3600 = vadd.f32 %v3504, %v3568
        %v3601 = vadd.f32 %v3505, %v3569
        %v3602 = vadd.f32 %v3506, %v3570
        %v3603 = vadd.f32 %v3507, %v3571
        %v3604 = vadd.f32 %v3508, %v3572
        %v3605 = vadd.f32 %v3509, %v3573
        %v3606 = vadd.f32 %v3510, %v3574
        %v3607 = vadd.f32 %v3511, %v3575
        %v3608 = vadd.f32 %v3512, %v3576
        %v3609 = vadd.f32 %v3513, %v3577
        %v3610 = vadd.f32 %v3514, %v3578
        %v3611 = vadd.f32 %v3515, %v3579
        %v3612 = vadd.f32 %v3516, %v3580
        %v3613 = vadd.f32 %v3517, %v3581
        %v3614 = vadd.f32 %v3518, %v3582
        %v3615 = vadd.f32 %v3519, %v3583
        %v3616 = vadd.f32 %v3520, %v3584
        %v3617 = vadd.f32 %v3521, %v3585
        %v3618 = vadd.f32 %v3522, %v3586
        %v3619 = vadd.f32 %v3523, %v3587
        %v3620 = vadd.f32 %v3524, %v3588
        %v3621 = vadd.f32 %v3525, %v3589
        %v3622 = vadd.f32 %v3526, %v3590
        %v3623 = vadd.f32 %v3527, %v3591
        %v3624 = vadd.f32 %v3528, %v3592
        %v3625 = vadd.f32 %v3529, %v3593
        %v3626 = vadd.f32 %v3530, %v3594
        %v3627 = vadd.f32 %v3531, %v3595
        %v3628 = vadd.f32 %v3532, %v3596
        %v3629 = vadd.f32 %v3533, %v3597
        %v3630 = vmax.f32 %v3598, 0.0
        %v3631 = vmax.f32 %v3599, 0.0
        %v3632 = vmax.f32 %v3600, 0.0
        %v3633 = vmax.f32 %v3601, 0.0
        %v3634 = vmax.f32 %v3602, 0.0
        %v3635 = vmax.f32 %v3603, 0.0
        %v3636 = vmax.f32 %v3604, 0.0
        %v3637 = vmax.f32 %v3605, 0.0
        %v3638 = vmax.f32 %v3606, 0.0
        %v3639 = vmax.f32 %v3607, 0.0
        %v3640 = vmax.f32 %v3608, 0.0
        %v3641 = vmax.f32 %v3609, 0.0
        %v3642 = vmax.f32 %v3610, 0.0
        %v3643 = vmax.f32 %v3611, 0.0
        %v3644 = vmax.f32 %v3612, 0.0
        %v3645 = vmax.f32 %v3613, 0.0
        %v3646 = vmax.f32 %v3614, 0.0
        %v3647 = vmax.f32 %v3615, 0.0
        %v3648 = vmax.f32 %v3616, 0.0
        %v3649 = vmax.f32 %v3617, 0.0
        %v3650 = vmax.f32 %v3618, 0.0
        %v3651 = vmax.f32 %v3619, 0.0
        %v3652 = vmax.f32 %v3620, 0.0
        %v3653 = vmax.f32 %v3621, 0.0
        %v3654 = vmax.f32 %v3622, 0.0
        %v3655 = vmax.f32 %v3623, 0.0
        %v3656 = vmax.f32 %v3624, 0.0
        %v3657 = vmax.f32 %v3625, 0.0
        %v3658 = vmax.f32 %v3626, 0.0
        %v3659 = vmax.f32 %v3627, 0.0
        %v3660 = vmax.f32 %v3628, 0.0
        %v3661 = vmax.f32 %v3629, 0.0
        %3662 = vst [vmem:[%s529] sm:$0xff] %v3630
        %3663 = vst [vmem:[%s529 + $0x8] sm:$0xff] %v3631
        %3664 = vst [vmem:[%s529 + $0x10] sm:$0xff] %v3632
        %3665 = vst [vmem:[%s529 + $0x18] sm:$0xff] %v3633
        %3666 = vst [vmem:[%s529 + $0x20] sm:$0xff] %v3634
        %3667 = vst [vmem:[%s529 + $0x28] sm:$0xff] %v3635
        %3668 = vst [vmem:[%s529 + $0x30] sm:$0xff] %v3636
        %3669 = vst [vmem:[%s529 + $0x38] sm:$0xff] %v3637
        %3670 = vst [vmem:[%s529 + $0x40] sm:$0xff] %v3638
        %3671 = vst [vmem:[%s529 + $0x48] sm:$0xff] %v3639
        %3672 = vst [vmem:[%s529 + $0x50] sm:$0xff] %v3640
        %3673 = vst [vmem:[%s529 + $0x58] sm:$0xff] %v3641
        %3674 = vst [vmem:[%s529 + $0x60] sm:$0xff] %v3642
        %3675 = vst [vmem:[%s529 + $0x68] sm:$0xff] %v3643
        %3676 = vst [vmem:[%s529 + $0x70] sm:$0xff] %v3644
        %3677 = vst [vmem:[%s529 + $0x78] sm:$0xff] %v3645
        %3678 = vst [vmem:[%s529 + $0x80] sm:$0xff] %v3646
        %3679 = vst [vmem:[%s529 + $0x88] sm:$0xff] %v3647
        %3680 = vst [vmem:[%s529 + $0x90] sm:$0xff] %v3648
        %3681 = vst [vmem:[%s529 + $0x98] sm:$0xff] %v3649
        %3682 = vst [vmem:[%s529 + $0xa0] sm:$0xff] %v3650
        %3683 = vst [vmem:[%s529 + $0xa8] sm:$0xff] %v3651
        %3684 = vst [vmem:[%s529 + $0xb0] sm:$0xff] %v3652
        %3685 = vst [vmem:[%s529 + $0xb8] sm:$0xff] %v3653
        %3686 = vst [vmem:[%s529 + $0xc0] sm:$0xff] %v3654
        %3687 = vst [vmem:[%s529 + $0xc8] sm:$0xff] %v3655
        %3688 = vst [vmem:[%s529 + $0xd0] sm:$0xff] %v3656
        %3689 = vst [vmem:[%s529 + $0xd8] sm:$0xff] %v3657
        %3690 = vst [vmem:[%s529 + $0xe0] sm:$0xff] %v3658
        %3691 = vst [vmem:[%s529 + $0xe8] sm:$0xff] %v3659
        %3692 = vst [vmem:[%s529 + $0xf0] sm:$0xff] %v3660
        %3693 = vst [vmem:[%s529 + $0xf8] sm:$0xff] %v3661
        %s3694 = sand.u32 %s304, 1
        %s3695 = scalar_lea.sflag [#allocation4], %s3694
        %s3696 = sand.u32 %s304, 1
        %s3697 = smul.addr %s3696, 256
        %s3698 = scalar_lea.vmem [#allocation13], %s3697
        // Predicated region
        $region93: #{tpu_custom_call.1} parent=67 // pred_check
          %p3699 = pneg %p314
        $region94: #{tpu_custom_call.1} parent=67 // pred_check_branch
          %3701 = sbr.rel (%p3699) target = $region96
        $region95: #{tpu_custom_call.1} parent=67 // pred_region
          %s3703 = ssub.s32 4096, 4096
          %3704 = vsyncadd %s3695, %s3703
          %s3705 = smul.addr %s34, 32
          %s3706 = smul.addr %s3705, 128
          %s3707 = scalar_lea.hbm %s12, %s3706
          %s3708 = sshll.u32 %s3698, 4
          %s3709 = int_to_ptr.vmem [resolvable:$true] %s3708
          %3714 = dma.vmem_to_hbm [thread:$0]  %s3709, 4096, %s3707, %s3695, 128, 128, 8
        $region96: #{tpu_custom_call.1} parent=67 // pred_fallthru
          _
      $region68: #{tpu_custom_call.1} parent=5 // pred_fallthru
        _
      %p3715 = scmp.le.s32.totalorder 2, %s29
      // Predicated region
      $region97: #{tpu_custom_call.1} parent=5 // pred_check
        %p3716 = pneg %p3715
      $region98: #{tpu_custom_call.1} parent=5 // pred_check_branch
        %3718 = sbr.rel (%p3716) target = $region100
      $region99: #{tpu_custom_call.1} parent=5 // pred_region
        %s3719 = ssub.s32 %s29, 2
        // Predicated region
        $region101: #{tpu_custom_call.1} parent=99 // pred_check
          %p3720 = pneg %p320
        $region102: #{tpu_custom_call.1} parent=99 // pred_check_branch
          %3722 = sbr.rel (%p3720) target = $region104
        $region103: #{tpu_custom_call.1} parent=99 // pred_region
          %s3723 = sand.u32 %s305, 1
          %s3724 = scalar_lea.sflag [#allocation4], %s3723
          %s3725 = sand.u32 %s305, 1
          %s3726 = smul.addr %s3725, 256
          %s3727 = scalar_lea.vmem [#allocation13], %s3726
          %3728 = dma.done %s3724, 4096
        $region104: #{tpu_custom_call.1} parent=99 // pred_fallthru
          _
      $region100: #{tpu_custom_call.1} parent=5 // pred_fallthru
        _
    $region6: #{tpu_custom_call.1} parent=1 // loop_footer
      %s33 = sadd.s32 1, %s29
    $region7: #{tpu_custom_call.1} parent=1 // loop_footer_branch
      %28 = sbr.rel target = $region3
    $region8: #{tpu_custom_call.1} parent=1 // loop_exit
      _
    %3729 = vsyncpa [#allocation3], 1
    %s3730 = scalar_lea.sflag [#allocation3], 1
    %3731 = vsyncpa %s3730, 1
    %3732 = vsyncpa [#allocation6], 1
    %s3733 = scalar_lea.sflag [#allocation6], 1
    %3734 = vsyncpa %s3733, 1
    %3735 = vsyncpa [#allocation9], 1
    %3736 = vsyncpa [#allocation12], 1
    %3737 = vsyncpa [#allocation4], 1
    %s3738 = scalar_lea.sflag [#allocation4], 1
    %3739 = vsyncpa %s3738, 1

// kernel: tpu_custom_call.1
$region0: #{tpu_custom_call.1}
  #allocation0 [shape = 'u32[]', space=smem, size = 0x4, offset = 0x4, fixed_abs, tag = 'smem constant byte address 0x4 - core index']
  #allocation1 [shape = 'u32[144,128]{1,0:T(1,128)}', space=vmem, size = 0x12000, scoped, tag = 'internal scratch']
  %s0 = inlined_call_operand.hbm [shape: bf16[2,18,24,128], index: 0, kind: input, shape index: {}]
  %s1 = inlined_call_operand.hbm [shape: bf16[2,16,16,128], index: 1, kind: input, shape index: {}]
  %s2 = inlined_call_operand.hbm [shape: f32[1,18,24,128], index: 2, kind: input, shape index: {}]
  %s3 = inlined_call_operand.hbm [shape: bf16[128,128], index: 3, kind: input, shape index: {}]
  %s4 = inlined_call_operand.vmem [shape: f32[1,128], index: 4, kind: input, shape index: {}]
  %s5 = inlined_call_operand.vmem [shape: f32[1,128], index: 5, kind: input, shape index: {}]
  %s6 = inlined_call_operand.hbm [shape: bf16[1152,128], index: 6, kind: input, shape index: {}]
  %s7 = inlined_call_operand.vmem [shape: f32[1,128], index: 7, kind: input, shape index: {}]
  %s8 = inlined_call_operand.vmem [shape: f32[1,128], index: 8, kind: input, shape index: {}]
  %s9 = inlined_call_operand.hbm [shape: bf16[128,128], index: 9, kind: input, shape index: {}]
  %s10 = inlined_call_operand.vmem [shape: f32[1,128], index: 10, kind: input, shape index: {}]
  %s11 = inlined_call_operand.vmem [shape: f32[1,128], index: 11, kind: input, shape index: {}]
  %s12 = inlined_call_operand.hbm [shape: f32[2,16,16,128], index: 12, kind: output, shape index: {}]
  %s13 = sld [smem:[#allocation0]]
  $region105: #{tpu_custom_call.1} parent=0
    _
  %s15 = ssub.s32 1, %s13
  %s16 = scalar_select 0, %s15, %s13
  $region1: #{tpu_custom_call.1} parent=0
    #allocation2 [shape = 'u8[221184]{0}', space=vmem, size = 0x36000, scoped, tag = 'input window, operand 0']
    #allocation3 [shape = 's32[2]{0}', space=sflag, size = 0x8, scoped, tag = 'scoped memory for tpu_custom_call.1']
    #allocation4 [shape = 's32[2]{0}', space=sflag, size = 0x8, scoped, tag = 'scoped memory for tpu_custom_call.1']
    #allocation5 [shape = 'u8[131072]{0}', space=vmem, size = 0x20000, scoped, tag = 'input window, operand 1']
    #allocation6 [shape = 's32[2]{0}', space=sflag, size = 0x8, scoped, tag = 'scoped memory for tpu_custom_call.1']
    #allocation7 [shape = 'u8[221184]{0}', space=vmem, size = 0x36000, scoped, tag = 'input window, operand 2, single buffered']
    #allocation8 [shape = 'u8[32768]{0}', space=vmem, size = 0x8000, scoped, tag = 'input window, operand 3, single buffered']
    #allocation9 [shape = 's32[1]{0}', space=sflag, size = 0x4, scoped, tag = 'scoped memory for tpu_custom_call.1']
    #allocation10 [shape = 'u8[294912]{0}', space=vmem, size = 0x48000, scoped, tag = 'input window, operand 6, single buffered']
    #allocation11 [shape = 'u8[32768]{0}', space=vmem, size = 0x8000, scoped, tag = 'input window, operand 9, single buffered']
    #allocation12 [shape = 's32[1]{0}', space=sflag, size = 0x4, scoped, tag = 'scoped memory for tpu_custom_call.1']
    #allocation13 [shape = 'u8[262144]{0}', space=vmem, size = 0x40000, scoped, tag = 'output window, operand 0']
    %17 = vsyncpa [#allocation3], 0
    %s18 = scalar_lea.sflag [#allocation3], 1
    %19 = vsyncpa %s18, 0
    %20 = vsyncpa [#allocation6], 0
    %s21 = scalar_lea.sflag [#allocation6], 1
    %22 = vsyncpa %s21, 0
    %23 = vsyncpa [#allocation9], 0
    %24 = vsyncpa [#allocation12], 0
    %25 = vsyncpa [#allocation4], 0
    %s26 = scalar_lea.sflag [#allocation4], 1
    %27 = vsyncpa %s26, 0
    loop: start=0, step=1, limit=4
    $region2: #{tpu_custom_call.1} parent=1 // loop_pre_header
      _
    $region3: #{tpu_custom_call.1} parent=1 // loop_header
      %s29 = sphi 0, %s33
      %p30 = scmp.ge.s32.totalorder %s29, 4
      %s39 = sphi 0, %s41
      %s42 = sphi 0, %s39
      %s43 = sphi 0, %s42
      %s59 = sphi 0, %s43
      %s65 = sphi 0, %s67
      %s68 = sphi 0, %s65
      %s69 = sphi 0, %s68
      %s85 = sphi 0, %s69
      %s89 = sphi 0, %s89
      %s91 = sphi 0, %s89
      %s92 = sphi 0, %s91
      %s106 = sphi 0, %s92
      %s110 = sphi 0, %s110
      %s112 = sphi 0, %s110
      %s113 = sphi 0, %s112
      %s127 = sphi 0, %s113
      %s131 = sphi 0, %s131
      %s133 = sphi 0, %s131
      %s134 = sphi 0, %s133
      %s148 = sphi 0, %s134
      %s152 = sphi 0, %s152
      %s154 = sphi 0, %s152
      %s155 = sphi 0, %s154
      %s169 = sphi 0, %s155
      %s173 = sphi 0, %s173
      %s175 = sphi 0, %s173
      %s176 = sphi 0, %s175
      %s190 = sphi 0, %s176
      %s194 = sphi 0, %s194
      %s196 = sphi 0, %s194
      %s197 = sphi 0, %s196
      %s211 = sphi 0, %s197
      %s215 = sphi 0, %s215
      %s217 = sphi 0, %s215
      %s218 = sphi 0, %s217
      %s232 = sphi 0, %s218
      %s236 = sphi 0, %s236
      %s238 = sphi 0, %s236
      %s239 = sphi 0, %s238
      %s253 = sphi 0, %s239
      %s257 = sphi 0, %s257
      %s259 = sphi 0, %s257
      %s260 = sphi 0, %s259
      %s274 = sphi 0, %s260
      %s278 = sphi 0, %s278
      %s280 = sphi 0, %s278
      %s281 = sphi 0, %s280
      %s295 = sphi 0, %s281
      %s301 = sphi 0, %s303
      %s304 = sphi 0, %s301
      %s305 = sphi 0, %s304
      %s321 = sphi 0, %s305
    $region4: #{tpu_custom_call.1} parent=1 // loop_header_branch
      %32 = sbr.rel (%p30) target = $region8
    $region5: #{tpu_custom_call.1} parent=1 // loop_body
      %s34 = ssub.s32 %s29, 1
      %s35 = ssub.s32 %s29, 2
      %s36 = sadd.s32 %s29, 1
      %s37 = ssub.s32 %s29, %s36
      %p38 = scmp.eq.s32.totalorder %s37, 0
      %s40 = sadd.s32 %s39, 1
      %s41 = scalar_select %p38, %s39, %s40
      %p44 = pneg %p38
      %p45 = scmp.eq.s32.totalorder %s29, 1
      %p46 = por %p44, %p45
      %p47 = scmp.ne.s32.totalorder %s39, %s42
      %p48 = scmp.eq.s32.totalorder %s29, 0
      %p49 = por %p47, %p48
      %p50 = scmp.ne.s32.totalorder %s39, %s42
      %p51 = scmp.eq.s32.totalorder %s34, 1
      %p52 = por %p50, %p51
      %p53 = scmp.ne.s32.totalorder %s42, %s43
      %p54 = scmp.eq.s32.totalorder %s34, 0
      %p55 = por %p53, %p54
      %p56 = scmp.ne.s32.totalorder %s42, %s43
      %p57 = scmp.eq.s32.totalorder %s35, 1
      %p58 = por %p56, %p57
      %p60 = scmp.ne.s32.totalorder %s43, %s59
      %p61 = scmp.eq.s32.totalorder %s35, 0
      %p62 = por %p60, %p61
      %s63 = ssub.s32 %s29, %s36
      %p64 = scmp.eq.s32.totalorder %s63, 0
      %s66 = sadd.s32 %s65, 1
      %s67 = scalar_select %p64, %s65, %s66
      %p70 = pneg %p64
      %p71 = scmp.eq.s32.totalorder %s29, 1
      %p72 = por %p70, %p71
      %p73 = scmp.ne.s32.totalorder %s65, %s68
      %p74 = scmp.eq.s32.totalorder %s29, 0
      %p75 = por %p73, %p74
      %p76 = scmp.ne.s32.totalorder %s65, %s68
      %p77 = scmp.eq.s32.totalorder %s34, 1
      %p78 = por %p76, %p77
      %p79 = scmp.ne.s32.totalorder %s68, %s69
      %p80 = scmp.eq.s32.totalorder %s34, 0
      %p81 = por %p79, %p80
      %p82 = scmp.ne.s32.totalorder %s68, %s69
      %p83 = scmp.eq.s32.totalorder %s35, 1
      %p84 = por %p82, %p83
      %p86 = scmp.ne.s32.totalorder %s69, %s85
      %p87 = scmp.eq.s32.totalorder %s35, 0
      %p88 = por %p86, %p87
      %s90 = sadd.s32 %s89, 1
      %p93 = scmp.eq.s32.totalorder %s29, 1
      %p94 = scmp.ne.s32.totalorder %s89, %s91
      %p95 = scmp.eq.s32.totalorder %s29, 0
      %p96 = por %p94, %p95
      %p97 = scmp.ne.s32.totalorder %s89, %s91
      %p98 = scmp.eq.s32.totalorder %s34, 1
      %p99 = por %p97, %p98
      %p100 = scmp.ne.s32.totalorder %s91, %s92
      %p101 = scmp.eq.s32.totalorder %s34, 0
      %p102 = por %p100, %p101
      %p103 = scmp.ne.s32.totalorder %s91, %s92
      %p104 = scmp.eq.s32.totalorder %s35, 1
      %p105 = por %p103, %p104
      %p107 = scmp.ne.s32.totalorder %s92, %s106
      %p108 = scmp.eq.s32.totalorder %s35, 0
      %p109 = por %p107, %p108
      %s111 = sadd.s32 %s110, 1
      %p114 = scmp.eq.s32.totalorder %s29, 1
      %p115 = scmp.ne.s32.totalorder %s110, %s112
      %p116 = scmp.eq.s32.totalorder %s29, 0
      %p117 = por %p115, %p116
      %p118 = scmp.ne.s32.totalorder %s110, %s112
      %p119 = scmp.eq.s32.totalorder %s34, 1
      %p120 = por %p118, %p119
      %p121 = scmp.ne.s32.totalorder %s112, %s113
      %p122 = scmp.eq.s32.totalorder %s34, 0
      %p123 = por %p121, %p122
      %p124 = scmp.ne.s32.totalorder %s112, %s113
      %p125 = scmp.eq.s32.totalorder %s35, 1
      %p126 = por %p124, %p125
      %p128 = scmp.ne.s32.totalorder %s113, %s127
      %p129 = scmp.eq.s32.totalorder %s35, 0
      %p130 = por %p128, %p129
      %s132 = sadd.s32 %s131, 1
      %p135 = scmp.eq.s32.totalorder %s29, 1
      %p136 = scmp.ne.s32.totalorder %s131, %s133
      %p137 = scmp.eq.s32.totalorder %s29, 0
      %p138 = por %p136, %p137
      %p139 = scmp.ne.s32.totalorder %s131, %s133
      %p140 = scmp.eq.s32.totalorder %s34, 1
      %p141 = por %p139, %p140
      %p142 = scmp.ne.s32.totalorder %s133, %s134
      %p143 = scmp.eq.s32.totalorder %s34, 0
      %p144 = por %p142, %p143
      %p145 = scmp.ne.s32.totalorder %s133, %s134
      %p146 = scmp.eq.s32.totalorder %s35, 1
      %p147 = por %p145, %p146
      %p149 = scmp.ne.s32.totalorder %s134, %s148
      %p150 = scmp.eq.s32.totalorder %s35, 0
      %p151 = por %p149, %p150
      %s153 = sadd.s32 %s152, 1
      %p156 = scmp.eq.s32.totalorder %s29, 1
      %p157 = scmp.ne.s32.totalorder %s152, %s154
      %p158 = scmp.eq.s32.totalorder %s29, 0
      %p159 = por %p157, %p158
      %p160 = scmp.ne.s32.totalorder %s152, %s154
      %p161 = scmp.eq.s32.totalorder %s34, 1
      %p162 = por %p160, %p161
      %p163 = scmp.ne.s32.totalorder %s154, %s155
      %p164 = scmp.eq.s32.totalorder %s34, 0
      %p165 = por %p163, %p164
      %p166 = scmp.ne.s32.totalorder %s154, %s155
      %p167 = scmp.eq.s32.totalorder %s35, 1
      %p168 = por %p166, %p167
      %p170 = scmp.ne.s32.totalorder %s155, %s169
      %p171 = scmp.eq.s32.totalorder %s35, 0
      %p172 = por %p170, %p171
      %s174 = sadd.s32 %s173, 1
      %p177 = scmp.eq.s32.totalorder %s29, 1
      %p178 = scmp.ne.s32.totalorder %s173, %s175
      %p179 = scmp.eq.s32.totalorder %s29, 0
      %p180 = por %p178, %p179
      %p181 = scmp.ne.s32.totalorder %s173, %s175
      %p182 = scmp.eq.s32.totalorder %s34, 1
      %p183 = por %p181, %p182
      %p184 = scmp.ne.s32.totalorder %s175, %s176
      %p185 = scmp.eq.s32.totalorder %s34, 0
      %p186 = por %p184, %p185
      %p187 = scmp.ne.s32.totalorder %s175, %s176
      %p188 = scmp.eq.s32.totalorder %s35, 1
      %p189 = por %p187, %p188
      %p191 = scmp.ne.s32.totalorder %s176, %s190
      %p192 = scmp.eq.s32.totalorder %s35, 0
      %p193 = por %p191, %p192
      %s195 = sadd.s32 %s194, 1
      %p198 = scmp.eq.s32.totalorder %s29, 1
      %p199 = scmp.ne.s32.totalorder %s194, %s196
      %p200 = scmp.eq.s32.totalorder %s29, 0
      %p201 = por %p199, %p200
      %p202 = scmp.ne.s32.totalorder %s194, %s196
      %p203 = scmp.eq.s32.totalorder %s34, 1
      %p204 = por %p202, %p203
      %p205 = scmp.ne.s32.totalorder %s196, %s197
      %p206 = scmp.eq.s32.totalorder %s34, 0
      %p207 = por %p205, %p206
      %p208 = scmp.ne.s32.totalorder %s196, %s197
      %p209 = scmp.eq.s32.totalorder %s35, 1
      %p210 = por %p208, %p209
      %p212 = scmp.ne.s32.totalorder %s197, %s211
      %p213 = scmp.eq.s32.totalorder %s35, 0
      %p214 = por %p212, %p213
      %s216 = sadd.s32 %s215, 1
      %p219 = scmp.eq.s32.totalorder %s29, 1
      %p220 = scmp.ne.s32.totalorder %s215, %s217
      %p221 = scmp.eq.s32.totalorder %s29, 0
      %p222 = por %p220, %p221
      %p223 = scmp.ne.s32.totalorder %s215, %s217
      %p224 = scmp.eq.s32.totalorder %s34, 1
      %p225 = por %p223, %p224
      %p226 = scmp.ne.s32.totalorder %s217, %s218
      %p227 = scmp.eq.s32.totalorder %s34, 0
      %p228 = por %p226, %p227
      %p229 = scmp.ne.s32.totalorder %s217, %s218
      %p230 = scmp.eq.s32.totalorder %s35, 1
      %p231 = por %p229, %p230
      %p233 = scmp.ne.s32.totalorder %s218, %s232
      %p234 = scmp.eq.s32.totalorder %s35, 0
      %p235 = por %p233, %p234
      %s237 = sadd.s32 %s236, 1
      %p240 = scmp.eq.s32.totalorder %s29, 1
      %p241 = scmp.ne.s32.totalorder %s236, %s238
      %p242 = scmp.eq.s32.totalorder %s29, 0
      %p243 = por %p241, %p242
      %p244 = scmp.ne.s32.totalorder %s236, %s238
      %p245 = scmp.eq.s32.totalorder %s34, 1
      %p246 = por %p244, %p245
      %p247 = scmp.ne.s32.totalorder %s238, %s239
      %p248 = scmp.eq.s32.totalorder %s34, 0
      %p249 = por %p247, %p248
      %p250 = scmp.ne.s32.totalorder %s238, %s239
      %p251 = scmp.eq.s32.totalorder %s35, 1
      %p252 = por %p250, %p251
      %p254 = scmp.ne.s32.totalorder %s239, %s253
      %p255 = scmp.eq.s32.totalorder %s35, 0
      %p256 = por %p254, %p255
      %s258 = sadd.s32 %s257, 1
      %p261 = scmp.eq.s32.totalorder %s29, 1
      %p262 = scmp.ne.s32.totalorder %s257, %s259
      %p263 = scmp.eq.s32.totalorder %s29, 0
      %p264 = por %p262, %p263
      %p265 = scmp.ne.s32.totalorder %s257, %s259
      %p266 = scmp.eq.s32.totalorder %s34, 1
      %p267 = por %p265, %p266
      %p268 = scmp.ne.s32.totalorder %s259, %s260
      %p269 = scmp.eq.s32.totalorder %s34, 0
      %p270 = por %p268, %p269
      %p271 = scmp.ne.s32.totalorder %s259, %s260
      %p272 = scmp.eq.s32.totalorder %s35, 1
      %p273 = por %p271, %p272
      %p275 = scmp.ne.s32.totalorder %s260, %s274
      %p276 = scmp.eq.s32.totalorder %s35, 0
      %p277 = por %p275, %p276
      %s279 = sadd.s32 %s278, 1
      %p282 = scmp.eq.s32.totalorder %s29, 1
      %p283 = scmp.ne.s32.totalorder %s278, %s280
      %p284 = scmp.eq.s32.totalorder %s29, 0
      %p285 = por %p283, %p284
      %p286 = scmp.ne.s32.totalorder %s278, %s280
      %p287 = scmp.eq.s32.totalorder %s34, 1
      %p288 = por %p286, %p287
      %p289 = scmp.ne.s32.totalorder %s280, %s281
      %p290 = scmp.eq.s32.totalorder %s34, 0
      %p291 = por %p289, %p290
      %p292 = scmp.ne.s32.totalorder %s280, %s281
      %p293 = scmp.eq.s32.totalorder %s35, 1
      %p294 = por %p292, %p293
      %p296 = scmp.ne.s32.totalorder %s281, %s295
      %p297 = scmp.eq.s32.totalorder %s35, 0
      %p298 = por %p296, %p297
      %s299 = ssub.s32 %s29, %s36
      %p300 = scmp.eq.s32.totalorder %s299, 0
      %s302 = sadd.s32 %s301, 1
      %s303 = scalar_select %p300, %s301, %s302
      %p306 = pneg %p300
      %p307 = scmp.eq.s32.totalorder %s29, 1
      %p308 = por %p306, %p307
      %p309 = scmp.ne.s32.totalorder %s301, %s304
      %p310 = scmp.eq.s32.totalorder %s29, 0
      %p311 = por %p309, %p310
      %p312 = scmp.ne.s32.totalorder %s301, %s304
      %p313 = scmp.eq.s32.totalorder %s34, 1
      %p314 = por %p312, %p313
      %p315 = scmp.ne.s32.totalorder %s304, %s305
      %p316 = scmp.eq.s32.totalorder %s34, 0
      %p317 = por %p315, %p316
      %p318 = scmp.ne.s32.totalorder %s304, %s305
      %p319 = scmp.eq.s32.totalorder %s35, 1
      %p320 = por %p318, %p319
      %p322 = scmp.ne.s32.totalorder %s305, %s321
      %p323 = scmp.eq.s32.totalorder %s35, 0
      %p324 = por %p322, %p323
      %p325 = scmp.le.s32.totalorder 1, %s29
      %p326 = scmp.lt.s32.totalorder %s29, 3
      %p327 = pnand %p325, %p326
      %p328 = pneg %p327
      // Predicated region
      $region9: #{tpu_custom_call.1} parent=5 // pred_check
        _
      $region10: #{tpu_custom_call.1} parent=5 // pred_check_branch
        %330 = sbr.rel (%p327) target = $region12
      $region11: #{tpu_custom_call.1} parent=5 // pred_region
        %s331 = ssub.s32 %s29, 1
        // Predicated region
        $region13: #{tpu_custom_call.1} parent=11 // pred_check
          %p332 = pneg %p102
        $region14: #{tpu_custom_call.1} parent=11 // pred_check_branch
          %334 = sbr.rel (%p332) target = $region16
        $region15: #{tpu_custom_call.1} parent=11 // pred_region
          %s336 = ssub.s32 6912, 6912
          %337 = vsyncadd [#allocation6], %s336
          %s338 = sshll.u32 [#allocation7], 4
          %s339 = int_to_ptr.vmem [resolvable:$true] %s338
          %344 = dma.hbm_to_vmem [thread:$0]  %s2, 6912, %s339, [#allocation6], 128, 128, 8
        $region16: #{tpu_custom_call.1} parent=11 // pred_fallthru
          _
        // Predicated region
        $region17: #{tpu_custom_call.1} parent=11 // pred_check
          %p345 = pneg %p123
        $region18: #{tpu_custom_call.1} parent=11 // pred_check_branch
          %347 = sbr.rel (%p345) target = $region20
        $region19: #{tpu_custom_call.1} parent=11 // pred_region
          %s349 = ssub.s32 1024, 1024
          %350 = vsyncadd [#allocation9], %s349
          %s351 = sshll.u32 [#allocation8], 4
          %s352 = int_to_ptr.vmem [resolvable:$true] %s351
          %357 = dma.hbm_to_vmem [thread:$0]  %s3, 1024, %s352, [#allocation9], 64, 64, 4
        $region20: #{tpu_custom_call.1} parent=11 // pred_fallthru
          _
        // Predicated region
        $region21: #{tpu_custom_call.1} parent=11 // pred_check
          %p358 = pneg %p144
        $region22: #{tpu_custom_call.1} parent=11 // pred_check_branch
          %360 = sbr.rel (%p358) target = $region24
        $region23: #{tpu_custom_call.1} parent=11 // pred_region
          _
        $region24: #{tpu_custom_call.1} parent=11 // pred_fallthru
          _
        // Predicated region
        $region25: #{tpu_custom_call.1} parent=11 // pred_check
          %p361 = pneg %p165
        $region26: #{tpu_custom_call.1} parent=11 // pred_check_branch
          %363 = sbr.rel (%p361) target = $region28
        $region27: #{tpu_custom_call.1} parent=11 // pred_region
          _
        $region28: #{tpu_custom_call.1} parent=11 // pred_fallthru
          _
        // Predicated region
        $region29: #{tpu_custom_call.1} parent=11 // pred_check
          %p364 = pneg %p186
        $region30: #{tpu_custom_call.1} parent=11 // pred_check_branch
          %366 = sbr.rel (%p364) target = $region32
        $region31: #{tpu_custom_call.1} parent=11 // pred_region
          %s368 = ssub.s32 9216, 9216
          %369 = vsyncadd [#allocation9], %s368
          %s370 = sshll.u32 [#allocation10], 4
          %s371 = int_to_ptr.vmem [resolvable:$true] %s370
          %376 = dma.hbm_to_vmem [thread:$0]  %s6, 9216, %s371, [#allocation9], 64, 64, 4
        $region32: #{tpu_custom_call.1} parent=11 // pred_fallthru
          _
        // Predicated region
        $region33: #{tpu_custom_call.1} parent=11 // pred_check
          %p377 = pneg %p207
        $region34: #{tpu_custom_call.1} parent=11 // pred_check_branch
          %379 = sbr.rel (%p377) target = $region36
        $region35: #{tpu_custom_call.1} parent=11 // pred_region
          _
        $region36: #{tpu_custom_call.1} parent=11 // pred_fallthru
          _
        // Predicated region
        $region37: #{tpu_custom_call.1} parent=11 // pred_check
          %p380 = pneg %p228
        $region38: #{tpu_custom_call.1} parent=11 // pred_check_branch
          %382 = sbr.rel (%p380) target = $region40
        $region39: #{tpu_custom_call.1} parent=11 // pred_region
          _
        $region40: #{tpu_custom_call.1} parent=11 // pred_fallthru
          _
        // Predicated region
        $region41: #{tpu_custom_call.1} parent=11 // pred_check
          %p383 = pneg %p249
        $region42: #{tpu_custom_call.1} parent=11 // pred_check_branch
          %385 = sbr.rel (%p383) target = $region44
        $region43: #{tpu_custom_call.1} parent=11 // pred_region
          %s387 = ssub.s32 1024, 1024
          %388 = vsyncadd [#allocation12], %s387
          %s389 = sshll.u32 [#allocation11], 4
          %s390 = int_to_ptr.vmem [resolvable:$true] %s389
          %395 = dma.hbm_to_vmem [thread:$0]  %s9, 1024, %s390, [#allocation12], 64, 64, 4
        $region44: #{tpu_custom_call.1} parent=11 // pred_fallthru
          _
        // Predicated region
        $region45: #{tpu_custom_call.1} parent=11 // pred_check
          %p396 = pneg %p270
        $region46: #{tpu_custom_call.1} parent=11 // pred_check_branch
          %398 = sbr.rel (%p396) target = $region48
        $region47: #{tpu_custom_call.1} parent=11 // pred_region
          _
        $region48: #{tpu_custom_call.1} parent=11 // pred_fallthru
          _
        // Predicated region
        $region49: #{tpu_custom_call.1} parent=11 // pred_check
          %p399 = pneg %p291
        $region50: #{tpu_custom_call.1} parent=11 // pred_check_branch
          %401 = sbr.rel (%p399) target = $region52
        $region51: #{tpu_custom_call.1} parent=11 // pred_region
          _
        $region52: #{tpu_custom_call.1} parent=11 // pred_fallthru
          _
      $region12: #{tpu_custom_call.1} parent=5 // pred_fallthru
        _
      %p402 = scmp.lt.s32.totalorder %s29, 2
      // Predicated region
      $region53: #{tpu_custom_call.1} parent=5 // pred_check
        %p403 = pneg %p402
      $region54: #{tpu_custom_call.1} parent=5 // pred_check_branch
        %405 = sbr.rel (%p403) target = $region56
      $region55: #{tpu_custom_call.1} parent=5 // pred_region
        // Predicated region
        $region57: #{tpu_custom_call.1} parent=55 // pred_check
          %p406 = pneg %p49
        $region58: #{tpu_custom_call.1} parent=55 // pred_check_branch
          %408 = sbr.rel (%p406) target = $region60
        $region59: #{tpu_custom_call.1} parent=55 // pred_region
          %s409 = sand.u32 %s39, 1
          %s410 = scalar_lea.sflag [#allocation3], %s409
          %s411 = sand.u32 %s39, 1
          %s412 = smul.addr %s411, 216
          %s413 = scalar_lea.vmem [#allocation2], %s412
          %s415 = ssub.s32 3456, 3456
          %416 = vsyncadd %s410, %s415
          %s417 = smul.addr %s29, 54
          %s418 = smul.addr %s417, 64
          %s419 = scalar_lea.hbm %s0, %s418
          %s420 = sshll.u32 %s413, 4
          %s421 = int_to_ptr.vmem [resolvable:$true] %s420
          %426 = dma.hbm_to_vmem [thread:$0]  %s419, 3456, %s421, %s410, 64, 64, 4
        $region60: #{tpu_custom_call.1} parent=55 // pred_fallthru
          _
        // Predicated region
        $region61: #{tpu_custom_call.1} parent=55 // pred_check
          %p427 = pneg %p75
        $region62: #{tpu_custom_call.1} parent=55 // pred_check_branch
          %429 = sbr.rel (%p427) target = $region64
        $region63: #{tpu_custom_call.1} parent=55 // pred_region
          %s430 = sand.u32 %s29, 1
          %s431 = scalar_lea.sflag [#allocation6], %s430
          %s432 = sand.u32 %s65, 1
          %s433 = smul.addr %s432, 128
          %s434 = scalar_lea.vmem [#allocation5], %s433
          %s436 = ssub.s32 2048, 2048
          %437 = vsyncadd %s431, %s436
          %s438 = smul.addr %s29, 32
          %s439 = smul.addr %s438, 64
          %s440 = scalar_lea.hbm %s1, %s439
          %s441 = sshll.u32 %s434, 4
          %s442 = int_to_ptr.vmem [resolvable:$true] %s441
          %447 = dma.hbm_to_vmem [thread:$0]  %s440, 2048, %s442, %s431, 64, 64, 4
        $region64: #{tpu_custom_call.1} parent=55 // pred_fallthru
          _
      $region56: #{tpu_custom_call.1} parent=5 // pred_fallthru
        _
      %p448 = scmp.le.s32.totalorder 1, %s29
      %p449 = scmp.lt.s32.totalorder %s29, 3
      %p450 = pnand %p448, %p449
      %p451 = pneg %p450
      // Predicated region
      $region65: #{tpu_custom_call.1} parent=5 // pred_check
        _
      $region66: #{tpu_custom_call.1} parent=5 // pred_check_branch
        %453 = sbr.rel (%p450) target = $region68
      $region67: #{tpu_custom_call.1} parent=5 // pred_region
        %s454 = ssub.s32 %s29, 1
        %s455 = sand.u32 %s42, 1
        %s456 = scalar_lea.sflag [#allocation3], %s455
        %s457 = sand.u32 %s42, 1
        %s458 = smul.addr %s457, 216
        %s459 = scalar_lea.vmem [#allocation2], %s458
        // Predicated region
        $region69: #{tpu_custom_call.1} parent=67 // pred_check
          %p460 = pneg %p55
        $region70: #{tpu_custom_call.1} parent=67 // pred_check_branch
          %462 = sbr.rel (%p460) target = $region72
        $region71: #{tpu_custom_call.1} parent=67 // pred_region
          %463 = dma.done %s456, 3456
        $region72: #{tpu_custom_call.1} parent=67 // pred_fallthru
          _
        %s464 = sand.u32 %s34, 1
        %s465 = scalar_lea.sflag [#allocation6], %s464
        %s466 = sand.u32 %s68, 1
        %s467 = smul.addr %s466, 128
        %s468 = scalar_lea.vmem [#allocation5], %s467
        // Predicated region
        $region73: #{tpu_custom_call.1} parent=67 // pred_check
          %p469 = pneg %p81
        $region74: #{tpu_custom_call.1} parent=67 // pred_check_branch
          %471 = sbr.rel (%p469) target = $region76
        $region75: #{tpu_custom_call.1} parent=67 // pred_region
          %472 = dma.done %s465, 2048
        $region76: #{tpu_custom_call.1} parent=67 // pred_fallthru
          _
        // Predicated region
        $region77: #{tpu_custom_call.1} parent=67 // pred_check
          %p473 = pneg %p102
        $region78: #{tpu_custom_call.1} parent=67 // pred_check_branch
          %475 = sbr.rel (%p473) target = $region80
        $region79: #{tpu_custom_call.1} parent=67 // pred_region
          %476 = dma.done [#allocation6], 6912
        $region80: #{tpu_custom_call.1} parent=67 // pred_fallthru
          _
        // Predicated region
        $region81: #{tpu_custom_call.1} parent=67 // pred_check
          %p477 = pneg %p123
        $region82: #{tpu_custom_call.1} parent=67 // pred_check_branch
          %479 = sbr.rel (%p477) target = $region84
        $region83: #{tpu_custom_call.1} parent=67 // pred_region
          %480 = dma.done [#allocation9], 1024
        $region84: #{tpu_custom_call.1} parent=67 // pred_fallthru
          _
        // Predicated region
        $region85: #{tpu_custom_call.1} parent=67 // pred_check
          %p481 = pneg %p186
        $region86: #{tpu_custom_call.1} parent=67 // pred_check_branch
          %483 = sbr.rel (%p481) target = $region88
        $region87: #{tpu_custom_call.1} parent=67 // pred_region
          %484 = dma.done [#allocation9], 9216
        $region88: #{tpu_custom_call.1} parent=67 // pred_fallthru
          _
        // Predicated region
        $region89: #{tpu_custom_call.1} parent=67 // pred_check
          %p485 = pneg %p249
        $region90: #{tpu_custom_call.1} parent=67 // pred_check_branch
          %487 = sbr.rel (%p485) target = $region92
        $region91: #{tpu_custom_call.1} parent=67 // pred_region
          %488 = dma.done [#allocation12], 1024
        $region92: #{tpu_custom_call.1} parent=67 // pred_fallthru
          _
        %s489 = sand.u32 %s42, 1
        %s490 = scalar_lea.sflag [#allocation3], %s489
        %s491 = sand.u32 %s42, 1
        %s492 = smul.addr %s491, 216
        %s493 = scalar_lea.vmem [#allocation2], %s492
        %p494 = pneg %p55
        %p495 = pneg %p52
        %s496 = sand.u32 %s34, 1
        %s497 = scalar_lea.sflag [#allocation6], %s496
        %s498 = sand.u32 %s68, 1
        %s499 = smul.addr %s498, 128
        %s500 = scalar_lea.vmem [#allocation5], %s499
        %p501 = pneg %p81
        %p502 = pneg %p78
        %p503 = pneg %p102
        %p504 = pneg %p99
        %p505 = pneg %p123
        %p506 = pneg %p120
        %p507 = pneg %p144
        %p508 = pneg %p141
        %p509 = pneg %p165
        %p510 = pneg %p162
        %p511 = pneg %p186
        %p512 = pneg %p183
        %p513 = pneg %p207
        %p514 = pneg %p204
        %p515 = pneg %p228
        %p516 = pneg %p225
        %p517 = pneg %p249
        %p518 = pneg %p246
        %p519 = pneg %p270
        %p520 = pneg %p267
        %p521 = pneg %p291
        %p522 = pneg %p288
        %p523 = pneg %p317
        %p524 = pneg %p314
        %s525 = sand.u32 %s304, 1
        %s526 = scalar_lea.sflag [#allocation4], %s525
        %s527 = sand.u32 %s304, 1
        %s528 = smul.addr %s527, 256
        %s529 = scalar_lea.vmem [#allocation13], %s528
        %v531 = vld [vmem:[%s459] sm:$0xf]
        %v532 = vld [vmem:[%s459 + $0x4] sm:$0xf]
        %v533 = vld [vmem:[%s459 + $0x8] sm:$0xf]
        %v534 = vld [vmem:[%s459 + $0xc] sm:$0xf]
        %v535 = vld [vmem:[%s459 + $0x10] sm:$0xf]
        %v536 = vld [vmem:[%s459 + $0x14] sm:$0xf]
        %v537 = vld [vmem:[%s459 + $0x18] sm:$0xf]
        %v538 = vld [vmem:[%s459 + $0x1c] sm:$0xf]
        %v539 = vld [vmem:[%s459 + $0x20] sm:$0xf]
        %v540 = vld [vmem:[%s459 + $0x24] sm:$0xf]
        %v541 = vld [vmem:[%s459 + $0x28] sm:$0xf]
        %v542 = vld [vmem:[%s459 + $0x2c] sm:$0xf]
        %v543 = vld [vmem:[%s459 + $0x30] sm:$0xf]
        %v544 = vld [vmem:[%s459 + $0x34] sm:$0xf]
        %v545 = vld [vmem:[%s459 + $0x38] sm:$0xf]
        %v546 = vld [vmem:[%s459 + $0x3c] sm:$0xf]
        %v547 = vld [vmem:[%s459 + $0x40] sm:$0xf]
        %v548 = vld [vmem:[%s459 + $0x44] sm:$0xf]
        %v549 = vld [vmem:[%s459 + $0x48] sm:$0xf]
        %v550 = vld [vmem:[%s459 + $0x4c] sm:$0xf]
        %v551 = vld [vmem:[%s459 + $0x50] sm:$0xf]
        %v552 = vld [vmem:[%s459 + $0x54] sm:$0xf]
        %v553 = vld [vmem:[%s459 + $0x58] sm:$0xf]
        %v554 = vld [vmem:[%s459 + $0x5c] sm:$0xf]
        %v555 = vld [vmem:[%s459 + $0x60] sm:$0xf]
        %v556 = vld [vmem:[%s459 + $0x64] sm:$0xf]
        %v557 = vld [vmem:[%s459 + $0x68] sm:$0xf]
        %v558 = vld [vmem:[%s459 + $0x6c] sm:$0xf]
        %v559 = vld [vmem:[%s459 + $0x70] sm:$0xf]
        %v560 = vld [vmem:[%s459 + $0x74] sm:$0xf]
        %v561 = vld [vmem:[%s459 + $0x78] sm:$0xf]
        %v562 = vld [vmem:[%s459 + $0x7c] sm:$0xf]
        %v563 = vld [vmem:[%s459 + $0x80] sm:$0xf]
        %v564 = vld [vmem:[%s459 + $0x84] sm:$0xf]
        %v565 = vld [vmem:[%s459 + $0x88] sm:$0xf]
        %v566 = vld [vmem:[%s459 + $0x8c] sm:$0xf]
        %v567 = vld [vmem:[%s459 + $0x90] sm:$0xf]
        %v568 = vld [vmem:[%s459 + $0x94] sm:$0xf]
        %v569 = vld [vmem:[%s459 + $0x98] sm:$0xf]
        %v570 = vld [vmem:[%s459 + $0x9c] sm:$0xf]
        %v571 = vld [vmem:[%s459 + $0xa0] sm:$0xf]
        %v572 = vld [vmem:[%s459 + $0xa4] sm:$0xf]
        %v573 = vld [vmem:[%s459 + $0xa8] sm:$0xf]
        %v574 = vld [vmem:[%s459 + $0xac] sm:$0xf]
        %v575 = vld [vmem:[%s459 + $0xb0] sm:$0xf]
        %v576 = vld [vmem:[%s459 + $0xb4] sm:$0xf]
        %v577 = vld [vmem:[%s459 + $0xb8] sm:$0xf]
        %v578 = vld [vmem:[%s459 + $0xbc] sm:$0xf]
        %v579 = vld [vmem:[%s459 + $0xc0] sm:$0xf]
        %v580 = vld [vmem:[%s459 + $0xc4] sm:$0xf]
        %v581 = vld [vmem:[%s459 + $0xc8] sm:$0xf]
        %v582 = vld [vmem:[%s459 + $0xcc] sm:$0xf]
        %v583 = vld [vmem:[%s459 + $0xd0] sm:$0xf]
        %v584 = vld [vmem:[%s459 + $0xd4] sm:$0xf]
        %v585 = vld [vmem:[#allocation8] sm:$0xf]
        %v586 = vld [vmem:[#allocation8 + $0x4] sm:$0xf]
        %v587 = vld [vmem:[#allocation8 + $0x8] sm:$0xf]
        %v588 = vld [vmem:[#allocation8 + $0xc] sm:$0xf]
        %v589 = vld [vmem:[#allocation8 + $0x10] sm:$0xf]
        %v590 = vld [vmem:[#allocation8 + $0x14] sm:$0xf]
        %v591 = vld [vmem:[#allocation8 + $0x18] sm:$0xf]
        %v592 = vld [vmem:[#allocation8 + $0x1c] sm:$0xf]
        %v593 = vld [vmem:[#allocation8 + $0x20] sm:$0xf]
        %v594 = vld [vmem:[#allocation8 + $0x24] sm:$0xf]
        %v595 = vld [vmem:[#allocation8 + $0x28] sm:$0xf]
        %v596 = vld [vmem:[#allocation8 + $0x2c] sm:$0xf]
        %v597 = vld [vmem:[#allocation8 + $0x30] sm:$0xf]
        %v598 = vld [vmem:[#allocation8 + $0x34] sm:$0xf]
        %v599 = vld [vmem:[#allocation8 + $0x38] sm:$0xf]
        %v600 = vld [vmem:[#allocation8 + $0x3c] sm:$0xf]
        %v655 = vunpack.c.l.b16 %v531
        %v656 = vunpack.c.l.b16 %v532
        %v657 = vunpack.c.l.b16 %v533
        %v658 = vunpack.c.l.b16 %v534
        %v659 = vunpack.c.l.b16 %v535
        %v660 = vunpack.c.l.b16 %v536
        %v661 = vunpack.c.l.b16 %v537
        %v662 = vunpack.c.l.b16 %v538
        %v663 = vunpack.c.l.b16 %v539
        %v664 = vunpack.c.l.b16 %v540
        %v665 = vunpack.c.l.b16 %v541
        %v666 = vunpack.c.l.b16 %v542
        %v667 = vunpack.c.l.b16 %v543
        %v668 = vunpack.c.l.b16 %v544
        %v669 = vunpack.c.l.b16 %v545
        %v670 = vunpack.c.l.b16 %v546
        %v671 = vunpack.c.l.b16 %v547
        %v672 = vunpack.c.l.b16 %v548
        %v673 = vunpack.c.l.b16 %v549
        %v674 = vunpack.c.l.b16 %v550
        %v675 = vunpack.c.l.b16 %v551
        %v676 = vunpack.c.l.b16 %v552
        %v677 = vunpack.c.l.b16 %v553
        %v678 = vunpack.c.l.b16 %v554
        %v679 = vunpack.c.l.b16 %v555
        %v680 = vunpack.c.l.b16 %v556
        %v681 = vunpack.c.l.b16 %v557
        %v682 = vunpack.c.l.b16 %v558
        %v683 = vunpack.c.l.b16 %v559
        %v684 = vunpack.c.l.b16 %v560
        %v685 = vunpack.c.l.b16 %v561
        %v686 = vunpack.c.l.b16 %v562
        %v687 = vunpack.c.l.b16 %v563
        %v688 = vunpack.c.l.b16 %v564
        %v689 = vunpack.c.l.b16 %v565
        %v690 = vunpack.c.l.b16 %v566
        %v691 = vunpack.c.l.b16 %v567
        %v692 = vunpack.c.l.b16 %v568
        %v693 = vunpack.c.l.b16 %v569
        %v694 = vunpack.c.l.b16 %v570
        %v695 = vunpack.c.l.b16 %v571
        %v696 = vunpack.c.l.b16 %v572
        %v697 = vunpack.c.l.b16 %v573
        %v698 = vunpack.c.l.b16 %v574
        %v699 = vunpack.c.l.b16 %v575
        %v700 = vunpack.c.l.b16 %v576
        %v701 = vunpack.c.l.b16 %v577
        %v702 = vunpack.c.l.b16 %v578
        %v703 = vunpack.c.l.b16 %v579
        %v704 = vunpack.c.l.b16 %v580
        %v705 = vunpack.c.l.b16 %v581
        %v706 = vunpack.c.l.b16 %v582
        %v707 = vunpack.c.l.b16 %v583
        %v708 = vunpack.c.l.b16 %v584
        %v709 = vpack.c.b16 %v656, %v655
        %v710 = vpack.c.b16 %v658, %v657
        %v711 = vpack.c.b16 %v660, %v659
        %v712 = vpack.c.b16 %v662, %v661
        %v713 = vpack.c.b16 %v664, %v663
        %v714 = vpack.c.b16 %v666, %v665
        %v715 = vpack.c.b16 %v668, %v667
        %v716 = vpack.c.b16 %v670, %v669
        %v717 = vpack.c.b16 %v672, %v671
        %v718 = vpack.c.b16 %v674, %v673
        %v719 = vpack.c.b16 %v676, %v675
        %v720 = vpack.c.b16 %v678, %v677
        %v721 = vpack.c.b16 %v680, %v679
        %v722 = vpack.c.b16 %v682, %v681
        %v723 = vpack.c.b16 %v684, %v683
        %v724 = vpack.c.b16 %v686, %v685
        %v725 = vpack.c.b16 %v688, %v687
        %v726 = vpack.c.b16 %v690, %v689
        %v727 = vpack.c.b16 %v692, %v691
        %v728 = vpack.c.b16 %v694, %v693
        %v729 = vpack.c.b16 %v696, %v695
        %v730 = vpack.c.b16 %v698, %v697
        %v731 = vpack.c.b16 %v700, %v699
        %v732 = vpack.c.b16 %v702, %v701
        %v733 = vpack.c.b16 %v704, %v703
        %v734 = vpack.c.b16 %v706, %v705
        %v735 = vpack.c.b16 %v708, %v707
        %v779 = vunpack.c.l.b16 %v585
        %v780 = vunpack.c.l.b16 %v586
        %v781 = vunpack.c.l.b16 %v587
        %v782 = vunpack.c.l.b16 %v588
        %v783 = vunpack.c.l.b16 %v589
        %v784 = vunpack.c.l.b16 %v590
        %v785 = vunpack.c.l.b16 %v591
        %v786 = vunpack.c.l.b16 %v592
        %v787 = vunpack.c.l.b16 %v593
        %v788 = vunpack.c.l.b16 %v594
        %v789 = vunpack.c.l.b16 %v595
        %v790 = vunpack.c.l.b16 %v596
        %v791 = vunpack.c.l.b16 %v597
        %v792 = vunpack.c.l.b16 %v598
        %v793 = vunpack.c.l.b16 %v599
        %v794 = vunpack.c.l.b16 %v600
        %v795 = vpack.c.b16 %v780, %v779
        %v796 = vpack.c.b16 %v782, %v781
        %v797 = vpack.c.b16 %v784, %v783
        %v798 = vpack.c.b16 %v786, %v785
        %v799 = vpack.c.b16 %v788, %v787
        %v800 = vpack.c.b16 %v790, %v789
        %v801 = vpack.c.b16 %v792, %v791
        %v802 = vpack.c.b16 %v794, %v793
        %811 = vmatprep.subr.bf16.mxu0 0
        %812 = vmatpush1.bf16.msra.mxu0 %v802
        %813 = vmatprep.subr.bf16.mxu0 0
        %814 = vmatpush1.bf16.msra.mxu0 %v801
        %815 = vmatprep.subr.bf16.mxu0 0
        %816 = vmatpush1.bf16.msra.mxu0 %v800
        %817 = vmatprep.subr.bf16.mxu0 0
        %818 = vmatpush1.bf16.msra.mxu0 %v799
        %819 = vmatprep.subr.bf16.mxu0 0
        %820 = vmatpush1.bf16.msra.mxu0 %v798
        %821 = vmatprep.subr.bf16.mxu0 0
        %822 = vmatpush1.bf16.msra.mxu0 %v797
        %823 = vmatprep.subr.bf16.mxu0 0
        %824 = vmatpush1.bf16.msra.mxu0 %v796
        %825 = vmatprep.subr.bf16.mxu0 0
        %826 = vmatpush1.bf16.msra.mxu0 %v795
        %827 = vmatprep.subr.bf16.mxu0 0
        %828 = vmatpush2.bf16.msra.mxu0 0
        %829 = vmatprep.subr.bf16.mxu0 0
        %830 = vmatpush2.bf16.msra.mxu0 0
        %831 = vmatprep.subr.bf16.mxu0 0
        %832 = vmatpush2.bf16.msra.mxu0 0
        %833 = vmatprep.subr.bf16.mxu0 0
        %834 = vmatpush2.bf16.msra.mxu0 0
        %835 = vmatprep.subr.bf16.mxu0 0
        %836 = vmatpush2.bf16.msra.mxu0 0
        %837 = vmatprep.subr.bf16.mxu0 0
        %838 = vmatpush2.bf16.msra.mxu0 0
        %839 = vmatprep.subr.bf16.mxu0 0
        %840 = vmatpush2.bf16.msra.mxu0 0
        %841 = vmatprep.subr.bf16.mxu0 0
        %842 = vmatpush2.bf16.msra.mxu0 0
        %843 = vmatprep.mubr.bf16.mxu0 0
        %844 = vmatmul.mubr.bf16.gmra.mxu0 %v709
        %v845 = vpop.f32.mrf.mxu0
        %v846 = vadd.f32 0.0, %v845
        %v847 = vpop.f32.mrf.mxu0
        %v848 = vpop.f32.mrf.mxu0
        %v849 = vadd.f32 0.0, %v848
        %v850 = vpop.f32.mrf.mxu0
        %851 = vmatprep.mubr.bf16.mxu0 0
        %852 = vmatmul.mubr.bf16.gmra.mxu0 %v710
        %v853 = vpop.f32.mrf.mxu0
        %v854 = vadd.f32 0.0, %v853
        %v855 = vpop.f32.mrf.mxu0
        %v856 = vpop.f32.mrf.mxu0
        %v857 = vadd.f32 0.0, %v856
        %v858 = vpop.f32.mrf.mxu0
        %859 = vmatprep.mubr.bf16.mxu0 0
        %860 = vmatmul.mubr.bf16.gmra.mxu0 %v711
        %v861 = vpop.f32.mrf.mxu0
        %v862 = vadd.f32 0.0, %v861
        %v863 = vpop.f32.mrf.mxu0
        %v864 = vpop.f32.mrf.mxu0
        %v865 = vadd.f32 0.0, %v864
        %v866 = vpop.f32.mrf.mxu0
        %867 = vmatprep.mubr.bf16.mxu0 0
        %868 = vmatmul.mubr.bf16.gmra.mxu0 %v712
        %v869 = vpop.f32.mrf.mxu0
        %v870 = vadd.f32 0.0, %v869
        %v871 = vpop.f32.mrf.mxu0
        %v872 = vpop.f32.mrf.mxu0
        %v873 = vadd.f32 0.0, %v872
        %v874 = vpop.f32.mrf.mxu0
        %875 = vmatprep.mubr.bf16.mxu0 0
        %876 = vmatmul.mubr.bf16.gmra.mxu0 %v713
        %v877 = vpop.f32.mrf.mxu0
        %v878 = vadd.f32 0.0, %v877
        %v879 = vpop.f32.mrf.mxu0
        %v880 = vpop.f32.mrf.mxu0
        %v881 = vadd.f32 0.0, %v880
        %v882 = vpop.f32.mrf.mxu0
        %883 = vmatprep.mubr.bf16.mxu0 0
        %884 = vmatmul.mubr.bf16.gmra.mxu0 %v714
        %v885 = vpop.f32.mrf.mxu0
        %v886 = vadd.f32 0.0, %v885
        %v887 = vpop.f32.mrf.mxu0
        %v888 = vpop.f32.mrf.mxu0
        %v889 = vadd.f32 0.0, %v888
        %v890 = vpop.f32.mrf.mxu0
        %891 = vmatprep.mubr.bf16.mxu0 0
        %892 = vmatmul.mubr.bf16.gmra.mxu0 %v715
        %v893 = vpop.f32.mrf.mxu0
        %v894 = vadd.f32 0.0, %v893
        %v895 = vpop.f32.mrf.mxu0
        %v896 = vpop.f32.mrf.mxu0
        %v897 = vadd.f32 0.0, %v896
        %v898 = vpop.f32.mrf.mxu0
        %899 = vmatprep.mubr.bf16.mxu0 0
        %900 = vmatmul.mubr.bf16.gmra.mxu0 %v716
        %v901 = vpop.f32.mrf.mxu0
        %v902 = vadd.f32 0.0, %v901
        %v903 = vpop.f32.mrf.mxu0
        %v904 = vpop.f32.mrf.mxu0
        %v905 = vadd.f32 0.0, %v904
        %v906 = vpop.f32.mrf.mxu0
        %907 = vmatprep.mubr.bf16.mxu0 0
        %908 = vmatmul.mubr.bf16.gmra.mxu0 %v717
        %v909 = vpop.f32.mrf.mxu0
        %v910 = vadd.f32 0.0, %v909
        %v911 = vpop.f32.mrf.mxu0
        %v912 = vpop.f32.mrf.mxu0
        %v913 = vadd.f32 0.0, %v912
        %v914 = vpop.f32.mrf.mxu0
        %915 = vmatprep.mubr.bf16.mxu0 0
        %916 = vmatmul.mubr.bf16.gmra.mxu0 %v718
        %v917 = vpop.f32.mrf.mxu0
        %v918 = vadd.f32 0.0, %v917
        %v919 = vpop.f32.mrf.mxu0
        %v920 = vpop.f32.mrf.mxu0
        %v921 = vadd.f32 0.0, %v920
        %v922 = vpop.f32.mrf.mxu0
        %923 = vmatprep.mubr.bf16.mxu0 0
        %924 = vmatmul.mubr.bf16.gmra.mxu0 %v719
        %v925 = vpop.f32.mrf.mxu0
        %v926 = vadd.f32 0.0, %v925
        %v927 = vpop.f32.mrf.mxu0
        %v928 = vpop.f32.mrf.mxu0
        %v929 = vadd.f32 0.0, %v928
        %v930 = vpop.f32.mrf.mxu0
        %931 = vmatprep.mubr.bf16.mxu0 0
        %932 = vmatmul.mubr.bf16.gmra.mxu0 %v720
        %v933 = vpop.f32.mrf.mxu0
        %v934 = vadd.f32 0.0, %v933
        %v935 = vpop.f32.mrf.mxu0
        %v936 = vpop.f32.mrf.mxu0
        %v937 = vadd.f32 0.0, %v936
        %v938 = vpop.f32.mrf.mxu0
        %939 = vmatprep.mubr.bf16.mxu0 0
        %940 = vmatmul.mubr.bf16.gmra.mxu0 %v721
        %v941 = vpop.f32.mrf.mxu0
        %v942 = vadd.f32 0.0, %v941
        %v943 = vpop.f32.mrf.mxu0
        %v944 = vpop.f32.mrf.mxu0
        %v945 = vadd.f32 0.0, %v944
        %v946 = vpop.f32.mrf.mxu0
        %947 = vmatprep.mubr.bf16.mxu0 0
        %948 = vmatmul.mubr.bf16.gmra.mxu0 %v722
        %v949 = vpop.f32.mrf.mxu0
        %v950 = vadd.f32 0.0, %v949
        %v951 = vpop.f32.mrf.mxu0
        %v952 = vpop.f32.mrf.mxu0
        %v953 = vadd.f32 0.0, %v952
        %v954 = vpop.f32.mrf.mxu0
        %955 = vmatprep.mubr.bf16.mxu0 0
        %956 = vmatmul.mubr.bf16.gmra.mxu0 %v723
        %v957 = vpop.f32.mrf.mxu0
        %v958 = vadd.f32 0.0, %v957
        %v959 = vpop.f32.mrf.mxu0
        %v960 = vpop.f32.mrf.mxu0
        %v961 = vadd.f32 0.0, %v960
        %v962 = vpop.f32.mrf.mxu0
        %963 = vmatprep.mubr.bf16.mxu0 0
        %964 = vmatmul.mubr.bf16.gmra.mxu0 %v724
        %v965 = vpop.f32.mrf.mxu0
        %v966 = vadd.f32 0.0, %v965
        %v967 = vpop.f32.mrf.mxu0
        %v968 = vpop.f32.mrf.mxu0
        %v969 = vadd.f32 0.0, %v968
        %v970 = vpop.f32.mrf.mxu0
        %971 = vmatprep.mubr.bf16.mxu0 0
        %972 = vmatmul.mubr.bf16.gmra.mxu0 %v725
        %v973 = vpop.f32.mrf.mxu0
        %v974 = vadd.f32 0.0, %v973
        %v975 = vpop.f32.mrf.mxu0
        %v976 = vpop.f32.mrf.mxu0
        %v977 = vadd.f32 0.0, %v976
        %v978 = vpop.f32.mrf.mxu0
        %979 = vmatprep.mubr.bf16.mxu0 0
        %980 = vmatmul.mubr.bf16.gmra.mxu0 %v726
        %v981 = vpop.f32.mrf.mxu0
        %v982 = vadd.f32 0.0, %v981
        %v983 = vpop.f32.mrf.mxu0
        %v984 = vpop.f32.mrf.mxu0
        %v985 = vadd.f32 0.0, %v984
        %v986 = vpop.f32.mrf.mxu0
        %987 = vmatprep.mubr.bf16.mxu0 0
        %988 = vmatmul.mubr.bf16.gmra.mxu0 %v727
        %v989 = vpop.f32.mrf.mxu0
        %v990 = vadd.f32 0.0, %v989
        %v991 = vpop.f32.mrf.mxu0
        %v992 = vpop.f32.mrf.mxu0
        %v993 = vadd.f32 0.0, %v992
        %v994 = vpop.f32.mrf.mxu0
        %995 = vmatprep.mubr.bf16.mxu0 0
        %996 = vmatmul.mubr.bf16.gmra.mxu0 %v728
        %v997 = vpop.f32.mrf.mxu0
        %v998 = vadd.f32 0.0, %v997
        %v999 = vpop.f32.mrf.mxu0
        %v1000 = vpop.f32.mrf.mxu0
        %v1001 = vadd.f32 0.0, %v1000
        %v1002 = vpop.f32.mrf.mxu0
        %1003 = vmatprep.mubr.bf16.mxu0 0
        %1004 = vmatmul.mubr.bf16.gmra.mxu0 %v729
        %v1005 = vpop.f32.mrf.mxu0
        %v1006 = vadd.f32 0.0, %v1005
        %v1007 = vpop.f32.mrf.mxu0
        %v1008 = vpop.f32.mrf.mxu0
        %v1009 = vadd.f32 0.0, %v1008
        %v1010 = vpop.f32.mrf.mxu0
        %1011 = vmatprep.mubr.bf16.mxu0 0
        %1012 = vmatmul.mubr.bf16.gmra.mxu0 %v730
        %v1013 = vpop.f32.mrf.mxu0
        %v1014 = vadd.f32 0.0, %v1013
        %v1015 = vpop.f32.mrf.mxu0
        %v1016 = vpop.f32.mrf.mxu0
        %v1017 = vadd.f32 0.0, %v1016
        %v1018 = vpop.f32.mrf.mxu0
        %1019 = vmatprep.mubr.bf16.mxu0 0
        %1020 = vmatmul.mubr.bf16.gmra.mxu0 %v731
        %v1021 = vpop.f32.mrf.mxu0
        %v1022 = vadd.f32 0.0, %v1021
        %v1023 = vpop.f32.mrf.mxu0
        %v1024 = vpop.f32.mrf.mxu0
        %v1025 = vadd.f32 0.0, %v1024
        %v1026 = vpop.f32.mrf.mxu0
        %1027 = vmatprep.mubr.bf16.mxu0 0
        %1028 = vmatmul.mubr.bf16.gmra.mxu0 %v732
        %v1029 = vpop.f32.mrf.mxu0
        %v1030 = vadd.f32 0.0, %v1029
        %v1031 = vpop.f32.mrf.mxu0
        %v1032 = vpop.f32.mrf.mxu0
        %v1033 = vadd.f32 0.0, %v1032
        %v1034 = vpop.f32.mrf.mxu0
        %1035 = vmatprep.mubr.bf16.mxu0 0
        %1036 = vmatmul.mubr.bf16.gmra.mxu0 %v733
        %v1037 = vpop.f32.mrf.mxu0
        %v1038 = vadd.f32 0.0, %v1037
        %v1039 = vpop.f32.mrf.mxu0
        %v1040 = vpop.f32.mrf.mxu0
        %v1041 = vadd.f32 0.0, %v1040
        %v1042 = vpop.f32.mrf.mxu0
        %1043 = vmatprep.mubr.bf16.mxu0 0
        %1044 = vmatmul.mubr.bf16.gmra.mxu0 %v734
        %v1045 = vpop.f32.mrf.mxu0
        %v1046 = vadd.f32 0.0, %v1045
        %v1047 = vpop.f32.mrf.mxu0
        %v1048 = vpop.f32.mrf.mxu0
        %v1049 = vadd.f32 0.0, %v1048
        %v1050 = vpop.f32.mrf.mxu0
        %1051 = vmatprep.mubr.bf16.mxu0 0
        %1052 = vmatmul.mubr.bf16.gmra.mxu0 %v735
        %v1053 = vpop.f32.mrf.mxu0
        %v1054 = vadd.f32 0.0, %v1053
        %v1055 = vpop.f32.mrf.mxu0
        %v1056 = vpop.f32.mrf.mxu0
        %v1057 = vadd.f32 0.0, %v1056
        %v1058 = vpop.f32.mrf.mxu0
        %1059 = vdwg.mxu0
        %v1060 = vld [vmem:[%s4] sm:$0x1]
        %v1062 = vlaneseq
        %v1063 = vshrl.u32 %v1062, 7
        %v1064 = vsub.s32 0, %v1063
        %v1065 = vrot.slane %v1060, %v1064
        %v1067 = vmul.f32 %v846, %v1065
        %v1068 = vmul.f32 %v849, %v1065
        %v1069 = vmul.f32 %v854, %v1065
        %v1070 = vmul.f32 %v857, %v1065
        %v1071 = vmul.f32 %v862, %v1065
        %v1072 = vmul.f32 %v865, %v1065
        %v1073 = vmul.f32 %v870, %v1065
        %v1074 = vmul.f32 %v873, %v1065
        %v1075 = vmul.f32 %v878, %v1065
        %v1076 = vmul.f32 %v881, %v1065
        %v1077 = vmul.f32 %v886, %v1065
        %v1078 = vmul.f32 %v889, %v1065
        %v1079 = vmul.f32 %v894, %v1065
        %v1080 = vmul.f32 %v897, %v1065
        %v1081 = vmul.f32 %v902, %v1065
        %v1082 = vmul.f32 %v905, %v1065
        %v1083 = vmul.f32 %v910, %v1065
        %v1084 = vmul.f32 %v913, %v1065
        %v1085 = vmul.f32 %v918, %v1065
        %v1086 = vmul.f32 %v921, %v1065
        %v1087 = vmul.f32 %v926, %v1065
        %v1088 = vmul.f32 %v929, %v1065
        %v1089 = vmul.f32 %v934, %v1065
        %v1090 = vmul.f32 %v937, %v1065
        %v1091 = vmul.f32 %v942, %v1065
        %v1092 = vmul.f32 %v945, %v1065
        %v1093 = vmul.f32 %v950, %v1065
        %v1094 = vmul.f32 %v953, %v1065
        %v1095 = vmul.f32 %v958, %v1065
        %v1096 = vmul.f32 %v961, %v1065
        %v1097 = vmul.f32 %v966, %v1065
        %v1098 = vmul.f32 %v969, %v1065
        %v1099 = vmul.f32 %v974, %v1065
        %v1100 = vmul.f32 %v977, %v1065
        %v1101 = vmul.f32 %v982, %v1065
        %v1102 = vmul.f32 %v985, %v1065
        %v1103 = vmul.f32 %v990, %v1065
        %v1104 = vmul.f32 %v993, %v1065
        %v1105 = vmul.f32 %v998, %v1065
        %v1106 = vmul.f32 %v1001, %v1065
        %v1107 = vmul.f32 %v1006, %v1065
        %v1108 = vmul.f32 %v1009, %v1065
        %v1109 = vmul.f32 %v1014, %v1065
        %v1110 = vmul.f32 %v1017, %v1065
        %v1111 = vmul.f32 %v1022, %v1065
        %v1112 = vmul.f32 %v1025, %v1065
        %v1113 = vmul.f32 %v1030, %v1065
        %v1114 = vmul.f32 %v1033, %v1065
        %v1115 = vmul.f32 %v1038, %v1065
        %v1116 = vmul.f32 %v1041, %v1065
        %v1117 = vmul.f32 %v1046, %v1065
        %v1118 = vmul.f32 %v1049, %v1065
        %v1119 = vmul.f32 %v1054, %v1065
        %v1120 = vmul.f32 %v1057, %v1065
        %v1121 = vld [vmem:[%s5] sm:$0x1]
        %v1123 = vlaneseq
        %v1124 = vshrl.u32 %v1123, 7
        %v1125 = vsub.s32 0, %v1124
        %v1126 = vrot.slane %v1121, %v1125
        %v1128 = vadd.f32 %v1067, %v1126
        %v1129 = vadd.f32 %v1068, %v1126
        %v1130 = vadd.f32 %v1069, %v1126
        %v1131 = vadd.f32 %v1070, %v1126
        %v1132 = vadd.f32 %v1071, %v1126
        %v1133 = vadd.f32 %v1072, %v1126
        %v1134 = vadd.f32 %v1073, %v1126
        %v1135 = vadd.f32 %v1074, %v1126
        %v1136 = vadd.f32 %v1075, %v1126
        %v1137 = vadd.f32 %v1076, %v1126
        %v1138 = vadd.f32 %v1077, %v1126
        %v1139 = vadd.f32 %v1078, %v1126
        %v1140 = vadd.f32 %v1079, %v1126
        %v1141 = vadd.f32 %v1080, %v1126
        %v1142 = vadd.f32 %v1081, %v1126
        %v1143 = vadd.f32 %v1082, %v1126
        %v1144 = vadd.f32 %v1083, %v1126
        %v1145 = vadd.f32 %v1084, %v1126
        %v1146 = vadd.f32 %v1085, %v1126
        %v1147 = vadd.f32 %v1086, %v1126
        %v1148 = vadd.f32 %v1087, %v1126
        %v1149 = vadd.f32 %v1088, %v1126
        %v1150 = vadd.f32 %v1089, %v1126
        %v1151 = vadd.f32 %v1090, %v1126
        %v1152 = vadd.f32 %v1091, %v1126
        %v1153 = vadd.f32 %v1092, %v1126
        %v1154 = vadd.f32 %v1093, %v1126
        %v1155 = vadd.f32 %v1094, %v1126
        %v1156 = vadd.f32 %v1095, %v1126
        %v1157 = vadd.f32 %v1096, %v1126
        %v1158 = vadd.f32 %v1097, %v1126
        %v1159 = vadd.f32 %v1098, %v1126
        %v1160 = vadd.f32 %v1099, %v1126
        %v1161 = vadd.f32 %v1100, %v1126
        %v1162 = vadd.f32 %v1101, %v1126
        %v1163 = vadd.f32 %v1102, %v1126
        %v1164 = vadd.f32 %v1103, %v1126
        %v1165 = vadd.f32 %v1104, %v1126
        %v1166 = vadd.f32 %v1105, %v1126
        %v1167 = vadd.f32 %v1106, %v1126
        %v1168 = vadd.f32 %v1107, %v1126
        %v1169 = vadd.f32 %v1108, %v1126
        %v1170 = vadd.f32 %v1109, %v1126
        %v1171 = vadd.f32 %v1110, %v1126
        %v1172 = vadd.f32 %v1111, %v1126
        %v1173 = vadd.f32 %v1112, %v1126
        %v1174 = vadd.f32 %v1113, %v1126
        %v1175 = vadd.f32 %v1114, %v1126
        %v1176 = vadd.f32 %v1115, %v1126
        %v1177 = vadd.f32 %v1116, %v1126
        %v1178 = vadd.f32 %v1117, %v1126
        %v1179 = vadd.f32 %v1118, %v1126
        %v1180 = vadd.f32 %v1119, %v1126
        %v1181 = vadd.f32 %v1120, %v1126
        %v1182 = vmax.f32 %v1128, 0.0
        %v1183 = vmax.f32 %v1129, 0.0
        %v1184 = vmax.f32 %v1130, 0.0
        %v1185 = vmax.f32 %v1131, 0.0
        %v1186 = vmax.f32 %v1132, 0.0
        %v1187 = vmax.f32 %v1133, 0.0
        %v1188 = vmax.f32 %v1134, 0.0
        %v1189 = vmax.f32 %v1135, 0.0
        %v1190 = vmax.f32 %v1136, 0.0
        %v1191 = vmax.f32 %v1137, 0.0
        %v1192 = vmax.f32 %v1138, 0.0
        %v1193 = vmax.f32 %v1139, 0.0
        %v1194 = vmax.f32 %v1140, 0.0
        %v1195 = vmax.f32 %v1141, 0.0
        %v1196 = vmax.f32 %v1142, 0.0
        %v1197 = vmax.f32 %v1143, 0.0
        %v1198 = vmax.f32 %v1144, 0.0
        %v1199 = vmax.f32 %v1145, 0.0
        %v1200 = vmax.f32 %v1146, 0.0
        %v1201 = vmax.f32 %v1147, 0.0
        %v1202 = vmax.f32 %v1148, 0.0
        %v1203 = vmax.f32 %v1149, 0.0
        %v1204 = vmax.f32 %v1150, 0.0
        %v1205 = vmax.f32 %v1151, 0.0
        %v1206 = vmax.f32 %v1152, 0.0
        %v1207 = vmax.f32 %v1153, 0.0
        %v1208 = vmax.f32 %v1154, 0.0
        %v1209 = vmax.f32 %v1155, 0.0
        %v1210 = vmax.f32 %v1156, 0.0
        %v1211 = vmax.f32 %v1157, 0.0
        %v1212 = vmax.f32 %v1158, 0.0
        %v1213 = vmax.f32 %v1159, 0.0
        %v1214 = vmax.f32 %v1160, 0.0
        %v1215 = vmax.f32 %v1161, 0.0
        %v1216 = vmax.f32 %v1162, 0.0
        %v1217 = vmax.f32 %v1163, 0.0
        %v1218 = vmax.f32 %v1164, 0.0
        %v1219 = vmax.f32 %v1165, 0.0
        %v1220 = vmax.f32 %v1166, 0.0
        %v1221 = vmax.f32 %v1167, 0.0
        %v1222 = vmax.f32 %v1168, 0.0
        %v1223 = vmax.f32 %v1169, 0.0
        %v1224 = vmax.f32 %v1170, 0.0
        %v1225 = vmax.f32 %v1171, 0.0
        %v1226 = vmax.f32 %v1172, 0.0
        %v1227 = vmax.f32 %v1173, 0.0
        %v1228 = vmax.f32 %v1174, 0.0
        %v1229 = vmax.f32 %v1175, 0.0
        %v1230 = vmax.f32 %v1176, 0.0
        %v1231 = vmax.f32 %v1177, 0.0
        %v1232 = vmax.f32 %v1178, 0.0
        %v1233 = vmax.f32 %v1179, 0.0
        %v1234 = vmax.f32 %v1180, 0.0
        %v1235 = vmax.f32 %v1181, 0.0
        %v1236 = vld [vmem:[#allocation7] sm:$0xff]
        %v1237 = vld [vmem:[#allocation7 + $0x8] sm:$0xff]
        %v1238 = vld [vmem:[#allocation7 + $0x10] sm:$0xff]
        %v1239 = vld [vmem:[#allocation7 + $0x18] sm:$0xff]
        %v1240 = vld [vmem:[#allocation7 + $0x20] sm:$0xff]
        %v1241 = vld [vmem:[#allocation7 + $0x28] sm:$0xff]
        %v1242 = vld [vmem:[#allocation7 + $0x30] sm:$0xff]
        %v1243 = vld [vmem:[#allocation7 + $0x38] sm:$0xff]
        %v1244 = vld [vmem:[#allocation7 + $0x40] sm:$0xff]
        %v1245 = vld [vmem:[#allocation7 + $0x48] sm:$0xff]
        %v1246 = vld [vmem:[#allocation7 + $0x50] sm:$0xff]
        %v1247 = vld [vmem:[#allocation7 + $0x58] sm:$0xff]
        %v1248 = vld [vmem:[#allocation7 + $0x60] sm:$0xff]
        %v1249 = vld [vmem:[#allocation7 + $0x68] sm:$0xff]
        %v1250 = vld [vmem:[#allocation7 + $0x70] sm:$0xff]
        %v1251 = vld [vmem:[#allocation7 + $0x78] sm:$0xff]
        %v1252 = vld [vmem:[#allocation7 + $0x80] sm:$0xff]
        %v1253 = vld [vmem:[#allocation7 + $0x88] sm:$0xff]
        %v1254 = vld [vmem:[#allocation7 + $0x90] sm:$0xff]
        %v1255 = vld [vmem:[#allocation7 + $0x98] sm:$0xff]
        %v1256 = vld [vmem:[#allocation7 + $0xa0] sm:$0xff]
        %v1257 = vld [vmem:[#allocation7 + $0xa8] sm:$0xff]
        %v1258 = vld [vmem:[#allocation7 + $0xb0] sm:$0xff]
        %v1259 = vld [vmem:[#allocation7 + $0xb8] sm:$0xff]
        %v1260 = vld [vmem:[#allocation7 + $0xc0] sm:$0xff]
        %v1261 = vld [vmem:[#allocation7 + $0xc8] sm:$0xff]
        %v1262 = vld [vmem:[#allocation7 + $0xd0] sm:$0xff]
        %v1263 = vld [vmem:[#allocation7 + $0xd8] sm:$0xff]
        %v1264 = vld [vmem:[#allocation7 + $0xe0] sm:$0xff]
        %v1265 = vld [vmem:[#allocation7 + $0xe8] sm:$0xff]
        %v1266 = vld [vmem:[#allocation7 + $0xf0] sm:$0xff]
        %v1267 = vld [vmem:[#allocation7 + $0xf8] sm:$0xff]
        %v1268 = vld [vmem:[#allocation7 + $0x100] sm:$0xff]
        %v1269 = vld [vmem:[#allocation7 + $0x108] sm:$0xff]
        %v1270 = vld [vmem:[#allocation7 + $0x110] sm:$0xff]
        %v1271 = vld [vmem:[#allocation7 + $0x118] sm:$0xff]
        %v1272 = vld [vmem:[#allocation7 + $0x120] sm:$0xff]
        %v1273 = vld [vmem:[#allocation7 + $0x128] sm:$0xff]
        %v1274 = vld [vmem:[#allocation7 + $0x130] sm:$0xff]
        %v1275 = vld [vmem:[#allocation7 + $0x138] sm:$0xff]
        %v1276 = vld [vmem:[#allocation7 + $0x140] sm:$0xff]
        %v1277 = vld [vmem:[#allocation7 + $0x148] sm:$0xff]
        %v1278 = vld [vmem:[#allocation7 + $0x150] sm:$0xff]
        %v1279 = vld [vmem:[#allocation7 + $0x158] sm:$0xff]
        %v1280 = vld [vmem:[#allocation7 + $0x160] sm:$0xff]
        %v1281 = vld [vmem:[#allocation7 + $0x168] sm:$0xff]
        %v1282 = vld [vmem:[#allocation7 + $0x170] sm:$0xff]
        %v1283 = vld [vmem:[#allocation7 + $0x178] sm:$0xff]
        %v1284 = vld [vmem:[#allocation7 + $0x180] sm:$0xff]
        %v1285 = vld [vmem:[#allocation7 + $0x188] sm:$0xff]
        %v1286 = vld [vmem:[#allocation7 + $0x190] sm:$0xff]
        %v1287 = vld [vmem:[#allocation7 + $0x198] sm:$0xff]
        %v1288 = vld [vmem:[#allocation7 + $0x1a0] sm:$0xff]
        %v1289 = vld [vmem:[#allocation7 + $0x1a8] sm:$0xff]
        %v1290 = vmul.f32 %v1182, %v1236
        %v1291 = vmul.f32 %v1183, %v1237
        %v1292 = vmul.f32 %v1184, %v1238
        %v1293 = vmul.f32 %v1185, %v1239
        %v1294 = vmul.f32 %v1186, %v1240
        %v1295 = vmul.f32 %v1187, %v1241
        %v1296 = vmul.f32 %v1188, %v1242
        %v1297 = vmul.f32 %v1189, %v1243
        %v1298 = vmul.f32 %v1190, %v1244
        %v1299 = vmul.f32 %v1191, %v1245
        %v1300 = vmul.f32 %v1192, %v1246
        %v1301 = vmul.f32 %v1193, %v1247
        %v1302 = vmul.f32 %v1194, %v1248
        %v1303 = vmul.f32 %v1195, %v1249
        %v1304 = vmul.f32 %v1196, %v1250
        %v1305 = vmul.f32 %v1197, %v1251
        %v1306 = vmul.f32 %v1198, %v1252
        %v1307 = vmul.f32 %v1199, %v1253
        %v1308 = vmul.f32 %v1200, %v1254
        %v1309 = vmul.f32 %v1201, %v1255
        %v1310 = vmul.f32 %v1202, %v1256
        %v1311 = vmul.f32 %v1203, %v1257
        %v1312 = vmul.f32 %v1204, %v1258
        %v1313 = vmul.f32 %v1205, %v1259
        %v1314 = vmul.f32 %v1206, %v1260
        %v1315 = vmul.f32 %v1207, %v1261
        %v1316 = vmul.f32 %v1208, %v1262
        %v1317 = vmul.f32 %v1209, %v1263
        %v1318 = vmul.f32 %v1210, %v1264
        %v1319 = vmul.f32 %v1211, %v1265
        %v1320 = vmul.f32 %v1212, %v1266
        %v1321 = vmul.f32 %v1213, %v1267
        %v1322 = vmul.f32 %v1214, %v1268
        %v1323 = vmul.f32 %v1215, %v1269
        %v1324 = vmul.f32 %v1216, %v1270
        %v1325 = vmul.f32 %v1217, %v1271
        %v1326 = vmul.f32 %v1218, %v1272
        %v1327 = vmul.f32 %v1219, %v1273
        %v1328 = vmul.f32 %v1220, %v1274
        %v1329 = vmul.f32 %v1221, %v1275
        %v1330 = vmul.f32 %v1222, %v1276
        %v1331 = vmul.f32 %v1223, %v1277
        %v1332 = vmul.f32 %v1224, %v1278
        %v1333 = vmul.f32 %v1225, %v1279
        %v1334 = vmul.f32 %v1226, %v1280
        %v1335 = vmul.f32 %v1227, %v1281
        %v1336 = vmul.f32 %v1228, %v1282
        %v1337 = vmul.f32 %v1229, %v1283
        %v1338 = vmul.f32 %v1230, %v1284
        %v1339 = vmul.f32 %v1231, %v1285
        %v1340 = vmul.f32 %v1232, %v1286
        %v1341 = vmul.f32 %v1233, %v1287
        %v1342 = vmul.f32 %v1234, %v1288
        %v1343 = vmul.f32 %v1235, %v1289
        %v1344 = vpack.c.bf16 %v1291, %v1290
        %v1345 = vpack.c.bf16 %v1292, %v1292
        %v1346 = vpack.c.bf16 %v1294, %v1293
        %v1347 = vpack.c.bf16 %v1295, %v1295
        %v1348 = vpack.c.bf16 %v1297, %v1296
        %v1349 = vpack.c.bf16 %v1298, %v1298
        %v1350 = vpack.c.bf16 %v1300, %v1299
        %v1351 = vpack.c.bf16 %v1301, %v1301
        %v1352 = vpack.c.bf16 %v1303, %v1302
        %v1353 = vpack.c.bf16 %v1304, %v1304
        %v1354 = vpack.c.bf16 %v1306, %v1305
        %v1355 = vpack.c.bf16 %v1307, %v1307
        %v1356 = vpack.c.bf16 %v1309, %v1308
        %v1357 = vpack.c.bf16 %v1310, %v1310
        %v1358 = vpack.c.bf16 %v1312, %v1311
        %v1359 = vpack.c.bf16 %v1313, %v1313
        %v1360 = vpack.c.bf16 %v1315, %v1314
        %v1361 = vpack.c.bf16 %v1316, %v1316
        %v1362 = vpack.c.bf16 %v1318, %v1317
        %v1363 = vpack.c.bf16 %v1319, %v1319
        %v1364 = vpack.c.bf16 %v1321, %v1320
        %v1365 = vpack.c.bf16 %v1322, %v1322
        %v1366 = vpack.c.bf16 %v1324, %v1323
        %v1367 = vpack.c.bf16 %v1325, %v1325
        %v1368 = vpack.c.bf16 %v1327, %v1326
        %v1369 = vpack.c.bf16 %v1328, %v1328
        %v1370 = vpack.c.bf16 %v1330, %v1329
        %v1371 = vpack.c.bf16 %v1331, %v1331
        %v1372 = vpack.c.bf16 %v1333, %v1332
        %v1373 = vpack.c.bf16 %v1334, %v1334
        %v1374 = vpack.c.bf16 %v1336, %v1335
        %v1375 = vpack.c.bf16 %v1337, %v1337
        %v1376 = vpack.c.bf16 %v1339, %v1338
        %v1377 = vpack.c.bf16 %v1340, %v1340
        %v1378 = vpack.c.bf16 %v1342, %v1341
        %v1379 = vpack.c.bf16 %v1343, %v1343
        %vm1380 = vsmask.f32 7424
        %v1382 = vshrl.u32 %v1344, 16
        %v1384 = vshll.u32 %v1344, 16
        %v1386 = vrot.slane %v1384, 1
        %v1387 = vor.u32 %v1382, %v1386
        %v1389 = vshll.u32 %v1345, 16
        %v1391 = vrot.slane %v1389, 1
        %v1392 = vsel %vm1380, %v1387, %v1391
        %v1394 = vshrl.u32 %v1346, 16
        %v1396 = vshll.u32 %v1346, 16
        %v1398 = vrot.slane %v1396, 1
        %v1399 = vor.u32 %v1394, %v1398
        %v1401 = vshll.u32 %v1347, 16
        %v1403 = vrot.slane %v1401, 1
        %v1404 = vsel %vm1380, %v1399, %v1403
        %v1406 = vshrl.u32 %v1348, 16
        %v1408 = vshll.u32 %v1348, 16
        %v1410 = vrot.slane %v1408, 1
        %v1411 = vor.u32 %v1406, %v1410
        %v1413 = vshll.u32 %v1349, 16
        %v1415 = vrot.slane %v1413, 1
        %v1416 = vsel %vm1380, %v1411, %v1415
        %v1418 = vshrl.u32 %v1350, 16
        %v1420 = vshll.u32 %v1350, 16
        %v1422 = vrot.slane %v1420, 1
        %v1423 = vor.u32 %v1418, %v1422
        %v1425 = vshll.u32 %v1351, 16
        %v1427 = vrot.slane %v1425, 1
        %v1428 = vsel %vm1380, %v1423, %v1427
        %v1430 = vshrl.u32 %v1352, 16
        %v1432 = vshll.u32 %v1352, 16
        %v1434 = vrot.slane %v1432, 1
        %v1435 = vor.u32 %v1430, %v1434
        %v1437 = vshll.u32 %v1353, 16
        %v1439 = vrot.slane %v1437, 1
        %v1440 = vsel %vm1380, %v1435, %v1439
        %v1442 = vshrl.u32 %v1354, 16
        %v1444 = vshll.u32 %v1354, 16
        %v1446 = vrot.slane %v1444, 1
        %v1447 = vor.u32 %v1442, %v1446
        %v1449 = vshll.u32 %v1355, 16
        %v1451 = vrot.slane %v1449, 1
        %v1452 = vsel %vm1380, %v1447, %v1451
        %v1454 = vshrl.u32 %v1356, 16
        %v1456 = vshll.u32 %v1356, 16
        %v1458 = vrot.slane %v1456, 1
        %v1459 = vor.u32 %v1454, %v1458
        %v1461 = vshll.u32 %v1357, 16
        %v1463 = vrot.slane %v1461, 1
        %v1464 = vsel %vm1380, %v1459, %v1463
        %v1466 = vshrl.u32 %v1358, 16
        %v1468 = vshll.u32 %v1358, 16
        %v1470 = vrot.slane %v1468, 1
        %v1471 = vor.u32 %v1466, %v1470
        %v1473 = vshll.u32 %v1359, 16
        %v1475 = vrot.slane %v1473, 1
        %v1476 = vsel %vm1380, %v1471, %v1475
        %v1478 = vshrl.u32 %v1360, 16
        %v1480 = vshll.u32 %v1360, 16
        %v1482 = vrot.slane %v1480, 1
        %v1483 = vor.u32 %v1478, %v1482
        %v1485 = vshll.u32 %v1361, 16
        %v1487 = vrot.slane %v1485, 1
        %v1488 = vsel %vm1380, %v1483, %v1487
        %v1490 = vshrl.u32 %v1362, 16
        %v1492 = vshll.u32 %v1362, 16
        %v1494 = vrot.slane %v1492, 1
        %v1495 = vor.u32 %v1490, %v1494
        %v1497 = vshll.u32 %v1363, 16
        %v1499 = vrot.slane %v1497, 1
        %v1500 = vsel %vm1380, %v1495, %v1499
        %v1502 = vshrl.u32 %v1364, 16
        %v1504 = vshll.u32 %v1364, 16
        %v1506 = vrot.slane %v1504, 1
        %v1507 = vor.u32 %v1502, %v1506
        %v1509 = vshll.u32 %v1365, 16
        %v1511 = vrot.slane %v1509, 1
        %v1512 = vsel %vm1380, %v1507, %v1511
        %v1514 = vshrl.u32 %v1366, 16
        %v1516 = vshll.u32 %v1366, 16
        %v1518 = vrot.slane %v1516, 1
        %v1519 = vor.u32 %v1514, %v1518
        %v1521 = vshll.u32 %v1367, 16
        %v1523 = vrot.slane %v1521, 1
        %v1524 = vsel %vm1380, %v1519, %v1523
        %v1526 = vshrl.u32 %v1368, 16
        %v1528 = vshll.u32 %v1368, 16
        %v1530 = vrot.slane %v1528, 1
        %v1531 = vor.u32 %v1526, %v1530
        %v1533 = vshll.u32 %v1369, 16
        %v1535 = vrot.slane %v1533, 1
        %v1536 = vsel %vm1380, %v1531, %v1535
        %v1538 = vshrl.u32 %v1370, 16
        %v1540 = vshll.u32 %v1370, 16
        %v1542 = vrot.slane %v1540, 1
        %v1543 = vor.u32 %v1538, %v1542
        %v1545 = vshll.u32 %v1371, 16
        %v1547 = vrot.slane %v1545, 1
        %v1548 = vsel %vm1380, %v1543, %v1547
        %v1550 = vshrl.u32 %v1372, 16
        %v1552 = vshll.u32 %v1372, 16
        %v1554 = vrot.slane %v1552, 1
        %v1555 = vor.u32 %v1550, %v1554
        %v1557 = vshll.u32 %v1373, 16
        %v1559 = vrot.slane %v1557, 1
        %v1560 = vsel %vm1380, %v1555, %v1559
        %v1562 = vshrl.u32 %v1374, 16
        %v1564 = vshll.u32 %v1374, 16
        %v1566 = vrot.slane %v1564, 1
        %v1567 = vor.u32 %v1562, %v1566
        %v1569 = vshll.u32 %v1375, 16
        %v1571 = vrot.slane %v1569, 1
        %v1572 = vsel %vm1380, %v1567, %v1571
        %vm1621 = vcmask 1046528
        %v1622 = vrot.slane %v1344, 1
        %v1623 = vrot.slane %v1345, 1
        %v1624 = vsel %vm1621, %v1622, %v1623
        %v1625 = vrot.slane %v1346, 1
        %v1626 = vrot.slane %v1347, 1
        %v1627 = vsel %vm1621, %v1625, %v1626
        %v1628 = vrot.slane %v1348, 1
        %v1629 = vrot.slane %v1349, 1
        %v1630 = vsel %vm1621, %v1628, %v1629
        %v1631 = vrot.slane %v1350, 1
        %v1632 = vrot.slane %v1351, 1
        %v1633 = vsel %vm1621, %v1631, %v1632
        %v1634 = vrot.slane %v1352, 1
        %v1635 = vrot.slane %v1353, 1
        %v1636 = vsel %vm1621, %v1634, %v1635
        %v1637 = vrot.slane %v1354, 1
        %v1638 = vrot.slane %v1355, 1
        %v1639 = vsel %vm1621, %v1637, %v1638
        %v1640 = vrot.slane %v1356, 1
        %v1641 = vrot.slane %v1357, 1
        %v1642 = vsel %vm1621, %v1640, %v1641
        %v1643 = vrot.slane %v1358, 1
        %v1644 = vrot.slane %v1359, 1
        %v1645 = vsel %vm1621, %v1643, %v1644
        %v1646 = vrot.slane %v1360, 1
        %v1647 = vrot.slane %v1361, 1
        %v1648 = vsel %vm1621, %v1646, %v1647
        %v1649 = vrot.slane %v1362, 1
        %v1650 = vrot.slane %v1363, 1
        %v1651 = vsel %vm1621, %v1649, %v1650
        %v1652 = vrot.slane %v1364, 1
        %v1653 = vrot.slane %v1365, 1
        %v1654 = vsel %vm1621, %v1652, %v1653
        %v1655 = vrot.slane %v1366, 1
        %v1656 = vrot.slane %v1367, 1
        %v1657 = vsel %vm1621, %v1655, %v1656
        %v1658 = vrot.slane %v1368, 1
        %v1659 = vrot.slane %v1369, 1
        %v1660 = vsel %vm1621, %v1658, %v1659
        %v1661 = vrot.slane %v1370, 1
        %v1662 = vrot.slane %v1371, 1
        %v1663 = vsel %vm1621, %v1661, %v1662
        %v1664 = vrot.slane %v1372, 1
        %v1665 = vrot.slane %v1373, 1
        %v1666 = vsel %vm1621, %v1664, %v1665
        %v1667 = vrot.slane %v1374, 1
        %v1668 = vrot.slane %v1375, 1
        %v1669 = vsel %vm1621, %v1667, %v1668
        %v1687 = vshrl.u32 %v1376, 16
        %v1689 = vshll.u32 %v1376, 16
        %v1691 = vrot.slane %v1689, 1
        %v1692 = vor.u32 %v1687, %v1691
        %v1694 = vshll.u32 %v1377, 16
        %v1696 = vrot.slane %v1694, 1
        %v1697 = vsel %vm1380, %v1692, %v1696
        %v1701 = vrot.slane %v1376, 1
        %v1702 = vrot.slane %v1377, 1
        %v1703 = vsel %vm1621, %v1701, %v1702
        %v1706 = vshrl.u32 %v1378, 16
        %v1708 = vshll.u32 %v1378, 16
        %v1710 = vrot.slane %v1708, 1
        %v1711 = vor.u32 %v1706, %v1710
        %v1713 = vshll.u32 %v1379, 16
        %v1715 = vrot.slane %v1713, 1
        %v1716 = vsel %vm1380, %v1711, %v1715
        %v1720 = vrot.slane %v1378, 1
        %v1721 = vrot.slane %v1379, 1
        %v1722 = vsel %vm1621, %v1720, %v1721
        %v1724 = vld [vmem:[#allocation10] sm:$0xf]
        %v1725 = vld [vmem:[#allocation10 + $0x4] sm:$0xf]
        %v1726 = vld [vmem:[#allocation10 + $0x8] sm:$0xf]
        %v1727 = vld [vmem:[#allocation10 + $0xc] sm:$0xf]
        %v1728 = vld [vmem:[#allocation10 + $0x10] sm:$0xf]
        %v1729 = vld [vmem:[#allocation10 + $0x14] sm:$0xf]
        %v1730 = vld [vmem:[#allocation10 + $0x18] sm:$0xf]
        %v1731 = vld [vmem:[#allocation10 + $0x1c] sm:$0xf]
        %v1732 = vld [vmem:[#allocation10 + $0x20] sm:$0xf]
        %v1733 = vld [vmem:[#allocation10 + $0x24] sm:$0xf]
        %v1734 = vld [vmem:[#allocation10 + $0x28] sm:$0xf]
        %v1735 = vld [vmem:[#allocation10 + $0x2c] sm:$0xf]
        %v1736 = vld [vmem:[#allocation10 + $0x30] sm:$0xf]
        %v1737 = vld [vmem:[#allocation10 + $0x34] sm:$0xf]
        %v1738 = vld [vmem:[#allocation10 + $0x38] sm:$0xf]
        %v1739 = vld [vmem:[#allocation10 + $0x3c] sm:$0xf]
        %v1740 = vld [vmem:[#allocation10 + $0x40] sm:$0xf]
        %v1741 = vld [vmem:[#allocation10 + $0x44] sm:$0xf]
        %v1742 = vld [vmem:[#allocation10 + $0x48] sm:$0xf]
        %v1743 = vld [vmem:[#allocation10 + $0x4c] sm:$0xf]
        %v1744 = vld [vmem:[#allocation10 + $0x50] sm:$0xf]
        %v1745 = vld [vmem:[#allocation10 + $0x54] sm:$0xf]
        %v1746 = vld [vmem:[#allocation10 + $0x58] sm:$0xf]
        %v1747 = vld [vmem:[#allocation10 + $0x5c] sm:$0xf]
        %v1748 = vld [vmem:[#allocation10 + $0x60] sm:$0xf]
        %v1749 = vld [vmem:[#allocation10 + $0x64] sm:$0xf]
        %v1750 = vld [vmem:[#allocation10 + $0x68] sm:$0xf]
        %v1751 = vld [vmem:[#allocation10 + $0x6c] sm:$0xf]
        %v1752 = vld [vmem:[#allocation10 + $0x70] sm:$0xf]
        %v1753 = vld [vmem:[#allocation10 + $0x74] sm:$0xf]
        %v1754 = vld [vmem:[#allocation10 + $0x78] sm:$0xf]
        %v1755 = vld [vmem:[#allocation10 + $0x7c] sm:$0xf]
        %v1756 = vld [vmem:[#allocation10 + $0x80] sm:$0xf]
        %v1757 = vld [vmem:[#allocation10 + $0x84] sm:$0xf]
        %v1758 = vld [vmem:[#allocation10 + $0x88] sm:$0xf]
        %v1759 = vld [vmem:[#allocation10 + $0x8c] sm:$0xf]
        %v1760 = vld [vmem:[#allocation10 + $0x90] sm:$0xf]
        %v1761 = vld [vmem:[#allocation10 + $0x94] sm:$0xf]
        %v1762 = vld [vmem:[#allocation10 + $0x98] sm:$0xf]
        %v1763 = vld [vmem:[#allocation10 + $0x9c] sm:$0xf]
        %v1764 = vld [vmem:[#allocation10 + $0xa0] sm:$0xf]
        %v1765 = vld [vmem:[#allocation10 + $0xa4] sm:$0xf]
        %v1766 = vld [vmem:[#allocation10 + $0xa8] sm:$0xf]
        %v1767 = vld [vmem:[#allocation10 + $0xac] sm:$0xf]
        %v1768 = vld [vmem:[#allocation10 + $0xb0] sm:$0xf]
        %v1769 = vld [vmem:[#allocation10 + $0xb4] sm:$0xf]
        %v1770 = vld [vmem:[#allocation10 + $0xb8] sm:$0xf]
        %v1771 = vld [vmem:[#allocation10 + $0xbc] sm:$0xf]
        %v1772 = vld [vmem:[#allocation10 + $0xc0] sm:$0xf]
        %v1773 = vld [vmem:[#allocation10 + $0xc4] sm:$0xf]
        %v1774 = vld [vmem:[#allocation10 + $0xc8] sm:$0xf]
        %v1775 = vld [vmem:[#allocation10 + $0xcc] sm:$0xf]
        %v1776 = vld [vmem:[#allocation10 + $0xd0] sm:$0xf]
        %v1777 = vld [vmem:[#allocation10 + $0xd4] sm:$0xf]
        %v1778 = vld [vmem:[#allocation10 + $0xd8] sm:$0xf]
        %v1779 = vld [vmem:[#allocation10 + $0xdc] sm:$0xf]
        %v1780 = vld [vmem:[#allocation10 + $0xe0] sm:$0xf]
        %v1781 = vld [vmem:[#allocation10 + $0xe4] sm:$0xf]
        %v1782 = vld [vmem:[#allocation10 + $0xe8] sm:$0xf]
        %v1783 = vld [vmem:[#allocation10 + $0xec] sm:$0xf]
        %v1784 = vld [vmem:[#allocation10 + $0xf0] sm:$0xf]
        %v1785 = vld [vmem:[#allocation10 + $0xf4] sm:$0xf]
        %v1786 = vld [vmem:[#allocation10 + $0xf8] sm:$0xf]
        %v1787 = vld [vmem:[#allocation10 + $0xfc] sm:$0xf]
        %v1788 = vld [vmem:[#allocation10 + $0x100] sm:$0xf]
        %v1789 = vld [vmem:[#allocation10 + $0x104] sm:$0xf]
        %v1790 = vld [vmem:[#allocation10 + $0x108] sm:$0xf]
        %v1791 = vld [vmem:[#allocation10 + $0x10c] sm:$0xf]
        %v1792 = vld [vmem:[#allocation10 + $0x110] sm:$0xf]
        %v1793 = vld [vmem:[#allocation10 + $0x114] sm:$0xf]
        %v1794 = vld [vmem:[#allocation10 + $0x118] sm:$0xf]
        %v1795 = vld [vmem:[#allocation10 + $0x11c] sm:$0xf]
        %v1796 = vld [vmem:[#allocation10 + $0x120] sm:$0xf]
        %v1797 = vld [vmem:[#allocation10 + $0x124] sm:$0xf]
        %v1798 = vld [vmem:[#allocation10 + $0x128] sm:$0xf]
        %v1799 = vld [vmem:[#allocation10 + $0x12c] sm:$0xf]
        %v1800 = vld [vmem:[#allocation10 + $0x130] sm:$0xf]
        %v1801 = vld [vmem:[#allocation10 + $0x134] sm:$0xf]
        %v1802 = vld [vmem:[#allocation10 + $0x138] sm:$0xf]
        %v1803 = vld [vmem:[#allocation10 + $0x13c] sm:$0xf]
        %v1804 = vld [vmem:[#allocation10 + $0x140] sm:$0xf]
        %v1805 = vld [vmem:[#allocation10 + $0x144] sm:$0xf]
        %v1806 = vld [vmem:[#allocation10 + $0x148] sm:$0xf]
        %v1807 = vld [vmem:[#allocation10 + $0x14c] sm:$0xf]
        %v1808 = vld [vmem:[#allocation10 + $0x150] sm:$0xf]
        %v1809 = vld [vmem:[#allocation10 + $0x154] sm:$0xf]
        %v1810 = vld [vmem:[#allocation10 + $0x158] sm:$0xf]
        %v1811 = vld [vmem:[#allocation10 + $0x15c] sm:$0xf]
        %v1812 = vld [vmem:[#allocation10 + $0x160] sm:$0xf]
        %v1813 = vld [vmem:[#allocation10 + $0x164] sm:$0xf]
        %v1814 = vld [vmem:[#allocation10 + $0x168] sm:$0xf]
        %v1815 = vld [vmem:[#allocation10 + $0x16c] sm:$0xf]
        %v1816 = vld [vmem:[#allocation10 + $0x170] sm:$0xf]
        %v1817 = vld [vmem:[#allocation10 + $0x174] sm:$0xf]
        %v1818 = vld [vmem:[#allocation10 + $0x178] sm:$0xf]
        %v1819 = vld [vmem:[#allocation10 + $0x17c] sm:$0xf]
        %v1820 = vld [vmem:[#allocation10 + $0x180] sm:$0xf]
        %v1821 = vld [vmem:[#allocation10 + $0x184] sm:$0xf]
        %v1822 = vld [vmem:[#allocation10 + $0x188] sm:$0xf]
        %v1823 = vld [vmem:[#allocation10 + $0x18c] sm:$0xf]
        %v1824 = vld [vmem:[#allocation10 + $0x190] sm:$0xf]
        %v1825 = vld [vmem:[#allocation10 + $0x194] sm:$0xf]
        %v1826 = vld [vmem:[#allocation10 + $0x198] sm:$0xf]
        %v1827 = vld [vmem:[#allocation10 + $0x19c] sm:$0xf]
        %v1828 = vld [vmem:[#allocation10 + $0x1a0] sm:$0xf]
        %v1829 = vld [vmem:[#allocation10 + $0x1a4] sm:$0xf]
        %v1830 = vld [vmem:[#allocation10 + $0x1a8] sm:$0xf]
        %v1831 = vld [vmem:[#allocation10 + $0x1ac] sm:$0xf]
        %v1832 = vld [vmem:[#allocation10 + $0x1b0] sm:$0xf]
        %v1833 = vld [vmem:[#allocation10 + $0x1b4] sm:$0xf]
        %v1834 = vld [vmem:[#allocation10 + $0x1b8] sm:$0xf]
        %v1835 = vld [vmem:[#allocation10 + $0x1bc] sm:$0xf]
        %v1836 = vld [vmem:[#allocation10 + $0x1c0] sm:$0xf]
        %v1837 = vld [vmem:[#allocation10 + $0x1c4] sm:$0xf]
        %v1838 = vld [vmem:[#allocation10 + $0x1c8] sm:$0xf]
        %v1839 = vld [vmem:[#allocation10 + $0x1cc] sm:$0xf]
        %v1840 = vld [vmem:[#allocation10 + $0x1d0] sm:$0xf]
        %v1841 = vld [vmem:[#allocation10 + $0x1d4] sm:$0xf]
        %v1842 = vld [vmem:[#allocation10 + $0x1d8] sm:$0xf]
        %v1843 = vld [vmem:[#allocation10 + $0x1dc] sm:$0xf]
        %v1844 = vld [vmem:[#allocation10 + $0x1e0] sm:$0xf]
        %v1845 = vld [vmem:[#allocation10 + $0x1e4] sm:$0xf]
        %v1846 = vld [vmem:[#allocation10 + $0x1e8] sm:$0xf]
        %v1847 = vld [vmem:[#allocation10 + $0x1ec] sm:$0xf]
        %v1848 = vld [vmem:[#allocation10 + $0x1f0] sm:$0xf]
        %v1849 = vld [vmem:[#allocation10 + $0x1f4] sm:$0xf]
        %v1850 = vld [vmem:[#allocation10 + $0x1f8] sm:$0xf]
        %v1851 = vld [vmem:[#allocation10 + $0x1fc] sm:$0xf]
        %v1852 = vld [vmem:[#allocation10 + $0x200] sm:$0xf]
        %v1853 = vld [vmem:[#allocation10 + $0x204] sm:$0xf]
        %v1854 = vld [vmem:[#allocation10 + $0x208] sm:$0xf]
        %v1855 = vld [vmem:[#allocation10 + $0x20c] sm:$0xf]
        %v1856 = vld [vmem:[#allocation10 + $0x210] sm:$0xf]
        %v1857 = vld [vmem:[#allocation10 + $0x214] sm:$0xf]
        %v1858 = vld [vmem:[#allocation10 + $0x218] sm:$0xf]
        %v1859 = vld [vmem:[#allocation10 + $0x21c] sm:$0xf]
        %v1860 = vld [vmem:[#allocation10 + $0x220] sm:$0xf]
        %v1861 = vld [vmem:[#allocation10 + $0x224] sm:$0xf]
        %v1862 = vld [vmem:[#allocation10 + $0x228] sm:$0xf]
        %v1863 = vld [vmem:[#allocation10 + $0x22c] sm:$0xf]
        %v1864 = vld [vmem:[#allocation10 + $0x230] sm:$0xf]
        %v1865 = vld [vmem:[#allocation10 + $0x234] sm:$0xf]
        %v1866 = vld [vmem:[#allocation10 + $0x238] sm:$0xf]
        %v1867 = vld [vmem:[#allocation10 + $0x23c] sm:$0xf]
        %v2012 = vunpack.c.l.b16 %v1724
        %v2013 = vunpack.c.l.b16 %v1725
        %v2014 = vunpack.c.l.b16 %v1726
        %v2015 = vunpack.c.l.b16 %v1727
        %v2016 = vunpack.c.l.b16 %v1728
        %v2017 = vunpack.c.l.b16 %v1729
        %v2018 = vunpack.c.l.b16 %v1730
        %v2019 = vunpack.c.l.b16 %v1731
        %v2020 = vunpack.c.l.b16 %v1732
        %v2021 = vunpack.c.l.b16 %v1733
        %v2022 = vunpack.c.l.b16 %v1734
        %v2023 = vunpack.c.l.b16 %v1735
        %v2024 = vunpack.c.l.b16 %v1736
        %v2025 = vunpack.c.l.b16 %v1737
        %v2026 = vunpack.c.l.b16 %v1738
        %v2027 = vunpack.c.l.b16 %v1739
        %v2028 = vunpack.c.l.b16 %v1740
        %v2029 = vunpack.c.l.b16 %v1741
        %v2030 = vunpack.c.l.b16 %v1742
        %v2031 = vunpack.c.l.b16 %v1743
        %v2032 = vunpack.c.l.b16 %v1744
        %v2033 = vunpack.c.l.b16 %v1745
        %v2034 = vunpack.c.l.b16 %v1746
        %v2035 = vunpack.c.l.b16 %v1747
        %v2036 = vunpack.c.l.b16 %v1748
        %v2037 = vunpack.c.l.b16 %v1749
        %v2038 = vunpack.c.l.b16 %v1750
        %v2039 = vunpack.c.l.b16 %v1751
        %v2040 = vunpack.c.l.b16 %v1752
        %v2041 = vunpack.c.l.b16 %v1753
        %v2042 = vunpack.c.l.b16 %v1754
        %v2043 = vunpack.c.l.b16 %v1755
        %v2044 = vunpack.c.l.b16 %v1756
        %v2045 = vunpack.c.l.b16 %v1757
        %v2046 = vunpack.c.l.b16 %v1758
        %v2047 = vunpack.c.l.b16 %v1759
        %v2048 = vunpack.c.l.b16 %v1760
        %v2049 = vunpack.c.l.b16 %v1761
        %v2050 = vunpack.c.l.b16 %v1762
        %v2051 = vunpack.c.l.b16 %v1763
        %v2052 = vunpack.c.l.b16 %v1764
        %v2053 = vunpack.c.l.b16 %v1765
        %v2054 = vunpack.c.l.b16 %v1766
        %v2055 = vunpack.c.l.b16 %v1767
        %v2056 = vunpack.c.l.b16 %v1768
        %v2057 = vunpack.c.l.b16 %v1769
        %v2058 = vunpack.c.l.b16 %v1770
        %v2059 = vunpack.c.l.b16 %v1771
        %v2060 = vunpack.c.l.b16 %v1772
        %v2061 = vunpack.c.l.b16 %v1773
        %v2062 = vunpack.c.l.b16 %v1774
        %v2063 = vunpack.c.l.b16 %v1775
        %v2064 = vunpack.c.l.b16 %v1776
        %v2065 = vunpack.c.l.b16 %v1777
        %v2066 = vunpack.c.l.b16 %v1778
        %v2067 = vunpack.c.l.b16 %v1779
        %v2068 = vunpack.c.l.b16 %v1780
        %v2069 = vunpack.c.l.b16 %v1781
        %v2070 = vunpack.c.l.b16 %v1782
        %v2071 = vunpack.c.l.b16 %v1783
        %v2072 = vunpack.c.l.b16 %v1784
        %v2073 = vunpack.c.l.b16 %v1785
        %v2074 = vunpack.c.l.b16 %v1786
        %v2075 = vunpack.c.l.b16 %v1787
        %v2076 = vunpack.c.l.b16 %v1788
        %v2077 = vunpack.c.l.b16 %v1789
        %v2078 = vunpack.c.l.b16 %v1790
        %v2079 = vunpack.c.l.b16 %v1791
        %v2080 = vunpack.c.l.b16 %v1792
        %v2081 = vunpack.c.l.b16 %v1793
        %v2082 = vunpack.c.l.b16 %v1794
        %v2083 = vunpack.c.l.b16 %v1795
        %v2084 = vunpack.c.l.b16 %v1796
        %v2085 = vunpack.c.l.b16 %v1797
        %v2086 = vunpack.c.l.b16 %v1798
        %v2087 = vunpack.c.l.b16 %v1799
        %v2088 = vunpack.c.l.b16 %v1800
        %v2089 = vunpack.c.l.b16 %v1801
        %v2090 = vunpack.c.l.b16 %v1802
        %v2091 = vunpack.c.l.b16 %v1803
        %v2092 = vunpack.c.l.b16 %v1804
        %v2093 = vunpack.c.l.b16 %v1805
        %v2094 = vunpack.c.l.b16 %v1806
        %v2095 = vunpack.c.l.b16 %v1807
        %v2096 = vunpack.c.l.b16 %v1808
        %v2097 = vunpack.c.l.b16 %v1809
        %v2098 = vunpack.c.l.b16 %v1810
        %v2099 = vunpack.c.l.b16 %v1811
        %v2100 = vunpack.c.l.b16 %v1812
        %v2101 = vunpack.c.l.b16 %v1813
        %v2102 = vunpack.c.l.b16 %v1814
        %v2103 = vunpack.c.l.b16 %v1815
        %v2104 = vunpack.c.l.b16 %v1816
        %v2105 = vunpack.c.l.b16 %v1817
        %v2106 = vunpack.c.l.b16 %v1818
        %v2107 = vunpack.c.l.b16 %v1819
        %v2108 = vunpack.c.l.b16 %v1820
        %v2109 = vunpack.c.l.b16 %v1821
        %v2110 = vunpack.c.l.b16 %v1822
        %v2111 = vunpack.c.l.b16 %v1823
        %v2112 = vunpack.c.l.b16 %v1824
        %v2113 = vunpack.c.l.b16 %v1825
        %v2114 = vunpack.c.l.b16 %v1826
        %v2115 = vunpack.c.l.b16 %v1827
        %v2116 = vunpack.c.l.b16 %v1828
        %v2117 = vunpack.c.l.b16 %v1829
        %v2118 = vunpack.c.l.b16 %v1830
        %v2119 = vunpack.c.l.b16 %v1831
        %v2120 = vunpack.c.l.b16 %v1832
        %v2121 = vunpack.c.l.b16 %v1833
        %v2122 = vunpack.c.l.b16 %v1834
        %v2123 = vunpack.c.l.b16 %v1835
        %v2124 = vunpack.c.l.b16 %v1836
        %v2125 = vunpack.c.l.b16 %v1837
        %v2126 = vunpack.c.l.b16 %v1838
        %v2127 = vunpack.c.l.b16 %v1839
        %v2128 = vunpack.c.l.b16 %v1840
        %v2129 = vunpack.c.l.b16 %v1841
        %v2130 = vunpack.c.l.b16 %v1842
        %v2131 = vunpack.c.l.b16 %v1843
        %v2132 = vunpack.c.l.b16 %v1844
        %v2133 = vunpack.c.l.b16 %v1845
        %v2134 = vunpack.c.l.b16 %v1846
        %v2135 = vunpack.c.l.b16 %v1847
        %v2136 = vunpack.c.l.b16 %v1848
        %v2137 = vunpack.c.l.b16 %v1849
        %v2138 = vunpack.c.l.b16 %v1850
        %v2139 = vunpack.c.l.b16 %v1851
        %v2140 = vunpack.c.l.b16 %v1852
        %v2141 = vunpack.c.l.b16 %v1853
        %v2142 = vunpack.c.l.b16 %v1854
        %v2143 = vunpack.c.l.b16 %v1855
        %v2144 = vunpack.c.l.b16 %v1856
        %v2145 = vunpack.c.l.b16 %v1857
        %v2146 = vunpack.c.l.b16 %v1858
        %v2147 = vunpack.c.l.b16 %v1859
        %v2148 = vunpack.c.l.b16 %v1860
        %v2149 = vunpack.c.l.b16 %v1861
        %v2150 = vunpack.c.l.b16 %v1862
        %v2151 = vunpack.c.l.b16 %v1863
        %v2152 = vunpack.c.l.b16 %v1864
        %v2153 = vunpack.c.l.b16 %v1865
        %v2154 = vunpack.c.l.b16 %v1866
        %v2155 = vunpack.c.l.b16 %v1867
        %v2156 = vpack.c.b16 %v2013, %v2012
        %v2157 = vpack.c.b16 %v2015, %v2014
        %v2158 = vpack.c.b16 %v2017, %v2016
        %v2159 = vpack.c.b16 %v2019, %v2018
        %v2160 = vpack.c.b16 %v2021, %v2020
        %v2161 = vpack.c.b16 %v2023, %v2022
        %v2162 = vpack.c.b16 %v2025, %v2024
        %v2163 = vpack.c.b16 %v2027, %v2026
        %v2164 = vpack.c.b16 %v2029, %v2028
        %v2165 = vpack.c.b16 %v2031, %v2030
        %v2166 = vpack.c.b16 %v2033, %v2032
        %v2167 = vpack.c.b16 %v2035, %v2034
        %v2168 = vpack.c.b16 %v2037, %v2036
        %v2169 = vpack.c.b16 %v2039, %v2038
        %v2170 = vpack.c.b16 %v2041, %v2040
        %v2171 = vpack.c.b16 %v2043, %v2042
        %v2172 = vpack.c.b16 %v2045, %v2044
        %v2173 = vpack.c.b16 %v2047, %v2046
        %v2174 = vpack.c.b16 %v2049, %v2048
        %v2175 = vpack.c.b16 %v2051, %v2050
        %v2176 = vpack.c.b16 %v2053, %v2052
        %v2177 = vpack.c.b16 %v2055, %v2054
        %v2178 = vpack.c.b16 %v2057, %v2056
        %v2179 = vpack.c.b16 %v2059, %v2058
        %v2180 = vpack.c.b16 %v2061, %v2060
        %v2181 = vpack.c.b16 %v2063, %v2062
        %v2182 = vpack.c.b16 %v2065, %v2064
        %v2183 = vpack.c.b16 %v2067, %v2066
        %v2184 = vpack.c.b16 %v2069, %v2068
        %v2185 = vpack.c.b16 %v2071, %v2070
        %v2186 = vpack.c.b16 %v2073, %v2072
        %v2187 = vpack.c.b16 %v2075, %v2074
        %v2188 = vpack.c.b16 %v2077, %v2076
        %v2189 = vpack.c.b16 %v2079, %v2078
        %v2190 = vpack.c.b16 %v2081, %v2080
        %v2191 = vpack.c.b16 %v2083, %v2082
        %v2192 = vpack.c.b16 %v2085, %v2084
        %v2193 = vpack.c.b16 %v2087, %v2086
        %v2194 = vpack.c.b16 %v2089, %v2088
        %v2195 = vpack.c.b16 %v2091, %v2090
        %v2196 = vpack.c.b16 %v2093, %v2092
        %v2197 = vpack.c.b16 %v2095, %v2094
        %v2198 = vpack.c.b16 %v2097, %v2096
        %v2199 = vpack.c.b16 %v2099, %v2098
        %v2200 = vpack.c.b16 %v2101, %v2100
        %v2201 = vpack.c.b16 %v2103, %v2102
        %v2202 = vpack.c.b16 %v2105, %v2104
        %v2203 = vpack.c.b16 %v2107, %v2106
        %v2204 = vpack.c.b16 %v2109, %v2108
        %v2205 = vpack.c.b16 %v2111, %v2110
        %v2206 = vpack.c.b16 %v2113, %v2112
        %v2207 = vpack.c.b16 %v2115, %v2114
        %v2208 = vpack.c.b16 %v2117, %v2116
        %v2209 = vpack.c.b16 %v2119, %v2118
        %v2210 = vpack.c.b16 %v2121, %v2120
        %v2211 = vpack.c.b16 %v2123, %v2122
        %v2212 = vpack.c.b16 %v2125, %v2124
        %v2213 = vpack.c.b16 %v2127, %v2126
        %v2214 = vpack.c.b16 %v2129, %v2128
        %v2215 = vpack.c.b16 %v2131, %v2130
        %v2216 = vpack.c.b16 %v2133, %v2132
        %v2217 = vpack.c.b16 %v2135, %v2134
        %v2218 = vpack.c.b16 %v2137, %v2136
        %v2219 = vpack.c.b16 %v2139, %v2138
        %v2220 = vpack.c.b16 %v2141, %v2140
        %v2221 = vpack.c.b16 %v2143, %v2142
        %v2222 = vpack.c.b16 %v2145, %v2144
        %v2223 = vpack.c.b16 %v2147, %v2146
        %v2224 = vpack.c.b16 %v2149, %v2148
        %v2225 = vpack.c.b16 %v2151, %v2150
        %v2226 = vpack.c.b16 %v2153, %v2152
        %v2227 = vpack.c.b16 %v2155, %v2154
        %2300 = vmatprep.subr.bf16.mxu0 0
        %2301 = vmatpush1.bf16.msra.mxu0 %v2163
        %2302 = vmatprep.subr.bf16.mxu0 0
        %2303 = vmatpush1.bf16.msra.mxu0 %v2162
        %2304 = vmatprep.subr.bf16.mxu0 0
        %2305 = vmatpush1.bf16.msra.mxu0 %v2161
        %2306 = vmatprep.subr.bf16.mxu0 0
        %2307 = vmatpush1.bf16.msra.mxu0 %v2160
        %2308 = vmatprep.subr.bf16.mxu0 0
        %2309 = vmatpush1.bf16.msra.mxu0 %v2159
        %2310 = vmatprep.subr.bf16.mxu0 0
        %2311 = vmatpush1.bf16.msra.mxu0 %v2158
        %2312 = vmatprep.subr.bf16.mxu0 0
        %2313 = vmatpush1.bf16.msra.mxu0 %v2157
        %2314 = vmatprep.subr.bf16.mxu0 0
        %2315 = vmatpush1.bf16.msra.mxu0 %v2156
        %2316 = vmatprep.subr.bf16.mxu0 0
        %2317 = vmatpush2.bf16.msra.mxu0 %v2171
        %2318 = vmatprep.subr.bf16.mxu0 0
        %2319 = vmatpush2.bf16.msra.mxu0 %v2170
        %2320 = vmatprep.subr.bf16.mxu0 0
        %2321 = vmatpush2.bf16.msra.mxu0 %v2169
        %2322 = vmatprep.subr.bf16.mxu0 0
        %2323 = vmatpush2.bf16.msra.mxu0 %v2168
        %2324 = vmatprep.subr.bf16.mxu0 0
        %2325 = vmatpush2.bf16.msra.mxu0 %v2167
        %2326 = vmatprep.subr.bf16.mxu0 0
        %2327 = vmatpush2.bf16.msra.mxu0 %v2166
        %2328 = vmatprep.subr.bf16.mxu0 0
        %2329 = vmatpush2.bf16.msra.mxu0 %v2165
        %2330 = vmatprep.subr.bf16.mxu0 0
        %2331 = vmatpush2.bf16.msra.mxu0 %v2164
        %2332 = vmatprep.mubr.bf16.mxu0 %v1392
        %2333 = vmatmul.mubr.bf16.gmra.mxu0 %v1344
        %v2334 = vpop.f32.mrf.mxu0
        %v2335 = vadd.f32 0.0, %v2334
        %v2336 = vpop.f32.mrf.mxu0
        %v2337 = vpop.f32.mrf.mxu0
        %v2338 = vadd.f32 0.0, %v2337
        %v2339 = vpop.f32.mrf.mxu0
        %2340 = vmatprep.mubr.bf16.mxu0 %v1404
        %2341 = vmatmul.mubr.bf16.gmra.mxu0 %v1346
        %v2342 = vpop.f32.mrf.mxu0
        %v2343 = vadd.f32 0.0, %v2342
        %v2344 = vpop.f32.mrf.mxu0
        %v2345 = vpop.f32.mrf.mxu0
        %v2346 = vadd.f32 0.0, %v2345
        %v2347 = vpop.f32.mrf.mxu0
        %2348 = vmatprep.mubr.bf16.mxu0 %v1416
        %2349 = vmatmul.mubr.bf16.gmra.mxu0 %v1348
        %v2350 = vpop.f32.mrf.mxu0
        %v2351 = vadd.f32 0.0, %v2350
        %v2352 = vpop.f32.mrf.mxu0
        %v2353 = vpop.f32.mrf.mxu0
        %v2354 = vadd.f32 0.0, %v2353
        %v2355 = vpop.f32.mrf.mxu0
        %2356 = vmatprep.mubr.bf16.mxu0 %v1428
        %2357 = vmatmul.mubr.bf16.gmra.mxu0 %v1350
        %v2358 = vpop.f32.mrf.mxu0
        %v2359 = vadd.f32 0.0, %v2358
        %v2360 = vpop.f32.mrf.mxu0
        %v2361 = vpop.f32.mrf.mxu0
        %v2362 = vadd.f32 0.0, %v2361
        %v2363 = vpop.f32.mrf.mxu0
        %2364 = vmatprep.mubr.bf16.mxu0 %v1440
        %2365 = vmatmul.mubr.bf16.gmra.mxu0 %v1352
        %v2366 = vpop.f32.mrf.mxu0
        %v2367 = vadd.f32 0.0, %v2366
        %v2368 = vpop.f32.mrf.mxu0
        %v2369 = vpop.f32.mrf.mxu0
        %v2370 = vadd.f32 0.0, %v2369
        %v2371 = vpop.f32.mrf.mxu0
        %2372 = vmatprep.mubr.bf16.mxu0 %v1452
        %2373 = vmatmul.mubr.bf16.gmra.mxu0 %v1354
        %v2374 = vpop.f32.mrf.mxu0
        %v2375 = vadd.f32 0.0, %v2374
        %v2376 = vpop.f32.mrf.mxu0
        %v2377 = vpop.f32.mrf.mxu0
        %v2378 = vadd.f32 0.0, %v2377
        %v2379 = vpop.f32.mrf.mxu0
        %2380 = vmatprep.mubr.bf16.mxu0 %v1464
        %2381 = vmatmul.mubr.bf16.gmra.mxu0 %v1356
        %v2382 = vpop.f32.mrf.mxu0
        %v2383 = vadd.f32 0.0, %v2382
        %v2384 = vpop.f32.mrf.mxu0
        %v2385 = vpop.f32.mrf.mxu0
        %v2386 = vadd.f32 0.0, %v2385
        %v2387 = vpop.f32.mrf.mxu0
        %2388 = vmatprep.mubr.bf16.mxu0 %v1476
        %2389 = vmatmul.mubr.bf16.gmra.mxu0 %v1358
        %v2390 = vpop.f32.mrf.mxu0
        %v2391 = vadd.f32 0.0, %v2390
        %v2392 = vpop.f32.mrf.mxu0
        %v2393 = vpop.f32.mrf.mxu0
        %v2394 = vadd.f32 0.0, %v2393
        %v2395 = vpop.f32.mrf.mxu0
        %2396 = vmatprep.mubr.bf16.mxu0 %v1488
        %2397 = vmatmul.mubr.bf16.gmra.mxu0 %v1360
        %v2398 = vpop.f32.mrf.mxu0
        %v2399 = vadd.f32 0.0, %v2398
        %v2400 = vpop.f32.mrf.mxu0
        %v2401 = vpop.f32.mrf.mxu0
        %v2402 = vadd.f32 0.0, %v2401
        %v2403 = vpop.f32.mrf.mxu0
        %2404 = vmatprep.mubr.bf16.mxu0 %v1500
        %2405 = vmatmul.mubr.bf16.gmra.mxu0 %v1362
        %v2406 = vpop.f32.mrf.mxu0
        %v2407 = vadd.f32 0.0, %v2406
        %v2408 = vpop.f32.mrf.mxu0
        %v2409 = vpop.f32.mrf.mxu0
        %v2410 = vadd.f32 0.0, %v2409
        %v2411 = vpop.f32.mrf.mxu0
        %2412 = vmatprep.mubr.bf16.mxu0 %v1512
        %2413 = vmatmul.mubr.bf16.gmra.mxu0 %v1364
        %v2414 = vpop.f32.mrf.mxu0
        %v2415 = vadd.f32 0.0, %v2414
        %v2416 = vpop.f32.mrf.mxu0
        %v2417 = vpop.f32.mrf.mxu0
        %v2418 = vadd.f32 0.0, %v2417
        %v2419 = vpop.f32.mrf.mxu0
        %2420 = vmatprep.mubr.bf16.mxu0 %v1524
        %2421 = vmatmul.mubr.bf16.gmra.mxu0 %v1366
        %v2422 = vpop.f32.mrf.mxu0
        %v2423 = vadd.f32 0.0, %v2422
        %v2424 = vpop.f32.mrf.mxu0
        %v2425 = vpop.f32.mrf.mxu0
        %v2426 = vadd.f32 0.0, %v2425
        %v2427 = vpop.f32.mrf.mxu0
        %2428 = vmatprep.mubr.bf16.mxu0 %v1536
        %2429 = vmatmul.mubr.bf16.gmra.mxu0 %v1368
        %v2430 = vpop.f32.mrf.mxu0
        %v2431 = vadd.f32 0.0, %v2430
        %v2432 = vpop.f32.mrf.mxu0
        %v2433 = vpop.f32.mrf.mxu0
        %v2434 = vadd.f32 0.0, %v2433
        %v2435 = vpop.f32.mrf.mxu0
        %2436 = vmatprep.mubr.bf16.mxu0 %v1548
        %2437 = vmatmul.mubr.bf16.gmra.mxu0 %v1370
        %v2438 = vpop.f32.mrf.mxu0
        %v2439 = vadd.f32 0.0, %v2438
        %v2440 = vpop.f32.mrf.mxu0
        %v2441 = vpop.f32.mrf.mxu0
        %v2442 = vadd.f32 0.0, %v2441
        %v2443 = vpop.f32.mrf.mxu0
        %2444 = vmatprep.mubr.bf16.mxu0 %v1560
        %2445 = vmatmul.mubr.bf16.gmra.mxu0 %v1372
        %v2446 = vpop.f32.mrf.mxu0
        %v2447 = vadd.f32 0.0, %v2446
        %v2448 = vpop.f32.mrf.mxu0
        %v2449 = vpop.f32.mrf.mxu0
        %v2450 = vadd.f32 0.0, %v2449
        %v2451 = vpop.f32.mrf.mxu0
        %2452 = vmatprep.mubr.bf16.mxu0 %v1572
        %2453 = vmatmul.mubr.bf16.gmra.mxu0 %v1374
        %v2454 = vpop.f32.mrf.mxu0
        %v2455 = vadd.f32 0.0, %v2454
        %v2456 = vpop.f32.mrf.mxu0
        %v2457 = vpop.f32.mrf.mxu0
        %v2458 = vadd.f32 0.0, %v2457
        %v2459 = vpop.f32.mrf.mxu0
        %2460 = vdwg.mxu0
        %2461 = vmatprep.subr.bf16.mxu0 0
        %2462 = vmatpush1.bf16.msra.mxu0 %v2179
        %2463 = vmatprep.subr.bf16.mxu0 0
        %2464 = vmatpush1.bf16.msra.mxu0 %v2178
        %2465 = vmatprep.subr.bf16.mxu0 0
        %2466 = vmatpush1.bf16.msra.mxu0 %v2177
        %2467 = vmatprep.subr.bf16.mxu0 0
        %2468 = vmatpush1.bf16.msra.mxu0 %v2176
        %2469 = vmatprep.subr.bf16.mxu0 0
        %2470 = vmatpush1.bf16.msra.mxu0 %v2175
        %2471 = vmatprep.subr.bf16.mxu0 0
        %2472 = vmatpush1.bf16.msra.mxu0 %v2174
        %2473 = vmatprep.subr.bf16.mxu0 0
        %2474 = vmatpush1.bf16.msra.mxu0 %v2173
        %2475 = vmatprep.subr.bf16.mxu0 0
        %2476 = vmatpush1.bf16.msra.mxu0 %v2172
        %2477 = vmatprep.subr.bf16.mxu0 0
        %2478 = vmatpush2.bf16.msra.mxu0 %v2187
        %2479 = vmatprep.subr.bf16.mxu0 0
        %2480 = vmatpush2.bf16.msra.mxu0 %v2186
        %2481 = vmatprep.subr.bf16.mxu0 0
        %2482 = vmatpush2.bf16.msra.mxu0 %v2185
        %2483 = vmatprep.subr.bf16.mxu0 0
        %2484 = vmatpush2.bf16.msra.mxu0 %v2184
        %2485 = vmatprep.subr.bf16.mxu0 0
        %2486 = vmatpush2.bf16.msra.mxu0 %v2183
        %2487 = vmatprep.subr.bf16.mxu0 0
        %2488 = vmatpush2.bf16.msra.mxu0 %v2182
        %2489 = vmatprep.subr.bf16.mxu0 0
        %2490 = vmatpush2.bf16.msra.mxu0 %v2181
        %2491 = vmatprep.subr.bf16.mxu0 0
        %2492 = vmatpush2.bf16.msra.mxu0 %v2180
        %2493 = vmatprep.mubr.bf16.mxu0 %v1346
        %2494 = vmatmul.mubr.bf16.gmra.mxu0 %v1624
        %v2495 = vpop.f32.mrf.mxu0
        %v2496 = vadd.f32 %v2335, %v2495
        %v2497 = vpop.f32.mrf.mxu0
        %v2498 = vpop.f32.mrf.mxu0
        %v2499 = vadd.f32 %v2338, %v2498
        %v2500 = vpop.f32.mrf.mxu0
        %2501 = vmatprep.mubr.bf16.mxu0 %v1348
        %2502 = vmatmul.mubr.bf16.gmra.mxu0 %v1627
        %v2503 = vpop.f32.mrf.mxu0
        %v2504 = vadd.f32 %v2343, %v2503
        %v2505 = vpop.f32.mrf.mxu0
        %v2506 = vpop.f32.mrf.mxu0
        %v2507 = vadd.f32 %v2346, %v2506
        %v2508 = vpop.f32.mrf.mxu0
        %2509 = vmatprep.mubr.bf16.mxu0 %v1350
        %2510 = vmatmul.mubr.bf16.gmra.mxu0 %v1630
        %v2511 = vpop.f32.mrf.mxu0
        %v2512 = vadd.f32 %v2351, %v2511
        %v2513 = vpop.f32.mrf.mxu0
        %v2514 = vpop.f32.mrf.mxu0
        %v2515 = vadd.f32 %v2354, %v2514
        %v2516 = vpop.f32.mrf.mxu0
        %2517 = vmatprep.mubr.bf16.mxu0 %v1352
        %2518 = vmatmul.mubr.bf16.gmra.mxu0 %v1633
        %v2519 = vpop.f32.mrf.mxu0
        %v2520 = vadd.f32 %v2359, %v2519
        %v2521 = vpop.f32.mrf.mxu0
        %v2522 = vpop.f32.mrf.mxu0
        %v2523 = vadd.f32 %v2362, %v2522
        %v2524 = vpop.f32.mrf.mxu0
        %2525 = vmatprep.mubr.bf16.mxu0 %v1354
        %2526 = vmatmul.mubr.bf16.gmra.mxu0 %v1636
        %v2527 = vpop.f32.mrf.mxu0
        %v2528 = vadd.f32 %v2367, %v2527
        %v2529 = vpop.f32.mrf.mxu0
        %v2530 = vpop.f32.mrf.mxu0
        %v2531 = vadd.f32 %v2370, %v2530
        %v2532 = vpop.f32.mrf.mxu0
        %2533 = vmatprep.mubr.bf16.mxu0 %v1356
        %2534 = vmatmul.mubr.bf16.gmra.mxu0 %v1639
        %v2535 = vpop.f32.mrf.mxu0
        %v2536 = vadd.f32 %v2375, %v2535
        %v2537 = vpop.f32.mrf.mxu0
        %v2538 = vpop.f32.mrf.mxu0
        %v2539 = vadd.f32 %v2378, %v2538
        %v2540 = vpop.f32.mrf.mxu0
        %2541 = vmatprep.mubr.bf16.mxu0 %v1358
        %2542 = vmatmul.mubr.bf16.gmra.mxu0 %v1642
        %v2543 = vpop.f32.mrf.mxu0
        %v2544 = vadd.f32 %v2383, %v2543
        %v2545 = vpop.f32.mrf.mxu0
        %v2546 = vpop.f32.mrf.mxu0
        %v2547 = vadd.f32 %v2386, %v2546
        %v2548 = vpop.f32.mrf.mxu0
        %2549 = vmatprep.mubr.bf16.mxu0 %v1360
        %2550 = vmatmul.mubr.bf16.gmra.mxu0 %v1645
        %v2551 = vpop.f32.mrf.mxu0
        %v2552 = vadd.f32 %v2391, %v2551
        %v2553 = vpop.f32.mrf.mxu0
        %v2554 = vpop.f32.mrf.mxu0
        %v2555 = vadd.f32 %v2394, %v2554
        %v2556 = vpop.f32.mrf.mxu0
        %2557 = vmatprep.mubr.bf16.mxu0 %v1362
        %2558 = vmatmul.mubr.bf16.gmra.mxu0 %v1648
        %v2559 = vpop.f32.mrf.mxu0
        %v2560 = vadd.f32 %v2399, %v2559
        %v2561 = vpop.f32.mrf.mxu0
        %v2562 = vpop.f32.mrf.mxu0
        %v2563 = vadd.f32 %v2402, %v2562
        %v2564 = vpop.f32.mrf.mxu0
        %2565 = vmatprep.mubr.bf16.mxu0 %v1364
        %2566 = vmatmul.mubr.bf16.gmra.mxu0 %v1651
        %v2567 = vpop.f32.mrf.mxu0
        %v2568 = vadd.f32 %v2407, %v2567
        %v2569 = vpop.f32.mrf.mxu0
        %v2570 = vpop.f32.mrf.mxu0
        %v2571 = vadd.f32 %v2410, %v2570
        %v2572 = vpop.f32.mrf.mxu0
        %2573 = vmatprep.mubr.bf16.mxu0 %v1366
        %2574 = vmatmul.mubr.bf16.gmra.mxu0 %v1654
        %v2575 = vpop.f32.mrf.mxu0
        %v2576 = vadd.f32 %v2415, %v2575
        %v2577 = vpop.f32.mrf.mxu0
        %v2578 = vpop.f32.mrf.mxu0
        %v2579 = vadd.f32 %v2418, %v2578
        %v2580 = vpop.f32.mrf.mxu0
        %2581 = vmatprep.mubr.bf16.mxu0 %v1368
        %2582 = vmatmul.mubr.bf16.gmra.mxu0 %v1657
        %v2583 = vpop.f32.mrf.mxu0
        %v2584 = vadd.f32 %v2423, %v2583
        %v2585 = vpop.f32.mrf.mxu0
        %v2586 = vpop.f32.mrf.mxu0
        %v2587 = vadd.f32 %v2426, %v2586
        %v2588 = vpop.f32.mrf.mxu0
        %2589 = vmatprep.mubr.bf16.mxu0 %v1370
        %2590 = vmatmul.mubr.bf16.gmra.mxu0 %v1660
        %v2591 = vpop.f32.mrf.mxu0
        %v2592 = vadd.f32 %v2431, %v2591
        %v2593 = vpop.f32.mrf.mxu0
        %v2594 = vpop.f32.mrf.mxu0
        %v2595 = vadd.f32 %v2434, %v2594
        %v2596 = vpop.f32.mrf.mxu0
        %2597 = vmatprep.mubr.bf16.mxu0 %v1372
        %2598 = vmatmul.mubr.bf16.gmra.mxu0 %v1663
        %v2599 = vpop.f32.mrf.mxu0
        %v2600 = vadd.f32 %v2439, %v2599
        %v2601 = vpop.f32.mrf.mxu0
        %v2602 = vpop.f32.mrf.mxu0
        %v2603 = vadd.f32 %v2442, %v2602
        %v2604 = vpop.f32.mrf.mxu0
        %2605 = vmatprep.mubr.bf16.mxu0 %v1374
        %2606 = vmatmul.mubr.bf16.gmra.mxu0 %v1666
        %v2607 = vpop.f32.mrf.mxu0
        %v2608 = vadd.f32 %v2447, %v2607
        %v2609 = vpop.f32.mrf.mxu0
        %v2610 = vpop.f32.mrf.mxu0
        %v2611 = vadd.f32 %v2450, %v2610
        %v2612 = vpop.f32.mrf.mxu0
        %2613 = vmatprep.mubr.bf16.mxu0 %v1376
        %2614 = vmatmul.mubr.bf16.gmra.mxu0 %v1669
        %v2615 = vpop.f32.mrf.mxu0
        %v2616 = vadd.f32 %v2455, %v2615
        %v2617 = vpop.f32.mrf.mxu0
        %v2618 = vpop.f32.mrf.mxu0
        %v2619 = vadd.f32 %v2458, %v2618
        %v2620 = vpop.f32.mrf.mxu0
        %2621 = vdwg.mxu0
        %2622 = vmatprep.subr.bf16.mxu0 0
        %2623 = vmatpush1.bf16.msra.mxu0 %v2195
        %2624 = vmatprep.subr.bf16.mxu0 0
        %2625 = vmatpush1.bf16.msra.mxu0 %v2194
        %2626 = vmatprep.subr.bf16.mxu0 0
        %2627 = vmatpush1.bf16.msra.mxu0 %v2193
        %2628 = vmatprep.subr.bf16.mxu0 0
        %2629 = vmatpush1.bf16.msra.mxu0 %v2192
        %2630 = vmatprep.subr.bf16.mxu0 0
        %2631 = vmatpush1.bf16.msra.mxu0 %v2191
        %2632 = vmatprep.subr.bf16.mxu0 0
        %2633 = vmatpush1.bf16.msra.mxu0 %v2190
        %2634 = vmatprep.subr.bf16.mxu0 0
        %2635 = vmatpush1.bf16.msra.mxu0 %v2189
        %2636 = vmatprep.subr.bf16.mxu0 0
        %2637 = vmatpush1.bf16.msra.mxu0 %v2188
        %2638 = vmatprep.subr.bf16.mxu0 0
        %2639 = vmatpush2.bf16.msra.mxu0 %v2203
        %2640 = vmatprep.subr.bf16.mxu0 0
        %2641 = vmatpush2.bf16.msra.mxu0 %v2202
        %2642 = vmatprep.subr.bf16.mxu0 0
        %2643 = vmatpush2.bf16.msra.mxu0 %v2201
        %2644 = vmatprep.subr.bf16.mxu0 0
        %2645 = vmatpush2.bf16.msra.mxu0 %v2200
        %2646 = vmatprep.subr.bf16.mxu0 0
        %2647 = vmatpush2.bf16.msra.mxu0 %v2199
        %2648 = vmatprep.subr.bf16.mxu0 0
        %2649 = vmatpush2.bf16.msra.mxu0 %v2198
        %2650 = vmatprep.subr.bf16.mxu0 0
        %2651 = vmatpush2.bf16.msra.mxu0 %v2197
        %2652 = vmatprep.subr.bf16.mxu0 0
        %2653 = vmatpush2.bf16.msra.mxu0 %v2196
        %2654 = vmatprep.mubr.bf16.mxu0 %v1627
        %2655 = vmatmul.mubr.bf16.gmra.mxu0 %v1404
        %v2656 = vpop.f32.mrf.mxu0
        %v2657 = vadd.f32 %v2496, %v2656
        %v2658 = vpop.f32.mrf.mxu0
        %v2659 = vpop.f32.mrf.mxu0
        %v2660 = vadd.f32 %v2499, %v2659
        %v2661 = vpop.f32.mrf.mxu0
        %2662 = vmatprep.mubr.bf16.mxu0 %v1630
        %2663 = vmatmul.mubr.bf16.gmra.mxu0 %v1416
        %v2664 = vpop.f32.mrf.mxu0
        %v2665 = vadd.f32 %v2504, %v2664
        %v2666 = vpop.f32.mrf.mxu0
        %v2667 = vpop.f32.mrf.mxu0
        %v2668 = vadd.f32 %v2507, %v2667
        %v2669 = vpop.f32.mrf.mxu0
        %2670 = vmatprep.mubr.bf16.mxu0 %v1633
        %2671 = vmatmul.mubr.bf16.gmra.mxu0 %v1428
        %v2672 = vpop.f32.mrf.mxu0
        %v2673 = vadd.f32 %v2512, %v2672
        %v2674 = vpop.f32.mrf.mxu0
        %v2675 = vpop.f32.mrf.mxu0
        %v2676 = vadd.f32 %v2515, %v2675
        %v2677 = vpop.f32.mrf.mxu0
        %2678 = vmatprep.mubr.bf16.mxu0 %v1636
        %2679 = vmatmul.mubr.bf16.gmra.mxu0 %v1440
        %v2680 = vpop.f32.mrf.mxu0
        %v2681 = vadd.f32 %v2520, %v2680
        %v2682 = vpop.f32.mrf.mxu0
        %v2683 = vpop.f32.mrf.mxu0
        %v2684 = vadd.f32 %v2523, %v2683
        %v2685 = vpop.f32.mrf.mxu0
        %2686 = vmatprep.mubr.bf16.mxu0 %v1639
        %2687 = vmatmul.mubr.bf16.gmra.mxu0 %v1452
        %v2688 = vpop.f32.mrf.mxu0
        %v2689 = vadd.f32 %v2528, %v2688
        %v2690 = vpop.f32.mrf.mxu0
        %v2691 = vpop.f32.mrf.mxu0
        %v2692 = vadd.f32 %v2531, %v2691
        %v2693 = vpop.f32.mrf.mxu0
        %2694 = vmatprep.mubr.bf16.mxu0 %v1642
        %2695 = vmatmul.mubr.bf16.gmra.mxu0 %v1464
        %v2696 = vpop.f32.mrf.mxu0
        %v2697 = vadd.f32 %v2536, %v2696
        %v2698 = vpop.f32.mrf.mxu0
        %v2699 = vpop.f32.mrf.mxu0
        %v2700 = vadd.f32 %v2539, %v2699
        %v2701 = vpop.f32.mrf.mxu0
        %2702 = vmatprep.mubr.bf16.mxu0 %v1645
        %2703 = vmatmul.mubr.bf16.gmra.mxu0 %v1476
        %v2704 = vpop.f32.mrf.mxu0
        %v2705 = vadd.f32 %v2544, %v2704
        %v2706 = vpop.f32.mrf.mxu0
        %v2707 = vpop.f32.mrf.mxu0
        %v2708 = vadd.f32 %v2547, %v2707
        %v2709 = vpop.f32.mrf.mxu0
        %2710 = vmatprep.mubr.bf16.mxu0 %v1648
        %2711 = vmatmul.mubr.bf16.gmra.mxu0 %v1488
        %v2712 = vpop.f32.mrf.mxu0
        %v2713 = vadd.f32 %v2552, %v2712
        %v2714 = vpop.f32.mrf.mxu0
        %v2715 = vpop.f32.mrf.mxu0
        %v2716 = vadd.f32 %v2555, %v2715
        %v2717 = vpop.f32.mrf.mxu0
        %2718 = vmatprep.mubr.bf16.mxu0 %v1651
        %2719 = vmatmul.mubr.bf16.gmra.mxu0 %v1500
        %v2720 = vpop.f32.mrf.mxu0
        %v2721 = vadd.f32 %v2560, %v2720
        %v2722 = vpop.f32.mrf.mxu0
        %v2723 = vpop.f32.mrf.mxu0
        %v2724 = vadd.f32 %v2563, %v2723
        %v2725 = vpop.f32.mrf.mxu0
        %2726 = vmatprep.mubr.bf16.mxu0 %v1654
        %2727 = vmatmul.mubr.bf16.gmra.mxu0 %v1512
        %v2728 = vpop.f32.mrf.mxu0
        %v2729 = vadd.f32 %v2568, %v2728
        %v2730 = vpop.f32.mrf.mxu0
        %v2731 = vpop.f32.mrf.mxu0
        %v2732 = vadd.f32 %v2571, %v2731
        %v2733 = vpop.f32.mrf.mxu0
        %2734 = vmatprep.mubr.bf16.mxu0 %v1657
        %2735 = vmatmul.mubr.bf16.gmra.mxu0 %v1524
        %v2736 = vpop.f32.mrf.mxu0
        %v2737 = vadd.f32 %v2576, %v2736
        %v2738 = vpop.f32.mrf.mxu0
        %v2739 = vpop.f32.mrf.mxu0
        %v2740 = vadd.f32 %v2579, %v2739
        %v2741 = vpop.f32.mrf.mxu0
        %2742 = vmatprep.mubr.bf16.mxu0 %v1660
        %2743 = vmatmul.mubr.bf16.gmra.mxu0 %v1536
        %v2744 = vpop.f32.mrf.mxu0
        %v2745 = vadd.f32 %v2584, %v2744
        %v2746 = vpop.f32.mrf.mxu0
        %v2747 = vpop.f32.mrf.mxu0
        %v2748 = vadd.f32 %v2587, %v2747
        %v2749 = vpop.f32.mrf.mxu0
        %2750 = vmatprep.mubr.bf16.mxu0 %v1663
        %2751 = vmatmul.mubr.bf16.gmra.mxu0 %v1548
        %v2752 = vpop.f32.mrf.mxu0
        %v2753 = vadd.f32 %v2592, %v2752
        %v2754 = vpop.f32.mrf.mxu0
        %v2755 = vpop.f32.mrf.mxu0
        %v2756 = vadd.f32 %v2595, %v2755
        %v2757 = vpop.f32.mrf.mxu0
        %2758 = vmatprep.mubr.bf16.mxu0 %v1666
        %2759 = vmatmul.mubr.bf16.gmra.mxu0 %v1560
        %v2760 = vpop.f32.mrf.mxu0
        %v2761 = vadd.f32 %v2600, %v2760
        %v2762 = vpop.f32.mrf.mxu0
        %v2763 = vpop.f32.mrf.mxu0
        %v2764 = vadd.f32 %v2603, %v2763
        %v2765 = vpop.f32.mrf.mxu0
        %2766 = vmatprep.mubr.bf16.mxu0 %v1669
        %2767 = vmatmul.mubr.bf16.gmra.mxu0 %v1572
        %v2768 = vpop.f32.mrf.mxu0
        %v2769 = vadd.f32 %v2608, %v2768
        %v2770 = vpop.f32.mrf.mxu0
        %v2771 = vpop.f32.mrf.mxu0
        %v2772 = vadd.f32 %v2611, %v2771
        %v2773 = vpop.f32.mrf.mxu0
        %2774 = vmatprep.mubr.bf16.mxu0 %v1703
        %2775 = vmatmul.mubr.bf16.gmra.mxu0 %v1697
        %v2776 = vpop.f32.mrf.mxu0
        %v2777 = vadd.f32 %v2616, %v2776
        %v2778 = vpop.f32.mrf.mxu0
        %v2779 = vpop.f32.mrf.mxu0
        %v2780 = vadd.f32 %v2619, %v2779
        %v2781 = vpop.f32.mrf.mxu0
        %2782 = vdwg.mxu0
        %2783 = vmatprep.subr.bf16.mxu0 0
        %2784 = vmatpush1.bf16.msra.mxu0 %v2211
        %2785 = vmatprep.subr.bf16.mxu0 0
        %2786 = vmatpush1.bf16.msra.mxu0 %v2210
        %2787 = vmatprep.subr.bf16.mxu0 0
        %2788 = vmatpush1.bf16.msra.mxu0 %v2209
        %2789 = vmatprep.subr.bf16.mxu0 0
        %2790 = vmatpush1.bf16.msra.mxu0 %v2208
        %2791 = vmatprep.subr.bf16.mxu0 0
        %2792 = vmatpush1.bf16.msra.mxu0 %v2207
        %2793 = vmatprep.subr.bf16.mxu0 0
        %2794 = vmatpush1.bf16.msra.mxu0 %v2206
        %2795 = vmatprep.subr.bf16.mxu0 0
        %2796 = vmatpush1.bf16.msra.mxu0 %v2205
        %2797 = vmatprep.subr.bf16.mxu0 0
        %2798 = vmatpush1.bf16.msra.mxu0 %v2204
        %2799 = vmatprep.subr.bf16.mxu0 0
        %2800 = vmatpush2.bf16.msra.mxu0 %v2219
        %2801 = vmatprep.subr.bf16.mxu0 0
        %2802 = vmatpush2.bf16.msra.mxu0 %v2218
        %2803 = vmatprep.subr.bf16.mxu0 0
        %2804 = vmatpush2.bf16.msra.mxu0 %v2217
        %2805 = vmatprep.subr.bf16.mxu0 0
        %2806 = vmatpush2.bf16.msra.mxu0 %v2216
        %2807 = vmatprep.subr.bf16.mxu0 0
        %2808 = vmatpush2.bf16.msra.mxu0 %v2215
        %2809 = vmatprep.subr.bf16.mxu0 0
        %2810 = vmatpush2.bf16.msra.mxu0 %v2214
        %2811 = vmatprep.subr.bf16.mxu0 0
        %2812 = vmatpush2.bf16.msra.mxu0 %v2213
        %2813 = vmatprep.subr.bf16.mxu0 0
        %2814 = vmatpush2.bf16.msra.mxu0 %v2212
        %2815 = vmatprep.mubr.bf16.mxu0 %v1416
        %2816 = vmatmul.mubr.bf16.gmra.mxu0 %v1348
        %v2817 = vpop.f32.mrf.mxu0
        %v2818 = vadd.f32 %v2657, %v2817
        %v2819 = vpop.f32.mrf.mxu0
        %v2820 = vpop.f32.mrf.mxu0
        %v2821 = vadd.f32 %v2660, %v2820
        %v2822 = vpop.f32.mrf.mxu0
        %2823 = vmatprep.mubr.bf16.mxu0 %v1428
        %2824 = vmatmul.mubr.bf16.gmra.mxu0 %v1350
        %v2825 = vpop.f32.mrf.mxu0
        %v2826 = vadd.f32 %v2665, %v2825
        %v2827 = vpop.f32.mrf.mxu0
        %v2828 = vpop.f32.mrf.mxu0
        %v2829 = vadd.f32 %v2668, %v2828
        %v2830 = vpop.f32.mrf.mxu0
        %2831 = vmatprep.mubr.bf16.mxu0 %v1440
        %2832 = vmatmul.mubr.bf16.gmra.mxu0 %v1352
        %v2833 = vpop.f32.mrf.mxu0
        %v2834 = vadd.f32 %v2673, %v2833
        %v2835 = vpop.f32.mrf.mxu0
        %v2836 = vpop.f32.mrf.mxu0
        %v2837 = vadd.f32 %v2676, %v2836
        %v2838 = vpop.f32.mrf.mxu0
        %2839 = vmatprep.mubr.bf16.mxu0 %v1452
        %2840 = vmatmul.mubr.bf16.gmra.mxu0 %v1354
        %v2841 = vpop.f32.mrf.mxu0
        %v2842 = vadd.f32 %v2681, %v2841
        %v2843 = vpop.f32.mrf.mxu0
        %v2844 = vpop.f32.mrf.mxu0
        %v2845 = vadd.f32 %v2684, %v2844
        %v2846 = vpop.f32.mrf.mxu0
        %2847 = vmatprep.mubr.bf16.mxu0 %v1464
        %2848 = vmatmul.mubr.bf16.gmra.mxu0 %v1356
        %v2849 = vpop.f32.mrf.mxu0
        %v2850 = vadd.f32 %v2689, %v2849
        %v2851 = vpop.f32.mrf.mxu0
        %v2852 = vpop.f32.mrf.mxu0
        %v2853 = vadd.f32 %v2692, %v2852
        %v2854 = vpop.f32.mrf.mxu0
        %2855 = vmatprep.mubr.bf16.mxu0 %v1476
        %2856 = vmatmul.mubr.bf16.gmra.mxu0 %v1358
        %v2857 = vpop.f32.mrf.mxu0
        %v2858 = vadd.f32 %v2697, %v2857
        %v2859 = vpop.f32.mrf.mxu0
        %v2860 = vpop.f32.mrf.mxu0
        %v2861 = vadd.f32 %v2700, %v2860
        %v2862 = vpop.f32.mrf.mxu0
        %2863 = vmatprep.mubr.bf16.mxu0 %v1488
        %2864 = vmatmul.mubr.bf16.gmra.mxu0 %v1360
        %v2865 = vpop.f32.mrf.mxu0
        %v2866 = vadd.f32 %v2705, %v2865
        %v2867 = vpop.f32.mrf.mxu0
        %v2868 = vpop.f32.mrf.mxu0
        %v2869 = vadd.f32 %v2708, %v2868
        %v2870 = vpop.f32.mrf.mxu0
        %2871 = vmatprep.mubr.bf16.mxu0 %v1500
        %2872 = vmatmul.mubr.bf16.gmra.mxu0 %v1362
        %v2873 = vpop.f32.mrf.mxu0
        %v2874 = vadd.f32 %v2713, %v2873
        %v2875 = vpop.f32.mrf.mxu0
        %v2876 = vpop.f32.mrf.mxu0
        %v2877 = vadd.f32 %v2716, %v2876
        %v2878 = vpop.f32.mrf.mxu0
        %2879 = vmatprep.mubr.bf16.mxu0 %v1512
        %2880 = vmatmul.mubr.bf16.gmra.mxu0 %v1364
        %v2881 = vpop.f32.mrf.mxu0
        %v2882 = vadd.f32 %v2721, %v2881
        %v2883 = vpop.f32.mrf.mxu0
        %v2884 = vpop.f32.mrf.mxu0
        %v2885 = vadd.f32 %v2724, %v2884
        %v2886 = vpop.f32.mrf.mxu0
        %2887 = vmatprep.mubr.bf16.mxu0 %v1524
        %2888 = vmatmul.mubr.bf16.gmra.mxu0 %v1366
        %v2889 = vpop.f32.mrf.mxu0
        %v2890 = vadd.f32 %v2729, %v2889
        %v2891 = vpop.f32.mrf.mxu0
        %v2892 = vpop.f32.mrf.mxu0
        %v2893 = vadd.f32 %v2732, %v2892
        %v2894 = vpop.f32.mrf.mxu0
        %2895 = vmatprep.mubr.bf16.mxu0 %v1536
        %2896 = vmatmul.mubr.bf16.gmra.mxu0 %v1368
        %v2897 = vpop.f32.mrf.mxu0
        %v2898 = vadd.f32 %v2737, %v2897
        %v2899 = vpop.f32.mrf.mxu0
        %v2900 = vpop.f32.mrf.mxu0
        %v2901 = vadd.f32 %v2740, %v2900
        %v2902 = vpop.f32.mrf.mxu0
        %2903 = vmatprep.mubr.bf16.mxu0 %v1548
        %2904 = vmatmul.mubr.bf16.gmra.mxu0 %v1370
        %v2905 = vpop.f32.mrf.mxu0
        %v2906 = vadd.f32 %v2745, %v2905
        %v2907 = vpop.f32.mrf.mxu0
        %v2908 = vpop.f32.mrf.mxu0
        %v2909 = vadd.f32 %v2748, %v2908
        %v2910 = vpop.f32.mrf.mxu0
        %2911 = vmatprep.mubr.bf16.mxu0 %v1560
        %2912 = vmatmul.mubr.bf16.gmra.mxu0 %v1372
        %v2913 = vpop.f32.mrf.mxu0
        %v2914 = vadd.f32 %v2753, %v2913
        %v2915 = vpop.f32.mrf.mxu0
        %v2916 = vpop.f32.mrf.mxu0
        %v2917 = vadd.f32 %v2756, %v2916
        %v2918 = vpop.f32.mrf.mxu0
        %2919 = vmatprep.mubr.bf16.mxu0 %v1572
        %2920 = vmatmul.mubr.bf16.gmra.mxu0 %v1374
        %v2921 = vpop.f32.mrf.mxu0
        %v2922 = vadd.f32 %v2761, %v2921
        %v2923 = vpop.f32.mrf.mxu0
        %v2924 = vpop.f32.mrf.mxu0
        %v2925 = vadd.f32 %v2764, %v2924
        %v2926 = vpop.f32.mrf.mxu0
        %2927 = vmatprep.mubr.bf16.mxu0 %v1697
        %2928 = vmatmul.mubr.bf16.gmra.mxu0 %v1376
        %v2929 = vpop.f32.mrf.mxu0
        %v2930 = vadd.f32 %v2769, %v2929
        %v2931 = vpop.f32.mrf.mxu0
        %v2932 = vpop.f32.mrf.mxu0
        %v2933 = vadd.f32 %v2772, %v2932
        %v2934 = vpop.f32.mrf.mxu0
        %2935 = vmatprep.mubr.bf16.mxu0 %v1716
        %2936 = vmatmul.mubr.bf16.gmra.mxu0 %v1378
        %v2937 = vpop.f32.mrf.mxu0
        %v2938 = vadd.f32 %v2777, %v2937
        %v2939 = vpop.f32.mrf.mxu0
        %v2940 = vpop.f32.mrf.mxu0
        %v2941 = vadd.f32 %v2780, %v2940
        %v2942 = vpop.f32.mrf.mxu0
        %2943 = vdwg.mxu0
        %2944 = vmatprep.subr.bf16.mxu0 0
        %2945 = vmatpush1.bf16.msra.mxu0 %v2227
        %2946 = vmatprep.subr.bf16.mxu0 0
        %2947 = vmatpush1.bf16.msra.mxu0 %v2226
        %2948 = vmatprep.subr.bf16.mxu0 0
        %2949 = vmatpush1.bf16.msra.mxu0 %v2225
        %2950 = vmatprep.subr.bf16.mxu0 0
        %2951 = vmatpush1.bf16.msra.mxu0 %v2224
        %2952 = vmatprep.subr.bf16.mxu0 0
        %2953 = vmatpush1.bf16.msra.mxu0 %v2223
        %2954 = vmatprep.subr.bf16.mxu0 0
        %2955 = vmatpush1.bf16.msra.mxu0 %v2222
        %2956 = vmatprep.subr.bf16.mxu0 0
        %2957 = vmatpush1.bf16.msra.mxu0 %v2221
        %2958 = vmatprep.subr.bf16.mxu0 0
        %2959 = vmatpush1.bf16.msra.mxu0 %v2220
        %2960 = vmatprep.subr.bf16.mxu0 0
        %2961 = vmatpush2.bf16.msra.mxu0 0
        %2962 = vmatprep.subr.bf16.mxu0 0
        %2963 = vmatpush2.bf16.msra.mxu0 0
        %2964 = vmatprep.subr.bf16.mxu0 0
        %2965 = vmatpush2.bf16.msra.mxu0 0
        %2966 = vmatprep.subr.bf16.mxu0 0
        %2967 = vmatpush2.bf16.msra.mxu0 0
        %2968 = vmatprep.subr.bf16.mxu0 0
        %2969 = vmatpush2.bf16.msra.mxu0 0
        %2970 = vmatprep.subr.bf16.mxu0 0
        %2971 = vmatpush2.bf16.msra.mxu0 0
        %2972 = vmatprep.subr.bf16.mxu0 0
        %2973 = vmatpush2.bf16.msra.mxu0 0
        %2974 = vmatprep.subr.bf16.mxu0 0
        %2975 = vmatpush2.bf16.msra.mxu0 0
        %2976 = vmatprep.mubr.bf16.mxu0 0
        %2977 = vmatmul.mubr.bf16.gmra.mxu0 %v1630
        %v2978 = vpop.f32.mrf.mxu0
        %v2979 = vadd.f32 %v2818, %v2978
        %v2980 = vpop.f32.mrf.mxu0
        %v2981 = vpop.f32.mrf.mxu0
        %v2982 = vadd.f32 %v2821, %v2981
        %v2983 = vpop.f32.mrf.mxu0
        %2984 = vmatprep.mubr.bf16.mxu0 0
        %2985 = vmatmul.mubr.bf16.gmra.mxu0 %v1633
        %v2986 = vpop.f32.mrf.mxu0
        %v2987 = vadd.f32 %v2826, %v2986
        %v2988 = vpop.f32.mrf.mxu0
        %v2989 = vpop.f32.mrf.mxu0
        %v2990 = vadd.f32 %v2829, %v2989
        %v2991 = vpop.f32.mrf.mxu0
        %2992 = vmatprep.mubr.bf16.mxu0 0
        %2993 = vmatmul.mubr.bf16.gmra.mxu0 %v1636
        %v2994 = vpop.f32.mrf.mxu0
        %v2995 = vadd.f32 %v2834, %v2994
        %v2996 = vpop.f32.mrf.mxu0
        %v2997 = vpop.f32.mrf.mxu0
        %v2998 = vadd.f32 %v2837, %v2997
        %v2999 = vpop.f32.mrf.mxu0
        %3000 = vmatprep.mubr.bf16.mxu0 0
        %3001 = vmatmul.mubr.bf16.gmra.mxu0 %v1639
        %v3002 = vpop.f32.mrf.mxu0
        %v3003 = vadd.f32 %v2842, %v3002
        %v3004 = vpop.f32.mrf.mxu0
        %v3005 = vpop.f32.mrf.mxu0
        %v3006 = vadd.f32 %v2845, %v3005
        %v3007 = vpop.f32.mrf.mxu0
        %3008 = vmatprep.mubr.bf16.mxu0 0
        %3009 = vmatmul.mubr.bf16.gmra.mxu0 %v1642
        %v3010 = vpop.f32.mrf.mxu0
        %v3011 = vadd.f32 %v2850, %v3010
        %v3012 = vpop.f32.mrf.mxu0
        %v3013 = vpop.f32.mrf.mxu0
        %v3014 = vadd.f32 %v2853, %v3013
        %v3015 = vpop.f32.mrf.mxu0
        %3016 = vmatprep.mubr.bf16.mxu0 0
        %3017 = vmatmul.mubr.bf16.gmra.mxu0 %v1645
        %v3018 = vpop.f32.mrf.mxu0
        %v3019 = vadd.f32 %v2858, %v3018
        %v3020 = vpop.f32.mrf.mxu0
        %v3021 = vpop.f32.mrf.mxu0
        %v3022 = vadd.f32 %v2861, %v3021
        %v3023 = vpop.f32.mrf.mxu0
        %3024 = vmatprep.mubr.bf16.mxu0 0
        %3025 = vmatmul.mubr.bf16.gmra.mxu0 %v1648
        %v3026 = vpop.f32.mrf.mxu0
        %v3027 = vadd.f32 %v2866, %v3026
        %v3028 = vpop.f32.mrf.mxu0
        %v3029 = vpop.f32.mrf.mxu0
        %v3030 = vadd.f32 %v2869, %v3029
        %v3031 = vpop.f32.mrf.mxu0
        %3032 = vmatprep.mubr.bf16.mxu0 0
        %3033 = vmatmul.mubr.bf16.gmra.mxu0 %v1651
        %v3034 = vpop.f32.mrf.mxu0
        %v3035 = vadd.f32 %v2874, %v3034
        %v3036 = vpop.f32.mrf.mxu0
        %v3037 = vpop.f32.mrf.mxu0
        %v3038 = vadd.f32 %v2877, %v3037
        %v3039 = vpop.f32.mrf.mxu0
        %3040 = vmatprep.mubr.bf16.mxu0 0
        %3041 = vmatmul.mubr.bf16.gmra.mxu0 %v1654
        %v3042 = vpop.f32.mrf.mxu0
        %v3043 = vadd.f32 %v2882, %v3042
        %v3044 = vpop.f32.mrf.mxu0
        %v3045 = vpop.f32.mrf.mxu0
        %v3046 = vadd.f32 %v2885, %v3045
        %v3047 = vpop.f32.mrf.mxu0
        %3048 = vmatprep.mubr.bf16.mxu0 0
        %3049 = vmatmul.mubr.bf16.gmra.mxu0 %v1657
        %v3050 = vpop.f32.mrf.mxu0
        %v3051 = vadd.f32 %v2890, %v3050
        %v3052 = vpop.f32.mrf.mxu0
        %v3053 = vpop.f32.mrf.mxu0
        %v3054 = vadd.f32 %v2893, %v3053
        %v3055 = vpop.f32.mrf.mxu0
        %3056 = vmatprep.mubr.bf16.mxu0 0
        %3057 = vmatmul.mubr.bf16.gmra.mxu0 %v1660
        %v3058 = vpop.f32.mrf.mxu0
        %v3059 = vadd.f32 %v2898, %v3058
        %v3060 = vpop.f32.mrf.mxu0
        %v3061 = vpop.f32.mrf.mxu0
        %v3062 = vadd.f32 %v2901, %v3061
        %v3063 = vpop.f32.mrf.mxu0
        %3064 = vmatprep.mubr.bf16.mxu0 0
        %3065 = vmatmul.mubr.bf16.gmra.mxu0 %v1663
        %v3066 = vpop.f32.mrf.mxu0
        %v3067 = vadd.f32 %v2906, %v3066
        %v3068 = vpop.f32.mrf.mxu0
        %v3069 = vpop.f32.mrf.mxu0
        %v3070 = vadd.f32 %v2909, %v3069
        %v3071 = vpop.f32.mrf.mxu0
        %3072 = vmatprep.mubr.bf16.mxu0 0
        %3073 = vmatmul.mubr.bf16.gmra.mxu0 %v1666
        %v3074 = vpop.f32.mrf.mxu0
        %v3075 = vadd.f32 %v2914, %v3074
        %v3076 = vpop.f32.mrf.mxu0
        %v3077 = vpop.f32.mrf.mxu0
        %v3078 = vadd.f32 %v2917, %v3077
        %v3079 = vpop.f32.mrf.mxu0
        %3080 = vmatprep.mubr.bf16.mxu0 0
        %3081 = vmatmul.mubr.bf16.gmra.mxu0 %v1669
        %v3082 = vpop.f32.mrf.mxu0
        %v3083 = vadd.f32 %v2922, %v3082
        %v3084 = vpop.f32.mrf.mxu0
        %v3085 = vpop.f32.mrf.mxu0
        %v3086 = vadd.f32 %v2925, %v3085
        %v3087 = vpop.f32.mrf.mxu0
        %3088 = vmatprep.mubr.bf16.mxu0 0
        %3089 = vmatmul.mubr.bf16.gmra.mxu0 %v1703
        %v3090 = vpop.f32.mrf.mxu0
        %v3091 = vadd.f32 %v2930, %v3090
        %v3092 = vpop.f32.mrf.mxu0
        %v3093 = vpop.f32.mrf.mxu0
        %v3094 = vadd.f32 %v2933, %v3093
        %v3095 = vpop.f32.mrf.mxu0
        %3096 = vmatprep.mubr.bf16.mxu0 0
        %3097 = vmatmul.mubr.bf16.gmra.mxu0 %v1722
        %v3098 = vpop.f32.mrf.mxu0
        %v3099 = vadd.f32 %v2938, %v3098
        %v3100 = vpop.f32.mrf.mxu0
        %v3101 = vpop.f32.mrf.mxu0
        %v3102 = vadd.f32 %v2941, %v3101
        %v3103 = vpop.f32.mrf.mxu0
        %3104 = vdwg.mxu0
        %v3105 = vld [vmem:[%s7] sm:$0x1]
        %v3107 = vlaneseq
        %v3108 = vshrl.u32 %v3107, 7
        %v3109 = vsub.s32 0, %v3108
        %v3110 = vrot.slane %v3105, %v3109
        %v3112 = vmul.f32 %v2979, %v3110
        %v3113 = vmul.f32 %v2982, %v3110
        %v3114 = vmul.f32 %v2987, %v3110
        %v3115 = vmul.f32 %v2990, %v3110
        %v3116 = vmul.f32 %v2995, %v3110
        %v3117 = vmul.f32 %v2998, %v3110
        %v3118 = vmul.f32 %v3003, %v3110
        %v3119 = vmul.f32 %v3006, %v3110
        %v3120 = vmul.f32 %v3011, %v3110
        %v3121 = vmul.f32 %v3014, %v3110
        %v3122 = vmul.f32 %v3019, %v3110
        %v3123 = vmul.f32 %v3022, %v3110
        %v3124 = vmul.f32 %v3027, %v3110
        %v3125 = vmul.f32 %v3030, %v3110
        %v3126 = vmul.f32 %v3035, %v3110
        %v3127 = vmul.f32 %v3038, %v3110
        %v3128 = vmul.f32 %v3043, %v3110
        %v3129 = vmul.f32 %v3046, %v3110
        %v3130 = vmul.f32 %v3051, %v3110
        %v3131 = vmul.f32 %v3054, %v3110
        %v3132 = vmul.f32 %v3059, %v3110
        %v3133 = vmul.f32 %v3062, %v3110
        %v3134 = vmul.f32 %v3067, %v3110
        %v3135 = vmul.f32 %v3070, %v3110
        %v3136 = vmul.f32 %v3075, %v3110
        %v3137 = vmul.f32 %v3078, %v3110
        %v3138 = vmul.f32 %v3083, %v3110
        %v3139 = vmul.f32 %v3086, %v3110
        %v3140 = vmul.f32 %v3091, %v3110
        %v3141 = vmul.f32 %v3094, %v3110
        %v3142 = vmul.f32 %v3099, %v3110
        %v3143 = vmul.f32 %v3102, %v3110
        %v3144 = vld [vmem:[%s8] sm:$0x1]
        %v3146 = vlaneseq
        %v3147 = vshrl.u32 %v3146, 7
        %v3148 = vsub.s32 0, %v3147
        %v3149 = vrot.slane %v3144, %v3148
        %v3151 = vadd.f32 %v3112, %v3149
        %v3152 = vadd.f32 %v3113, %v3149
        %v3153 = vadd.f32 %v3114, %v3149
        %v3154 = vadd.f32 %v3115, %v3149
        %v3155 = vadd.f32 %v3116, %v3149
        %v3156 = vadd.f32 %v3117, %v3149
        %v3157 = vadd.f32 %v3118, %v3149
        %v3158 = vadd.f32 %v3119, %v3149
        %v3159 = vadd.f32 %v3120, %v3149
        %v3160 = vadd.f32 %v3121, %v3149
        %v3161 = vadd.f32 %v3122, %v3149
        %v3162 = vadd.f32 %v3123, %v3149
        %v3163 = vadd.f32 %v3124, %v3149
        %v3164 = vadd.f32 %v3125, %v3149
        %v3165 = vadd.f32 %v3126, %v3149
        %v3166 = vadd.f32 %v3127, %v3149
        %v3167 = vadd.f32 %v3128, %v3149
        %v3168 = vadd.f32 %v3129, %v3149
        %v3169 = vadd.f32 %v3130, %v3149
        %v3170 = vadd.f32 %v3131, %v3149
        %v3171 = vadd.f32 %v3132, %v3149
        %v3172 = vadd.f32 %v3133, %v3149
        %v3173 = vadd.f32 %v3134, %v3149
        %v3174 = vadd.f32 %v3135, %v3149
        %v3175 = vadd.f32 %v3136, %v3149
        %v3176 = vadd.f32 %v3137, %v3149
        %v3177 = vadd.f32 %v3138, %v3149
        %v3178 = vadd.f32 %v3139, %v3149
        %v3179 = vadd.f32 %v3140, %v3149
        %v3180 = vadd.f32 %v3141, %v3149
        %v3181 = vadd.f32 %v3142, %v3149
        %v3182 = vadd.f32 %v3143, %v3149
        %v3183 = vmax.f32 %v3151, 0.0
        %v3184 = vmax.f32 %v3152, 0.0
        %v3185 = vmax.f32 %v3153, 0.0
        %v3186 = vmax.f32 %v3154, 0.0
        %v3187 = vmax.f32 %v3155, 0.0
        %v3188 = vmax.f32 %v3156, 0.0
        %v3189 = vmax.f32 %v3157, 0.0
        %v3190 = vmax.f32 %v3158, 0.0
        %v3191 = vmax.f32 %v3159, 0.0
        %v3192 = vmax.f32 %v3160, 0.0
        %v3193 = vmax.f32 %v3161, 0.0
        %v3194 = vmax.f32 %v3162, 0.0
        %v3195 = vmax.f32 %v3163, 0.0
        %v3196 = vmax.f32 %v3164, 0.0
        %v3197 = vmax.f32 %v3165, 0.0
        %v3198 = vmax.f32 %v3166, 0.0
        %v3199 = vmax.f32 %v3167, 0.0
        %v3200 = vmax.f32 %v3168, 0.0
        %v3201 = vmax.f32 %v3169, 0.0
        %v3202 = vmax.f32 %v3170, 0.0
        %v3203 = vmax.f32 %v3171, 0.0
        %v3204 = vmax.f32 %v3172, 0.0
        %v3205 = vmax.f32 %v3173, 0.0
        %v3206 = vmax.f32 %v3174, 0.0
        %v3207 = vmax.f32 %v3175, 0.0
        %v3208 = vmax.f32 %v3176, 0.0
        %v3209 = vmax.f32 %v3177, 0.0
        %v3210 = vmax.f32 %v3178, 0.0
        %v3211 = vmax.f32 %v3179, 0.0
        %v3212 = vmax.f32 %v3180, 0.0
        %v3213 = vmax.f32 %v3181, 0.0
        %v3214 = vmax.f32 %v3182, 0.0
        %v3215 = vpack.c.bf16 %v3184, %v3183
        %v3216 = vpack.c.bf16 %v3186, %v3185
        %v3217 = vpack.c.bf16 %v3188, %v3187
        %v3218 = vpack.c.bf16 %v3190, %v3189
        %v3219 = vpack.c.bf16 %v3192, %v3191
        %v3220 = vpack.c.bf16 %v3194, %v3193
        %v3221 = vpack.c.bf16 %v3196, %v3195
        %v3222 = vpack.c.bf16 %v3198, %v3197
        %v3223 = vpack.c.bf16 %v3200, %v3199
        %v3224 = vpack.c.bf16 %v3202, %v3201
        %v3225 = vpack.c.bf16 %v3204, %v3203
        %v3226 = vpack.c.bf16 %v3206, %v3205
        %v3227 = vpack.c.bf16 %v3208, %v3207
        %v3228 = vpack.c.bf16 %v3210, %v3209
        %v3229 = vpack.c.bf16 %v3212, %v3211
        %v3230 = vpack.c.bf16 %v3214, %v3213
        %v3231 = vld [vmem:[#allocation11] sm:$0xf]
        %v3232 = vld [vmem:[#allocation11 + $0x4] sm:$0xf]
        %v3233 = vld [vmem:[#allocation11 + $0x8] sm:$0xf]
        %v3234 = vld [vmem:[#allocation11 + $0xc] sm:$0xf]
        %v3235 = vld [vmem:[#allocation11 + $0x10] sm:$0xf]
        %v3236 = vld [vmem:[#allocation11 + $0x14] sm:$0xf]
        %v3237 = vld [vmem:[#allocation11 + $0x18] sm:$0xf]
        %v3238 = vld [vmem:[#allocation11 + $0x1c] sm:$0xf]
        %v3239 = vld [vmem:[#allocation11 + $0x20] sm:$0xf]
        %v3240 = vld [vmem:[#allocation11 + $0x24] sm:$0xf]
        %v3241 = vld [vmem:[#allocation11 + $0x28] sm:$0xf]
        %v3242 = vld [vmem:[#allocation11 + $0x2c] sm:$0xf]
        %v3243 = vld [vmem:[#allocation11 + $0x30] sm:$0xf]
        %v3244 = vld [vmem:[#allocation11 + $0x34] sm:$0xf]
        %v3245 = vld [vmem:[#allocation11 + $0x38] sm:$0xf]
        %v3246 = vld [vmem:[#allocation11 + $0x3c] sm:$0xf]
        %v3263 = vunpack.c.l.b16 %v3231
        %v3264 = vunpack.c.l.b16 %v3232
        %v3265 = vunpack.c.l.b16 %v3233
        %v3266 = vunpack.c.l.b16 %v3234
        %v3267 = vunpack.c.l.b16 %v3235
        %v3268 = vunpack.c.l.b16 %v3236
        %v3269 = vunpack.c.l.b16 %v3237
        %v3270 = vunpack.c.l.b16 %v3238
        %v3271 = vunpack.c.l.b16 %v3239
        %v3272 = vunpack.c.l.b16 %v3240
        %v3273 = vunpack.c.l.b16 %v3241
        %v3274 = vunpack.c.l.b16 %v3242
        %v3275 = vunpack.c.l.b16 %v3243
        %v3276 = vunpack.c.l.b16 %v3244
        %v3277 = vunpack.c.l.b16 %v3245
        %v3278 = vunpack.c.l.b16 %v3246
        %v3279 = vpack.c.b16 %v3264, %v3263
        %v3280 = vpack.c.b16 %v3266, %v3265
        %v3281 = vpack.c.b16 %v3268, %v3267
        %v3282 = vpack.c.b16 %v3270, %v3269
        %v3283 = vpack.c.b16 %v3272, %v3271
        %v3284 = vpack.c.b16 %v3274, %v3273
        %v3285 = vpack.c.b16 %v3276, %v3275
        %v3286 = vpack.c.b16 %v3278, %v3277
        %3295 = vmatprep.subr.bf16.mxu0 0
        %3296 = vmatpush1.bf16.msra.mxu0 %v3286
        %3297 = vmatprep.subr.bf16.mxu0 0
        %3298 = vmatpush1.bf16.msra.mxu0 %v3285
        %3299 = vmatprep.subr.bf16.mxu0 0
        %3300 = vmatpush1.bf16.msra.mxu0 %v3284
        %3301 = vmatprep.subr.bf16.mxu0 0
        %3302 = vmatpush1.bf16.msra.mxu0 %v3283
        %3303 = vmatprep.subr.bf16.mxu0 0
        %3304 = vmatpush1.bf16.msra.mxu0 %v3282
        %3305 = vmatprep.subr.bf16.mxu0 0
        %3306 = vmatpush1.bf16.msra.mxu0 %v3281
        %3307 = vmatprep.subr.bf16.mxu0 0
        %3308 = vmatpush1.bf16.msra.mxu0 %v3280
        %3309 = vmatprep.subr.bf16.mxu0 0
        %3310 = vmatpush1.bf16.msra.mxu0 %v3279
        %3311 = vmatprep.subr.bf16.mxu0 0
        %3312 = vmatpush2.bf16.msra.mxu0 0
        %3313 = vmatprep.subr.bf16.mxu0 0
        %3314 = vmatpush2.bf16.msra.mxu0 0
        %3315 = vmatprep.subr.bf16.mxu0 0
        %3316 = vmatpush2.bf16.msra.mxu0 0
        %3317 = vmatprep.subr.bf16.mxu0 0
        %3318 = vmatpush2.bf16.msra.mxu0 0
        %3319 = vmatprep.subr.bf16.mxu0 0
        %3320 = vmatpush2.bf16.msra.mxu0 0
        %3321 = vmatprep.subr.bf16.mxu0 0
        %3322 = vmatpush2.bf16.msra.mxu0 0
        %3323 = vmatprep.subr.bf16.mxu0 0
        %3324 = vmatpush2.bf16.msra.mxu0 0
        %3325 = vmatprep.subr.bf16.mxu0 0
        %3326 = vmatpush2.bf16.msra.mxu0 0
        %3327 = vmatprep.mubr.bf16.mxu0 0
        %3328 = vmatmul.mubr.bf16.gmra.mxu0 %v3215
        %v3329 = vpop.f32.mrf.mxu0
        %v3330 = vadd.f32 0.0, %v3329
        %v3331 = vpop.f32.mrf.mxu0
        %v3332 = vpop.f32.mrf.mxu0
        %v3333 = vadd.f32 0.0, %v3332
        %v3334 = vpop.f32.mrf.mxu0
        %3335 = vmatprep.mubr.bf16.mxu0 0
        %3336 = vmatmul.mubr.bf16.gmra.mxu0 %v3216
        %v3337 = vpop.f32.mrf.mxu0
        %v3338 = vadd.f32 0.0, %v3337
        %v3339 = vpop.f32.mrf.mxu0
        %v3340 = vpop.f32.mrf.mxu0
        %v3341 = vadd.f32 0.0, %v3340
        %v3342 = vpop.f32.mrf.mxu0
        %3343 = vmatprep.mubr.bf16.mxu0 0
        %3344 = vmatmul.mubr.bf16.gmra.mxu0 %v3217
        %v3345 = vpop.f32.mrf.mxu0
        %v3346 = vadd.f32 0.0, %v3345
        %v3347 = vpop.f32.mrf.mxu0
        %v3348 = vpop.f32.mrf.mxu0
        %v3349 = vadd.f32 0.0, %v3348
        %v3350 = vpop.f32.mrf.mxu0
        %3351 = vmatprep.mubr.bf16.mxu0 0
        %3352 = vmatmul.mubr.bf16.gmra.mxu0 %v3218
        %v3353 = vpop.f32.mrf.mxu0
        %v3354 = vadd.f32 0.0, %v3353
        %v3355 = vpop.f32.mrf.mxu0
        %v3356 = vpop.f32.mrf.mxu0
        %v3357 = vadd.f32 0.0, %v3356
        %v3358 = vpop.f32.mrf.mxu0
        %3359 = vmatprep.mubr.bf16.mxu0 0
        %3360 = vmatmul.mubr.bf16.gmra.mxu0 %v3219
        %v3361 = vpop.f32.mrf.mxu0
        %v3362 = vadd.f32 0.0, %v3361
        %v3363 = vpop.f32.mrf.mxu0
        %v3364 = vpop.f32.mrf.mxu0
        %v3365 = vadd.f32 0.0, %v3364
        %v3366 = vpop.f32.mrf.mxu0
        %3367 = vmatprep.mubr.bf16.mxu0 0
        %3368 = vmatmul.mubr.bf16.gmra.mxu0 %v3220
        %v3369 = vpop.f32.mrf.mxu0
        %v3370 = vadd.f32 0.0, %v3369
        %v3371 = vpop.f32.mrf.mxu0
        %v3372 = vpop.f32.mrf.mxu0
        %v3373 = vadd.f32 0.0, %v3372
        %v3374 = vpop.f32.mrf.mxu0
        %3375 = vmatprep.mubr.bf16.mxu0 0
        %3376 = vmatmul.mubr.bf16.gmra.mxu0 %v3221
        %v3377 = vpop.f32.mrf.mxu0
        %v3378 = vadd.f32 0.0, %v3377
        %v3379 = vpop.f32.mrf.mxu0
        %v3380 = vpop.f32.mrf.mxu0
        %v3381 = vadd.f32 0.0, %v3380
        %v3382 = vpop.f32.mrf.mxu0
        %3383 = vmatprep.mubr.bf16.mxu0 0
        %3384 = vmatmul.mubr.bf16.gmra.mxu0 %v3222
        %v3385 = vpop.f32.mrf.mxu0
        %v3386 = vadd.f32 0.0, %v3385
        %v3387 = vpop.f32.mrf.mxu0
        %v3388 = vpop.f32.mrf.mxu0
        %v3389 = vadd.f32 0.0, %v3388
        %v3390 = vpop.f32.mrf.mxu0
        %3391 = vmatprep.mubr.bf16.mxu0 0
        %3392 = vmatmul.mubr.bf16.gmra.mxu0 %v3223
        %v3393 = vpop.f32.mrf.mxu0
        %v3394 = vadd.f32 0.0, %v3393
        %v3395 = vpop.f32.mrf.mxu0
        %v3396 = vpop.f32.mrf.mxu0
        %v3397 = vadd.f32 0.0, %v3396
        %v3398 = vpop.f32.mrf.mxu0
        %3399 = vmatprep.mubr.bf16.mxu0 0
        %3400 = vmatmul.mubr.bf16.gmra.mxu0 %v3224
        %v3401 = vpop.f32.mrf.mxu0
        %v3402 = vadd.f32 0.0, %v3401
        %v3403 = vpop.f32.mrf.mxu0
        %v3404 = vpop.f32.mrf.mxu0
        %v3405 = vadd.f32 0.0, %v3404
        %v3406 = vpop.f32.mrf.mxu0
        %3407 = vmatprep.mubr.bf16.mxu0 0
        %3408 = vmatmul.mubr.bf16.gmra.mxu0 %v3225
        %v3409 = vpop.f32.mrf.mxu0
        %v3410 = vadd.f32 0.0, %v3409
        %v3411 = vpop.f32.mrf.mxu0
        %v3412 = vpop.f32.mrf.mxu0
        %v3413 = vadd.f32 0.0, %v3412
        %v3414 = vpop.f32.mrf.mxu0
        %3415 = vmatprep.mubr.bf16.mxu0 0
        %3416 = vmatmul.mubr.bf16.gmra.mxu0 %v3226
        %v3417 = vpop.f32.mrf.mxu0
        %v3418 = vadd.f32 0.0, %v3417
        %v3419 = vpop.f32.mrf.mxu0
        %v3420 = vpop.f32.mrf.mxu0
        %v3421 = vadd.f32 0.0, %v3420
        %v3422 = vpop.f32.mrf.mxu0
        %3423 = vmatprep.mubr.bf16.mxu0 0
        %3424 = vmatmul.mubr.bf16.gmra.mxu0 %v3227
        %v3425 = vpop.f32.mrf.mxu0
        %v3426 = vadd.f32 0.0, %v3425
        %v3427 = vpop.f32.mrf.mxu0
        %v3428 = vpop.f32.mrf.mxu0
        %v3429 = vadd.f32 0.0, %v3428
        %v3430 = vpop.f32.mrf.mxu0
        %3431 = vmatprep.mubr.bf16.mxu0 0
        %3432 = vmatmul.mubr.bf16.gmra.mxu0 %v3228
        %v3433 = vpop.f32.mrf.mxu0
        %v3434 = vadd.f32 0.0, %v3433
        %v3435 = vpop.f32.mrf.mxu0
        %v3436 = vpop.f32.mrf.mxu0
        %v3437 = vadd.f32 0.0, %v3436
        %v3438 = vpop.f32.mrf.mxu0
        %3439 = vmatprep.mubr.bf16.mxu0 0
        %3440 = vmatmul.mubr.bf16.gmra.mxu0 %v3229
        %v3441 = vpop.f32.mrf.mxu0
        %v3442 = vadd.f32 0.0, %v3441
        %v3443 = vpop.f32.mrf.mxu0
        %v3444 = vpop.f32.mrf.mxu0
        %v3445 = vadd.f32 0.0, %v3444
        %v3446 = vpop.f32.mrf.mxu0
        %3447 = vmatprep.mubr.bf16.mxu0 0
        %3448 = vmatmul.mubr.bf16.gmra.mxu0 %v3230
        %v3449 = vpop.f32.mrf.mxu0
        %v3450 = vadd.f32 0.0, %v3449
        %v3451 = vpop.f32.mrf.mxu0
        %v3452 = vpop.f32.mrf.mxu0
        %v3453 = vadd.f32 0.0, %v3452
        %v3454 = vpop.f32.mrf.mxu0
        %3455 = vdwg.mxu0
        %v3456 = vld [vmem:[%s10] sm:$0x1]
        %v3458 = vlaneseq
        %v3459 = vshrl.u32 %v3458, 7
        %v3460 = vsub.s32 0, %v3459
        %v3461 = vrot.slane %v3456, %v3460
        %v3463 = vmul.f32 %v3330, %v3461
        %v3464 = vmul.f32 %v3333, %v3461
        %v3465 = vmul.f32 %v3338, %v3461
        %v3466 = vmul.f32 %v3341, %v3461
        %v3467 = vmul.f32 %v3346, %v3461
        %v3468 = vmul.f32 %v3349, %v3461
        %v3469 = vmul.f32 %v3354, %v3461
        %v3470 = vmul.f32 %v3357, %v3461
        %v3471 = vmul.f32 %v3362, %v3461
        %v3472 = vmul.f32 %v3365, %v3461
        %v3473 = vmul.f32 %v3370, %v3461
        %v3474 = vmul.f32 %v3373, %v3461
        %v3475 = vmul.f32 %v3378, %v3461
        %v3476 = vmul.f32 %v3381, %v3461
        %v3477 = vmul.f32 %v3386, %v3461
        %v3478 = vmul.f32 %v3389, %v3461
        %v3479 = vmul.f32 %v3394, %v3461
        %v3480 = vmul.f32 %v3397, %v3461
        %v3481 = vmul.f32 %v3402, %v3461
        %v3482 = vmul.f32 %v3405, %v3461
        %v3483 = vmul.f32 %v3410, %v3461
        %v3484 = vmul.f32 %v3413, %v3461
        %v3485 = vmul.f32 %v3418, %v3461
        %v3486 = vmul.f32 %v3421, %v3461
        %v3487 = vmul.f32 %v3426, %v3461
        %v3488 = vmul.f32 %v3429, %v3461
        %v3489 = vmul.f32 %v3434, %v3461
        %v3490 = vmul.f32 %v3437, %v3461
        %v3491 = vmul.f32 %v3442, %v3461
        %v3492 = vmul.f32 %v3445, %v3461
        %v3493 = vmul.f32 %v3450, %v3461
        %v3494 = vmul.f32 %v3453, %v3461
        %v3495 = vld [vmem:[%s11] sm:$0x1]
        %v3497 = vlaneseq
        %v3498 = vshrl.u32 %v3497, 7
        %v3499 = vsub.s32 0, %v3498
        %v3500 = vrot.slane %v3495, %v3499
        %v3502 = vadd.f32 %v3463, %v3500
        %v3503 = vadd.f32 %v3464, %v3500
        %v3504 = vadd.f32 %v3465, %v3500
        %v3505 = vadd.f32 %v3466, %v3500
        %v3506 = vadd.f32 %v3467, %v3500
        %v3507 = vadd.f32 %v3468, %v3500
        %v3508 = vadd.f32 %v3469, %v3500
        %v3509 = vadd.f32 %v3470, %v3500
        %v3510 = vadd.f32 %v3471, %v3500
        %v3511 = vadd.f32 %v3472, %v3500
        %v3512 = vadd.f32 %v3473, %v3500
        %v3513 = vadd.f32 %v3474, %v3500
        %v3514 = vadd.f32 %v3475, %v3500
        %v3515 = vadd.f32 %v3476, %v3500
        %v3516 = vadd.f32 %v3477, %v3500
        %v3517 = vadd.f32 %v3478, %v3500
        %v3518 = vadd.f32 %v3479, %v3500
        %v3519 = vadd.f32 %v3480, %v3500
        %v3520 = vadd.f32 %v3481, %v3500
        %v3521 = vadd.f32 %v3482, %v3500
        %v3522 = vadd.f32 %v3483, %v3500
        %v3523 = vadd.f32 %v3484, %v3500
        %v3524 = vadd.f32 %v3485, %v3500
        %v3525 = vadd.f32 %v3486, %v3500
        %v3526 = vadd.f32 %v3487, %v3500
        %v3527 = vadd.f32 %v3488, %v3500
        %v3528 = vadd.f32 %v3489, %v3500
        %v3529 = vadd.f32 %v3490, %v3500
        %v3530 = vadd.f32 %v3491, %v3500
        %v3531 = vadd.f32 %v3492, %v3500
        %v3532 = vadd.f32 %v3493, %v3500
        %v3533 = vadd.f32 %v3494, %v3500
        %v3534 = vld [vmem:[%s468] sm:$0xf]
        %v3535 = vld [vmem:[%s468 + $0x4] sm:$0xf]
        %v3536 = vld [vmem:[%s468 + $0x8] sm:$0xf]
        %v3537 = vld [vmem:[%s468 + $0xc] sm:$0xf]
        %v3538 = vld [vmem:[%s468 + $0x10] sm:$0xf]
        %v3539 = vld [vmem:[%s468 + $0x14] sm:$0xf]
        %v3540 = vld [vmem:[%s468 + $0x18] sm:$0xf]
        %v3541 = vld [vmem:[%s468 + $0x1c] sm:$0xf]
        %v3542 = vld [vmem:[%s468 + $0x20] sm:$0xf]
        %v3543 = vld [vmem:[%s468 + $0x24] sm:$0xf]
        %v3544 = vld [vmem:[%s468 + $0x28] sm:$0xf]
        %v3545 = vld [vmem:[%s468 + $0x2c] sm:$0xf]
        %v3546 = vld [vmem:[%s468 + $0x30] sm:$0xf]
        %v3547 = vld [vmem:[%s468 + $0x34] sm:$0xf]
        %v3548 = vld [vmem:[%s468 + $0x38] sm:$0xf]
        %v3549 = vld [vmem:[%s468 + $0x3c] sm:$0xf]
        %v3550 = vld [vmem:[%s468 + $0x40] sm:$0xf]
        %v3551 = vld [vmem:[%s468 + $0x44] sm:$0xf]
        %v3552 = vld [vmem:[%s468 + $0x48] sm:$0xf]
        %v3553 = vld [vmem:[%s468 + $0x4c] sm:$0xf]
        %v3554 = vld [vmem:[%s468 + $0x50] sm:$0xf]
        %v3555 = vld [vmem:[%s468 + $0x54] sm:$0xf]
        %v3556 = vld [vmem:[%s468 + $0x58] sm:$0xf]
        %v3557 = vld [vmem:[%s468 + $0x5c] sm:$0xf]
        %v3558 = vld [vmem:[%s468 + $0x60] sm:$0xf]
        %v3559 = vld [vmem:[%s468 + $0x64] sm:$0xf]
        %v3560 = vld [vmem:[%s468 + $0x68] sm:$0xf]
        %v3561 = vld [vmem:[%s468 + $0x6c] sm:$0xf]
        %v3562 = vld [vmem:[%s468 + $0x70] sm:$0xf]
        %v3563 = vld [vmem:[%s468 + $0x74] sm:$0xf]
        %v3564 = vld [vmem:[%s468 + $0x78] sm:$0xf]
        %v3565 = vld [vmem:[%s468 + $0x7c] sm:$0xf]
        %v3566 = vunpack.c.l.bf16 %v3534
        %v3567 = vunpack.c.l.bf16 %v3535
        %v3568 = vunpack.c.l.bf16 %v3536
        %v3569 = vunpack.c.l.bf16 %v3537
        %v3570 = vunpack.c.l.bf16 %v3538
        %v3571 = vunpack.c.l.bf16 %v3539
        %v3572 = vunpack.c.l.bf16 %v3540
        %v3573 = vunpack.c.l.bf16 %v3541
        %v3574 = vunpack.c.l.bf16 %v3542
        %v3575 = vunpack.c.l.bf16 %v3543
        %v3576 = vunpack.c.l.bf16 %v3544
        %v3577 = vunpack.c.l.bf16 %v3545
        %v3578 = vunpack.c.l.bf16 %v3546
        %v3579 = vunpack.c.l.bf16 %v3547
        %v3580 = vunpack.c.l.bf16 %v3548
        %v3581 = vunpack.c.l.bf16 %v3549
        %v3582 = vunpack.c.l.bf16 %v3550
        %v3583 = vunpack.c.l.bf16 %v3551
        %v3584 = vunpack.c.l.bf16 %v3552
        %v3585 = vunpack.c.l.bf16 %v3553
        %v3586 = vunpack.c.l.bf16 %v3554
        %v3587 = vunpack.c.l.bf16 %v3555
        %v3588 = vunpack.c.l.bf16 %v3556
        %v3589 = vunpack.c.l.bf16 %v3557
        %v3590 = vunpack.c.l.bf16 %v3558
        %v3591 = vunpack.c.l.bf16 %v3559
        %v3592 = vunpack.c.l.bf16 %v3560
        %v3593 = vunpack.c.l.bf16 %v3561
        %v3594 = vunpack.c.l.bf16 %v3562
        %v3595 = vunpack.c.l.bf16 %v3563
        %v3596 = vunpack.c.l.bf16 %v3564
        %v3597 = vunpack.c.l.bf16 %v3565
        %v3598 = vadd.f32 %v3502, %v3566
        %v3599 = vadd.f32 %v3503, %v3567
        %v3600 = vadd.f32 %v3504, %v3568
        %v3601 = vadd.f32 %v3505, %v3569
        %v3602 = vadd.f32 %v3506, %v3570
        %v3603 = vadd.f32 %v3507, %v3571
        %v3604 = vadd.f32 %v3508, %v3572
        %v3605 = vadd.f32 %v3509, %v3573
        %v3606 = vadd.f32 %v3510, %v3574
        %v3607 = vadd.f32 %v3511, %v3575
        %v3608 = vadd.f32 %v3512, %v3576
        %v3609 = vadd.f32 %v3513, %v3577
        %v3610 = vadd.f32 %v3514, %v3578
        %v3611 = vadd.f32 %v3515, %v3579
        %v3612 = vadd.f32 %v3516, %v3580
        %v3613 = vadd.f32 %v3517, %v3581
        %v3614 = vadd.f32 %v3518, %v3582
        %v3615 = vadd.f32 %v3519, %v3583
        %v3616 = vadd.f32 %v3520, %v3584
        %v3617 = vadd.f32 %v3521, %v3585
        %v3618 = vadd.f32 %v3522, %v3586
        %v3619 = vadd.f32 %v3523, %v3587
        %v3620 = vadd.f32 %v3524, %v3588
        %v3621 = vadd.f32 %v3525, %v3589
        %v3622 = vadd.f32 %v3526, %v3590
        %v3623 = vadd.f32 %v3527, %v3591
        %v3624 = vadd.f32 %v3528, %v3592
        %v3625 = vadd.f32 %v3529, %v3593
        %v3626 = vadd.f32 %v3530, %v3594
        %v3627 = vadd.f32 %v3531, %v3595
        %v3628 = vadd.f32 %v3532, %v3596
        %v3629 = vadd.f32 %v3533, %v3597
        %v3630 = vmax.f32 %v3598, 0.0
        %v3631 = vmax.f32 %v3599, 0.0
        %v3632 = vmax.f32 %v3600, 0.0
        %v3633 = vmax.f32 %v3601, 0.0
        %v3634 = vmax.f32 %v3602, 0.0
        %v3635 = vmax.f32 %v3603, 0.0
        %v3636 = vmax.f32 %v3604, 0.0
        %v3637 = vmax.f32 %v3605, 0.0
        %v3638 = vmax.f32 %v3606, 0.0
        %v3639 = vmax.f32 %v3607, 0.0
        %v3640 = vmax.f32 %v3608, 0.0
        %v3641 = vmax.f32 %v3609, 0.0
        %v3642 = vmax.f32 %v3610, 0.0
        %v3643 = vmax.f32 %v3611, 0.0
        %v3644 = vmax.f32 %v3612, 0.0
        %v3645 = vmax.f32 %v3613, 0.0
        %v3646 = vmax.f32 %v3614, 0.0
        %v3647 = vmax.f32 %v3615, 0.0
        %v3648 = vmax.f32 %v3616, 0.0
        %v3649 = vmax.f32 %v3617, 0.0
        %v3650 = vmax.f32 %v3618, 0.0
        %v3651 = vmax.f32 %v3619, 0.0
        %v3652 = vmax.f32 %v3620, 0.0
        %v3653 = vmax.f32 %v3621, 0.0
        %v3654 = vmax.f32 %v3622, 0.0
        %v3655 = vmax.f32 %v3623, 0.0
        %v3656 = vmax.f32 %v3624, 0.0
        %v3657 = vmax.f32 %v3625, 0.0
        %v3658 = vmax.f32 %v3626, 0.0
        %v3659 = vmax.f32 %v3627, 0.0
        %v3660 = vmax.f32 %v3628, 0.0
        %v3661 = vmax.f32 %v3629, 0.0
        %3662 = vst [vmem:[%s529] sm:$0xff] %v3630
        %3663 = vst [vmem:[%s529 + $0x8] sm:$0xff] %v3631
        %3664 = vst [vmem:[%s529 + $0x10] sm:$0xff] %v3632
        %3665 = vst [vmem:[%s529 + $0x18] sm:$0xff] %v3633
        %3666 = vst [vmem:[%s529 + $0x20] sm:$0xff] %v3634
        %3667 = vst [vmem:[%s529 + $0x28] sm:$0xff] %v3635
        %3668 = vst [vmem:[%s529 + $0x30] sm:$0xff] %v3636
        %3669 = vst [vmem:[%s529 + $0x38] sm:$0xff] %v3637
        %3670 = vst [vmem:[%s529 + $0x40] sm:$0xff] %v3638
        %3671 = vst [vmem:[%s529 + $0x48] sm:$0xff] %v3639
        %3672 = vst [vmem:[%s529 + $0x50] sm:$0xff] %v3640
        %3673 = vst [vmem:[%s529 + $0x58] sm:$0xff] %v3641
        %3674 = vst [vmem:[%s529 + $0x60] sm:$0xff] %v3642
        %3675 = vst [vmem:[%s529 + $0x68] sm:$0xff] %v3643
        %3676 = vst [vmem:[%s529 + $0x70] sm:$0xff] %v3644
        %3677 = vst [vmem:[%s529 + $0x78] sm:$0xff] %v3645
        %3678 = vst [vmem:[%s529 + $0x80] sm:$0xff] %v3646
        %3679 = vst [vmem:[%s529 + $0x88] sm:$0xff] %v3647
        %3680 = vst [vmem:[%s529 + $0x90] sm:$0xff] %v3648
        %3681 = vst [vmem:[%s529 + $0x98] sm:$0xff] %v3649
        %3682 = vst [vmem:[%s529 + $0xa0] sm:$0xff] %v3650
        %3683 = vst [vmem:[%s529 + $0xa8] sm:$0xff] %v3651
        %3684 = vst [vmem:[%s529 + $0xb0] sm:$0xff] %v3652
        %3685 = vst [vmem:[%s529 + $0xb8] sm:$0xff] %v3653
        %3686 = vst [vmem:[%s529 + $0xc0] sm:$0xff] %v3654
        %3687 = vst [vmem:[%s529 + $0xc8] sm:$0xff] %v3655
        %3688 = vst [vmem:[%s529 + $0xd0] sm:$0xff] %v3656
        %3689 = vst [vmem:[%s529 + $0xd8] sm:$0xff] %v3657
        %3690 = vst [vmem:[%s529 + $0xe0] sm:$0xff] %v3658
        %3691 = vst [vmem:[%s529 + $0xe8] sm:$0xff] %v3659
        %3692 = vst [vmem:[%s529 + $0xf0] sm:$0xff] %v3660
        %3693 = vst [vmem:[%s529 + $0xf8] sm:$0xff] %v3661
        %s3694 = sand.u32 %s304, 1
        %s3695 = scalar_lea.sflag [#allocation4], %s3694
        %s3696 = sand.u32 %s304, 1
        %s3697 = smul.addr %s3696, 256
        %s3698 = scalar_lea.vmem [#allocation13], %s3697
        // Predicated region
        $region93: #{tpu_custom_call.1} parent=67 // pred_check
          %p3699 = pneg %p314
        $region94: #{tpu_custom_call.1} parent=67 // pred_check_branch
          %3701 = sbr.rel (%p3699) target = $region96
        $region95: #{tpu_custom_call.1} parent=67 // pred_region
          %s3703 = ssub.s32 4096, 4096
          %3704 = vsyncadd %s3695, %s3703
          %s3705 = smul.addr %s34, 32
          %s3706 = smul.addr %s3705, 128
          %s3707 = scalar_lea.hbm %s12, %s3706
          %s3708 = sshll.u32 %s3698, 4
          %s3709 = int_to_ptr.vmem [resolvable:$true] %s3708
          %3714 = dma.vmem_to_hbm [thread:$0]  %s3709, 4096, %s3707, %s3695, 128, 128, 8
        $region96: #{tpu_custom_call.1} parent=67 // pred_fallthru
          _
      $region68: #{tpu_custom_call.1} parent=5 // pred_fallthru
        _
      %p3715 = scmp.le.s32.totalorder 2, %s29
      // Predicated region
      $region97: #{tpu_custom_call.1} parent=5 // pred_check
        %p3716 = pneg %p3715
      $region98: #{tpu_custom_call.1} parent=5 // pred_check_branch
        %3718 = sbr.rel (%p3716) target = $region100
      $region99: #{tpu_custom_call.1} parent=5 // pred_region
        %s3719 = ssub.s32 %s29, 2
        // Predicated region
        $region101: #{tpu_custom_call.1} parent=99 // pred_check
          %p3720 = pneg %p320
        $region102: #{tpu_custom_call.1} parent=99 // pred_check_branch
          %3722 = sbr.rel (%p3720) target = $region104
        $region103: #{tpu_custom_call.1} parent=99 // pred_region
          %s3723 = sand.u32 %s305, 1
          %s3724 = scalar_lea.sflag [#allocation4], %s3723
          %s3725 = sand.u32 %s305, 1
          %s3726 = smul.addr %s3725, 256
          %s3727 = scalar_lea.vmem [#allocation13], %s3726
          %3728 = dma.done %s3724, 4096
        $region104: #{tpu_custom_call.1} parent=99 // pred_fallthru
          _
      $region100: #{tpu_custom_call.1} parent=5 // pred_fallthru
        _
    $region6: #{tpu_custom_call.1} parent=1 // loop_footer
      %s33 = sadd.s32 1, %s29
    $region7: #{tpu_custom_call.1} parent=1 // loop_footer_branch
      %28 = sbr.rel target = $region3
    $region8: #{tpu_custom_call.1} parent=1 // loop_exit
      _
    %3729 = vsyncpa [#allocation3], 1
    %s3730 = scalar_lea.sflag [#allocation3], 1
    %3731 = vsyncpa %s3730, 1
    %3732 = vsyncpa [#allocation6], 1
    %s3733 = scalar_lea.sflag [#allocation6], 1
    %3734 = vsyncpa %s3733, 1
    %3735 = vsyncpa [#allocation9], 1
    %3736 = vsyncpa [#allocation12], 1
    %3737 = vsyncpa [#allocation4], 1
    %s3738 = scalar_lea.sflag [#allocation4], 1
    %3739 = vsyncpa %s3738, 1

</llo_original>
